<compile_context>
chip_gen: v7x
topology: tpu7x:2x2x1
jax: 0.10.0
libtpu: 0.0.40
codegen_flags: <defaults>
</compile_context>

<pallas_src>
import functools

import jax
import jax.numpy as jnp
from jax import lax
from jax.experimental import pallas as pl
from jax.experimental.pallas import tpu as pltpu


def _round_up(x, m):
    return (x + m - 1) // m * m


def _vmem_estimate(H, W_p, TH, Cin_p, Cw_p):
    """Rough per-step VMEM need (blocks x buffers + weights + kernel temps)."""
    F = (TH + 2) * W_p
    M = TH * W_p
    x_blk = (H + 2) * W_p * Cin_p * 2 * 2            # bf16, double buffered
    out_blk = M * Cin_p * 4 * 2                      # f32, double buffered
    weights = ((Cin_p * Cw_p + 9 * Cw_p * Cw_p + Cw_p * Cin_p) * 2
               + (2 * Cw_p + Cin_p) * 4 + (H + 2) * W_p * 4)
    temps = (F * Cw_p * 4          # h1 f32
             + F * Cw_p * 2        # h1 bf16
             + M * 9 * Cw_p * 2    # im2col slab bf16
             + M * Cw_p * 4 + M * Cw_p * 2   # h2 f32 + bf16
             + M * Cin_p * 4       # h3/out f32
             + F * Cin_p * 4)      # identity f32
    return x_blk + out_blk + weights + temps


def _pick_tile_h(H, W_p, Cin_p, Cw_p, budget=28 << 20):
    """Largest divisor of H whose per-step VMEM estimate fits the budget."""
    best = 1
    for t in range(1, H + 1):
        if H % t == 0 and _vmem_estimate(H, W_p, t, Cin_p, Cw_p) <= budget:
            best = t
    return best


def _bottleneck_kernel(TH, W_p,
                       x_ref, mask_ref, w1_ref, b1_ref, w2_ref, b2_ref,
                       w3_ref, b3_ref, o_ref):
    """One (image n, row-tile h) grid step.

    x_ref   : (1, (H+2)*W_p, Cin_p) bf16 spatially/channel padded, pre-flattened
    mask_ref: ((H+2)*W_p, 1) f32    1.0 at interior pixels, 0.0 at conv2 padding
    w*_ref  : bf16 conv weights with the BN scale folded in
    b*_ref  : (1, C) f32 BN shifts
    o_ref   : (1, TH*W_p, Cin_p) f32
    """
    Cw = w1_ref.shape[1]
    F = (TH + 2) * W_p            # flattened rows of the halo'd window
    M = TH * W_p                  # flattened output rows of this tile

    off = pl.multiple_of(pl.program_id(1) * M, M)   # window start (flattened)

    x_flat = x_ref[0, pl.ds(off, F), :]             # (F, Cin_p) bf16
    m = mask_ref[pl.ds(off, F), :]                  # (F, 1) f32, hoisted mask

    # ---- conv1 (1x1) + bn1 shift + ReLU (BN scale folded into w1) --------
    h1 = jnp.dot(x_flat, w1_ref[...], preferred_element_type=jnp.float32)
    # Zero conv2's zero-padding positions (border halo + width pad) with the
    # precomputed mask, then drop to bf16 so the im2col slab build is bf16.
    h1 = (jnp.maximum(h1 + b1_ref[...], 0.0) * m).astype(jnp.bfloat16)

    # ---- conv2 (3x3, pad=1) as ONE im2col matmul with K = 9*Cw -----------
    # dx = +/-1 shifts along the flattened (row*W_p + col) axis.  Because the
    # image columns are zero-padded on both sides, shifted values that cross
    # a row boundary only ever land in (cropped) pad columns.
    zrow = jnp.zeros((1, Cw), jnp.bfloat16)
    sh = (jnp.concatenate([zrow, h1[:-1, :]], axis=0),   # tap dx = -1
          h1,                                            # tap dx =  0
          jnp.concatenate([h1[1:, :], zrow], axis=0))    # tap dx = +1
    # dy handled by aligned row slices (offsets kh*W_p, and W_p % 8 == 0).
    pieces = [sh[kw][kh * W_p:kh * W_p + M, :]
              for kh in range(3) for kw in range(3)]
    slab = jnp.concatenate(pieces, axis=-1)              # (M, 9*Cw) bf16
    h2 = jnp.dot(slab, w2_ref[...], preferred_element_type=jnp.float32)
    h2 = jnp.maximum(h2 + b2_ref[...], 0.0).astype(jnp.bfloat16)

    # ---- conv3 (1x1) + bn3 shift + residual add + ReLU (f32 epilogue) ----
    h3 = jnp.dot(h2, w3_ref[...], preferred_element_type=jnp.float32)
    identity = x_flat[W_p:W_p + M, :].astype(jnp.float32)
    o_ref[0] = jnp.maximum(h3 + b3_ref[...] + identity, 0.0)


def bottleneck_transposed(x_nchw, params, tile_h=None):
    """x_nchw: (N, Cin, H, W) f32 with Cin == planes * 4 (== inplanes)."""
    N, Cin, H, W = x_nchw.shape
    Cin_p, Cw_p = params["w1"].shape
    W_p = _round_up(W + 2, 8)
    if tile_h is None:
        tile_h = _pick_tile_h(H, W_p, Cin_p, Cw_p)
    assert H % tile_h == 0, (H, tile_h)
    TH = tile_h
    M = TH * W_p

    # NCHW -> NHWC in bf16; pad: 1 halo row top/bottom, 1 halo col left, width
    # out to a sublane multiple, channels out to the 128-lane tile (zeros);
    # then pre-flatten the spatial dims (host reshape is free).
    x = jnp.transpose(x_nchw, (0, 2, 3, 1)).astype(jnp.bfloat16)
    x = jnp.pad(x, ((0, 0), (1, 1), (1, W_p - W - 1), (0, Cin_p - Cin)))
    x = x.reshape(N, (H + 2) * W_p, Cin_p)

    # Hoisted validity mask for conv2's zero padding (interior pixels = 1).
    rows = jnp.arange(H + 2)[:, None]
    cols = jnp.arange(W_p)[None, :]
    mask = ((rows >= 1) & (rows <= H) & (cols >= 1) & (cols <= W))
    mask = mask.astype(jnp.float32).reshape((H + 2) * W_p, 1)

    vmem_bytes = min(64 << 20,
                     2 * _vmem_estimate(H, W_p, TH, Cin_p, Cw_p) + (4 << 20))

    flops = 2 * N * H * W_p * (Cin_p * Cw_p + 9 * Cw_p * Cw_p + Cw_p * Cin_p)
    bytes_accessed = (int(x.size) * 2 + int(mask.size) * 4
                      + N * H * W_p * Cin_p * 4
                      + sum(int(params[k].size) * params[k].dtype.itemsize
                            for k in ("w1", "b1", "w2", "b2", "w3", "b3")))

    kernel = functools.partial(_bottleneck_kernel, TH, W_p)

    def build(single_buffer):
        def const_spec(shape):
            idx = lambda n, h: (0,) * len(shape)
            if single_buffer:
                # Constant-index weights/bias/mask: one buffer is enough.
                return pl.BlockSpec(shape, idx, pipeline_mode=pl.Buffered(1))
            return pl.BlockSpec(shape, idx)

        in_specs = [
            # x stays resident across the h axis (index_map ignores h).
            pl.BlockSpec((1, (H + 2) * W_p, Cin_p), lambda n, h: (n, 0, 0)),
            const_spec(((H + 2) * W_p, 1)),                 # validity mask
            const_spec((Cin_p, Cw_p)), const_spec((1, Cw_p)),        # w1, b1
            const_spec((9 * Cw_p, Cw_p)), const_spec((1, Cw_p)),     # w2, b2
            const_spec((Cw_p, Cin_p)), const_spec((1, Cin_p)),       # w3, b3
        ]
        return pl.pallas_call(
            kernel,
            out_shape=jax.ShapeDtypeStruct((N, H * W_p, Cin_p), jnp.float32),
            grid_spec=pltpu.PrefetchScalarGridSpec(
                num_scalar_prefetch=0,
                grid=(N, H // TH),
                in_specs=in_specs,
                out_specs=pl.BlockSpec((1, M, Cin_p), lambda n, h: (n, h, 0)),
            ),
            compiler_params=pltpu.CompilerParams(
                dimension_semantics=("parallel", "parallel"),
                vmem_limit_bytes=int(vmem_bytes)),
            cost_estimate=pl.CostEstimate(flops=int(flops), transcendentals=0,
                                          bytes_accessed=int(bytes_accessed)),
        )

    args = (x, mask, params["w1"], params["b1"], params["w2"], params["b2"],
            params["w3"], params["b3"])
    use_single_buffer = hasattr(pl, "Buffered")
    try:
        out = build(use_single_buffer)(*args)
    except Exception:
        if not use_single_buffer:
            raise
        out = build(False)(*args)   # retry without pipeline_mode

    # Crop width / channel padding, back to NCHW.  (If activations stay NHWC
    # and Cin % 128 == 0 in a real network, the channel crop is a no-op.)
    out = out.reshape(N, H, W_p, Cin_p)[:, :, 1:W + 1, :Cin]
    return jnp.transpose(out, (0, 3, 1, 2))


def make_params(key, inplanes, planes, base_width=64, groups=1, eps=1e-5):
    """Synthetic parameters matching the PyTorch module shapes.

    Returns (kernel_params, ref_params): kernel_params are BN-folded,
    channel-padded bf16 weights in kernel layout; ref_params are the original
    PyTorch-layout f32 weights plus BN scale/shift for the pure-JAX reference.
    """
    expansion = 4
    width = int(planes * (base_width / 64.0)) * groups
    cin = planes * expansion
    assert inplanes == cin, "residual add requires inplanes == planes * expansion"

    ks = jax.random.split(key, 15)

    def bn_fold(k0, k1, k2, k3, ch):
        gamma = 1.0 + 0.1 * jax.random.normal(k0, (ch,), jnp.float32)
        beta = 0.1 * jax.random.normal(k1, (ch,), jnp.float32)
        mean = 0.1 * jax.random.normal(k2, (ch,), jnp.float32)
        var = jax.random.uniform(k3, (ch,), jnp.float32, minval=0.5, maxval=1.5)
        scale = gamma / jnp.sqrt(var + eps)      # inference-mode BatchNorm
        shift = beta - mean * scale
        return scale, shift

    # PyTorch-layout (OIHW) conv weights.
    w1_pt = 0.1 * jax.random.normal(ks[0], (width, cin, 1, 1), jnp.float32)
    w2_pt = 0.1 * jax.random.normal(ks[1], (width, width, 3, 3), jnp.float32)
    w3_pt = 0.1 * jax.random.normal(ks[2], (inplanes, width, 1, 1), jnp.float32)

    s1, t1 = bn_fold(ks[3], ks[4], ks[5], ks[6], width)
    s2, t2 = bn_fold(ks[7], ks[8], ks[9], ks[10], width)
    s3, t3 = bn_fold(ks[11], ks[12], ks[13], ks[14], inplanes)

    Cin_p = _round_up(cin, 128)
    Cw_p = _round_up(width, 128)

    # Fold BN scale into the conv weights (per output channel).
    w1 = jnp.transpose(w1_pt[:, :, 0, 0], (1, 0)) * s1[None, :]          # (cin, width)
    w2 = jnp.transpose(w2_pt, (2, 3, 1, 0)) * s2[None, None, None, :]    # (3,3,in,out)
    w3 = jnp.transpose(w3_pt[:, :, 0, 0], (1, 0)) * s3[None, :]          # (width, cin)

    def pad2(a, rows, cols):
        return jnp.pad(a, ((0, rows - a.shape[0]), (0, cols - a.shape[1])))

    w2 = jnp.pad(w2, ((0, 0), (0, 0), (0, Cw_p - width), (0, Cw_p - width)))

    params = {
        "w1": pad2(w1, Cin_p, Cw_p).astype(jnp.bfloat16),
        "b1": jnp.pad(t1, (0, Cw_p - width)).reshape(1, Cw_p),
        "w2": w2.reshape(9 * Cw_p, Cw_p).astype(jnp.bfloat16),
        "b2": jnp.pad(t2, (0, Cw_p - width)).reshape(1, Cw_p),
        "w3": pad2(w3, Cw_p, Cin_p).astype(jnp.bfloat16),
        "b3": jnp.pad(t3, (0, Cin_p - inplanes)).reshape(1, Cin_p),
    }
    ref_params = {"w1_pt": w1_pt, "w2_pt": w2_pt, "w3_pt": w3_pt,
                  "s1": s1, "b1": t1, "s2": s2, "b2": t2, "s3": s3, "b3": t3}
    return params, ref_params


def reference(x, rp):
    """Pure-JAX NCHW reference with PyTorch conv / inference-BN semantics."""
    def conv(a, w, pad):
        return lax.conv_general_dilated(
            a, w, window_strides=(1, 1), padding=pad,
            dimension_numbers=("NCHW", "OIHW", "NCHW"))

    def bn(a, scale, shift):
        return a * scale.reshape(1, -1, 1, 1) + shift.reshape(1, -1, 1, 1)

    out = jax.nn.relu(bn(conv(x, rp["w1_pt"], "VALID"), rp["s1"], rp["b1"]))
    out = jax.nn.relu(bn(conv(out, rp["w2_pt"], ((1, 1), (1, 1))),
                         rp["s2"], rp["b2"]))
    out = bn(conv(out, rp["w3_pt"], "VALID"), rp["s3"], rp["b3"])
    return jax.nn.relu(out + x)


if __name__ == "__main__":
    # planes=8 -> width=8, inplanes = planes*4 = 32 (needed for residual add).
    N, planes, H, W = 2, 8, 16, 16
    inplanes = planes * 4

    key = jax.random.PRNGKey(0)
    kx, kp = jax.random.split(key)
    x = jax.random.normal(kx, (N, inplanes, H, W), jnp.float32)

    params, ref_params = make_params(kp, inplanes, planes)
    ref = reference(x, ref_params)

    # Auto tile_h (whole image per grid step for this small H).
    out = jax.block_until_ready(bottleneck_transposed(x, params))
    assert out.shape == ref.shape, (out.shape, ref.shape)
    err = float(jnp.max(jnp.abs(out - ref)))
    # bf16 MXU operands + bf16 identity (f32 accumulation) vs the f32 reference.
    assert jnp.allclose(out, ref, atol=3e-2, rtol=2e-2), err

    # Forced multi-tile run to exercise the per-tile halo / masking path.
    out2 = jax.block_until_ready(bottleneck_transposed(x, params, tile_h=8))
    err2 = float(jnp.max(jnp.abs(out2 - ref)))
    assert jnp.allclose(out2, ref, atol=3e-2, rtol=2e-2), err2

    print("KERNEL_OK")
</pallas_src>

<mosaic_0001>
module attributes {stable_mosaic.version = 11 : i64} {
  func.func @_bottleneck_kernel(%arg0: i32, %arg1: i32, %arg2: memref<1x432x128xbf16, #tpu.memory_space<vmem>>, %arg3: memref<432x1xf32, #tpu.memory_space<vmem>>, %arg4: memref<128x128xbf16, #tpu.memory_space<vmem>>, %arg5: memref<1x128xf32, #tpu.memory_space<vmem>>, %arg6: memref<1152x128xbf16, #tpu.memory_space<vmem>>, %arg7: memref<1x128xf32, #tpu.memory_space<vmem>>, %arg8: memref<128x128xbf16, #tpu.memory_space<vmem>>, %arg9: memref<1x128xf32, #tpu.memory_space<vmem>>, %arg10: memref<1x384x128xf32, #tpu.memory_space<vmem>>) attributes {dimension_semantics = [#tpu.dimension_semantics<parallel>, #tpu.dimension_semantics<parallel>], iteration_bounds = array<i64: 2, 1>, scalar_prefetch = 0 : i64, scratch_operands = 0 : i64, tpu.core_type = #tpu.core_type<tc>, window_params = [{transform_indices = @transform_0, window_bounds = array<i64: 1, 432, 128>}, {pipeline_mode = #tpu.pipeline_mode<synchronous>, transform_indices = @transform_1, window_bounds = array<i64: 432, 1>}, {pipeline_mode = #tpu.pipeline_mode<synchronous>, transform_indices = @transform_2, window_bounds = array<i64: 128, 128>}, {pipeline_mode = #tpu.pipeline_mode<synchronous>, transform_indices = @transform_3, window_bounds = array<i64: 1, 128>}, {pipeline_mode = #tpu.pipeline_mode<synchronous>, transform_indices = @transform_4, window_bounds = array<i64: 1152, 128>}, {pipeline_mode = #tpu.pipeline_mode<synchronous>, transform_indices = @transform_5, window_bounds = array<i64: 1, 128>}, {pipeline_mode = #tpu.pipeline_mode<synchronous>, transform_indices = @transform_6, window_bounds = array<i64: 128, 128>}, {pipeline_mode = #tpu.pipeline_mode<synchronous>, transform_indices = @transform_7, window_bounds = array<i64: 1, 128>}, {transform_indices = @transform_8, window_bounds = array<i64: 1, 384, 128>}]} {
    %c384_i32 = arith.constant 384 : i32
    %0 = arith.muli %arg1, %c384_i32 : i32
    %1 = tpu.assume_multiple %0, 384 : i32
    %c0 = arith.constant 0 : index
    %2 = arith.index_cast %1 : i32 to index
    %c0_0 = arith.constant 0 : index
    %3 = vector.load %arg2[%c0, %2, %c0_0] : memref<1x432x128xbf16, #tpu.memory_space<vmem>>, vector<1x432x128xbf16>
    %4 = vector.shape_cast %3 : vector<1x432x128xbf16> to vector<432x128xbf16>
    %5 = arith.index_cast %1 : i32 to index
    %c0_1 = arith.constant 0 : index
    %6 = vector.load %arg3[%5, %c0_1] : memref<432x1xf32, #tpu.memory_space<vmem>>, vector<432x1xf32>
    %c0_2 = arith.constant 0 : index
    %c0_3 = arith.constant 0 : index
    %7 = vector.load %arg4[%c0_2, %c0_3] : memref<128x128xbf16, #tpu.memory_space<vmem>>, vector<128x128xbf16>
    %cst = arith.constant dense<0.000000e+00> : vector<432x128xf32>
    %8 = tpu.matmul %4, %7, %cst {dimension_numbers = #tpu.dot_dimension_numbers<[1], [0], [0], [1], [0, 0, 1, 1], [], []>} : vector<432x128xbf16>, vector<128x128xbf16>, vector<432x128xf32> -> vector<432x128xf32>
    %c0_4 = arith.constant 0 : index
    %c0_5 = arith.constant 0 : index
    %9 = vector.load %arg5[%c0_4, %c0_5] : memref<1x128xf32, #tpu.memory_space<vmem>>, vector<1x128xf32>
    %10 = vector.broadcast %9 : vector<1x128xf32> to vector<432x128xf32>
    %11 = arith.addf %8, %10 : vector<432x128xf32>
    %cst_6 = arith.constant 0.000000e+00 : f32
    %12 = vector.broadcast %cst_6 : f32 to vector<432x128xf32>
    %13 = arith.maximumf %11, %12 : vector<432x128xf32>
    %14 = vector.broadcast %6 : vector<432x1xf32> to vector<432x128xf32>
    %15 = arith.mulf %13, %14 : vector<432x128xf32>
    %16 = arith.truncf %15 : vector<432x128xf32> to vector<432x128xbf16>
    %cst_7 = arith.constant 0.000000e+00 : bf16
    %17 = vector.broadcast %cst_7 : bf16 to vector<1x128xbf16>
    %18 = vector.extract_strided_slice %16 {offsets = [0, 0], sizes = [431, 128], strides = [1, 1]} : vector<432x128xbf16> to vector<431x128xbf16>
    %19 = tpu.concatenate %17, %18 in 0 : vector<1x128xbf16>, vector<431x128xbf16> -> vector<432x128xbf16>
    %20 = vector.extract_strided_slice %16 {offsets = [1, 0], sizes = [431, 128], strides = [1, 1]} : vector<432x128xbf16> to vector<431x128xbf16>
    %21 = tpu.concatenate %20, %17 in 0 : vector<431x128xbf16>, vector<1x128xbf16> -> vector<432x128xbf16>
    %22 = vector.extract_strided_slice %19 {offsets = [0, 0], sizes = [384, 128], strides = [1, 1]} : vector<432x128xbf16> to vector<384x128xbf16>
    %23 = vector.extract_strided_slice %16 {offsets = [0, 0], sizes = [384, 128], strides = [1, 1]} : vector<432x128xbf16> to vector<384x128xbf16>
    %24 = vector.extract_strided_slice %21 {offsets = [0, 0], sizes = [384, 128], strides = [1, 1]} : vector<432x128xbf16> to vector<384x128xbf16>
    %25 = vector.extract_strided_slice %19 {offsets = [24, 0], sizes = [384, 128], strides = [1, 1]} : vector<432x128xbf16> to vector<384x128xbf16>
    %26 = vector.extract_strided_slice %16 {offsets = [24, 0], sizes = [384, 128], strides = [1, 1]} : vector<432x128xbf16> to vector<384x128xbf16>
    %27 = vector.extract_strided_slice %21 {offsets = [24, 0], sizes = [384, 128], strides = [1, 1]} : vector<432x128xbf16> to vector<384x128xbf16>
    %28 = vector.extract_strided_slice %19 {offsets = [48, 0], sizes = [384, 128], strides = [1, 1]} : vector<432x128xbf16> to vector<384x128xbf16>
    %29 = vector.extract_strided_slice %16 {offsets = [48, 0], sizes = [384, 128], strides = [1, 1]} : vector<432x128xbf16> to vector<384x128xbf16>
    %30 = vector.extract_strided_slice %21 {offsets = [48, 0], sizes = [384, 128], strides = [1, 1]} : vector<432x128xbf16> to vector<384x128xbf16>
    %31 = tpu.concatenate %22, %23, %24, %25, %26, %27, %28, %29, %30 in 1 : vector<384x128xbf16>, vector<384x128xbf16>, vector<384x128xbf16>, vector<384x128xbf16>, vector<384x128xbf16>, vector<384x128xbf16>, vector<384x128xbf16>, vector<384x128xbf16>, vector<384x128xbf16> -> vector<384x1152xbf16>
    %c0_8 = arith.constant 0 : index
    %c0_9 = arith.constant 0 : index
    %32 = vector.load %arg6[%c0_8, %c0_9] : memref<1152x128xbf16, #tpu.memory_space<vmem>>, vector<1152x128xbf16>
    %cst_10 = arith.constant dense<0.000000e+00> : vector<384x128xf32>
    %33 = tpu.matmul %31, %32, %cst_10 {dimension_numbers = #tpu.dot_dimension_numbers<[1], [0], [0], [1], [0, 0, 1, 1], [], []>} : vector<384x1152xbf16>, vector<1152x128xbf16>, vector<384x128xf32> -> vector<384x128xf32>
    %c0_11 = arith.constant 0 : index
    %c0_12 = arith.constant 0 : index
    %34 = vector.load %arg7[%c0_11, %c0_12] : memref<1x128xf32, #tpu.memory_space<vmem>>, vector<1x128xf32>
    %35 = vector.broadcast %34 : vector<1x128xf32> to vector<384x128xf32>
    %36 = arith.addf %33, %35 : vector<384x128xf32>
    %cst_13 = arith.constant 0.000000e+00 : f32
    %37 = vector.broadcast %cst_13 : f32 to vector<384x128xf32>
    %38 = arith.maximumf %36, %37 : vector<384x128xf32>
    %39 = arith.truncf %38 : vector<384x128xf32> to vector<384x128xbf16>
    %c0_14 = arith.constant 0 : index
    %c0_15 = arith.constant 0 : index
    %40 = vector.load %arg8[%c0_14, %c0_15] : memref<128x128xbf16, #tpu.memory_space<vmem>>, vector<128x128xbf16>
    %cst_16 = arith.constant dense<0.000000e+00> : vector<384x128xf32>
    %41 = tpu.matmul %39, %40, %cst_16 {dimension_numbers = #tpu.dot_dimension_numbers<[1], [0], [0], [1], [0, 0, 1, 1], [], []>} : vector<384x128xbf16>, vector<128x128xbf16>, vector<384x128xf32> -> vector<384x128xf32>
    %42 = vector.extract_strided_slice %4 {offsets = [24, 0], sizes = [384, 128], strides = [1, 1]} : vector<432x128xbf16> to vector<384x128xbf16>
    %43 = arith.extf %42 : vector<384x128xbf16> to vector<384x128xf32>
    %c0_17 = arith.constant 0 : index
    %c0_18 = arith.constant 0 : index
    %44 = vector.load %arg9[%c0_17, %c0_18] : memref<1x128xf32, #tpu.memory_space<vmem>>, vector<1x128xf32>
    %45 = vector.broadcast %44 : vector<1x128xf32> to vector<384x128xf32>
    %46 = arith.addf %41, %45 : vector<384x128xf32>
    %47 = arith.addf %46, %43 : vector<384x128xf32>
    %cst_19 = arith.constant 0.000000e+00 : f32
    %48 = vector.broadcast %cst_19 : f32 to vector<384x128xf32>
    %49 = arith.maximumf %47, %48 : vector<384x128xf32>
    %c0_20 = arith.constant 0 : index
    %c0_21 = arith.constant 0 : index
    %c0_22 = arith.constant 0 : index
    %50 = vector.load %arg10[%c0_20, %c0_21, %c0_22] : memref<1x384x128xf32, #tpu.memory_space<vmem>>, vector<1x384x128xf32>
    %51 = vector.shape_cast %50 : vector<1x384x128xf32> to vector<384x128xf32>
    %52 = vector.shape_cast %49 : vector<384x128xf32> to vector<1x384x128xf32>
    tpu.vector_store %arg10[%c0_20, %c0_21, %c0_22], %52 {strides = array<i32>} : memref<1x384x128xf32, #tpu.memory_space<vmem>>, vector<1x384x128xf32>,
    return
  }
  func.func @transform_0(%arg0: i32, %arg1: i32) -> (i32, i32, i32) {
    %c0_i32 = arith.constant 0 : i32
    %c0_i32_0 = arith.constant 0 : i32
    %c0_i32_1 = arith.constant 0 : i32
    return %arg0, %c0_i32, %c0_i32_0 : i32, i32, i32
  }
  func.func @transform_1(%arg0: i32, %arg1: i32) -> (i32, i32) {
    %c0_i32 = arith.constant 0 : i32
    %c0_i32_0 = arith.constant 0 : i32
    %c0_i32_1 = arith.constant 0 : i32
    return %c0_i32, %c0_i32_0 : i32, i32
  }
  func.func @transform_2(%arg0: i32, %arg1: i32) -> (i32, i32) {
    %c0_i32 = arith.constant 0 : i32
    %c0_i32_0 = arith.constant 0 : i32
    %c0_i32_1 = arith.constant 0 : i32
    return %c0_i32, %c0_i32_0 : i32, i32
  }
  func.func @transform_3(%arg0: i32, %arg1: i32) -> (i32, i32) {
    %c0_i32 = arith.constant 0 : i32
    %c0_i32_0 = arith.constant 0 : i32
    %c0_i32_1 = arith.constant 0 : i32
    return %c0_i32, %c0_i32_0 : i32, i32
  }
  func.func @transform_4(%arg0: i32, %arg1: i32) -> (i32, i32) {
    %c0_i32 = arith.constant 0 : i32
    %c0_i32_0 = arith.constant 0 : i32
    %c0_i32_1 = arith.constant 0 : i32
    return %c0_i32, %c0_i32_0 : i32, i32
  }
  func.func @transform_5(%arg0: i32, %arg1: i32) -> (i32, i32) {
    %c0_i32 = arith.constant 0 : i32
    %c0_i32_0 = arith.constant 0 : i32
    %c0_i32_1 = arith.constant 0 : i32
    return %c0_i32, %c0_i32_0 : i32, i32
  }
  func.func @transform_6(%arg0: i32, %arg1: i32) -> (i32, i32) {
    %c0_i32 = arith.constant 0 : i32
    %c0_i32_0 = arith.constant 0 : i32
    %c0_i32_1 = arith.constant 0 : i32
    return %c0_i32, %c0_i32_0 : i32, i32
  }
  func.func @transform_7(%arg0: i32, %arg1: i32) -> (i32, i32) {
    %c0_i32 = arith.constant 0 : i32
    %c0_i32_0 = arith.constant 0 : i32
    %c0_i32_1 = arith.constant 0 : i32
    return %c0_i32, %c0_i32_0 : i32, i32
  }
  func.func @transform_8(%arg0: i32, %arg1: i32) -> (i32, i32, i32) {
    %c0_i32 = arith.constant 0 : i32
    %c0_i32_0 = arith.constant 0 : i32
    return %arg0, %arg1, %c0_i32 : i32, i32, i32
  }
}

module attributes {stable_mosaic.version = 11 : i64} {
  func.func @_bottleneck_kernel(%arg0: i32, %arg1: i32, %arg2: memref<1x432x128xbf16, #tpu.memory_space<vmem>>, %arg3: memref<432x1xf32, #tpu.memory_space<vmem>>, %arg4: memref<128x128xbf16, #tpu.memory_space<vmem>>, %arg5: memref<1x128xf32, #tpu.memory_space<vmem>>, %arg6: memref<1152x128xbf16, #tpu.memory_space<vmem>>, %arg7: memref<1x128xf32, #tpu.memory_space<vmem>>, %arg8: memref<128x128xbf16, #tpu.memory_space<vmem>>, %arg9: memref<1x128xf32, #tpu.memory_space<vmem>>, %arg10: memref<1x384x128xf32, #tpu.memory_space<vmem>>) attributes {dimension_semantics = [#tpu.dimension_semantics<parallel>, #tpu.dimension_semantics<parallel>], iteration_bounds = array<i64: 2, 1>, scalar_prefetch = 0 : i64, scratch_operands = 0 : i64, tpu.core_type = #tpu.core_type<tc>, window_params = [{transform_indices = @transform_0, window_bounds = array<i64: 1, 432, 128>}, {pipeline_mode = #tpu.pipeline_mode<synchronous>, transform_indices = @transform_1, window_bounds = array<i64: 432, 1>}, {pipeline_mode = #tpu.pipeline_mode<synchronous>, transform_indices = @transform_2, window_bounds = array<i64: 128, 128>}, {pipeline_mode = #tpu.pipeline_mode<synchronous>, transform_indices = @transform_3, window_bounds = array<i64: 1, 128>}, {pipeline_mode = #tpu.pipeline_mode<synchronous>, transform_indices = @transform_4, window_bounds = array<i64: 1152, 128>}, {pipeline_mode = #tpu.pipeline_mode<synchronous>, transform_indices = @transform_5, window_bounds = array<i64: 1, 128>}, {pipeline_mode = #tpu.pipeline_mode<synchronous>, transform_indices = @transform_6, window_bounds = array<i64: 128, 128>}, {pipeline_mode = #tpu.pipeline_mode<synchronous>, transform_indices = @transform_7, window_bounds = array<i64: 1, 128>}, {transform_indices = @transform_8, window_bounds = array<i64: 1, 384, 128>}]} {
    %c384_i32 = arith.constant 384 : i32
    %0 = arith.muli %arg1, %c384_i32 : i32
    %1 = tpu.assume_multiple %0, 384 : i32
    %c0 = arith.constant 0 : index
    %2 = arith.index_cast %1 : i32 to index
    %c0_0 = arith.constant 0 : index
    %3 = vector.load %arg2[%c0, %2, %c0_0] : memref<1x432x128xbf16, #tpu.memory_space<vmem>>, vector<1x432x128xbf16>
    %4 = vector.shape_cast %3 : vector<1x432x128xbf16> to vector<432x128xbf16>
    %5 = arith.index_cast %1 : i32 to index
    %c0_1 = arith.constant 0 : index
    %6 = vector.load %arg3[%5, %c0_1] : memref<432x1xf32, #tpu.memory_space<vmem>>, vector<432x1xf32>
    %c0_2 = arith.constant 0 : index
    %c0_3 = arith.constant 0 : index
    %7 = vector.load %arg4[%c0_2, %c0_3] : memref<128x128xbf16, #tpu.memory_space<vmem>>, vector<128x128xbf16>
    %cst = arith.constant dense<0.000000e+00> : vector<432x128xf32>
    %8 = tpu.matmul %4, %7, %cst {dimension_numbers = #tpu.dot_dimension_numbers<[1], [0], [0], [1], [0, 0, 1, 1], [], []>} : vector<432x128xbf16>, vector<128x128xbf16>, vector<432x128xf32> -> vector<432x128xf32>
    %c0_4 = arith.constant 0 : index
    %c0_5 = arith.constant 0 : index
    %9 = vector.load %arg5[%c0_4, %c0_5] : memref<1x128xf32, #tpu.memory_space<vmem>>, vector<1x128xf32>
    %10 = vector.broadcast %9 : vector<1x128xf32> to vector<432x128xf32>
    %11 = arith.addf %8, %10 : vector<432x128xf32>
    %cst_6 = arith.constant 0.000000e+00 : f32
    %12 = vector.broadcast %cst_6 : f32 to vector<432x128xf32>
    %13 = arith.maximumf %11, %12 : vector<432x128xf32>
    %14 = vector.broadcast %6 : vector<432x1xf32> to vector<432x128xf32>
    %15 = arith.mulf %13, %14 : vector<432x128xf32>
    %16 = arith.truncf %15 : vector<432x128xf32> to vector<432x128xbf16>
    %cst_7 = arith.constant 0.000000e+00 : bf16
    %17 = vector.broadcast %cst_7 : bf16 to vector<1x128xbf16>
    %18 = vector.extract_strided_slice %16 {offsets = [0, 0], sizes = [431, 128], strides = [1, 1]} : vector<432x128xbf16> to vector<431x128xbf16>
    %19 = tpu.concatenate %17, %18 in 0 : vector<1x128xbf16>, vector<431x128xbf16> -> vector<432x128xbf16>
    %20 = vector.extract_strided_slice %16 {offsets = [1, 0], sizes = [431, 128], strides = [1, 1]} : vector<432x128xbf16> to vector<431x128xbf16>
    %21 = tpu.concatenate %20, %17 in 0 : vector<431x128xbf16>, vector<1x128xbf16> -> vector<432x128xbf16>
    %22 = vector.extract_strided_slice %19 {offsets = [0, 0], sizes = [384, 128], strides = [1, 1]} : vector<432x128xbf16> to vector<384x128xbf16>
    %23 = vector.extract_strided_slice %16 {offsets = [0, 0], sizes = [384, 128], strides = [1, 1]} : vector<432x128xbf16> to vector<384x128xbf16>
    %24 = vector.extract_strided_slice %21 {offsets = [0, 0], sizes = [384, 128], strides = [1, 1]} : vector<432x128xbf16> to vector<384x128xbf16>
    %25 = vector.extract_strided_slice %19 {offsets = [24, 0], sizes = [384, 128], strides = [1, 1]} : vector<432x128xbf16> to vector<384x128xbf16>
    %26 = vector.extract_strided_slice %16 {offsets = [24, 0], sizes = [384, 128], strides = [1, 1]} : vector<432x128xbf16> to vector<384x128xbf16>
    %27 = vector.extract_strided_slice %21 {offsets = [24, 0], sizes = [384, 128], strides = [1, 1]} : vector<432x128xbf16> to vector<384x128xbf16>
    %28 = vector.extract_strided_slice %19 {offsets = [48, 0], sizes = [384, 128], strides = [1, 1]} : vector<432x128xbf16> to vector<384x128xbf16>
    %29 = vector.extract_strided_slice %16 {offsets = [48, 0], sizes = [384, 128], strides = [1, 1]} : vector<432x128xbf16> to vector<384x128xbf16>
    %30 = vector.extract_strided_slice %21 {offsets = [48, 0], sizes = [384, 128], strides = [1, 1]} : vector<432x128xbf16> to vector<384x128xbf16>
    %31 = tpu.concatenate %22, %23, %24, %25, %26, %27, %28, %29, %30 in 1 : vector<384x128xbf16>, vector<384x128xbf16>, vector<384x128xbf16>, vector<384x128xbf16>, vector<384x128xbf16>, vector<384x128xbf16>, vector<384x128xbf16>, vector<384x128xbf16>, vector<384x128xbf16> -> vector<384x1152xbf16>
    %c0_8 = arith.constant 0 : index
    %c0_9 = arith.constant 0 : index
    %32 = vector.load %arg6[%c0_8, %c0_9] : memref<1152x128xbf16, #tpu.memory_space<vmem>>, vector<1152x128xbf16>
    %cst_10 = arith.constant dense<0.000000e+00> : vector<384x128xf32>
    %33 = tpu.matmul %31, %32, %cst_10 {dimension_numbers = #tpu.dot_dimension_numbers<[1], [0], [0], [1], [0, 0, 1, 1], [], []>} : vector<384x1152xbf16>, vector<1152x128xbf16>, vector<384x128xf32> -> vector<384x128xf32>
    %c0_11 = arith.constant 0 : index
    %c0_12 = arith.constant 0 : index
    %34 = vector.load %arg7[%c0_11, %c0_12] : memref<1x128xf32, #tpu.memory_space<vmem>>, vector<1x128xf32>
    %35 = vector.broadcast %34 : vector<1x128xf32> to vector<384x128xf32>
    %36 = arith.addf %33, %35 : vector<384x128xf32>
    %cst_13 = arith.constant 0.000000e+00 : f32
    %37 = vector.broadcast %cst_13 : f32 to vector<384x128xf32>
    %38 = arith.maximumf %36, %37 : vector<384x128xf32>
    %39 = arith.truncf %38 : vector<384x128xf32> to vector<384x128xbf16>
    %c0_14 = arith.constant 0 : index
    %c0_15 = arith.constant 0 : index
    %40 = vector.load %arg8[%c0_14, %c0_15] : memref<128x128xbf16, #tpu.memory_space<vmem>>, vector<128x128xbf16>
    %cst_16 = arith.constant dense<0.000000e+00> : vector<384x128xf32>
    %41 = tpu.matmul %39, %40, %cst_16 {dimension_numbers = #tpu.dot_dimension_numbers<[1], [0], [0], [1], [0, 0, 1, 1], [], []>} : vector<384x128xbf16>, vector<128x128xbf16>, vector<384x128xf32> -> vector<384x128xf32>
    %42 = vector.extract_strided_slice %4 {offsets = [24, 0], sizes = [384, 128], strides = [1, 1]} : vector<432x128xbf16> to vector<384x128xbf16>
    %43 = arith.extf %42 : vector<384x128xbf16> to vector<384x128xf32>
    %c0_17 = arith.constant 0 : index
    %c0_18 = arith.constant 0 : index
    %44 = vector.load %arg9[%c0_17, %c0_18] : memref<1x128xf32, #tpu.memory_space<vmem>>, vector<1x128xf32>
    %45 = vector.broadcast %44 : vector<1x128xf32> to vector<384x128xf32>
    %46 = arith.addf %41, %45 : vector<384x128xf32>
    %47 = arith.addf %46, %43 : vector<384x128xf32>
    %cst_19 = arith.constant 0.000000e+00 : f32
    %48 = vector.broadcast %cst_19 : f32 to vector<384x128xf32>
    %49 = arith.maximumf %47, %48 : vector<384x128xf32>
    %c0_20 = arith.constant 0 : index
    %c0_21 = arith.constant 0 : index
    %c0_22 = arith.constant 0 : index
    %50 = vector.load %arg10[%c0_20, %c0_21, %c0_22] : memref<1x384x128xf32, #tpu.memory_space<vmem>>, vector<1x384x128xf32>
    %51 = vector.shape_cast %50 : vector<1x384x128xf32> to vector<384x128xf32>
    %52 = vector.shape_cast %49 : vector<384x128xf32> to vector<1x384x128xf32>
    tpu.vector_store %arg10[%c0_20, %c0_21, %c0_22], %52 {strides = array<i32>} : memref<1x384x128xf32, #tpu.memory_space<vmem>>, vector<1x384x128xf32>,
    return
  }
  func.func @transform_0(%arg0: i32, %arg1: i32) -> (i32, i32, i32) {
    %c0_i32 = arith.constant 0 : i32
    %c0_i32_0 = arith.constant 0 : i32
    %c0_i32_1 = arith.constant 0 : i32
    return %arg0, %c0_i32, %c0_i32_0 : i32, i32, i32
  }
  func.func @transform_1(%arg0: i32, %arg1: i32) -> (i32, i32) {
    %c0_i32 = arith.constant 0 : i32
    %c0_i32_0 = arith.constant 0 : i32
    %c0_i32_1 = arith.constant 0 : i32
    return %c0_i32, %c0_i32_0 : i32, i32
  }
  func.func @transform_2(%arg0: i32, %arg1: i32) -> (i32, i32) {
    %c0_i32 = arith.constant 0 : i32
    %c0_i32_0 = arith.constant 0 : i32
    %c0_i32_1 = arith.constant 0 : i32
    return %c0_i32, %c0_i32_0 : i32, i32
  }
  func.func @transform_3(%arg0: i32, %arg1: i32) -> (i32, i32) {
    %c0_i32 = arith.constant 0 : i32
    %c0_i32_0 = arith.constant 0 : i32
    %c0_i32_1 = arith.constant 0 : i32
    return %c0_i32, %c0_i32_0 : i32, i32
  }
  func.func @transform_4(%arg0: i32, %arg1: i32) -> (i32, i32) {
    %c0_i32 = arith.constant 0 : i32
    %c0_i32_0 = arith.constant 0 : i32
    %c0_i32_1 = arith.constant 0 : i32
    return %c0_i32, %c0_i32_0 : i32, i32
  }
  func.func @transform_5(%arg0: i32, %arg1: i32) -> (i32, i32) {
    %c0_i32 = arith.constant 0 : i32
    %c0_i32_0 = arith.constant 0 : i32
    %c0_i32_1 = arith.constant 0 : i32
    return %c0_i32, %c0_i32_0 : i32, i32
  }
  func.func @transform_6(%arg0: i32, %arg1: i32) -> (i32, i32) {
    %c0_i32 = arith.constant 0 : i32
    %c0_i32_0 = arith.constant 0 : i32
    %c0_i32_1 = arith.constant 0 : i32
    return %c0_i32, %c0_i32_0 : i32, i32
  }
  func.func @transform_7(%arg0: i32, %arg1: i32) -> (i32, i32) {
    %c0_i32 = arith.constant 0 : i32
    %c0_i32_0 = arith.constant 0 : i32
    %c0_i32_1 = arith.constant 0 : i32
    return %c0_i32, %c0_i32_0 : i32, i32
  }
  func.func @transform_8(%arg0: i32, %arg1: i32) -> (i32, i32, i32) {
    %c0_i32 = arith.constant 0 : i32
    %c0_i32_0 = arith.constant 0 : i32
    return %arg0, %arg1, %c0_i32 : i32, i32, i32
  }
}

</mosaic_0001>

<llo_original>
// kernel: tpu_custom_call.1
$region0: #{tpu_custom_call.1}
  #allocation0 [shape = 'u32[]', space=smem, size = 0x4, offset = 0x4, fixed_abs, tag = 'smem constant byte address 0x4 - core index']
  #allocation1 [shape = 'u32[144,128]{1,0:T(1,128)}', space=vmem, size = 0x12000, scoped, tag = 'internal scratch']
  %s0 = inlined_call_operand.vmem [shape: bf16[2,432,128], index: 0, kind: input, shape index: {}]
  %s1 = inlined_call_operand.vmem [shape: f32[432,1], index: 1, kind: input, shape index: {}]
  %s2 = inlined_call_operand.hbm [shape: bf16[128,128], index: 2, kind: input, shape index: {}]
  %s3 = inlined_call_operand.vmem [shape: f32[1,128], index: 3, kind: input, shape index: {}]
  %s4 = inlined_call_operand.hbm [shape: bf16[1152,128], index: 4, kind: input, shape index: {}]
  %s5 = inlined_call_operand.vmem [shape: f32[1,128], index: 5, kind: input, shape index: {}]
  %s6 = inlined_call_operand.hbm [shape: bf16[128,128], index: 6, kind: input, shape index: {}]
  %s7 = inlined_call_operand.vmem [shape: f32[1,128], index: 7, kind: input, shape index: {}]
  %s8 = inlined_call_operand.hbm [shape: f32[2,384,128], index: 8, kind: output, shape index: {}]
  %s9 = sld [smem:[#allocation0]]
  $region77: #{tpu_custom_call.1} parent=0
    _
  %s11 = ssub.s32 1, %s9
  %s12 = scalar_select 0, %s11, %s9
  $region1: #{tpu_custom_call.1} parent=0
    #allocation2 [shape = 'u8[32768]{0}', space=vmem, size = 0x8000, scoped, tag = 'input window, operand 2, single buffered']
    #allocation3 [shape = 's32[2]{0}', space=sflag, size = 0x8, scoped, tag = 'scoped memory for tpu_custom_call.1']
    #allocation4 [shape = 's32[2]{0}', space=sflag, size = 0x8, scoped, tag = 'scoped memory for tpu_custom_call.1']
    #allocation5 [shape = 'u8[294912]{0}', space=vmem, size = 0x48000, scoped, tag = 'input window, operand 4, single buffered']
    #allocation6 [shape = 's32[1]{0}', space=sflag, size = 0x4, scoped, tag = 'scoped memory for tpu_custom_call.1']
    #allocation7 [shape = 'u8[32768]{0}', space=vmem, size = 0x8000, scoped, tag = 'input window, operand 6, single buffered']
    #allocation8 [shape = 'u8[393216]{0}', space=vmem, size = 0x60000, scoped, tag = 'output window, operand 0']
    %13 = vsyncpa [#allocation3], 0
    %14 = vsyncpa [#allocation6], 0
    %15 = vsyncpa [#allocation4], 0
    %s16 = scalar_lea.sflag [#allocation4], 1
    %17 = vsyncpa %s16, 0
    loop: start=0, step=1, limit=4
    $region2: #{tpu_custom_call.1} parent=1 // loop_pre_header
      _
    $region3: #{tpu_custom_call.1} parent=1 // loop_header
      %s19 = sphi 0, %s23
      %p20 = scmp.ge.s32.totalorder %s19, 4
      %s26 = sphi 0, %s38
      %s27 = sphi 0, %s34
      %s28 = sphi 0, %s26
      %s29 = sphi 0, %s27
      %s30 = sphi 0, %s28
      %s31 = sphi 0, %s29
      %s41 = sphi 0, %s43
      %s44 = sphi 0, %s41
      %s45 = sphi 0, %s44
      %s61 = sphi 0, %s45
      %s65 = sphi 0, %s65
      %s67 = sphi 0, %s65
      %s68 = sphi 0, %s67
      %s82 = sphi 0, %s68
      %s86 = sphi 0, %s86
      %s88 = sphi 0, %s86
      %s89 = sphi 0, %s88
      %s103 = sphi 0, %s89
      %s107 = sphi 0, %s107
      %s109 = sphi 0, %s107
      %s110 = sphi 0, %s109
      %s124 = sphi 0, %s110
      %s128 = sphi 0, %s128
      %s130 = sphi 0, %s128
      %s131 = sphi 0, %s130
      %s145 = sphi 0, %s131
      %s149 = sphi 0, %s149
      %s151 = sphi 0, %s149
      %s152 = sphi 0, %s151
      %s166 = sphi 0, %s152
      %s170 = sphi 0, %s170
      %s172 = sphi 0, %s170
      %s173 = sphi 0, %s172
      %s187 = sphi 0, %s173
      %s191 = sphi 0, %s191
      %s193 = sphi 0, %s191
      %s194 = sphi 0, %s193
      %s208 = sphi 0, %s194
      %s216 = sphi 0, %s218
      %s219 = sphi 0, %s216
      %s220 = sphi 0, %s219
      %s236 = sphi 0, %s220
    $region4: #{tpu_custom_call.1} parent=1 // loop_header_branch
      %22 = sbr.rel (%p20) target = $region8
    $region5: #{tpu_custom_call.1} parent=1 // loop_body
      %s24 = ssub.s32 %s19, 1
      %s25 = ssub.s32 %s19, 2
      %s32 = sadd.s32 1, %s27
      %p33 = scmp.ge.s32.totalorder %s32, 1
      %s34 = scalar_select %p33, 0, %s32
      %s35 = sadd.s32 1, %s26
      %s36 = scalar_select %p33, %s35, %s26
      %p37 = scmp.ge.s32.totalorder %s36, 2
      %s38 = scalar_select %p37, 0, %s36
      %s39 = ssub.s32 %s26, %s38
      %p40 = scmp.eq.s32.totalorder %s39, 0
      %s42 = sadd.s32 %s41, 1
      %s43 = scalar_select %p40, %s41, %s42
      %p46 = pneg %p40
      %p47 = scmp.eq.s32.totalorder %s19, 1
      %p48 = por %p46, %p47
      %p49 = scmp.ne.s32.totalorder %s41, %s44
      %p50 = scmp.eq.s32.totalorder %s19, 0
      %p51 = por %p49, %p50
      %p52 = scmp.ne.s32.totalorder %s41, %s44
      %p53 = scmp.eq.s32.totalorder %s24, 1
      %p54 = por %p52, %p53
      %p55 = scmp.ne.s32.totalorder %s44, %s45
      %p56 = scmp.eq.s32.totalorder %s24, 0
      %p57 = por %p55, %p56
      %p58 = scmp.ne.s32.totalorder %s44, %s45
      %p59 = scmp.eq.s32.totalorder %s25, 1
      %p60 = por %p58, %p59
      %p62 = scmp.ne.s32.totalorder %s45, %s61
      %p63 = scmp.eq.s32.totalorder %s25, 0
      %p64 = por %p62, %p63
      %s66 = sadd.s32 %s65, 1
      %p69 = scmp.eq.s32.totalorder %s19, 1
      %p70 = scmp.ne.s32.totalorder %s65, %s67
      %p71 = scmp.eq.s32.totalorder %s19, 0
      %p72 = por %p70, %p71
      %p73 = scmp.ne.s32.totalorder %s65, %s67
      %p74 = scmp.eq.s32.totalorder %s24, 1
      %p75 = por %p73, %p74
      %p76 = scmp.ne.s32.totalorder %s67, %s68
      %p77 = scmp.eq.s32.totalorder %s24, 0
      %p78 = por %p76, %p77
      %p79 = scmp.ne.s32.totalorder %s67, %s68
      %p80 = scmp.eq.s32.totalorder %s25, 1
      %p81 = por %p79, %p80
      %p83 = scmp.ne.s32.totalorder %s68, %s82
      %p84 = scmp.eq.s32.totalorder %s25, 0
      %p85 = por %p83, %p84
      %s87 = sadd.s32 %s86, 1
      %p90 = scmp.eq.s32.totalorder %s19, 1
      %p91 = scmp.ne.s32.totalorder %s86, %s88
      %p92 = scmp.eq.s32.totalorder %s19, 0
      %p93 = por %p91, %p92
      %p94 = scmp.ne.s32.totalorder %s86, %s88
      %p95 = scmp.eq.s32.totalorder %s24, 1
      %p96 = por %p94, %p95
      %p97 = scmp.ne.s32.totalorder %s88, %s89
      %p98 = scmp.eq.s32.totalorder %s24, 0
      %p99 = por %p97, %p98
      %p100 = scmp.ne.s32.totalorder %s88, %s89
      %p101 = scmp.eq.s32.totalorder %s25, 1
      %p102 = por %p100, %p101
      %p104 = scmp.ne.s32.totalorder %s89, %s103
      %p105 = scmp.eq.s32.totalorder %s25, 0
      %p106 = por %p104, %p105
      %s108 = sadd.s32 %s107, 1
      %p111 = scmp.eq.s32.totalorder %s19, 1
      %p112 = scmp.ne.s32.totalorder %s107, %s109
      %p113 = scmp.eq.s32.totalorder %s19, 0
      %p114 = por %p112, %p113
      %p115 = scmp.ne.s32.totalorder %s107, %s109
      %p116 = scmp.eq.s32.totalorder %s24, 1
      %p117 = por %p115, %p116
      %p118 = scmp.ne.s32.totalorder %s109, %s110
      %p119 = scmp.eq.s32.totalorder %s24, 0
      %p120 = por %p118, %p119
      %p121 = scmp.ne.s32.totalorder %s109, %s110
      %p122 = scmp.eq.s32.totalorder %s25, 1
      %p123 = por %p121, %p122
      %p125 = scmp.ne.s32.totalorder %s110, %s124
      %p126 = scmp.eq.s32.totalorder %s25, 0
      %p127 = por %p125, %p126
      %s129 = sadd.s32 %s128, 1
      %p132 = scmp.eq.s32.totalorder %s19, 1
      %p133 = scmp.ne.s32.totalorder %s128, %s130
      %p134 = scmp.eq.s32.totalorder %s19, 0
      %p135 = por %p133, %p134
      %p136 = scmp.ne.s32.totalorder %s128, %s130
      %p137 = scmp.eq.s32.totalorder %s24, 1
      %p138 = por %p136, %p137
      %p139 = scmp.ne.s32.totalorder %s130, %s131
      %p140 = scmp.eq.s32.totalorder %s24, 0
      %p141 = por %p139, %p140
      %p142 = scmp.ne.s32.totalorder %s130, %s131
      %p143 = scmp.eq.s32.totalorder %s25, 1
      %p144 = por %p142, %p143
      %p146 = scmp.ne.s32.totalorder %s131, %s145
      %p147 = scmp.eq.s32.totalorder %s25, 0
      %p148 = por %p146, %p147
      %s150 = sadd.s32 %s149, 1
      %p153 = scmp.eq.s32.totalorder %s19, 1
      %p154 = scmp.ne.s32.totalorder %s149, %s151
      %p155 = scmp.eq.s32.totalorder %s19, 0
      %p156 = por %p154, %p155
      %p157 = scmp.ne.s32.totalorder %s149, %s151
      %p158 = scmp.eq.s32.totalorder %s24, 1
      %p159 = por %p157, %p158
      %p160 = scmp.ne.s32.totalorder %s151, %s152
      %p161 = scmp.eq.s32.totalorder %s24, 0
      %p162 = por %p160, %p161
      %p163 = scmp.ne.s32.totalorder %s151, %s152
      %p164 = scmp.eq.s32.totalorder %s25, 1
      %p165 = por %p163, %p164
      %p167 = scmp.ne.s32.totalorder %s152, %s166
      %p168 = scmp.eq.s32.totalorder %s25, 0
      %p169 = por %p167, %p168
      %s171 = sadd.s32 %s170, 1
      %p174 = scmp.eq.s32.totalorder %s19, 1
      %p175 = scmp.ne.s32.totalorder %s170, %s172
      %p176 = scmp.eq.s32.totalorder %s19, 0
      %p177 = por %p175, %p176
      %p178 = scmp.ne.s32.totalorder %s170, %s172
      %p179 = scmp.eq.s32.totalorder %s24, 1
      %p180 = por %p178, %p179
      %p181 = scmp.ne.s32.totalorder %s172, %s173
      %p182 = scmp.eq.s32.totalorder %s24, 0
      %p183 = por %p181, %p182
      %p184 = scmp.ne.s32.totalorder %s172, %s173
      %p185 = scmp.eq.s32.totalorder %s25, 1
      %p186 = por %p184, %p185
      %p188 = scmp.ne.s32.totalorder %s173, %s187
      %p189 = scmp.eq.s32.totalorder %s25, 0
      %p190 = por %p188, %p189
      %s192 = sadd.s32 %s191, 1
      %p195 = scmp.eq.s32.totalorder %s19, 1
      %p196 = scmp.ne.s32.totalorder %s191, %s193
      %p197 = scmp.eq.s32.totalorder %s19, 0
      %p198 = por %p196, %p197
      %p199 = scmp.ne.s32.totalorder %s191, %s193
      %p200 = scmp.eq.s32.totalorder %s24, 1
      %p201 = por %p199, %p200
      %p202 = scmp.ne.s32.totalorder %s193, %s194
      %p203 = scmp.eq.s32.totalorder %s24, 0
      %p204 = por %p202, %p203
      %p205 = scmp.ne.s32.totalorder %s193, %s194
      %p206 = scmp.eq.s32.totalorder %s25, 1
      %p207 = por %p205, %p206
      %p209 = scmp.ne.s32.totalorder %s194, %s208
      %p210 = scmp.eq.s32.totalorder %s25, 0
      %p211 = por %p209, %p210
      %s212 = ssub.s32 %s26, %s38
      %s213 = ssub.s32 %s27, %s34
      %s214 = sor.u32 %s212, %s213
      %p215 = scmp.eq.s32.totalorder %s214, 0
      %s217 = sadd.s32 %s216, 1
      %s218 = scalar_select %p215, %s216, %s217
      %p221 = pneg %p215
      %p222 = scmp.eq.s32.totalorder %s19, 1
      %p223 = por %p221, %p222
      %p224 = scmp.ne.s32.totalorder %s216, %s219
      %p225 = scmp.eq.s32.totalorder %s19, 0
      %p226 = por %p224, %p225
      %p227 = scmp.ne.s32.totalorder %s216, %s219
      %p228 = scmp.eq.s32.totalorder %s24, 1
      %p229 = por %p227, %p228
      %p230 = scmp.ne.s32.totalorder %s219, %s220
      %p231 = scmp.eq.s32.totalorder %s24, 0
      %p232 = por %p230, %p231
      %p233 = scmp.ne.s32.totalorder %s219, %s220
      %p234 = scmp.eq.s32.totalorder %s25, 1
      %p235 = por %p233, %p234
      %p237 = scmp.ne.s32.totalorder %s220, %s236
      %p238 = scmp.eq.s32.totalorder %s25, 0
      %p239 = por %p237, %p238
      %p240 = scmp.le.s32.totalorder 1, %s19
      %p241 = scmp.lt.s32.totalorder %s19, 3
      %p242 = pnand %p240, %p241
      %p243 = pneg %p242
      // Predicated region
      $region9: #{tpu_custom_call.1} parent=5 // pred_check
        _
      $region10: #{tpu_custom_call.1} parent=5 // pred_check_branch
        %245 = sbr.rel (%p242) target = $region12
      $region11: #{tpu_custom_call.1} parent=5 // pred_region
        %s246 = ssub.s32 %s19, 1
        // Predicated region
        $region13: #{tpu_custom_call.1} parent=11 // pred_check
          %p247 = pneg %p78
        $region14: #{tpu_custom_call.1} parent=11 // pred_check_branch
          %249 = sbr.rel (%p247) target = $region16
        $region15: #{tpu_custom_call.1} parent=11 // pred_region
          _
        $region16: #{tpu_custom_call.1} parent=11 // pred_fallthru
          _
        // Predicated region
        $region17: #{tpu_custom_call.1} parent=11 // pred_check
          %p250 = pneg %p99
        $region18: #{tpu_custom_call.1} parent=11 // pred_check_branch
          %252 = sbr.rel (%p250) target = $region20
        $region19: #{tpu_custom_call.1} parent=11 // pred_region
          %s254 = ssub.s32 1024, 1024
          %255 = vsyncadd [#allocation3], %s254
          %s256 = sshll.u32 [#allocation2], 4
          %s257 = int_to_ptr.vmem [resolvable:$true] %s256
          %262 = dma.hbm_to_vmem [thread:$0]  %s2, 1024, %s257, [#allocation3], 64, 64, 4
        $region20: #{tpu_custom_call.1} parent=11 // pred_fallthru
          _
        // Predicated region
        $region21: #{tpu_custom_call.1} parent=11 // pred_check
          %p263 = pneg %p120
        $region22: #{tpu_custom_call.1} parent=11 // pred_check_branch
          %265 = sbr.rel (%p263) target = $region24
        $region23: #{tpu_custom_call.1} parent=11 // pred_region
          _
        $region24: #{tpu_custom_call.1} parent=11 // pred_fallthru
          _
        // Predicated region
        $region25: #{tpu_custom_call.1} parent=11 // pred_check
          %p266 = pneg %p141
        $region26: #{tpu_custom_call.1} parent=11 // pred_check_branch
          %268 = sbr.rel (%p266) target = $region28
        $region27: #{tpu_custom_call.1} parent=11 // pred_region
          %s270 = ssub.s32 9216, 9216
          %271 = vsyncadd [#allocation6], %s270
          %s272 = sshll.u32 [#allocation5], 4
          %s273 = int_to_ptr.vmem [resolvable:$true] %s272
          %278 = dma.hbm_to_vmem [thread:$0]  %s4, 9216, %s273, [#allocation6], 64, 64, 4
        $region28: #{tpu_custom_call.1} parent=11 // pred_fallthru
          _
        // Predicated region
        $region29: #{tpu_custom_call.1} parent=11 // pred_check
          %p279 = pneg %p162
        $region30: #{tpu_custom_call.1} parent=11 // pred_check_branch
          %281 = sbr.rel (%p279) target = $region32
        $region31: #{tpu_custom_call.1} parent=11 // pred_region
          _
        $region32: #{tpu_custom_call.1} parent=11 // pred_fallthru
          _
        // Predicated region
        $region33: #{tpu_custom_call.1} parent=11 // pred_check
          %p282 = pneg %p183
        $region34: #{tpu_custom_call.1} parent=11 // pred_check_branch
          %284 = sbr.rel (%p282) target = $region36
        $region35: #{tpu_custom_call.1} parent=11 // pred_region
          %s286 = ssub.s32 1024, 1024
          %287 = vsyncadd [#allocation6], %s286
          %s288 = sshll.u32 [#allocation7], 4
          %s289 = int_to_ptr.vmem [resolvable:$true] %s288
          %294 = dma.hbm_to_vmem [thread:$0]  %s6, 1024, %s289, [#allocation6], 64, 64, 4
        $region36: #{tpu_custom_call.1} parent=11 // pred_fallthru
          _
        // Predicated region
        $region37: #{tpu_custom_call.1} parent=11 // pred_check
          %p295 = pneg %p204
        $region38: #{tpu_custom_call.1} parent=11 // pred_check_branch
          %297 = sbr.rel (%p295) target = $region40
        $region39: #{tpu_custom_call.1} parent=11 // pred_region
          _
        $region40: #{tpu_custom_call.1} parent=11 // pred_fallthru
          _
      $region12: #{tpu_custom_call.1} parent=5 // pred_fallthru
        _
      %p298 = scmp.lt.s32.totalorder %s19, 2
      // Predicated region
      $region41: #{tpu_custom_call.1} parent=5 // pred_check
        %p299 = pneg %p298
      $region42: #{tpu_custom_call.1} parent=5 // pred_check_branch
        %301 = sbr.rel (%p299) target = $region44
      $region43: #{tpu_custom_call.1} parent=5 // pred_region
        // Predicated region
        $region45: #{tpu_custom_call.1} parent=43 // pred_check
          %p302 = pneg %p51
        $region46: #{tpu_custom_call.1} parent=43 // pred_check_branch
          %304 = sbr.rel (%p302) target = $region48
        $region47: #{tpu_custom_call.1} parent=43 // pred_region
          %p305 = scmp.lt.s32.totalorder %s26, 1
          %s306 = scalar_select %p305, %s26, 1
          %s307 = smul.addr %s306, 54
          %s308 = smul.addr %s307, 4
          %s309 = scalar_lea.vmem %s0, %s308
        $region48: #{tpu_custom_call.1} parent=43 // pred_fallthru
          _
      $region44: #{tpu_custom_call.1} parent=5 // pred_fallthru
        _
      %p310 = scmp.le.s32.totalorder 1, %s19
      %p311 = scmp.lt.s32.totalorder %s19, 3
      %p312 = pnand %p310, %p311
      %p313 = pneg %p312
      // Predicated region
      $region49: #{tpu_custom_call.1} parent=5 // pred_check
        _
      $region50: #{tpu_custom_call.1} parent=5 // pred_check_branch
        %315 = sbr.rel (%p312) target = $region52
      $region51: #{tpu_custom_call.1} parent=5 // pred_region
        %s316 = ssub.s32 %s19, 1
        // Predicated region
        $region53: #{tpu_custom_call.1} parent=51 // pred_check
          %p317 = pneg %p99
        $region54: #{tpu_custom_call.1} parent=51 // pred_check_branch
          %319 = sbr.rel (%p317) target = $region56
        $region55: #{tpu_custom_call.1} parent=51 // pred_region
          %320 = dma.done [#allocation3], 1024
        $region56: #{tpu_custom_call.1} parent=51 // pred_fallthru
          _
        // Predicated region
        $region57: #{tpu_custom_call.1} parent=51 // pred_check
          %p321 = pneg %p141
        $region58: #{tpu_custom_call.1} parent=51 // pred_check_branch
          %323 = sbr.rel (%p321) target = $region60
        $region59: #{tpu_custom_call.1} parent=51 // pred_region
          %324 = dma.done [#allocation6], 9216
        $region60: #{tpu_custom_call.1} parent=51 // pred_fallthru
          _
        // Predicated region
        $region61: #{tpu_custom_call.1} parent=51 // pred_check
          %p325 = pneg %p183
        $region62: #{tpu_custom_call.1} parent=51 // pred_check_branch
          %327 = sbr.rel (%p325) target = $region64
        $region63: #{tpu_custom_call.1} parent=51 // pred_region
          %328 = dma.done [#allocation6], 1024
        $region64: #{tpu_custom_call.1} parent=51 // pred_fallthru
          _
        %p329 = scmp.lt.s32.totalorder %s28, 1
        %s330 = scalar_select %p329, %s28, 1
        %s331 = smul.addr %s330, 54
        %s332 = smul.addr %s331, 4
        %s333 = scalar_lea.vmem %s0, %s332
        %p334 = pneg %p57
        %p335 = pneg %p54
        %p336 = pneg %p78
        %p337 = pneg %p75
        %p338 = pneg %p99
        %p339 = pneg %p96
        %p340 = pneg %p120
        %p341 = pneg %p117
        %p342 = pneg %p141
        %p343 = pneg %p138
        %p344 = pneg %p162
        %p345 = pneg %p159
        %p346 = pneg %p183
        %p347 = pneg %p180
        %p348 = pneg %p204
        %p349 = pneg %p201
        %p350 = pneg %p232
        %p351 = pneg %p229
        %s352 = sand.u32 %s219, 1
        %s353 = scalar_lea.sflag [#allocation4], %s352
        %s354 = sand.u32 %s219, 1
        %s355 = smul.addr %s354, 384
        %s356 = scalar_lea.vmem [#allocation8], %s355
        %p357 = scmp.lt.s32.totalorder %s28, 1
        %s358 = scalar_select %p357, %s28, 1
        %s359 = smul.addr %s358, 54
        %s360 = smul.addr %s359, 4
        %s361 = scalar_lea.vmem %s0, %s360
        %s362 = smul.u32 48, %s29
        %s364 = smul.u32 %s29, 384
        %s365 = sshra.s32 %s364, 3
        %s366 = sand.u32 %s364, 7
        %s367 = smul.addr %s365, 4
        %s368 = scalar_lea.vmem %s361, %s367
        %v369 = vld [vmem:[%s368] sm:$0xf]
        %v370 = vld [vmem:[%s368 + $0x4] sm:$0xf]
        %v371 = vld [vmem:[%s368 + $0x8] sm:$0xf]
        %v372 = vld [vmem:[%s368 + $0xc] sm:$0xf]
        %v373 = vld [vmem:[%s368 + $0x10] sm:$0xf]
        %v374 = vld [vmem:[%s368 + $0x14] sm:$0xf]
        %v375 = vld [vmem:[%s368 + $0x18] sm:$0xf]
        %v376 = vld [vmem:[%s368 + $0x1c] sm:$0xf]
        %v377 = vld [vmem:[%s368 + $0x20] sm:$0xf]
        %v378 = vld [vmem:[%s368 + $0x24] sm:$0xf]
        %v379 = vld [vmem:[%s368 + $0x28] sm:$0xf]
        %v380 = vld [vmem:[%s368 + $0x2c] sm:$0xf]
        %v381 = vld [vmem:[%s368 + $0x30] sm:$0xf]
        %v382 = vld [vmem:[%s368 + $0x34] sm:$0xf]
        %v383 = vld [vmem:[%s368 + $0x38] sm:$0xf]
        %v384 = vld [vmem:[%s368 + $0x3c] sm:$0xf]
        %v385 = vld [vmem:[%s368 + $0x40] sm:$0xf]
        %v386 = vld [vmem:[%s368 + $0x44] sm:$0xf]
        %v387 = vld [vmem:[%s368 + $0x48] sm:$0xf]
        %v388 = vld [vmem:[%s368 + $0x4c] sm:$0xf]
        %v389 = vld [vmem:[%s368 + $0x50] sm:$0xf]
        %v390 = vld [vmem:[%s368 + $0x54] sm:$0xf]
        %v391 = vld [vmem:[%s368 + $0x58] sm:$0xf]
        %v392 = vld [vmem:[%s368 + $0x5c] sm:$0xf]
        %v393 = vld [vmem:[%s368 + $0x60] sm:$0xf]
        %v394 = vld [vmem:[%s368 + $0x64] sm:$0xf]
        %v395 = vld [vmem:[%s368 + $0x68] sm:$0xf]
        %v396 = vld [vmem:[%s368 + $0x6c] sm:$0xf]
        %v397 = vld [vmem:[%s368 + $0x70] sm:$0xf]
        %v398 = vld [vmem:[%s368 + $0x74] sm:$0xf]
        %v399 = vld [vmem:[%s368 + $0x78] sm:$0xf]
        %v400 = vld [vmem:[%s368 + $0x7c] sm:$0xf]
        %v401 = vld [vmem:[%s368 + $0x80] sm:$0xf]
        %v402 = vld [vmem:[%s368 + $0x84] sm:$0xf]
        %v403 = vld [vmem:[%s368 + $0x88] sm:$0xf]
        %v404 = vld [vmem:[%s368 + $0x8c] sm:$0xf]
        %v405 = vld [vmem:[%s368 + $0x90] sm:$0xf]
        %v406 = vld [vmem:[%s368 + $0x94] sm:$0xf]
        %v407 = vld [vmem:[%s368 + $0x98] sm:$0xf]
        %v408 = vld [vmem:[%s368 + $0x9c] sm:$0xf]
        %v409 = vld [vmem:[%s368 + $0xa0] sm:$0xf]
        %v410 = vld [vmem:[%s368 + $0xa4] sm:$0xf]
        %v411 = vld [vmem:[%s368 + $0xa8] sm:$0xf]
        %v412 = vld [vmem:[%s368 + $0xac] sm:$0xf]
        %v413 = vld [vmem:[%s368 + $0xb0] sm:$0xf]
        %v414 = vld [vmem:[%s368 + $0xb4] sm:$0xf]
        %v415 = vld [vmem:[%s368 + $0xb8] sm:$0xf]
        %v416 = vld [vmem:[%s368 + $0xbc] sm:$0xf]
        %v417 = vld [vmem:[%s368 + $0xc0] sm:$0xf]
        %v418 = vld [vmem:[%s368 + $0xc4] sm:$0xf]
        %v419 = vld [vmem:[%s368 + $0xc8] sm:$0xf]
        %v420 = vld [vmem:[%s368 + $0xcc] sm:$0xf]
        %v421 = vld [vmem:[%s368 + $0xd0] sm:$0xf]
        %v422 = vld [vmem:[%s368 + $0xd4] sm:$0xf]
        %s423 = scalar_lea.vmem %s1, %s364
        %v424 = vld [vmem:[%s423] sm:$0xff]
        %v425 = vld [vmem:[%s423 + $0x8] sm:$0xff]
        %v426 = vld [vmem:[%s423 + $0x10] sm:$0xff]
        %v427 = vld [vmem:[%s423 + $0x18] sm:$0xff]
        %v428 = vld [vmem:[%s423 + $0x20] sm:$0xff]
        %v429 = vld [vmem:[%s423 + $0x28] sm:$0xff]
        %v430 = vld [vmem:[%s423 + $0x30] sm:$0xff]
        %v431 = vld [vmem:[%s423 + $0x38] sm:$0xff]
        %v432 = vld [vmem:[%s423 + $0x40] sm:$0xff]
        %v433 = vld [vmem:[%s423 + $0x48] sm:$0xff]
        %v434 = vld [vmem:[%s423 + $0x50] sm:$0xff]
        %v435 = vld [vmem:[%s423 + $0x58] sm:$0xff]
        %v436 = vld [vmem:[%s423 + $0x60] sm:$0xff]
        %v437 = vld [vmem:[%s423 + $0x68] sm:$0xff]
        %v438 = vld [vmem:[%s423 + $0x70] sm:$0xff]
        %v439 = vld [vmem:[%s423 + $0x78] sm:$0xff]
        %v440 = vld [vmem:[%s423 + $0x80] sm:$0xff]
        %v441 = vld [vmem:[%s423 + $0x88] sm:$0xff]
        %v442 = vld [vmem:[%s423 + $0x90] sm:$0xff]
        %v443 = vld [vmem:[%s423 + $0x98] sm:$0xff]
        %v444 = vld [vmem:[%s423 + $0xa0] sm:$0xff]
        %v445 = vld [vmem:[%s423 + $0xa8] sm:$0xff]
        %v446 = vld [vmem:[%s423 + $0xb0] sm:$0xff]
        %v447 = vld [vmem:[%s423 + $0xb8] sm:$0xff]
        %v448 = vld [vmem:[%s423 + $0xc0] sm:$0xff]
        %v449 = vld [vmem:[%s423 + $0xc8] sm:$0xff]
        %v450 = vld [vmem:[%s423 + $0xd0] sm:$0xff]
        %v451 = vld [vmem:[%s423 + $0xd8] sm:$0xff]
        %v452 = vld [vmem:[%s423 + $0xe0] sm:$0xff]
        %v453 = vld [vmem:[%s423 + $0xe8] sm:$0xff]
        %v454 = vld [vmem:[%s423 + $0xf0] sm:$0xff]
        %v455 = vld [vmem:[%s423 + $0xf8] sm:$0xff]
        %v456 = vld [vmem:[%s423 + $0x100] sm:$0xff]
        %v457 = vld [vmem:[%s423 + $0x108] sm:$0xff]
        %v458 = vld [vmem:[%s423 + $0x110] sm:$0xff]
        %v459 = vld [vmem:[%s423 + $0x118] sm:$0xff]
        %v460 = vld [vmem:[%s423 + $0x120] sm:$0xff]
        %v461 = vld [vmem:[%s423 + $0x128] sm:$0xff]
        %v462 = vld [vmem:[%s423 + $0x130] sm:$0xff]
        %v463 = vld [vmem:[%s423 + $0x138] sm:$0xff]
        %v464 = vld [vmem:[%s423 + $0x140] sm:$0xff]
        %v465 = vld [vmem:[%s423 + $0x148] sm:$0xff]
        %v466 = vld [vmem:[%s423 + $0x150] sm:$0xff]
        %v467 = vld [vmem:[%s423 + $0x158] sm:$0xff]
        %v468 = vld [vmem:[%s423 + $0x160] sm:$0xff]
        %v469 = vld [vmem:[%s423 + $0x168] sm:$0xff]
        %v470 = vld [vmem:[%s423 + $0x170] sm:$0xff]
        %v471 = vld [vmem:[%s423 + $0x178] sm:$0xff]
        %v472 = vld [vmem:[%s423 + $0x180] sm:$0xff]
        %v473 = vld [vmem:[%s423 + $0x188] sm:$0xff]
        %v474 = vld [vmem:[%s423 + $0x190] sm:$0xff]
        %v475 = vld [vmem:[%s423 + $0x198] sm:$0xff]
        %v476 = vld [vmem:[%s423 + $0x1a0] sm:$0xff]
        %v477 = vld [vmem:[%s423 + $0x1a8] sm:$0xff]
        %v478 = vld [vmem:[#allocation2] sm:$0xf]
        %v479 = vld [vmem:[#allocation2 + $0x4] sm:$0xf]
        %v480 = vld [vmem:[#allocation2 + $0x8] sm:$0xf]
        %v481 = vld [vmem:[#allocation2 + $0xc] sm:$0xf]
        %v482 = vld [vmem:[#allocation2 + $0x10] sm:$0xf]
        %v483 = vld [vmem:[#allocation2 + $0x14] sm:$0xf]
        %v484 = vld [vmem:[#allocation2 + $0x18] sm:$0xf]
        %v485 = vld [vmem:[#allocation2 + $0x1c] sm:$0xf]
        %v486 = vld [vmem:[#allocation2 + $0x20] sm:$0xf]
        %v487 = vld [vmem:[#allocation2 + $0x24] sm:$0xf]
        %v488 = vld [vmem:[#allocation2 + $0x28] sm:$0xf]
        %v489 = vld [vmem:[#allocation2 + $0x2c] sm:$0xf]
        %v490 = vld [vmem:[#allocation2 + $0x30] sm:$0xf]
        %v491 = vld [vmem:[#allocation2 + $0x34] sm:$0xf]
        %v492 = vld [vmem:[#allocation2 + $0x38] sm:$0xf]
        %v493 = vld [vmem:[#allocation2 + $0x3c] sm:$0xf]
        %v494 = vld [vmem:[%s3] sm:$0x1]
        %v496 = vlaneseq
        %v497 = vshrl.u32 %v496, 7
        %v498 = vsub.s32 0, %v497
        %v499 = vrot.slane %v494, %v498
        %v555 = vunpack.c.l.b16 %v369
        %v556 = vunpack.c.l.b16 %v370
        %v557 = vunpack.c.l.b16 %v371
        %v558 = vunpack.c.l.b16 %v372
        %v559 = vunpack.c.l.b16 %v373
        %v560 = vunpack.c.l.b16 %v374
        %v561 = vunpack.c.l.b16 %v375
        %v562 = vunpack.c.l.b16 %v376
        %v563 = vunpack.c.l.b16 %v377
        %v564 = vunpack.c.l.b16 %v378
        %v565 = vunpack.c.l.b16 %v379
        %v566 = vunpack.c.l.b16 %v380
        %v567 = vunpack.c.l.b16 %v381
        %v568 = vunpack.c.l.b16 %v382
        %v569 = vunpack.c.l.b16 %v383
        %v570 = vunpack.c.l.b16 %v384
        %v571 = vunpack.c.l.b16 %v385
        %v572 = vunpack.c.l.b16 %v386
        %v573 = vunpack.c.l.b16 %v387
        %v574 = vunpack.c.l.b16 %v388
        %v575 = vunpack.c.l.b16 %v389
        %v576 = vunpack.c.l.b16 %v390
        %v577 = vunpack.c.l.b16 %v391
        %v578 = vunpack.c.l.b16 %v392
        %v579 = vunpack.c.l.b16 %v393
        %v580 = vunpack.c.l.b16 %v394
        %v581 = vunpack.c.l.b16 %v395
        %v582 = vunpack.c.l.b16 %v396
        %v583 = vunpack.c.l.b16 %v397
        %v584 = vunpack.c.l.b16 %v398
        %v585 = vunpack.c.l.b16 %v399
        %v586 = vunpack.c.l.b16 %v400
        %v587 = vunpack.c.l.b16 %v401
        %v588 = vunpack.c.l.b16 %v402
        %v589 = vunpack.c.l.b16 %v403
        %v590 = vunpack.c.l.b16 %v404
        %v591 = vunpack.c.l.b16 %v405
        %v592 = vunpack.c.l.b16 %v406
        %v593 = vunpack.c.l.b16 %v407
        %v594 = vunpack.c.l.b16 %v408
        %v595 = vunpack.c.l.b16 %v409
        %v596 = vunpack.c.l.b16 %v410
        %v597 = vunpack.c.l.b16 %v411
        %v598 = vunpack.c.l.b16 %v412
        %v599 = vunpack.c.l.b16 %v413
        %v600 = vunpack.c.l.b16 %v414
        %v601 = vunpack.c.l.b16 %v415
        %v602 = vunpack.c.l.b16 %v416
        %v603 = vunpack.c.l.b16 %v417
        %v604 = vunpack.c.l.b16 %v418
        %v605 = vunpack.c.l.b16 %v419
        %v606 = vunpack.c.l.b16 %v420
        %v607 = vunpack.c.l.b16 %v421
        %v608 = vunpack.c.l.b16 %v422
        %v609 = vpack.c.b16 %v556, %v555
        %v610 = vpack.c.b16 %v558, %v557
        %v611 = vpack.c.b16 %v560, %v559
        %v612 = vpack.c.b16 %v562, %v561
        %v613 = vpack.c.b16 %v564, %v563
        %v614 = vpack.c.b16 %v566, %v565
        %v615 = vpack.c.b16 %v568, %v567
        %v616 = vpack.c.b16 %v570, %v569
        %v617 = vpack.c.b16 %v572, %v571
        %v618 = vpack.c.b16 %v574, %v573
        %v619 = vpack.c.b16 %v576, %v575
        %v620 = vpack.c.b16 %v578, %v577
        %v621 = vpack.c.b16 %v580, %v579
        %v622 = vpack.c.b16 %v582, %v581
        %v623 = vpack.c.b16 %v584, %v583
        %v624 = vpack.c.b16 %v586, %v585
        %v625 = vpack.c.b16 %v588, %v587
        %v626 = vpack.c.b16 %v590, %v589
        %v627 = vpack.c.b16 %v592, %v591
        %v628 = vpack.c.b16 %v594, %v593
        %v629 = vpack.c.b16 %v596, %v595
        %v630 = vpack.c.b16 %v598, %v597
        %v631 = vpack.c.b16 %v600, %v599
        %v632 = vpack.c.b16 %v602, %v601
        %v633 = vpack.c.b16 %v604, %v603
        %v634 = vpack.c.b16 %v606, %v605
        %v635 = vpack.c.b16 %v608, %v607
        %v679 = vunpack.c.l.b16 %v478
        %v680 = vunpack.c.l.b16 %v479
        %v681 = vunpack.c.l.b16 %v480
        %v682 = vunpack.c.l.b16 %v481
        %v683 = vunpack.c.l.b16 %v482
        %v684 = vunpack.c.l.b16 %v483
        %v685 = vunpack.c.l.b16 %v484
        %v686 = vunpack.c.l.b16 %v485
        %v687 = vunpack.c.l.b16 %v486
        %v688 = vunpack.c.l.b16 %v487
        %v689 = vunpack.c.l.b16 %v488
        %v690 = vunpack.c.l.b16 %v489
        %v691 = vunpack.c.l.b16 %v490
        %v692 = vunpack.c.l.b16 %v491
        %v693 = vunpack.c.l.b16 %v492
        %v694 = vunpack.c.l.b16 %v493
        %v695 = vpack.c.b16 %v680, %v679
        %v696 = vpack.c.b16 %v682, %v681
        %v697 = vpack.c.b16 %v684, %v683
        %v698 = vpack.c.b16 %v686, %v685
        %v699 = vpack.c.b16 %v688, %v687
        %v700 = vpack.c.b16 %v690, %v689
        %v701 = vpack.c.b16 %v692, %v691
        %v702 = vpack.c.b16 %v694, %v693
        %711 = vmatprep.subr.bf16.mxu0 0
        %712 = vmatpush1.bf16.msra.mxu0 %v695
        %713 = vmatprep.subr.bf16.mxu0 0
        %714 = vmatpush1.bf16.msra.mxu0 %v696
        %715 = vmatprep.subr.bf16.mxu0 0
        %716 = vmatpush1.bf16.msra.mxu0 %v697
        %717 = vmatprep.subr.bf16.mxu0 0
        %718 = vmatpush1.bf16.msra.mxu0 %v698
        %719 = vmatprep.subr.bf16.mxu0 0
        %720 = vmatpush1.bf16.msra.mxu0 %v699
        %721 = vmatprep.subr.bf16.mxu0 0
        %722 = vmatpush1.bf16.msra.mxu0 %v700
        %723 = vmatprep.subr.bf16.mxu0 0
        %724 = vmatpush1.bf16.msra.mxu0 %v701
        %725 = vmatprep.subr.bf16.mxu0 0
        %726 = vmatpush1.bf16.msra.mxu0 %v702
        %727 = vmatprep.subr.bf16.mxu0 0
        %728 = vmatpush1.bf16.msra.mxu0 0
        %729 = vmatprep.subr.bf16.mxu0 0
        %730 = vmatpush1.bf16.msra.mxu0 0
        %731 = vmatprep.subr.bf16.mxu0 0
        %732 = vmatpush1.bf16.msra.mxu0 0
        %733 = vmatprep.subr.bf16.mxu0 0
        %734 = vmatpush1.bf16.msra.mxu0 0
        %735 = vmatprep.subr.bf16.mxu0 0
        %736 = vmatpush1.bf16.msra.mxu0 0
        %737 = vmatprep.subr.bf16.mxu0 0
        %738 = vmatpush1.bf16.msra.mxu0 0
        %739 = vmatprep.subr.bf16.mxu0 0
        %740 = vmatpush1.bf16.msra.mxu0 0
        %741 = vmatprep.subr.bf16.mxu0 0
        %742 = vmatpush1.bf16.msra.mxu0 0
        %743 = vmatprep.mubr.bf16.mxu0 0
        %744 = vmatmul.mubr.bf16.gmra.mrb[0].mxu0 %v609
        %v745 = vpop.f32.mrb[0].mxu0
        %v746 = vadd.f32 %v499, %v745
        %v747 = vpop.f32.mrb[0].mxu0
        %v748 = vpop.f32.mrb[0].mxu0
        %v749 = vadd.f32 %v499, %v748
        %v750 = vpop.f32.mrb[0].mxu0
        %751 = vmatprep.mubr.bf16.mxu0 0
        %752 = vmatmul.mubr.bf16.gmra.mrb[0].mxu0 %v610
        %v753 = vpop.f32.mrb[0].mxu0
        %v754 = vadd.f32 %v499, %v753
        %v755 = vpop.f32.mrb[0].mxu0
        %v756 = vpop.f32.mrb[0].mxu0
        %v757 = vadd.f32 %v499, %v756
        %v758 = vpop.f32.mrb[0].mxu0
        %759 = vmatprep.mubr.bf16.mxu0 0
        %760 = vmatmul.mubr.bf16.gmra.mrb[0].mxu0 %v611
        %v761 = vpop.f32.mrb[0].mxu0
        %v762 = vadd.f32 %v499, %v761
        %v763 = vpop.f32.mrb[0].mxu0
        %v764 = vpop.f32.mrb[0].mxu0
        %v765 = vadd.f32 %v499, %v764
        %v766 = vpop.f32.mrb[0].mxu0
        %767 = vmatprep.mubr.bf16.mxu0 0
        %768 = vmatmul.mubr.bf16.gmra.mrb[0].mxu0 %v612
        %v769 = vpop.f32.mrb[0].mxu0
        %v770 = vadd.f32 %v499, %v769
        %v771 = vpop.f32.mrb[0].mxu0
        %v772 = vpop.f32.mrb[0].mxu0
        %v773 = vadd.f32 %v499, %v772
        %v774 = vpop.f32.mrb[0].mxu0
        %775 = vmatprep.mubr.bf16.mxu0 0
        %776 = vmatmul.mubr.bf16.gmra.mrb[0].mxu0 %v613
        %v777 = vpop.f32.mrb[0].mxu0
        %v778 = vadd.f32 %v499, %v777
        %v779 = vpop.f32.mrb[0].mxu0
        %v780 = vpop.f32.mrb[0].mxu0
        %v781 = vadd.f32 %v499, %v780
        %v782 = vpop.f32.mrb[0].mxu0
        %783 = vmatprep.mubr.bf16.mxu0 0
        %784 = vmatmul.mubr.bf16.gmra.mrb[0].mxu0 %v614
        %v785 = vpop.f32.mrb[0].mxu0
        %v786 = vadd.f32 %v499, %v785
        %v787 = vpop.f32.mrb[0].mxu0
        %v788 = vpop.f32.mrb[0].mxu0
        %v789 = vadd.f32 %v499, %v788
        %v790 = vpop.f32.mrb[0].mxu0
        %791 = vmatprep.mubr.bf16.mxu0 0
        %792 = vmatmul.mubr.bf16.gmra.mrb[0].mxu0 %v615
        %v793 = vpop.f32.mrb[0].mxu0
        %v794 = vadd.f32 %v499, %v793
        %v795 = vpop.f32.mrb[0].mxu0
        %v796 = vpop.f32.mrb[0].mxu0
        %v797 = vadd.f32 %v499, %v796
        %v798 = vpop.f32.mrb[0].mxu0
        %799 = vmatprep.mubr.bf16.mxu0 0
        %800 = vmatmul.mubr.bf16.gmra.mrb[0].mxu0 %v616
        %v801 = vpop.f32.mrb[0].mxu0
        %v802 = vadd.f32 %v499, %v801
        %v803 = vpop.f32.mrb[0].mxu0
        %v804 = vpop.f32.mrb[0].mxu0
        %v805 = vadd.f32 %v499, %v804
        %v806 = vpop.f32.mrb[0].mxu0
        %807 = vmatprep.mubr.bf16.mxu0 0
        %808 = vmatmul.mubr.bf16.gmra.mrb[0].mxu0 %v617
        %v809 = vpop.f32.mrb[0].mxu0
        %v810 = vadd.f32 %v499, %v809
        %v811 = vpop.f32.mrb[0].mxu0
        %v812 = vpop.f32.mrb[0].mxu0
        %v813 = vadd.f32 %v499, %v812
        %v814 = vpop.f32.mrb[0].mxu0
        %815 = vmatprep.mubr.bf16.mxu0 0
        %816 = vmatmul.mubr.bf16.gmra.mrb[0].mxu0 %v618
        %v817 = vpop.f32.mrb[0].mxu0
        %v818 = vadd.f32 %v499, %v817
        %v819 = vpop.f32.mrb[0].mxu0
        %v820 = vpop.f32.mrb[0].mxu0
        %v821 = vadd.f32 %v499, %v820
        %v822 = vpop.f32.mrb[0].mxu0
        %823 = vmatprep.mubr.bf16.mxu0 0
        %824 = vmatmul.mubr.bf16.gmra.mrb[0].mxu0 %v619
        %v825 = vpop.f32.mrb[0].mxu0
        %v826 = vadd.f32 %v499, %v825
        %v827 = vpop.f32.mrb[0].mxu0
        %v828 = vpop.f32.mrb[0].mxu0
        %v829 = vadd.f32 %v499, %v828
        %v830 = vpop.f32.mrb[0].mxu0
        %831 = vmatprep.mubr.bf16.mxu0 0
        %832 = vmatmul.mubr.bf16.gmra.mrb[0].mxu0 %v620
        %v833 = vpop.f32.mrb[0].mxu0
        %v834 = vadd.f32 %v499, %v833
        %v835 = vpop.f32.mrb[0].mxu0
        %v836 = vpop.f32.mrb[0].mxu0
        %v837 = vadd.f32 %v499, %v836
        %v838 = vpop.f32.mrb[0].mxu0
        %839 = vmatprep.mubr.bf16.mxu0 0
        %840 = vmatmul.mubr.bf16.gmra.mrb[0].mxu0 %v621
        %v841 = vpop.f32.mrb[0].mxu0
        %v842 = vadd.f32 %v499, %v841
        %v843 = vpop.f32.mrb[0].mxu0
        %v844 = vpop.f32.mrb[0].mxu0
        %v845 = vadd.f32 %v499, %v844
        %v846 = vpop.f32.mrb[0].mxu0
        %847 = vmatprep.mubr.bf16.mxu0 0
        %848 = vmatmul.mubr.bf16.gmra.mrb[0].mxu0 %v622
        %v849 = vpop.f32.mrb[0].mxu0
        %v850 = vadd.f32 %v499, %v849
        %v851 = vpop.f32.mrb[0].mxu0
        %v852 = vpop.f32.mrb[0].mxu0
        %v853 = vadd.f32 %v499, %v852
        %v854 = vpop.f32.mrb[0].mxu0
        %855 = vmatprep.mubr.bf16.mxu0 0
        %856 = vmatmul.mubr.bf16.gmra.mrb[0].mxu0 %v623
        %v857 = vpop.f32.mrb[0].mxu0
        %v858 = vadd.f32 %v499, %v857
        %v859 = vpop.f32.mrb[0].mxu0
        %v860 = vpop.f32.mrb[0].mxu0
        %v861 = vadd.f32 %v499, %v860
        %v862 = vpop.f32.mrb[0].mxu0
        %863 = vmatprep.mubr.bf16.mxu0 0
        %864 = vmatmul.mubr.bf16.gmra.mrb[0].mxu0 %v624
        %v865 = vpop.f32.mrb[0].mxu0
        %v866 = vadd.f32 %v499, %v865
        %v867 = vpop.f32.mrb[0].mxu0
        %v868 = vpop.f32.mrb[0].mxu0
        %v869 = vadd.f32 %v499, %v868
        %v870 = vpop.f32.mrb[0].mxu0
        %871 = vmatprep.mubr.bf16.mxu0 0
        %872 = vmatmul.mubr.bf16.gmra.mrb[0].mxu0 %v625
        %v873 = vpop.f32.mrb[0].mxu0
        %v874 = vadd.f32 %v499, %v873
        %v875 = vpop.f32.mrb[0].mxu0
        %v876 = vpop.f32.mrb[0].mxu0
        %v877 = vadd.f32 %v499, %v876
        %v878 = vpop.f32.mrb[0].mxu0
        %879 = vmatprep.mubr.bf16.mxu0 0
        %880 = vmatmul.mubr.bf16.gmra.mrb[0].mxu0 %v626
        %v881 = vpop.f32.mrb[0].mxu0
        %v882 = vadd.f32 %v499, %v881
        %v883 = vpop.f32.mrb[0].mxu0
        %v884 = vpop.f32.mrb[0].mxu0
        %v885 = vadd.f32 %v499, %v884
        %v886 = vpop.f32.mrb[0].mxu0
        %887 = vmatprep.mubr.bf16.mxu0 0
        %888 = vmatmul.mubr.bf16.gmra.mrb[0].mxu0 %v627
        %v889 = vpop.f32.mrb[0].mxu0
        %v890 = vadd.f32 %v499, %v889
        %v891 = vpop.f32.mrb[0].mxu0
        %v892 = vpop.f32.mrb[0].mxu0
        %v893 = vadd.f32 %v499, %v892
        %v894 = vpop.f32.mrb[0].mxu0
        %895 = vmatprep.mubr.bf16.mxu0 0
        %896 = vmatmul.mubr.bf16.gmra.mrb[0].mxu0 %v628
        %v897 = vpop.f32.mrb[0].mxu0
        %v898 = vadd.f32 %v499, %v897
        %v899 = vpop.f32.mrb[0].mxu0
        %v900 = vpop.f32.mrb[0].mxu0
        %v901 = vadd.f32 %v499, %v900
        %v902 = vpop.f32.mrb[0].mxu0
        %903 = vmatprep.mubr.bf16.mxu0 0
        %904 = vmatmul.mubr.bf16.gmra.mrb[0].mxu0 %v629
        %v905 = vpop.f32.mrb[0].mxu0
        %v906 = vadd.f32 %v499, %v905
        %v907 = vpop.f32.mrb[0].mxu0
        %v908 = vpop.f32.mrb[0].mxu0
        %v909 = vadd.f32 %v499, %v908
        %v910 = vpop.f32.mrb[0].mxu0
        %911 = vmatprep.mubr.bf16.mxu0 0
        %912 = vmatmul.mubr.bf16.gmra.mrb[0].mxu0 %v630
        %v913 = vpop.f32.mrb[0].mxu0
        %v914 = vadd.f32 %v499, %v913
        %v915 = vpop.f32.mrb[0].mxu0
        %v916 = vpop.f32.mrb[0].mxu0
        %v917 = vadd.f32 %v499, %v916
        %v918 = vpop.f32.mrb[0].mxu0
        %919 = vmatprep.mubr.bf16.mxu0 0
        %920 = vmatmul.mubr.bf16.gmra.mrb[0].mxu0 %v631
        %v921 = vpop.f32.mrb[0].mxu0
        %v922 = vadd.f32 %v499, %v921
        %v923 = vpop.f32.mrb[0].mxu0
        %v924 = vpop.f32.mrb[0].mxu0
        %v925 = vadd.f32 %v499, %v924
        %v926 = vpop.f32.mrb[0].mxu0
        %927 = vmatprep.mubr.bf16.mxu0 0
        %928 = vmatmul.mubr.bf16.gmra.mrb[0].mxu0 %v632
        %v929 = vpop.f32.mrb[0].mxu0
        %v930 = vadd.f32 %v499, %v929
        %v931 = vpop.f32.mrb[0].mxu0
        %v932 = vpop.f32.mrb[0].mxu0
        %v933 = vadd.f32 %v499, %v932
        %v934 = vpop.f32.mrb[0].mxu0
        %935 = vmatprep.mubr.bf16.mxu0 0
        %936 = vmatmul.mubr.bf16.gmra.mrb[0].mxu0 %v633
        %v937 = vpop.f32.mrb[0].mxu0
        %v938 = vadd.f32 %v499, %v937
        %v939 = vpop.f32.mrb[0].mxu0
        %v940 = vpop.f32.mrb[0].mxu0
        %v941 = vadd.f32 %v499, %v940
        %v942 = vpop.f32.mrb[0].mxu0
        %943 = vmatprep.mubr.bf16.mxu0 0
        %944 = vmatmul.mubr.bf16.gmra.mrb[0].mxu0 %v634
        %v945 = vpop.f32.mrb[0].mxu0
        %v946 = vadd.f32 %v499, %v945
        %v947 = vpop.f32.mrb[0].mxu0
        %v948 = vpop.f32.mrb[0].mxu0
        %v949 = vadd.f32 %v499, %v948
        %v950 = vpop.f32.mrb[0].mxu0
        %951 = vmatprep.mubr.bf16.mxu0 0
        %952 = vmatmul.mubr.bf16.gmra.mrb[0].mxu0 %v635
        %v953 = vpop.f32.mrb[0].mxu0
        %v954 = vadd.f32 %v499, %v953
        %v955 = vpop.f32.mrb[0].mxu0
        %v956 = vpop.f32.mrb[0].mxu0
        %v957 = vadd.f32 %v499, %v956
        %v958 = vpop.f32.mrb[0].mxu0
        %959 = vdwg.mxu0
        %v960 = vmax.f32 %v746, 0.0
        %v961 = vmax.f32 %v749, 0.0
        %v962 = vmax.f32 %v754, 0.0
        %v963 = vmax.f32 %v757, 0.0
        %v964 = vmax.f32 %v762, 0.0
        %v965 = vmax.f32 %v765, 0.0
        %v966 = vmax.f32 %v770, 0.0
        %v967 = vmax.f32 %v773, 0.0
        %v968 = vmax.f32 %v778, 0.0
        %v969 = vmax.f32 %v781, 0.0
        %v970 = vmax.f32 %v786, 0.0
        %v971 = vmax.f32 %v789, 0.0
        %v972 = vmax.f32 %v794, 0.0
        %v973 = vmax.f32 %v797, 0.0
        %v974 = vmax.f32 %v802, 0.0
        %v975 = vmax.f32 %v805, 0.0
        %v976 = vmax.f32 %v810, 0.0
        %v977 = vmax.f32 %v813, 0.0
        %v978 = vmax.f32 %v818, 0.0
        %v979 = vmax.f32 %v821, 0.0
        %v980 = vmax.f32 %v826, 0.0
        %v981 = vmax.f32 %v829, 0.0
        %v982 = vmax.f32 %v834, 0.0
        %v983 = vmax.f32 %v837, 0.0
        %v984 = vmax.f32 %v842, 0.0
        %v985 = vmax.f32 %v845, 0.0
        %v986 = vmax.f32 %v850, 0.0
        %v987 = vmax.f32 %v853, 0.0
        %v988 = vmax.f32 %v858, 0.0
        %v989 = vmax.f32 %v861, 0.0
        %v990 = vmax.f32 %v866, 0.0
        %v991 = vmax.f32 %v869, 0.0
        %v992 = vmax.f32 %v874, 0.0
        %v993 = vmax.f32 %v877, 0.0
        %v994 = vmax.f32 %v882, 0.0
        %v995 = vmax.f32 %v885, 0.0
        %v996 = vmax.f32 %v890, 0.0
        %v997 = vmax.f32 %v893, 0.0
        %v998 = vmax.f32 %v898, 0.0
        %v999 = vmax.f32 %v901, 0.0
        %v1000 = vmax.f32 %v906, 0.0
        %v1001 = vmax.f32 %v909, 0.0
        %v1002 = vmax.f32 %v914, 0.0
        %v1003 = vmax.f32 %v917, 0.0
        %v1004 = vmax.f32 %v922, 0.0
        %v1005 = vmax.f32 %v925, 0.0
        %v1006 = vmax.f32 %v930, 0.0
        %v1007 = vmax.f32 %v933, 0.0
        %v1008 = vmax.f32 %v938, 0.0
        %v1009 = vmax.f32 %v941, 0.0
        %v1010 = vmax.f32 %v946, 0.0
        %v1011 = vmax.f32 %v949, 0.0
        %v1012 = vmax.f32 %v954, 0.0
        %v1013 = vmax.f32 %v957, 0.0
        %1015 = vset.pattern.permute.xlu0 0
        %1016 = vperm.xlu0 %1015, %v424
        %v1017 = vpop.permute.xlu0 %1016
        %1020 = vset.pattern.permute.xlu0 0
        %1021 = vperm.xlu0 %1020, %v425
        %v1022 = vpop.permute.xlu0 %1021
        %1025 = vset.pattern.permute.xlu0 0
        %1026 = vperm.xlu0 %1025, %v426
        %v1027 = vpop.permute.xlu0 %1026
        %1030 = vset.pattern.permute.xlu0 0
        %1031 = vperm.xlu0 %1030, %v427
        %v1032 = vpop.permute.xlu0 %1031
        %1035 = vset.pattern.permute.xlu0 0
        %1036 = vperm.xlu0 %1035, %v428
        %v1037 = vpop.permute.xlu0 %1036
        %1040 = vset.pattern.permute.xlu0 0
        %1041 = vperm.xlu0 %1040, %v429
        %v1042 = vpop.permute.xlu0 %1041
        %1045 = vset.pattern.permute.xlu0 0
        %1046 = vperm.xlu0 %1045, %v430
        %v1047 = vpop.permute.xlu0 %1046
        %1050 = vset.pattern.permute.xlu0 0
        %1051 = vperm.xlu0 %1050, %v431
        %v1052 = vpop.permute.xlu0 %1051
        %1055 = vset.pattern.permute.xlu0 0
        %1056 = vperm.xlu0 %1055, %v432
        %v1057 = vpop.permute.xlu0 %1056
        %1060 = vset.pattern.permute.xlu0 0
        %1061 = vperm.xlu0 %1060, %v433
        %v1062 = vpop.permute.xlu0 %1061
        %1065 = vset.pattern.permute.xlu0 0
        %1066 = vperm.xlu0 %1065, %v434
        %v1067 = vpop.permute.xlu0 %1066
        %1070 = vset.pattern.permute.xlu0 0
        %1071 = vperm.xlu0 %1070, %v435
        %v1072 = vpop.permute.xlu0 %1071
        %1075 = vset.pattern.permute.xlu0 0
        %1076 = vperm.xlu0 %1075, %v436
        %v1077 = vpop.permute.xlu0 %1076
        %1080 = vset.pattern.permute.xlu0 0
        %1081 = vperm.xlu0 %1080, %v437
        %v1082 = vpop.permute.xlu0 %1081
        %1085 = vset.pattern.permute.xlu0 0
        %1086 = vperm.xlu0 %1085, %v438
        %v1087 = vpop.permute.xlu0 %1086
        %1090 = vset.pattern.permute.xlu0 0
        %1091 = vperm.xlu0 %1090, %v439
        %v1092 = vpop.permute.xlu0 %1091
        %1095 = vset.pattern.permute.xlu0 0
        %1096 = vperm.xlu0 %1095, %v440
        %v1097 = vpop.permute.xlu0 %1096
        %1100 = vset.pattern.permute.xlu0 0
        %1101 = vperm.xlu0 %1100, %v441
        %v1102 = vpop.permute.xlu0 %1101
        %1105 = vset.pattern.permute.xlu0 0
        %1106 = vperm.xlu0 %1105, %v442
        %v1107 = vpop.permute.xlu0 %1106
        %1110 = vset.pattern.permute.xlu0 0
        %1111 = vperm.xlu0 %1110, %v443
        %v1112 = vpop.permute.xlu0 %1111
        %1115 = vset.pattern.permute.xlu0 0
        %1116 = vperm.xlu0 %1115, %v444
        %v1117 = vpop.permute.xlu0 %1116
        %1120 = vset.pattern.permute.xlu0 0
        %1121 = vperm.xlu0 %1120, %v445
        %v1122 = vpop.permute.xlu0 %1121
        %1125 = vset.pattern.permute.xlu0 0
        %1126 = vperm.xlu0 %1125, %v446
        %v1127 = vpop.permute.xlu0 %1126
        %1130 = vset.pattern.permute.xlu0 0
        %1131 = vperm.xlu0 %1130, %v447
        %v1132 = vpop.permute.xlu0 %1131
        %1135 = vset.pattern.permute.xlu0 0
        %1136 = vperm.xlu0 %1135, %v448
        %v1137 = vpop.permute.xlu0 %1136
        %1140 = vset.pattern.permute.xlu0 0
        %1141 = vperm.xlu0 %1140, %v449
        %v1142 = vpop.permute.xlu0 %1141
        %1145 = vset.pattern.permute.xlu0 0
        %1146 = vperm.xlu0 %1145, %v450
        %v1147 = vpop.permute.xlu0 %1146
        %1150 = vset.pattern.permute.xlu0 0
        %1151 = vperm.xlu0 %1150, %v451
        %v1152 = vpop.permute.xlu0 %1151
        %1155 = vset.pattern.permute.xlu0 0
        %1156 = vperm.xlu0 %1155, %v452
        %v1157 = vpop.permute.xlu0 %1156
        %1160 = vset.pattern.permute.xlu0 0
        %1161 = vperm.xlu0 %1160, %v453
        %v1162 = vpop.permute.xlu0 %1161
        %1165 = vset.pattern.permute.xlu0 0
        %1166 = vperm.xlu0 %1165, %v454
        %v1167 = vpop.permute.xlu0 %1166
        %1170 = vset.pattern.permute.xlu0 0
        %1171 = vperm.xlu0 %1170, %v455
        %v1172 = vpop.permute.xlu0 %1171
        %1175 = vset.pattern.permute.xlu0 0
        %1176 = vperm.xlu0 %1175, %v456
        %v1177 = vpop.permute.xlu0 %1176
        %1180 = vset.pattern.permute.xlu0 0
        %1181 = vperm.xlu0 %1180, %v457
        %v1182 = vpop.permute.xlu0 %1181
        %1185 = vset.pattern.permute.xlu0 0
        %1186 = vperm.xlu0 %1185, %v458
        %v1187 = vpop.permute.xlu0 %1186
        %1190 = vset.pattern.permute.xlu0 0
        %1191 = vperm.xlu0 %1190, %v459
        %v1192 = vpop.permute.xlu0 %1191
        %1195 = vset.pattern.permute.xlu0 0
        %1196 = vperm.xlu0 %1195, %v460
        %v1197 = vpop.permute.xlu0 %1196
        %1200 = vset.pattern.permute.xlu0 0
        %1201 = vperm.xlu0 %1200, %v461
        %v1202 = vpop.permute.xlu0 %1201
        %1205 = vset.pattern.permute.xlu0 0
        %1206 = vperm.xlu0 %1205, %v462
        %v1207 = vpop.permute.xlu0 %1206
        %1210 = vset.pattern.permute.xlu0 0
        %1211 = vperm.xlu0 %1210, %v463
        %v1212 = vpop.permute.xlu0 %1211
        %1215 = vset.pattern.permute.xlu0 0
        %1216 = vperm.xlu0 %1215, %v464
        %v1217 = vpop.permute.xlu0 %1216
        %1220 = vset.pattern.permute.xlu0 0
        %1221 = vperm.xlu0 %1220, %v465
        %v1222 = vpop.permute.xlu0 %1221
        %1225 = vset.pattern.permute.xlu0 0
        %1226 = vperm.xlu0 %1225, %v466
        %v1227 = vpop.permute.xlu0 %1226
        %1230 = vset.pattern.permute.xlu0 0
        %1231 = vperm.xlu0 %1230, %v467
        %v1232 = vpop.permute.xlu0 %1231
        %1235 = vset.pattern.permute.xlu0 0
        %1236 = vperm.xlu0 %1235, %v468
        %v1237 = vpop.permute.xlu0 %1236
        %1240 = vset.pattern.permute.xlu0 0
        %1241 = vperm.xlu0 %1240, %v469
        %v1242 = vpop.permute.xlu0 %1241
        %1245 = vset.pattern.permute.xlu0 0
        %1246 = vperm.xlu0 %1245, %v470
        %v1247 = vpop.permute.xlu0 %1246
        %1250 = vset.pattern.permute.xlu0 0
        %1251 = vperm.xlu0 %1250, %v471
        %v1252 = vpop.permute.xlu0 %1251
        %1255 = vset.pattern.permute.xlu0 0
        %1256 = vperm.xlu0 %1255, %v472
        %v1257 = vpop.permute.xlu0 %1256
        %1260 = vset.pattern.permute.xlu0 0
        %1261 = vperm.xlu0 %1260, %v473
        %v1262 = vpop.permute.xlu0 %1261
        %1265 = vset.pattern.permute.xlu0 0
        %1266 = vperm.xlu0 %1265, %v474
        %v1267 = vpop.permute.xlu0 %1266
        %1270 = vset.pattern.permute.xlu0 0
        %1271 = vperm.xlu0 %1270, %v475
        %v1272 = vpop.permute.xlu0 %1271
        %1275 = vset.pattern.permute.xlu0 0
        %1276 = vperm.xlu0 %1275, %v476
        %v1277 = vpop.permute.xlu0 %1276
        %1280 = vset.pattern.permute.xlu0 0
        %1281 = vperm.xlu0 %1280, %v477
        %v1282 = vpop.permute.xlu0 %1281
        %v1284 = vmul.f32 %v960, %v1017
        %v1285 = vmul.f32 %v961, %v1022
        %v1286 = vmul.f32 %v962, %v1027
        %v1287 = vmul.f32 %v963, %v1032
        %v1288 = vmul.f32 %v964, %v1037
        %v1289 = vmul.f32 %v965, %v1042
        %v1290 = vmul.f32 %v966, %v1047
        %v1291 = vmul.f32 %v967, %v1052
        %v1292 = vmul.f32 %v968, %v1057
        %v1293 = vmul.f32 %v969, %v1062
        %v1294 = vmul.f32 %v970, %v1067
        %v1295 = vmul.f32 %v971, %v1072
        %v1296 = vmul.f32 %v972, %v1077
        %v1297 = vmul.f32 %v973, %v1082
        %v1298 = vmul.f32 %v974, %v1087
        %v1299 = vmul.f32 %v975, %v1092
        %v1300 = vmul.f32 %v976, %v1097
        %v1301 = vmul.f32 %v977, %v1102
        %v1302 = vmul.f32 %v978, %v1107
        %v1303 = vmul.f32 %v979, %v1112
        %v1304 = vmul.f32 %v980, %v1117
        %v1305 = vmul.f32 %v981, %v1122
        %v1306 = vmul.f32 %v982, %v1127
        %v1307 = vmul.f32 %v983, %v1132
        %v1308 = vmul.f32 %v984, %v1137
        %v1309 = vmul.f32 %v985, %v1142
        %v1310 = vmul.f32 %v986, %v1147
        %v1311 = vmul.f32 %v987, %v1152
        %v1312 = vmul.f32 %v988, %v1157
        %v1313 = vmul.f32 %v989, %v1162
        %v1314 = vmul.f32 %v990, %v1167
        %v1315 = vmul.f32 %v991, %v1172
        %v1316 = vmul.f32 %v992, %v1177
        %v1317 = vmul.f32 %v993, %v1182
        %v1318 = vmul.f32 %v994, %v1187
        %v1319 = vmul.f32 %v995, %v1192
        %v1320 = vmul.f32 %v996, %v1197
        %v1321 = vmul.f32 %v997, %v1202
        %v1322 = vmul.f32 %v998, %v1207
        %v1323 = vmul.f32 %v999, %v1212
        %v1324 = vmul.f32 %v1000, %v1217
        %v1325 = vmul.f32 %v1001, %v1222
        %v1326 = vmul.f32 %v1002, %v1227
        %v1327 = vmul.f32 %v1003, %v1232
        %v1328 = vmul.f32 %v1004, %v1237
        %v1329 = vmul.f32 %v1005, %v1242
        %v1330 = vmul.f32 %v1006, %v1247
        %v1331 = vmul.f32 %v1007, %v1252
        %v1332 = vmul.f32 %v1008, %v1257
        %v1333 = vmul.f32 %v1009, %v1262
        %v1334 = vmul.f32 %v1010, %v1267
        %v1335 = vmul.f32 %v1011, %v1272
        %v1336 = vmul.f32 %v1012, %v1277
        %v1337 = vmul.f32 %v1013, %v1282
        %v1338 = vpack.c.bf16 %v1285, %v1284
        %v1339 = vpack.c.bf16 %v1287, %v1286
        %v1340 = vpack.c.bf16 %v1289, %v1288
        %v1341 = vpack.c.bf16 %v1291, %v1290
        %v1342 = vpack.c.bf16 %v1293, %v1292
        %v1343 = vpack.c.bf16 %v1295, %v1294
        %v1344 = vpack.c.bf16 %v1297, %v1296
        %v1345 = vpack.c.bf16 %v1299, %v1298
        %v1346 = vpack.c.bf16 %v1301, %v1300
        %v1347 = vpack.c.bf16 %v1303, %v1302
        %v1348 = vpack.c.bf16 %v1305, %v1304
        %v1349 = vpack.c.bf16 %v1307, %v1306
        %v1350 = vpack.c.bf16 %v1309, %v1308
        %v1351 = vpack.c.bf16 %v1311, %v1310
        %v1352 = vpack.c.bf16 %v1313, %v1312
        %v1353 = vpack.c.bf16 %v1315, %v1314
        %v1354 = vpack.c.bf16 %v1317, %v1316
        %v1355 = vpack.c.bf16 %v1319, %v1318
        %v1356 = vpack.c.bf16 %v1321, %v1320
        %v1357 = vpack.c.bf16 %v1323, %v1322
        %v1358 = vpack.c.bf16 %v1325, %v1324
        %v1359 = vpack.c.bf16 %v1327, %v1326
        %v1360 = vpack.c.bf16 %v1329, %v1328
        %v1361 = vpack.c.bf16 %v1331, %v1330
        %v1362 = vpack.c.bf16 %v1333, %v1332
        %v1363 = vpack.c.bf16 %v1335, %v1334
        %v1364 = vpack.c.bf16 %v1337, %v1336
        %vm1365 = vsmask.f32 256
        %v1367 = vshrl.u32 %v1338, 16
        %v1369 = vrot.slane %v1367, 7
        %v1370 = vshll.u32 %v1338, 16
        %v1372 = vor.u32 %v1369, %v1370
        %v1374 = vshrl.u32 %v1339, 16
        %v1376 = vrot.slane %v1374, 7
        %v1377 = vshll.u32 %v1339, 16
        %v1379 = vor.u32 %v1376, %v1377
        %v1380 = vsel %vm1365, %v1369, %v1379
        %v1382 = vshrl.u32 %v1340, 16
        %v1384 = vrot.slane %v1382, 7
        %v1385 = vshll.u32 %v1340, 16
        %v1387 = vor.u32 %v1384, %v1385
        %v1388 = vsel %vm1365, %v1376, %v1387
        %v1390 = vshrl.u32 %v1341, 16
        %v1392 = vrot.slane %v1390, 7
        %v1393 = vshll.u32 %v1341, 16
        %v1395 = vor.u32 %v1392, %v1393
        %v1396 = vsel %vm1365, %v1384, %v1395
        %v1398 = vshrl.u32 %v1342, 16
        %v1400 = vrot.slane %v1398, 7
        %v1401 = vshll.u32 %v1342, 16
        %v1403 = vor.u32 %v1400, %v1401
        %v1404 = vsel %vm1365, %v1392, %v1403
        %v1406 = vshrl.u32 %v1343, 16
        %v1408 = vrot.slane %v1406, 7
        %v1409 = vshll.u32 %v1343, 16
        %v1411 = vor.u32 %v1408, %v1409
        %v1412 = vsel %vm1365, %v1400, %v1411
        %v1414 = vshrl.u32 %v1344, 16
        %v1416 = vrot.slane %v1414, 7
        %v1417 = vshll.u32 %v1344, 16
        %v1419 = vor.u32 %v1416, %v1417
        %v1420 = vsel %vm1365, %v1408, %v1419
        %v1422 = vshrl.u32 %v1345, 16
        %v1424 = vrot.slane %v1422, 7
        %v1425 = vshll.u32 %v1345, 16
        %v1427 = vor.u32 %v1424, %v1425
        %v1428 = vsel %vm1365, %v1416, %v1427
        %v1430 = vshrl.u32 %v1346, 16
        %v1432 = vrot.slane %v1430, 7
        %v1433 = vshll.u32 %v1346, 16
        %v1435 = vor.u32 %v1432, %v1433
        %v1436 = vsel %vm1365, %v1424, %v1435
        %v1438 = vshrl.u32 %v1347, 16
        %v1440 = vrot.slane %v1438, 7
        %v1441 = vshll.u32 %v1347, 16
        %v1443 = vor.u32 %v1440, %v1441
        %v1444 = vsel %vm1365, %v1432, %v1443
        %v1446 = vshrl.u32 %v1348, 16
        %v1448 = vrot.slane %v1446, 7
        %v1449 = vshll.u32 %v1348, 16
        %v1451 = vor.u32 %v1448, %v1449
        %v1452 = vsel %vm1365, %v1440, %v1451
        %v1454 = vshrl.u32 %v1349, 16
        %v1456 = vrot.slane %v1454, 7
        %v1457 = vshll.u32 %v1349, 16
        %v1459 = vor.u32 %v1456, %v1457
        %v1460 = vsel %vm1365, %v1448, %v1459
        %v1462 = vshrl.u32 %v1350, 16
        %v1464 = vrot.slane %v1462, 7
        %v1465 = vshll.u32 %v1350, 16
        %v1467 = vor.u32 %v1464, %v1465
        %v1468 = vsel %vm1365, %v1456, %v1467
        %v1470 = vshrl.u32 %v1351, 16
        %v1472 = vrot.slane %v1470, 7
        %v1473 = vshll.u32 %v1351, 16
        %v1475 = vor.u32 %v1472, %v1473
        %v1476 = vsel %vm1365, %v1464, %v1475
        %v1478 = vshrl.u32 %v1352, 16
        %v1480 = vrot.slane %v1478, 7
        %v1481 = vshll.u32 %v1352, 16
        %v1483 = vor.u32 %v1480, %v1481
        %v1484 = vsel %vm1365, %v1472, %v1483
        %v1486 = vshrl.u32 %v1353, 16
        %v1488 = vrot.slane %v1486, 7
        %v1489 = vshll.u32 %v1353, 16
        %v1491 = vor.u32 %v1488, %v1489
        %v1492 = vsel %vm1365, %v1480, %v1491
        %v1494 = vshrl.u32 %v1354, 16
        %v1496 = vrot.slane %v1494, 7
        %v1497 = vshll.u32 %v1354, 16
        %v1499 = vor.u32 %v1496, %v1497
        %v1500 = vsel %vm1365, %v1488, %v1499
        %v1502 = vshrl.u32 %v1355, 16
        %v1504 = vrot.slane %v1502, 7
        %v1505 = vshll.u32 %v1355, 16
        %v1507 = vor.u32 %v1504, %v1505
        %v1508 = vsel %vm1365, %v1496, %v1507
        %v1510 = vshrl.u32 %v1356, 16
        %v1512 = vrot.slane %v1510, 7
        %v1513 = vshll.u32 %v1356, 16
        %v1515 = vor.u32 %v1512, %v1513
        %v1516 = vsel %vm1365, %v1504, %v1515
        %v1518 = vshrl.u32 %v1357, 16
        %v1520 = vrot.slane %v1518, 7
        %v1521 = vshll.u32 %v1357, 16
        %v1523 = vor.u32 %v1520, %v1521
        %v1524 = vsel %vm1365, %v1512, %v1523
        %v1526 = vshrl.u32 %v1358, 16
        %v1528 = vrot.slane %v1526, 7
        %v1529 = vshll.u32 %v1358, 16
        %v1531 = vor.u32 %v1528, %v1529
        %v1532 = vsel %vm1365, %v1520, %v1531
        %v1534 = vshrl.u32 %v1359, 16
        %v1536 = vrot.slane %v1534, 7
        %v1537 = vshll.u32 %v1359, 16
        %v1539 = vor.u32 %v1536, %v1537
        %v1540 = vsel %vm1365, %v1528, %v1539
        %v1542 = vshrl.u32 %v1360, 16
        %v1544 = vrot.slane %v1542, 7
        %v1545 = vshll.u32 %v1360, 16
        %v1547 = vor.u32 %v1544, %v1545
        %v1548 = vsel %vm1365, %v1536, %v1547
        %v1550 = vshrl.u32 %v1361, 16
        %v1552 = vrot.slane %v1550, 7
        %v1553 = vshll.u32 %v1361, 16
        %v1555 = vor.u32 %v1552, %v1553
        %v1556 = vsel %vm1365, %v1544, %v1555
        %v1558 = vshrl.u32 %v1362, 16
        %v1560 = vrot.slane %v1558, 7
        %v1561 = vshll.u32 %v1362, 16
        %v1563 = vor.u32 %v1560, %v1561
        %v1564 = vsel %vm1365, %v1552, %v1563
        %v1566 = vshrl.u32 %v1363, 16
        %v1568 = vrot.slane %v1566, 7
        %v1569 = vshll.u32 %v1363, 16
        %v1571 = vor.u32 %v1568, %v1569
        %v1572 = vsel %vm1365, %v1560, %v1571
        %v1574 = vshrl.u32 %v1364, 16
        %v1576 = vrot.slane %v1574, 7
        %v1577 = vshll.u32 %v1364, 16
        %v1579 = vor.u32 %v1576, %v1577
        %v1580 = vsel %vm1365, %v1568, %v1579
        %vm1608 = vcmask 1040384
        %vm1609 = vmand %vm1608, %vm1365
        %v1610 = vsel %vm1609, 0, %v1372
        %vm1611 = vsmask.f32 7424
        %v1612 = vrot.slane %v1370, 1
        %v1613 = vor.u32 %v1367, %v1612
        %v1614 = vrot.slane %v1377, 1
        %v1615 = vsel %vm1611, %v1613, %v1614
        %v1616 = vor.u32 %v1374, %v1614
        %v1617 = vrot.slane %v1385, 1
        %v1618 = vsel %vm1611, %v1616, %v1617
        %v1619 = vor.u32 %v1382, %v1617
        %v1620 = vrot.slane %v1393, 1
        %v1621 = vsel %vm1611, %v1619, %v1620
        %v1622 = vor.u32 %v1390, %v1620
        %v1623 = vrot.slane %v1401, 1
        %v1624 = vsel %vm1611, %v1622, %v1623
        %v1625 = vor.u32 %v1398, %v1623
        %v1626 = vrot.slane %v1409, 1
        %v1627 = vsel %vm1611, %v1625, %v1626
        %v1628 = vor.u32 %v1406, %v1626
        %v1629 = vrot.slane %v1417, 1
        %v1630 = vsel %vm1611, %v1628, %v1629
        %v1631 = vor.u32 %v1414, %v1629
        %v1632 = vrot.slane %v1425, 1
        %v1633 = vsel %vm1611, %v1631, %v1632
        %v1634 = vor.u32 %v1422, %v1632
        %v1635 = vrot.slane %v1433, 1
        %v1636 = vsel %vm1611, %v1634, %v1635
        %v1637 = vor.u32 %v1430, %v1635
        %v1638 = vrot.slane %v1441, 1
        %v1639 = vsel %vm1611, %v1637, %v1638
        %v1640 = vor.u32 %v1438, %v1638
        %v1641 = vrot.slane %v1449, 1
        %v1642 = vsel %vm1611, %v1640, %v1641
        %v1643 = vor.u32 %v1446, %v1641
        %v1644 = vrot.slane %v1457, 1
        %v1645 = vsel %vm1611, %v1643, %v1644
        %v1646 = vor.u32 %v1454, %v1644
        %v1647 = vrot.slane %v1465, 1
        %v1648 = vsel %vm1611, %v1646, %v1647
        %v1649 = vor.u32 %v1462, %v1647
        %v1650 = vrot.slane %v1473, 1
        %v1651 = vsel %vm1611, %v1649, %v1650
        %v1652 = vor.u32 %v1470, %v1650
        %v1653 = vrot.slane %v1481, 1
        %v1654 = vsel %vm1611, %v1652, %v1653
        %v1655 = vor.u32 %v1478, %v1653
        %v1656 = vrot.slane %v1489, 1
        %v1657 = vsel %vm1611, %v1655, %v1656
        %v1658 = vor.u32 %v1486, %v1656
        %v1659 = vrot.slane %v1497, 1
        %v1660 = vsel %vm1611, %v1658, %v1659
        %v1661 = vor.u32 %v1494, %v1659
        %v1662 = vrot.slane %v1505, 1
        %v1663 = vsel %vm1611, %v1661, %v1662
        %v1664 = vor.u32 %v1502, %v1662
        %v1665 = vrot.slane %v1513, 1
        %v1666 = vsel %vm1611, %v1664, %v1665
        %v1667 = vor.u32 %v1510, %v1665
        %v1668 = vrot.slane %v1521, 1
        %v1669 = vsel %vm1611, %v1667, %v1668
        %v1670 = vor.u32 %v1518, %v1668
        %v1671 = vrot.slane %v1529, 1
        %v1672 = vsel %vm1611, %v1670, %v1671
        %v1673 = vor.u32 %v1526, %v1671
        %v1674 = vrot.slane %v1537, 1
        %v1675 = vsel %vm1611, %v1673, %v1674
        %v1676 = vor.u32 %v1534, %v1674
        %v1677 = vrot.slane %v1545, 1
        %v1678 = vsel %vm1611, %v1676, %v1677
        %v1679 = vor.u32 %v1542, %v1677
        %v1680 = vrot.slane %v1553, 1
        %v1681 = vsel %vm1611, %v1679, %v1680
        %v1682 = vor.u32 %v1550, %v1680
        %v1683 = vrot.slane %v1561, 1
        %v1684 = vsel %vm1611, %v1682, %v1683
        %v1685 = vor.u32 %v1558, %v1683
        %v1686 = vrot.slane %v1569, 1
        %v1687 = vsel %vm1611, %v1685, %v1686
        %v1688 = vor.u32 %v1566, %v1686
        %v1689 = vrot.slane %v1577, 1
        %v1690 = vsel %vm1611, %v1688, %v1689
        %v1691 = vor.u32 %v1574, %v1689
        %vm1719 = vcmask 1047552
        %vm1720 = vmand %vm1719, %vm1611
        %v1721 = vsel %vm1720, %v1691, 0
        %vm1722 = vcmask 1043456
        %v1723 = vrot.slane %v1380, 4
        %v1724 = vrot.slane %v1388, 4
        %v1725 = vsel %vm1722, %v1723, %v1724
        %v1726 = vrot.slane %v1396, 4
        %v1727 = vsel %vm1722, %v1724, %v1726
        %v1728 = vrot.slane %v1404, 4
        %v1729 = vsel %vm1722, %v1726, %v1728
        %v1730 = vrot.slane %v1412, 4
        %v1731 = vsel %vm1722, %v1728, %v1730
        %v1732 = vrot.slane %v1420, 4
        %v1733 = vsel %vm1722, %v1730, %v1732
        %v1734 = vrot.slane %v1428, 4
        %v1735 = vsel %vm1722, %v1732, %v1734
        %v1736 = vrot.slane %v1436, 4
        %v1737 = vsel %vm1722, %v1734, %v1736
        %v1738 = vrot.slane %v1444, 4
        %v1739 = vsel %vm1722, %v1736, %v1738
        %v1740 = vrot.slane %v1452, 4
        %v1741 = vsel %vm1722, %v1738, %v1740
        %v1742 = vrot.slane %v1460, 4
        %v1743 = vsel %vm1722, %v1740, %v1742
        %v1744 = vrot.slane %v1468, 4
        %v1745 = vsel %vm1722, %v1742, %v1744
        %v1746 = vrot.slane %v1476, 4
        %v1747 = vsel %vm1722, %v1744, %v1746
        %v1748 = vrot.slane %v1484, 4
        %v1749 = vsel %vm1722, %v1746, %v1748
        %v1750 = vrot.slane %v1492, 4
        %v1751 = vsel %vm1722, %v1748, %v1750
        %v1752 = vrot.slane %v1500, 4
        %v1753 = vsel %vm1722, %v1750, %v1752
        %v1754 = vrot.slane %v1508, 4
        %v1755 = vsel %vm1722, %v1752, %v1754
        %v1756 = vrot.slane %v1516, 4
        %v1757 = vsel %vm1722, %v1754, %v1756
        %v1758 = vrot.slane %v1524, 4
        %v1759 = vsel %vm1722, %v1756, %v1758
        %v1760 = vrot.slane %v1532, 4
        %v1761 = vsel %vm1722, %v1758, %v1760
        %v1762 = vrot.slane %v1540, 4
        %v1763 = vsel %vm1722, %v1760, %v1762
        %v1764 = vrot.slane %v1548, 4
        %v1765 = vsel %vm1722, %v1762, %v1764
        %v1766 = vrot.slane %v1556, 4
        %v1767 = vsel %vm1722, %v1764, %v1766
        %v1768 = vrot.slane %v1564, 4
        %v1769 = vsel %vm1722, %v1766, %v1768
        %v1770 = vrot.slane %v1572, 4
        %v1771 = vsel %vm1722, %v1768, %v1770
        %v1821 = vrot.slane %v1339, 4
        %v1822 = vrot.slane %v1340, 4
        %v1823 = vsel %vm1722, %v1821, %v1822
        %v1824 = vrot.slane %v1341, 4
        %v1825 = vsel %vm1722, %v1822, %v1824
        %v1826 = vrot.slane %v1342, 4
        %v1827 = vsel %vm1722, %v1824, %v1826
        %v1828 = vrot.slane %v1343, 4
        %v1829 = vsel %vm1722, %v1826, %v1828
        %v1830 = vrot.slane %v1344, 4
        %v1831 = vsel %vm1722, %v1828, %v1830
        %v1832 = vrot.slane %v1345, 4
        %v1833 = vsel %vm1722, %v1830, %v1832
        %v1834 = vrot.slane %v1346, 4
        %v1835 = vsel %vm1722, %v1832, %v1834
        %v1836 = vrot.slane %v1347, 4
        %v1837 = vsel %vm1722, %v1834, %v1836
        %v1838 = vrot.slane %v1348, 4
        %v1839 = vsel %vm1722, %v1836, %v1838
        %v1840 = vrot.slane %v1349, 4
        %v1841 = vsel %vm1722, %v1838, %v1840
        %v1842 = vrot.slane %v1350, 4
        %v1843 = vsel %vm1722, %v1840, %v1842
        %v1844 = vrot.slane %v1351, 4
        %v1845 = vsel %vm1722, %v1842, %v1844
        %v1846 = vrot.slane %v1352, 4
        %v1847 = vsel %vm1722, %v1844, %v1846
        %v1848 = vrot.slane %v1353, 4
        %v1849 = vsel %vm1722, %v1846, %v1848
        %v1850 = vrot.slane %v1354, 4
        %v1851 = vsel %vm1722, %v1848, %v1850
        %v1852 = vrot.slane %v1355, 4
        %v1853 = vsel %vm1722, %v1850, %v1852
        %v1854 = vrot.slane %v1356, 4
        %v1855 = vsel %vm1722, %v1852, %v1854
        %v1856 = vrot.slane %v1357, 4
        %v1857 = vsel %vm1722, %v1854, %v1856
        %v1858 = vrot.slane %v1358, 4
        %v1859 = vsel %vm1722, %v1856, %v1858
        %v1860 = vrot.slane %v1359, 4
        %v1861 = vsel %vm1722, %v1858, %v1860
        %v1862 = vrot.slane %v1360, 4
        %v1863 = vsel %vm1722, %v1860, %v1862
        %v1864 = vrot.slane %v1361, 4
        %v1865 = vsel %vm1722, %v1862, %v1864
        %v1866 = vrot.slane %v1362, 4
        %v1867 = vsel %vm1722, %v1864, %v1866
        %v1868 = vrot.slane %v1363, 4
        %v1869 = vsel %vm1722, %v1866, %v1868
        %v1894 = vrot.slane %v1618, 4
        %v1895 = vrot.slane %v1621, 4
        %v1896 = vsel %vm1722, %v1894, %v1895
        %v1897 = vrot.slane %v1624, 4
        %v1898 = vsel %vm1722, %v1895, %v1897
        %v1899 = vrot.slane %v1627, 4
        %v1900 = vsel %vm1722, %v1897, %v1899
        %v1901 = vrot.slane %v1630, 4
        %v1902 = vsel %vm1722, %v1899, %v1901
        %v1903 = vrot.slane %v1633, 4
        %v1904 = vsel %vm1722, %v1901, %v1903
        %v1905 = vrot.slane %v1636, 4
        %v1906 = vsel %vm1722, %v1903, %v1905
        %v1907 = vrot.slane %v1639, 4
        %v1908 = vsel %vm1722, %v1905, %v1907
        %v1909 = vrot.slane %v1642, 4
        %v1910 = vsel %vm1722, %v1907, %v1909
        %v1911 = vrot.slane %v1645, 4
        %v1912 = vsel %vm1722, %v1909, %v1911
        %v1913 = vrot.slane %v1648, 4
        %v1914 = vsel %vm1722, %v1911, %v1913
        %v1915 = vrot.slane %v1651, 4
        %v1916 = vsel %vm1722, %v1913, %v1915
        %v1917 = vrot.slane %v1654, 4
        %v1918 = vsel %vm1722, %v1915, %v1917
        %v1919 = vrot.slane %v1657, 4
        %v1920 = vsel %vm1722, %v1917, %v1919
        %v1921 = vrot.slane %v1660, 4
        %v1922 = vsel %vm1722, %v1919, %v1921
        %v1923 = vrot.slane %v1663, 4
        %v1924 = vsel %vm1722, %v1921, %v1923
        %v1925 = vrot.slane %v1666, 4
        %v1926 = vsel %vm1722, %v1923, %v1925
        %v1927 = vrot.slane %v1669, 4
        %v1928 = vsel %vm1722, %v1925, %v1927
        %v1929 = vrot.slane %v1672, 4
        %v1930 = vsel %vm1722, %v1927, %v1929
        %v1931 = vrot.slane %v1675, 4
        %v1932 = vsel %vm1722, %v1929, %v1931
        %v1933 = vrot.slane %v1678, 4
        %v1934 = vsel %vm1722, %v1931, %v1933
        %v1935 = vrot.slane %v1681, 4
        %v1936 = vsel %vm1722, %v1933, %v1935
        %v1937 = vrot.slane %v1684, 4
        %v1938 = vsel %vm1722, %v1935, %v1937
        %v1939 = vrot.slane %v1687, 4
        %v1940 = vsel %vm1722, %v1937, %v1939
        %v1941 = vrot.slane %v1690, 4
        %v1942 = vsel %vm1722, %v1939, %v1941
        %v1967 = vld [vmem:[#allocation5] sm:$0xf]
        %v1968 = vld [vmem:[#allocation5 + $0x4] sm:$0xf]
        %v1969 = vld [vmem:[#allocation5 + $0x8] sm:$0xf]
        %v1970 = vld [vmem:[#allocation5 + $0xc] sm:$0xf]
        %v1971 = vld [vmem:[#allocation5 + $0x10] sm:$0xf]
        %v1972 = vld [vmem:[#allocation5 + $0x14] sm:$0xf]
        %v1973 = vld [vmem:[#allocation5 + $0x18] sm:$0xf]
        %v1974 = vld [vmem:[#allocation5 + $0x1c] sm:$0xf]
        %v1975 = vld [vmem:[#allocation5 + $0x20] sm:$0xf]
        %v1976 = vld [vmem:[#allocation5 + $0x24] sm:$0xf]
        %v1977 = vld [vmem:[#allocation5 + $0x28] sm:$0xf]
        %v1978 = vld [vmem:[#allocation5 + $0x2c] sm:$0xf]
        %v1979 = vld [vmem:[#allocation5 + $0x30] sm:$0xf]
        %v1980 = vld [vmem:[#allocation5 + $0x34] sm:$0xf]
        %v1981 = vld [vmem:[#allocation5 + $0x38] sm:$0xf]
        %v1982 = vld [vmem:[#allocation5 + $0x3c] sm:$0xf]
        %v1983 = vld [vmem:[#allocation5 + $0x40] sm:$0xf]
        %v1984 = vld [vmem:[#allocation5 + $0x44] sm:$0xf]
        %v1985 = vld [vmem:[#allocation5 + $0x48] sm:$0xf]
        %v1986 = vld [vmem:[#allocation5 + $0x4c] sm:$0xf]
        %v1987 = vld [vmem:[#allocation5 + $0x50] sm:$0xf]
        %v1988 = vld [vmem:[#allocation5 + $0x54] sm:$0xf]
        %v1989 = vld [vmem:[#allocation5 + $0x58] sm:$0xf]
        %v1990 = vld [vmem:[#allocation5 + $0x5c] sm:$0xf]
        %v1991 = vld [vmem:[#allocation5 + $0x60] sm:$0xf]
        %v1992 = vld [vmem:[#allocation5 + $0x64] sm:$0xf]
        %v1993 = vld [vmem:[#allocation5 + $0x68] sm:$0xf]
        %v1994 = vld [vmem:[#allocation5 + $0x6c] sm:$0xf]
        %v1995 = vld [vmem:[#allocation5 + $0x70] sm:$0xf]
        %v1996 = vld [vmem:[#allocation5 + $0x74] sm:$0xf]
        %v1997 = vld [vmem:[#allocation5 + $0x78] sm:$0xf]
        %v1998 = vld [vmem:[#allocation5 + $0x7c] sm:$0xf]
        %v1999 = vld [vmem:[#allocation5 + $0x80] sm:$0xf]
        %v2000 = vld [vmem:[#allocation5 + $0x84] sm:$0xf]
        %v2001 = vld [vmem:[#allocation5 + $0x88] sm:$0xf]
        %v2002 = vld [vmem:[#allocation5 + $0x8c] sm:$0xf]
        %v2003 = vld [vmem:[#allocation5 + $0x90] sm:$0xf]
        %v2004 = vld [vmem:[#allocation5 + $0x94] sm:$0xf]
        %v2005 = vld [vmem:[#allocation5 + $0x98] sm:$0xf]
        %v2006 = vld [vmem:[#allocation5 + $0x9c] sm:$0xf]
        %v2007 = vld [vmem:[#allocation5 + $0xa0] sm:$0xf]
        %v2008 = vld [vmem:[#allocation5 + $0xa4] sm:$0xf]
        %v2009 = vld [vmem:[#allocation5 + $0xa8] sm:$0xf]
        %v2010 = vld [vmem:[#allocation5 + $0xac] sm:$0xf]
        %v2011 = vld [vmem:[#allocation5 + $0xb0] sm:$0xf]
        %v2012 = vld [vmem:[#allocation5 + $0xb4] sm:$0xf]
        %v2013 = vld [vmem:[#allocation5 + $0xb8] sm:$0xf]
        %v2014 = vld [vmem:[#allocation5 + $0xbc] sm:$0xf]
        %v2015 = vld [vmem:[#allocation5 + $0xc0] sm:$0xf]
        %v2016 = vld [vmem:[#allocation5 + $0xc4] sm:$0xf]
        %v2017 = vld [vmem:[#allocation5 + $0xc8] sm:$0xf]
        %v2018 = vld [vmem:[#allocation5 + $0xcc] sm:$0xf]
        %v2019 = vld [vmem:[#allocation5 + $0xd0] sm:$0xf]
        %v2020 = vld [vmem:[#allocation5 + $0xd4] sm:$0xf]
        %v2021 = vld [vmem:[#allocation5 + $0xd8] sm:$0xf]
        %v2022 = vld [vmem:[#allocation5 + $0xdc] sm:$0xf]
        %v2023 = vld [vmem:[#allocation5 + $0xe0] sm:$0xf]
        %v2024 = vld [vmem:[#allocation5 + $0xe4] sm:$0xf]
        %v2025 = vld [vmem:[#allocation5 + $0xe8] sm:$0xf]
        %v2026 = vld [vmem:[#allocation5 + $0xec] sm:$0xf]
        %v2027 = vld [vmem:[#allocation5 + $0xf0] sm:$0xf]
        %v2028 = vld [vmem:[#allocation5 + $0xf4] sm:$0xf]
        %v2029 = vld [vmem:[#allocation5 + $0xf8] sm:$0xf]
        %v2030 = vld [vmem:[#allocation5 + $0xfc] sm:$0xf]
        %v2031 = vld [vmem:[#allocation5 + $0x100] sm:$0xf]
        %v2032 = vld [vmem:[#allocation5 + $0x104] sm:$0xf]
        %v2033 = vld [vmem:[#allocation5 + $0x108] sm:$0xf]
        %v2034 = vld [vmem:[#allocation5 + $0x10c] sm:$0xf]
        %v2035 = vld [vmem:[#allocation5 + $0x110] sm:$0xf]
        %v2036 = vld [vmem:[#allocation5 + $0x114] sm:$0xf]
        %v2037 = vld [vmem:[#allocation5 + $0x118] sm:$0xf]
        %v2038 = vld [vmem:[#allocation5 + $0x11c] sm:$0xf]
        %v2039 = vld [vmem:[#allocation5 + $0x120] sm:$0xf]
        %v2040 = vld [vmem:[#allocation5 + $0x124] sm:$0xf]
        %v2041 = vld [vmem:[#allocation5 + $0x128] sm:$0xf]
        %v2042 = vld [vmem:[#allocation5 + $0x12c] sm:$0xf]
        %v2043 = vld [vmem:[#allocation5 + $0x130] sm:$0xf]
        %v2044 = vld [vmem:[#allocation5 + $0x134] sm:$0xf]
        %v2045 = vld [vmem:[#allocation5 + $0x138] sm:$0xf]
        %v2046 = vld [vmem:[#allocation5 + $0x13c] sm:$0xf]
        %v2047 = vld [vmem:[#allocation5 + $0x140] sm:$0xf]
        %v2048 = vld [vmem:[#allocation5 + $0x144] sm:$0xf]
        %v2049 = vld [vmem:[#allocation5 + $0x148] sm:$0xf]
        %v2050 = vld [vmem:[#allocation5 + $0x14c] sm:$0xf]
        %v2051 = vld [vmem:[#allocation5 + $0x150] sm:$0xf]
        %v2052 = vld [vmem:[#allocation5 + $0x154] sm:$0xf]
        %v2053 = vld [vmem:[#allocation5 + $0x158] sm:$0xf]
        %v2054 = vld [vmem:[#allocation5 + $0x15c] sm:$0xf]
        %v2055 = vld [vmem:[#allocation5 + $0x160] sm:$0xf]
        %v2056 = vld [vmem:[#allocation5 + $0x164] sm:$0xf]
        %v2057 = vld [vmem:[#allocation5 + $0x168] sm:$0xf]
        %v2058 = vld [vmem:[#allocation5 + $0x16c] sm:$0xf]
        %v2059 = vld [vmem:[#allocation5 + $0x170] sm:$0xf]
        %v2060 = vld [vmem:[#allocation5 + $0x174] sm:$0xf]
        %v2061 = vld [vmem:[#allocation5 + $0x178] sm:$0xf]
        %v2062 = vld [vmem:[#allocation5 + $0x17c] sm:$0xf]
        %v2063 = vld [vmem:[#allocation5 + $0x180] sm:$0xf]
        %v2064 = vld [vmem:[#allocation5 + $0x184] sm:$0xf]
        %v2065 = vld [vmem:[#allocation5 + $0x188] sm:$0xf]
        %v2066 = vld [vmem:[#allocation5 + $0x18c] sm:$0xf]
        %v2067 = vld [vmem:[#allocation5 + $0x190] sm:$0xf]
        %v2068 = vld [vmem:[#allocation5 + $0x194] sm:$0xf]
        %v2069 = vld [vmem:[#allocation5 + $0x198] sm:$0xf]
        %v2070 = vld [vmem:[#allocation5 + $0x19c] sm:$0xf]
        %v2071 = vld [vmem:[#allocation5 + $0x1a0] sm:$0xf]
        %v2072 = vld [vmem:[#allocation5 + $0x1a4] sm:$0xf]
        %v2073 = vld [vmem:[#allocation5 + $0x1a8] sm:$0xf]
        %v2074 = vld [vmem:[#allocation5 + $0x1ac] sm:$0xf]
        %v2075 = vld [vmem:[#allocation5 + $0x1b0] sm:$0xf]
        %v2076 = vld [vmem:[#allocation5 + $0x1b4] sm:$0xf]
        %v2077 = vld [vmem:[#allocation5 + $0x1b8] sm:$0xf]
        %v2078 = vld [vmem:[#allocation5 + $0x1bc] sm:$0xf]
        %v2079 = vld [vmem:[#allocation5 + $0x1c0] sm:$0xf]
        %v2080 = vld [vmem:[#allocation5 + $0x1c4] sm:$0xf]
        %v2081 = vld [vmem:[#allocation5 + $0x1c8] sm:$0xf]
        %v2082 = vld [vmem:[#allocation5 + $0x1cc] sm:$0xf]
        %v2083 = vld [vmem:[#allocation5 + $0x1d0] sm:$0xf]
        %v2084 = vld [vmem:[#allocation5 + $0x1d4] sm:$0xf]
        %v2085 = vld [vmem:[#allocation5 + $0x1d8] sm:$0xf]
        %v2086 = vld [vmem:[#allocation5 + $0x1dc] sm:$0xf]
        %v2087 = vld [vmem:[#allocation5 + $0x1e0] sm:$0xf]
        %v2088 = vld [vmem:[#allocation5 + $0x1e4] sm:$0xf]
        %v2089 = vld [vmem:[#allocation5 + $0x1e8] sm:$0xf]
        %v2090 = vld [vmem:[#allocation5 + $0x1ec] sm:$0xf]
        %v2091 = vld [vmem:[#allocation5 + $0x1f0] sm:$0xf]
        %v2092 = vld [vmem:[#allocation5 + $0x1f4] sm:$0xf]
        %v2093 = vld [vmem:[#allocation5 + $0x1f8] sm:$0xf]
        %v2094 = vld [vmem:[#allocation5 + $0x1fc] sm:$0xf]
        %v2095 = vld [vmem:[#allocation5 + $0x200] sm:$0xf]
        %v2096 = vld [vmem:[#allocation5 + $0x204] sm:$0xf]
        %v2097 = vld [vmem:[#allocation5 + $0x208] sm:$0xf]
        %v2098 = vld [vmem:[#allocation5 + $0x20c] sm:$0xf]
        %v2099 = vld [vmem:[#allocation5 + $0x210] sm:$0xf]
        %v2100 = vld [vmem:[#allocation5 + $0x214] sm:$0xf]
        %v2101 = vld [vmem:[#allocation5 + $0x218] sm:$0xf]
        %v2102 = vld [vmem:[#allocation5 + $0x21c] sm:$0xf]
        %v2103 = vld [vmem:[#allocation5 + $0x220] sm:$0xf]
        %v2104 = vld [vmem:[#allocation5 + $0x224] sm:$0xf]
        %v2105 = vld [vmem:[#allocation5 + $0x228] sm:$0xf]
        %v2106 = vld [vmem:[#allocation5 + $0x22c] sm:$0xf]
        %v2107 = vld [vmem:[#allocation5 + $0x230] sm:$0xf]
        %v2108 = vld [vmem:[#allocation5 + $0x234] sm:$0xf]
        %v2109 = vld [vmem:[#allocation5 + $0x238] sm:$0xf]
        %v2110 = vld [vmem:[#allocation5 + $0x23c] sm:$0xf]
        %v2111 = vld [vmem:[%s5] sm:$0x1]
        %v2113 = vlaneseq
        %v2114 = vshrl.u32 %v2113, 7
        %v2115 = vsub.s32 0, %v2114
        %v2116 = vrot.slane %v2111, %v2115
        %v2262 = vunpack.c.l.b16 %v1967
        %v2263 = vunpack.c.l.b16 %v1968
        %v2264 = vunpack.c.l.b16 %v1969
        %v2265 = vunpack.c.l.b16 %v1970
        %v2266 = vunpack.c.l.b16 %v1971
        %v2267 = vunpack.c.l.b16 %v1972
        %v2268 = vunpack.c.l.b16 %v1973
        %v2269 = vunpack.c.l.b16 %v1974
        %v2270 = vunpack.c.l.b16 %v1975
        %v2271 = vunpack.c.l.b16 %v1976
        %v2272 = vunpack.c.l.b16 %v1977
        %v2273 = vunpack.c.l.b16 %v1978
        %v2274 = vunpack.c.l.b16 %v1979
        %v2275 = vunpack.c.l.b16 %v1980
        %v2276 = vunpack.c.l.b16 %v1981
        %v2277 = vunpack.c.l.b16 %v1982
        %v2278 = vunpack.c.l.b16 %v1983
        %v2279 = vunpack.c.l.b16 %v1984
        %v2280 = vunpack.c.l.b16 %v1985
        %v2281 = vunpack.c.l.b16 %v1986
        %v2282 = vunpack.c.l.b16 %v1987
        %v2283 = vunpack.c.l.b16 %v1988
        %v2284 = vunpack.c.l.b16 %v1989
        %v2285 = vunpack.c.l.b16 %v1990
        %v2286 = vunpack.c.l.b16 %v1991
        %v2287 = vunpack.c.l.b16 %v1992
        %v2288 = vunpack.c.l.b16 %v1993
        %v2289 = vunpack.c.l.b16 %v1994
        %v2290 = vunpack.c.l.b16 %v1995
        %v2291 = vunpack.c.l.b16 %v1996
        %v2292 = vunpack.c.l.b16 %v1997
        %v2293 = vunpack.c.l.b16 %v1998
        %v2294 = vunpack.c.l.b16 %v1999
        %v2295 = vunpack.c.l.b16 %v2000
        %v2296 = vunpack.c.l.b16 %v2001
        %v2297 = vunpack.c.l.b16 %v2002
        %v2298 = vunpack.c.l.b16 %v2003
        %v2299 = vunpack.c.l.b16 %v2004
        %v2300 = vunpack.c.l.b16 %v2005
        %v2301 = vunpack.c.l.b16 %v2006
        %v2302 = vunpack.c.l.b16 %v2007
        %v2303 = vunpack.c.l.b16 %v2008
        %v2304 = vunpack.c.l.b16 %v2009
        %v2305 = vunpack.c.l.b16 %v2010
        %v2306 = vunpack.c.l.b16 %v2011
        %v2307 = vunpack.c.l.b16 %v2012
        %v2308 = vunpack.c.l.b16 %v2013
        %v2309 = vunpack.c.l.b16 %v2014
        %v2310 = vunpack.c.l.b16 %v2015
        %v2311 = vunpack.c.l.b16 %v2016
        %v2312 = vunpack.c.l.b16 %v2017
        %v2313 = vunpack.c.l.b16 %v2018
        %v2314 = vunpack.c.l.b16 %v2019
        %v2315 = vunpack.c.l.b16 %v2020
        %v2316 = vunpack.c.l.b16 %v2021
        %v2317 = vunpack.c.l.b16 %v2022
        %v2318 = vunpack.c.l.b16 %v2023
        %v2319 = vunpack.c.l.b16 %v2024
        %v2320 = vunpack.c.l.b16 %v2025
        %v2321 = vunpack.c.l.b16 %v2026
        %v2322 = vunpack.c.l.b16 %v2027
        %v2323 = vunpack.c.l.b16 %v2028
        %v2324 = vunpack.c.l.b16 %v2029
        %v2325 = vunpack.c.l.b16 %v2030
        %v2326 = vunpack.c.l.b16 %v2031
        %v2327 = vunpack.c.l.b16 %v2032
        %v2328 = vunpack.c.l.b16 %v2033
        %v2329 = vunpack.c.l.b16 %v2034
        %v2330 = vunpack.c.l.b16 %v2035
        %v2331 = vunpack.c.l.b16 %v2036
        %v2332 = vunpack.c.l.b16 %v2037
        %v2333 = vunpack.c.l.b16 %v2038
        %v2334 = vunpack.c.l.b16 %v2039
        %v2335 = vunpack.c.l.b16 %v2040
        %v2336 = vunpack.c.l.b16 %v2041
        %v2337 = vunpack.c.l.b16 %v2042
        %v2338 = vunpack.c.l.b16 %v2043
        %v2339 = vunpack.c.l.b16 %v2044
        %v2340 = vunpack.c.l.b16 %v2045
        %v2341 = vunpack.c.l.b16 %v2046
        %v2342 = vunpack.c.l.b16 %v2047
        %v2343 = vunpack.c.l.b16 %v2048
        %v2344 = vunpack.c.l.b16 %v2049
        %v2345 = vunpack.c.l.b16 %v2050
        %v2346 = vunpack.c.l.b16 %v2051
        %v2347 = vunpack.c.l.b16 %v2052
        %v2348 = vunpack.c.l.b16 %v2053
        %v2349 = vunpack.c.l.b16 %v2054
        %v2350 = vunpack.c.l.b16 %v2055
        %v2351 = vunpack.c.l.b16 %v2056
        %v2352 = vunpack.c.l.b16 %v2057
        %v2353 = vunpack.c.l.b16 %v2058
        %v2354 = vunpack.c.l.b16 %v2059
        %v2355 = vunpack.c.l.b16 %v2060
        %v2356 = vunpack.c.l.b16 %v2061
        %v2357 = vunpack.c.l.b16 %v2062
        %v2358 = vunpack.c.l.b16 %v2063
        %v2359 = vunpack.c.l.b16 %v2064
        %v2360 = vunpack.c.l.b16 %v2065
        %v2361 = vunpack.c.l.b16 %v2066
        %v2362 = vunpack.c.l.b16 %v2067
        %v2363 = vunpack.c.l.b16 %v2068
        %v2364 = vunpack.c.l.b16 %v2069
        %v2365 = vunpack.c.l.b16 %v2070
        %v2366 = vunpack.c.l.b16 %v2071
        %v2367 = vunpack.c.l.b16 %v2072
        %v2368 = vunpack.c.l.b16 %v2073
        %v2369 = vunpack.c.l.b16 %v2074
        %v2370 = vunpack.c.l.b16 %v2075
        %v2371 = vunpack.c.l.b16 %v2076
        %v2372 = vunpack.c.l.b16 %v2077
        %v2373 = vunpack.c.l.b16 %v2078
        %v2374 = vunpack.c.l.b16 %v2079
        %v2375 = vunpack.c.l.b16 %v2080
        %v2376 = vunpack.c.l.b16 %v2081
        %v2377 = vunpack.c.l.b16 %v2082
        %v2378 = vunpack.c.l.b16 %v2083
        %v2379 = vunpack.c.l.b16 %v2084
        %v2380 = vunpack.c.l.b16 %v2085
        %v2381 = vunpack.c.l.b16 %v2086
        %v2382 = vunpack.c.l.b16 %v2087
        %v2383 = vunpack.c.l.b16 %v2088
        %v2384 = vunpack.c.l.b16 %v2089
        %v2385 = vunpack.c.l.b16 %v2090
        %v2386 = vunpack.c.l.b16 %v2091
        %v2387 = vunpack.c.l.b16 %v2092
        %v2388 = vunpack.c.l.b16 %v2093
        %v2389 = vunpack.c.l.b16 %v2094
        %v2390 = vunpack.c.l.b16 %v2095
        %v2391 = vunpack.c.l.b16 %v2096
        %v2392 = vunpack.c.l.b16 %v2097
        %v2393 = vunpack.c.l.b16 %v2098
        %v2394 = vunpack.c.l.b16 %v2099
        %v2395 = vunpack.c.l.b16 %v2100
        %v2396 = vunpack.c.l.b16 %v2101
        %v2397 = vunpack.c.l.b16 %v2102
        %v2398 = vunpack.c.l.b16 %v2103
        %v2399 = vunpack.c.l.b16 %v2104
        %v2400 = vunpack.c.l.b16 %v2105
        %v2401 = vunpack.c.l.b16 %v2106
        %v2402 = vunpack.c.l.b16 %v2107
        %v2403 = vunpack.c.l.b16 %v2108
        %v2404 = vunpack.c.l.b16 %v2109
        %v2405 = vunpack.c.l.b16 %v2110
        %v2406 = vpack.c.b16 %v2263, %v2262
        %v2407 = vpack.c.b16 %v2265, %v2264
        %v2408 = vpack.c.b16 %v2267, %v2266
        %v2409 = vpack.c.b16 %v2269, %v2268
        %v2410 = vpack.c.b16 %v2271, %v2270
        %v2411 = vpack.c.b16 %v2273, %v2272
        %v2412 = vpack.c.b16 %v2275, %v2274
        %v2413 = vpack.c.b16 %v2277, %v2276
        %v2414 = vpack.c.b16 %v2279, %v2278
        %v2415 = vpack.c.b16 %v2281, %v2280
        %v2416 = vpack.c.b16 %v2283, %v2282
        %v2417 = vpack.c.b16 %v2285, %v2284
        %v2418 = vpack.c.b16 %v2287, %v2286
        %v2419 = vpack.c.b16 %v2289, %v2288
        %v2420 = vpack.c.b16 %v2291, %v2290
        %v2421 = vpack.c.b16 %v2293, %v2292
        %v2422 = vpack.c.b16 %v2295, %v2294
        %v2423 = vpack.c.b16 %v2297, %v2296
        %v2424 = vpack.c.b16 %v2299, %v2298
        %v2425 = vpack.c.b16 %v2301, %v2300
        %v2426 = vpack.c.b16 %v2303, %v2302
        %v2427 = vpack.c.b16 %v2305, %v2304
        %v2428 = vpack.c.b16 %v2307, %v2306
        %v2429 = vpack.c.b16 %v2309, %v2308
        %v2430 = vpack.c.b16 %v2311, %v2310
        %v2431 = vpack.c.b16 %v2313, %v2312
        %v2432 = vpack.c.b16 %v2315, %v2314
        %v2433 = vpack.c.b16 %v2317, %v2316
        %v2434 = vpack.c.b16 %v2319, %v2318
        %v2435 = vpack.c.b16 %v2321, %v2320
        %v2436 = vpack.c.b16 %v2323, %v2322
        %v2437 = vpack.c.b16 %v2325, %v2324
        %v2438 = vpack.c.b16 %v2327, %v2326
        %v2439 = vpack.c.b16 %v2329, %v2328
        %v2440 = vpack.c.b16 %v2331, %v2330
        %v2441 = vpack.c.b16 %v2333, %v2332
        %v2442 = vpack.c.b16 %v2335, %v2334
        %v2443 = vpack.c.b16 %v2337, %v2336
        %v2444 = vpack.c.b16 %v2339, %v2338
        %v2445 = vpack.c.b16 %v2341, %v2340
        %v2446 = vpack.c.b16 %v2343, %v2342
        %v2447 = vpack.c.b16 %v2345, %v2344
        %v2448 = vpack.c.b16 %v2347, %v2346
        %v2449 = vpack.c.b16 %v2349, %v2348
        %v2450 = vpack.c.b16 %v2351, %v2350
        %v2451 = vpack.c.b16 %v2353, %v2352
        %v2452 = vpack.c.b16 %v2355, %v2354
        %v2453 = vpack.c.b16 %v2357, %v2356
        %v2454 = vpack.c.b16 %v2359, %v2358
        %v2455 = vpack.c.b16 %v2361, %v2360
        %v2456 = vpack.c.b16 %v2363, %v2362
        %v2457 = vpack.c.b16 %v2365, %v2364
        %v2458 = vpack.c.b16 %v2367, %v2366
        %v2459 = vpack.c.b16 %v2369, %v2368
        %v2460 = vpack.c.b16 %v2371, %v2370
        %v2461 = vpack.c.b16 %v2373, %v2372
        %v2462 = vpack.c.b16 %v2375, %v2374
        %v2463 = vpack.c.b16 %v2377, %v2376
        %v2464 = vpack.c.b16 %v2379, %v2378
        %v2465 = vpack.c.b16 %v2381, %v2380
        %v2466 = vpack.c.b16 %v2383, %v2382
        %v2467 = vpack.c.b16 %v2385, %v2384
        %v2468 = vpack.c.b16 %v2387, %v2386
        %v2469 = vpack.c.b16 %v2389, %v2388
        %v2470 = vpack.c.b16 %v2391, %v2390
        %v2471 = vpack.c.b16 %v2393, %v2392
        %v2472 = vpack.c.b16 %v2395, %v2394
        %v2473 = vpack.c.b16 %v2397, %v2396
        %v2474 = vpack.c.b16 %v2399, %v2398
        %v2475 = vpack.c.b16 %v2401, %v2400
        %v2476 = vpack.c.b16 %v2403, %v2402
        %v2477 = vpack.c.b16 %v2405, %v2404
        %2550 = vmatprep.subr.bf16.mxu0 0
        %2551 = vmatpush1.bf16.msra.mxu0 %v2406
        %2552 = vmatprep.subr.bf16.mxu0 0
        %2553 = vmatpush1.bf16.msra.mxu0 %v2407
        %2554 = vmatprep.subr.bf16.mxu0 0
        %2555 = vmatpush1.bf16.msra.mxu0 %v2408
        %2556 = vmatprep.subr.bf16.mxu0 0
        %2557 = vmatpush1.bf16.msra.mxu0 %v2409
        %2558 = vmatprep.subr.bf16.mxu0 0
        %2559 = vmatpush1.bf16.msra.mxu0 %v2410
        %2560 = vmatprep.subr.bf16.mxu0 0
        %2561 = vmatpush1.bf16.msra.mxu0 %v2411
        %2562 = vmatprep.subr.bf16.mxu0 0
        %2563 = vmatpush1.bf16.msra.mxu0 %v2412
        %2564 = vmatprep.subr.bf16.mxu0 0
        %2565 = vmatpush1.bf16.msra.mxu0 %v2413
        %2566 = vmatprep.subr.bf16.mxu0 0
        %2567 = vmatpush1.bf16.msra.mxu0 %v2414
        %2568 = vmatprep.subr.bf16.mxu0 0
        %2569 = vmatpush1.bf16.msra.mxu0 %v2415
        %2570 = vmatprep.subr.bf16.mxu0 0
        %2571 = vmatpush1.bf16.msra.mxu0 %v2416
        %2572 = vmatprep.subr.bf16.mxu0 0
        %2573 = vmatpush1.bf16.msra.mxu0 %v2417
        %2574 = vmatprep.subr.bf16.mxu0 0
        %2575 = vmatpush1.bf16.msra.mxu0 %v2418
        %2576 = vmatprep.subr.bf16.mxu0 0
        %2577 = vmatpush1.bf16.msra.mxu0 %v2419
        %2578 = vmatprep.subr.bf16.mxu0 0
        %2579 = vmatpush1.bf16.msra.mxu0 %v2420
        %2580 = vmatprep.subr.bf16.mxu0 0
        %2581 = vmatpush1.bf16.msra.mxu0 %v2421
        %2582 = vmatprep.mubr.bf16.mxu0 %v1338
        %2583 = vmatmul.mubr.bf16.gmra.mrb[0].mxu0 %v1610
        %v2584 = vpop.f32.mrb[0].mxu0
        %v2585 = vadd.f32 %v2116, %v2584
        %v2586 = vpop.f32.mrb[0].mxu0
        %v2587 = vpop.f32.mrb[0].mxu0
        %v2588 = vadd.f32 %v2116, %v2587
        %v2589 = vpop.f32.mrb[0].mxu0
        %2590 = vmatprep.mubr.bf16.mxu0 %v1339
        %2591 = vmatmul.mubr.bf16.gmra.mrb[0].mxu0 %v1380
        %v2592 = vpop.f32.mrb[0].mxu0
        %v2593 = vadd.f32 %v2116, %v2592
        %v2594 = vpop.f32.mrb[0].mxu0
        %v2595 = vpop.f32.mrb[0].mxu0
        %v2596 = vadd.f32 %v2116, %v2595
        %v2597 = vpop.f32.mrb[0].mxu0
        %2598 = vmatprep.mubr.bf16.mxu0 %v1340
        %2599 = vmatmul.mubr.bf16.gmra.mrb[0].mxu0 %v1388
        %v2600 = vpop.f32.mrb[0].mxu0
        %v2601 = vadd.f32 %v2116, %v2600
        %v2602 = vpop.f32.mrb[0].mxu0
        %v2603 = vpop.f32.mrb[0].mxu0
        %v2604 = vadd.f32 %v2116, %v2603
        %v2605 = vpop.f32.mrb[0].mxu0
        %2606 = vmatprep.mubr.bf16.mxu0 %v1341
        %2607 = vmatmul.mubr.bf16.gmra.mrb[0].mxu0 %v1396
        %v2608 = vpop.f32.mrb[0].mxu0
        %v2609 = vadd.f32 %v2116, %v2608
        %v2610 = vpop.f32.mrb[0].mxu0
        %v2611 = vpop.f32.mrb[0].mxu0
        %v2612 = vadd.f32 %v2116, %v2611
        %v2613 = vpop.f32.mrb[0].mxu0
        %2614 = vmatprep.mubr.bf16.mxu0 %v1342
        %2615 = vmatmul.mubr.bf16.gmra.mrb[0].mxu0 %v1404
        %v2616 = vpop.f32.mrb[0].mxu0
        %v2617 = vadd.f32 %v2116, %v2616
        %v2618 = vpop.f32.mrb[0].mxu0
        %v2619 = vpop.f32.mrb[0].mxu0
        %v2620 = vadd.f32 %v2116, %v2619
        %v2621 = vpop.f32.mrb[0].mxu0
        %2622 = vmatprep.mubr.bf16.mxu0 %v1343
        %2623 = vmatmul.mubr.bf16.gmra.mrb[0].mxu0 %v1412
        %v2624 = vpop.f32.mrb[0].mxu0
        %v2625 = vadd.f32 %v2116, %v2624
        %v2626 = vpop.f32.mrb[0].mxu0
        %v2627 = vpop.f32.mrb[0].mxu0
        %v2628 = vadd.f32 %v2116, %v2627
        %v2629 = vpop.f32.mrb[0].mxu0
        %2630 = vmatprep.mubr.bf16.mxu0 %v1344
        %2631 = vmatmul.mubr.bf16.gmra.mrb[0].mxu0 %v1420
        %v2632 = vpop.f32.mrb[0].mxu0
        %v2633 = vadd.f32 %v2116, %v2632
        %v2634 = vpop.f32.mrb[0].mxu0
        %v2635 = vpop.f32.mrb[0].mxu0
        %v2636 = vadd.f32 %v2116, %v2635
        %v2637 = vpop.f32.mrb[0].mxu0
        %2638 = vmatprep.mubr.bf16.mxu0 %v1345
        %2639 = vmatmul.mubr.bf16.gmra.mrb[0].mxu0 %v1428
        %v2640 = vpop.f32.mrb[0].mxu0
        %v2641 = vadd.f32 %v2116, %v2640
        %v2642 = vpop.f32.mrb[0].mxu0
        %v2643 = vpop.f32.mrb[0].mxu0
        %v2644 = vadd.f32 %v2116, %v2643
        %v2645 = vpop.f32.mrb[0].mxu0
        %2646 = vmatprep.mubr.bf16.mxu0 %v1346
        %2647 = vmatmul.mubr.bf16.gmra.mrb[0].mxu0 %v1436
        %v2648 = vpop.f32.mrb[0].mxu0
        %v2649 = vadd.f32 %v2116, %v2648
        %v2650 = vpop.f32.mrb[0].mxu0
        %v2651 = vpop.f32.mrb[0].mxu0
        %v2652 = vadd.f32 %v2116, %v2651
        %v2653 = vpop.f32.mrb[0].mxu0
        %2654 = vmatprep.mubr.bf16.mxu0 %v1347
        %2655 = vmatmul.mubr.bf16.gmra.mrb[0].mxu0 %v1444
        %v2656 = vpop.f32.mrb[0].mxu0
        %v2657 = vadd.f32 %v2116, %v2656
        %v2658 = vpop.f32.mrb[0].mxu0
        %v2659 = vpop.f32.mrb[0].mxu0
        %v2660 = vadd.f32 %v2116, %v2659
        %v2661 = vpop.f32.mrb[0].mxu0
        %2662 = vmatprep.mubr.bf16.mxu0 %v1348
        %2663 = vmatmul.mubr.bf16.gmra.mrb[0].mxu0 %v1452
        %v2664 = vpop.f32.mrb[0].mxu0
        %v2665 = vadd.f32 %v2116, %v2664
        %v2666 = vpop.f32.mrb[0].mxu0
        %v2667 = vpop.f32.mrb[0].mxu0
        %v2668 = vadd.f32 %v2116, %v2667
        %v2669 = vpop.f32.mrb[0].mxu0
        %2670 = vmatprep.mubr.bf16.mxu0 %v1349
        %2671 = vmatmul.mubr.bf16.gmra.mrb[0].mxu0 %v1460
        %v2672 = vpop.f32.mrb[0].mxu0
        %v2673 = vadd.f32 %v2116, %v2672
        %v2674 = vpop.f32.mrb[0].mxu0
        %v2675 = vpop.f32.mrb[0].mxu0
        %v2676 = vadd.f32 %v2116, %v2675
        %v2677 = vpop.f32.mrb[0].mxu0
        %2678 = vmatprep.mubr.bf16.mxu0 %v1350
        %2679 = vmatmul.mubr.bf16.gmra.mrb[0].mxu0 %v1468
        %v2680 = vpop.f32.mrb[0].mxu0
        %v2681 = vadd.f32 %v2116, %v2680
        %v2682 = vpop.f32.mrb[0].mxu0
        %v2683 = vpop.f32.mrb[0].mxu0
        %v2684 = vadd.f32 %v2116, %v2683
        %v2685 = vpop.f32.mrb[0].mxu0
        %2686 = vmatprep.mubr.bf16.mxu0 %v1351
        %2687 = vmatmul.mubr.bf16.gmra.mrb[0].mxu0 %v1476
        %v2688 = vpop.f32.mrb[0].mxu0
        %v2689 = vadd.f32 %v2116, %v2688
        %v2690 = vpop.f32.mrb[0].mxu0
        %v2691 = vpop.f32.mrb[0].mxu0
        %v2692 = vadd.f32 %v2116, %v2691
        %v2693 = vpop.f32.mrb[0].mxu0
        %2694 = vmatprep.mubr.bf16.mxu0 %v1352
        %2695 = vmatmul.mubr.bf16.gmra.mrb[0].mxu0 %v1484
        %v2696 = vpop.f32.mrb[0].mxu0
        %v2697 = vadd.f32 %v2116, %v2696
        %v2698 = vpop.f32.mrb[0].mxu0
        %v2699 = vpop.f32.mrb[0].mxu0
        %v2700 = vadd.f32 %v2116, %v2699
        %v2701 = vpop.f32.mrb[0].mxu0
        %2702 = vmatprep.mubr.bf16.mxu0 %v1353
        %2703 = vmatmul.mubr.bf16.gmra.mrb[0].mxu0 %v1492
        %v2704 = vpop.f32.mrb[0].mxu0
        %v2705 = vadd.f32 %v2116, %v2704
        %v2706 = vpop.f32.mrb[0].mxu0
        %v2707 = vpop.f32.mrb[0].mxu0
        %v2708 = vadd.f32 %v2116, %v2707
        %v2709 = vpop.f32.mrb[0].mxu0
        %2710 = vmatprep.mubr.bf16.mxu0 %v1354
        %2711 = vmatmul.mubr.bf16.gmra.mrb[0].mxu0 %v1500
        %v2712 = vpop.f32.mrb[0].mxu0
        %v2713 = vadd.f32 %v2116, %v2712
        %v2714 = vpop.f32.mrb[0].mxu0
        %v2715 = vpop.f32.mrb[0].mxu0
        %v2716 = vadd.f32 %v2116, %v2715
        %v2717 = vpop.f32.mrb[0].mxu0
        %2718 = vmatprep.mubr.bf16.mxu0 %v1355
        %2719 = vmatmul.mubr.bf16.gmra.mrb[0].mxu0 %v1508
        %v2720 = vpop.f32.mrb[0].mxu0
        %v2721 = vadd.f32 %v2116, %v2720
        %v2722 = vpop.f32.mrb[0].mxu0
        %v2723 = vpop.f32.mrb[0].mxu0
        %v2724 = vadd.f32 %v2116, %v2723
        %v2725 = vpop.f32.mrb[0].mxu0
        %2726 = vmatprep.mubr.bf16.mxu0 %v1356
        %2727 = vmatmul.mubr.bf16.gmra.mrb[0].mxu0 %v1516
        %v2728 = vpop.f32.mrb[0].mxu0
        %v2729 = vadd.f32 %v2116, %v2728
        %v2730 = vpop.f32.mrb[0].mxu0
        %v2731 = vpop.f32.mrb[0].mxu0
        %v2732 = vadd.f32 %v2116, %v2731
        %v2733 = vpop.f32.mrb[0].mxu0
        %2734 = vmatprep.mubr.bf16.mxu0 %v1357
        %2735 = vmatmul.mubr.bf16.gmra.mrb[0].mxu0 %v1524
        %v2736 = vpop.f32.mrb[0].mxu0
        %v2737 = vadd.f32 %v2116, %v2736
        %v2738 = vpop.f32.mrb[0].mxu0
        %v2739 = vpop.f32.mrb[0].mxu0
        %v2740 = vadd.f32 %v2116, %v2739
        %v2741 = vpop.f32.mrb[0].mxu0
        %2742 = vmatprep.mubr.bf16.mxu0 %v1358
        %2743 = vmatmul.mubr.bf16.gmra.mrb[0].mxu0 %v1532
        %v2744 = vpop.f32.mrb[0].mxu0
        %v2745 = vadd.f32 %v2116, %v2744
        %v2746 = vpop.f32.mrb[0].mxu0
        %v2747 = vpop.f32.mrb[0].mxu0
        %v2748 = vadd.f32 %v2116, %v2747
        %v2749 = vpop.f32.mrb[0].mxu0
        %2750 = vmatprep.mubr.bf16.mxu0 %v1359
        %2751 = vmatmul.mubr.bf16.gmra.mrb[0].mxu0 %v1540
        %v2752 = vpop.f32.mrb[0].mxu0
        %v2753 = vadd.f32 %v2116, %v2752
        %v2754 = vpop.f32.mrb[0].mxu0
        %v2755 = vpop.f32.mrb[0].mxu0
        %v2756 = vadd.f32 %v2116, %v2755
        %v2757 = vpop.f32.mrb[0].mxu0
        %2758 = vmatprep.mubr.bf16.mxu0 %v1360
        %2759 = vmatmul.mubr.bf16.gmra.mrb[0].mxu0 %v1548
        %v2760 = vpop.f32.mrb[0].mxu0
        %v2761 = vadd.f32 %v2116, %v2760
        %v2762 = vpop.f32.mrb[0].mxu0
        %v2763 = vpop.f32.mrb[0].mxu0
        %v2764 = vadd.f32 %v2116, %v2763
        %v2765 = vpop.f32.mrb[0].mxu0
        %2766 = vmatprep.mubr.bf16.mxu0 %v1361
        %2767 = vmatmul.mubr.bf16.gmra.mrb[0].mxu0 %v1556
        %v2768 = vpop.f32.mrb[0].mxu0
        %v2769 = vadd.f32 %v2116, %v2768
        %v2770 = vpop.f32.mrb[0].mxu0
        %v2771 = vpop.f32.mrb[0].mxu0
        %v2772 = vadd.f32 %v2116, %v2771
        %v2773 = vpop.f32.mrb[0].mxu0
        %2774 = vdwg.mxu0
        %2775 = vmatprep.subr.bf16.mxu0 0
        %2776 = vmatpush1.bf16.msra.mxu0 %v2422
        %2777 = vmatprep.subr.bf16.mxu0 0
        %2778 = vmatpush1.bf16.msra.mxu0 %v2423
        %2779 = vmatprep.subr.bf16.mxu0 0
        %2780 = vmatpush1.bf16.msra.mxu0 %v2424
        %2781 = vmatprep.subr.bf16.mxu0 0
        %2782 = vmatpush1.bf16.msra.mxu0 %v2425
        %2783 = vmatprep.subr.bf16.mxu0 0
        %2784 = vmatpush1.bf16.msra.mxu0 %v2426
        %2785 = vmatprep.subr.bf16.mxu0 0
        %2786 = vmatpush1.bf16.msra.mxu0 %v2427
        %2787 = vmatprep.subr.bf16.mxu0 0
        %2788 = vmatpush1.bf16.msra.mxu0 %v2428
        %2789 = vmatprep.subr.bf16.mxu0 0
        %2790 = vmatpush1.bf16.msra.mxu0 %v2429
        %2791 = vmatprep.subr.bf16.mxu0 0
        %2792 = vmatpush1.bf16.msra.mxu0 %v2430
        %2793 = vmatprep.subr.bf16.mxu0 0
        %2794 = vmatpush1.bf16.msra.mxu0 %v2431
        %2795 = vmatprep.subr.bf16.mxu0 0
        %2796 = vmatpush1.bf16.msra.mxu0 %v2432
        %2797 = vmatprep.subr.bf16.mxu0 0
        %2798 = vmatpush1.bf16.msra.mxu0 %v2433
        %2799 = vmatprep.subr.bf16.mxu0 0
        %2800 = vmatpush1.bf16.msra.mxu0 %v2434
        %2801 = vmatprep.subr.bf16.mxu0 0
        %2802 = vmatpush1.bf16.msra.mxu0 %v2435
        %2803 = vmatprep.subr.bf16.mxu0 0
        %2804 = vmatpush1.bf16.msra.mxu0 %v2436
        %2805 = vmatprep.subr.bf16.mxu0 0
        %2806 = vmatpush1.bf16.msra.mxu0 %v2437
        %2807 = vmatprep.mubr.bf16.mxu0 %v1725
        %2808 = vmatmul.mubr.bf16.gmra.mrb[0].mxu0 %v1615
        %v2809 = vpop.f32.mrb[0].mxu0
        %v2810 = vadd.f32 %v2585, %v2809
        %v2811 = vpop.f32.mrb[0].mxu0
        %v2812 = vpop.f32.mrb[0].mxu0
        %v2813 = vadd.f32 %v2588, %v2812
        %v2814 = vpop.f32.mrb[0].mxu0
        %2815 = vmatprep.mubr.bf16.mxu0 %v1727
        %2816 = vmatmul.mubr.bf16.gmra.mrb[0].mxu0 %v1618
        %v2817 = vpop.f32.mrb[0].mxu0
        %v2818 = vadd.f32 %v2593, %v2817
        %v2819 = vpop.f32.mrb[0].mxu0
        %v2820 = vpop.f32.mrb[0].mxu0
        %v2821 = vadd.f32 %v2596, %v2820
        %v2822 = vpop.f32.mrb[0].mxu0
        %2823 = vmatprep.mubr.bf16.mxu0 %v1729
        %2824 = vmatmul.mubr.bf16.gmra.mrb[0].mxu0 %v1621
        %v2825 = vpop.f32.mrb[0].mxu0
        %v2826 = vadd.f32 %v2601, %v2825
        %v2827 = vpop.f32.mrb[0].mxu0
        %v2828 = vpop.f32.mrb[0].mxu0
        %v2829 = vadd.f32 %v2604, %v2828
        %v2830 = vpop.f32.mrb[0].mxu0
        %2831 = vmatprep.mubr.bf16.mxu0 %v1731
        %2832 = vmatmul.mubr.bf16.gmra.mrb[0].mxu0 %v1624
        %v2833 = vpop.f32.mrb[0].mxu0
        %v2834 = vadd.f32 %v2609, %v2833
        %v2835 = vpop.f32.mrb[0].mxu0
        %v2836 = vpop.f32.mrb[0].mxu0
        %v2837 = vadd.f32 %v2612, %v2836
        %v2838 = vpop.f32.mrb[0].mxu0
        %2839 = vmatprep.mubr.bf16.mxu0 %v1733
        %2840 = vmatmul.mubr.bf16.gmra.mrb[0].mxu0 %v1627
        %v2841 = vpop.f32.mrb[0].mxu0
        %v2842 = vadd.f32 %v2617, %v2841
        %v2843 = vpop.f32.mrb[0].mxu0
        %v2844 = vpop.f32.mrb[0].mxu0
        %v2845 = vadd.f32 %v2620, %v2844
        %v2846 = vpop.f32.mrb[0].mxu0
        %2847 = vmatprep.mubr.bf16.mxu0 %v1735
        %2848 = vmatmul.mubr.bf16.gmra.mrb[0].mxu0 %v1630
        %v2849 = vpop.f32.mrb[0].mxu0
        %v2850 = vadd.f32 %v2625, %v2849
        %v2851 = vpop.f32.mrb[0].mxu0
        %v2852 = vpop.f32.mrb[0].mxu0
        %v2853 = vadd.f32 %v2628, %v2852
        %v2854 = vpop.f32.mrb[0].mxu0
        %2855 = vmatprep.mubr.bf16.mxu0 %v1737
        %2856 = vmatmul.mubr.bf16.gmra.mrb[0].mxu0 %v1633
        %v2857 = vpop.f32.mrb[0].mxu0
        %v2858 = vadd.f32 %v2633, %v2857
        %v2859 = vpop.f32.mrb[0].mxu0
        %v2860 = vpop.f32.mrb[0].mxu0
        %v2861 = vadd.f32 %v2636, %v2860
        %v2862 = vpop.f32.mrb[0].mxu0
        %2863 = vmatprep.mubr.bf16.mxu0 %v1739
        %2864 = vmatmul.mubr.bf16.gmra.mrb[0].mxu0 %v1636
        %v2865 = vpop.f32.mrb[0].mxu0
        %v2866 = vadd.f32 %v2641, %v2865
        %v2867 = vpop.f32.mrb[0].mxu0
        %v2868 = vpop.f32.mrb[0].mxu0
        %v2869 = vadd.f32 %v2644, %v2868
        %v2870 = vpop.f32.mrb[0].mxu0
        %2871 = vmatprep.mubr.bf16.mxu0 %v1741
        %2872 = vmatmul.mubr.bf16.gmra.mrb[0].mxu0 %v1639
        %v2873 = vpop.f32.mrb[0].mxu0
        %v2874 = vadd.f32 %v2649, %v2873
        %v2875 = vpop.f32.mrb[0].mxu0
        %v2876 = vpop.f32.mrb[0].mxu0
        %v2877 = vadd.f32 %v2652, %v2876
        %v2878 = vpop.f32.mrb[0].mxu0
        %2879 = vmatprep.mubr.bf16.mxu0 %v1743
        %2880 = vmatmul.mubr.bf16.gmra.mrb[0].mxu0 %v1642
        %v2881 = vpop.f32.mrb[0].mxu0
        %v2882 = vadd.f32 %v2657, %v2881
        %v2883 = vpop.f32.mrb[0].mxu0
        %v2884 = vpop.f32.mrb[0].mxu0
        %v2885 = vadd.f32 %v2660, %v2884
        %v2886 = vpop.f32.mrb[0].mxu0
        %2887 = vmatprep.mubr.bf16.mxu0 %v1745
        %2888 = vmatmul.mubr.bf16.gmra.mrb[0].mxu0 %v1645
        %v2889 = vpop.f32.mrb[0].mxu0
        %v2890 = vadd.f32 %v2665, %v2889
        %v2891 = vpop.f32.mrb[0].mxu0
        %v2892 = vpop.f32.mrb[0].mxu0
        %v2893 = vadd.f32 %v2668, %v2892
        %v2894 = vpop.f32.mrb[0].mxu0
        %2895 = vmatprep.mubr.bf16.mxu0 %v1747
        %2896 = vmatmul.mubr.bf16.gmra.mrb[0].mxu0 %v1648
        %v2897 = vpop.f32.mrb[0].mxu0
        %v2898 = vadd.f32 %v2673, %v2897
        %v2899 = vpop.f32.mrb[0].mxu0
        %v2900 = vpop.f32.mrb[0].mxu0
        %v2901 = vadd.f32 %v2676, %v2900
        %v2902 = vpop.f32.mrb[0].mxu0
        %2903 = vmatprep.mubr.bf16.mxu0 %v1749
        %2904 = vmatmul.mubr.bf16.gmra.mrb[0].mxu0 %v1651
        %v2905 = vpop.f32.mrb[0].mxu0
        %v2906 = vadd.f32 %v2681, %v2905
        %v2907 = vpop.f32.mrb[0].mxu0
        %v2908 = vpop.f32.mrb[0].mxu0
        %v2909 = vadd.f32 %v2684, %v2908
        %v2910 = vpop.f32.mrb[0].mxu0
        %2911 = vmatprep.mubr.bf16.mxu0 %v1751
        %2912 = vmatmul.mubr.bf16.gmra.mrb[0].mxu0 %v1654
        %v2913 = vpop.f32.mrb[0].mxu0
        %v2914 = vadd.f32 %v2689, %v2913
        %v2915 = vpop.f32.mrb[0].mxu0
        %v2916 = vpop.f32.mrb[0].mxu0
        %v2917 = vadd.f32 %v2692, %v2916
        %v2918 = vpop.f32.mrb[0].mxu0
        %2919 = vmatprep.mubr.bf16.mxu0 %v1753
        %2920 = vmatmul.mubr.bf16.gmra.mrb[0].mxu0 %v1657
        %v2921 = vpop.f32.mrb[0].mxu0
        %v2922 = vadd.f32 %v2697, %v2921
        %v2923 = vpop.f32.mrb[0].mxu0
        %v2924 = vpop.f32.mrb[0].mxu0
        %v2925 = vadd.f32 %v2700, %v2924
        %v2926 = vpop.f32.mrb[0].mxu0
        %2927 = vmatprep.mubr.bf16.mxu0 %v1755
        %2928 = vmatmul.mubr.bf16.gmra.mrb[0].mxu0 %v1660
        %v2929 = vpop.f32.mrb[0].mxu0
        %v2930 = vadd.f32 %v2705, %v2929
        %v2931 = vpop.f32.mrb[0].mxu0
        %v2932 = vpop.f32.mrb[0].mxu0
        %v2933 = vadd.f32 %v2708, %v2932
        %v2934 = vpop.f32.mrb[0].mxu0
        %2935 = vmatprep.mubr.bf16.mxu0 %v1757
        %2936 = vmatmul.mubr.bf16.gmra.mrb[0].mxu0 %v1663
        %v2937 = vpop.f32.mrb[0].mxu0
        %v2938 = vadd.f32 %v2713, %v2937
        %v2939 = vpop.f32.mrb[0].mxu0
        %v2940 = vpop.f32.mrb[0].mxu0
        %v2941 = vadd.f32 %v2716, %v2940
        %v2942 = vpop.f32.mrb[0].mxu0
        %2943 = vmatprep.mubr.bf16.mxu0 %v1759
        %2944 = vmatmul.mubr.bf16.gmra.mrb[0].mxu0 %v1666
        %v2945 = vpop.f32.mrb[0].mxu0
        %v2946 = vadd.f32 %v2721, %v2945
        %v2947 = vpop.f32.mrb[0].mxu0
        %v2948 = vpop.f32.mrb[0].mxu0
        %v2949 = vadd.f32 %v2724, %v2948
        %v2950 = vpop.f32.mrb[0].mxu0
        %2951 = vmatprep.mubr.bf16.mxu0 %v1761
        %2952 = vmatmul.mubr.bf16.gmra.mrb[0].mxu0 %v1669
        %v2953 = vpop.f32.mrb[0].mxu0
        %v2954 = vadd.f32 %v2729, %v2953
        %v2955 = vpop.f32.mrb[0].mxu0
        %v2956 = vpop.f32.mrb[0].mxu0
        %v2957 = vadd.f32 %v2732, %v2956
        %v2958 = vpop.f32.mrb[0].mxu0
        %2959 = vmatprep.mubr.bf16.mxu0 %v1763
        %2960 = vmatmul.mubr.bf16.gmra.mrb[0].mxu0 %v1672
        %v2961 = vpop.f32.mrb[0].mxu0
        %v2962 = vadd.f32 %v2737, %v2961
        %v2963 = vpop.f32.mrb[0].mxu0
        %v2964 = vpop.f32.mrb[0].mxu0
        %v2965 = vadd.f32 %v2740, %v2964
        %v2966 = vpop.f32.mrb[0].mxu0
        %2967 = vmatprep.mubr.bf16.mxu0 %v1765
        %2968 = vmatmul.mubr.bf16.gmra.mrb[0].mxu0 %v1675
        %v2969 = vpop.f32.mrb[0].mxu0
        %v2970 = vadd.f32 %v2745, %v2969
        %v2971 = vpop.f32.mrb[0].mxu0
        %v2972 = vpop.f32.mrb[0].mxu0
        %v2973 = vadd.f32 %v2748, %v2972
        %v2974 = vpop.f32.mrb[0].mxu0
        %2975 = vmatprep.mubr.bf16.mxu0 %v1767
        %2976 = vmatmul.mubr.bf16.gmra.mrb[0].mxu0 %v1678
        %v2977 = vpop.f32.mrb[0].mxu0
        %v2978 = vadd.f32 %v2753, %v2977
        %v2979 = vpop.f32.mrb[0].mxu0
        %v2980 = vpop.f32.mrb[0].mxu0
        %v2981 = vadd.f32 %v2756, %v2980
        %v2982 = vpop.f32.mrb[0].mxu0
        %2983 = vmatprep.mubr.bf16.mxu0 %v1769
        %2984 = vmatmul.mubr.bf16.gmra.mrb[0].mxu0 %v1681
        %v2985 = vpop.f32.mrb[0].mxu0
        %v2986 = vadd.f32 %v2761, %v2985
        %v2987 = vpop.f32.mrb[0].mxu0
        %v2988 = vpop.f32.mrb[0].mxu0
        %v2989 = vadd.f32 %v2764, %v2988
        %v2990 = vpop.f32.mrb[0].mxu0
        %2991 = vmatprep.mubr.bf16.mxu0 %v1771
        %2992 = vmatmul.mubr.bf16.gmra.mrb[0].mxu0 %v1684
        %v2993 = vpop.f32.mrb[0].mxu0
        %v2994 = vadd.f32 %v2769, %v2993
        %v2995 = vpop.f32.mrb[0].mxu0
        %v2996 = vpop.f32.mrb[0].mxu0
        %v2997 = vadd.f32 %v2772, %v2996
        %v2998 = vpop.f32.mrb[0].mxu0
        %2999 = vdwg.mxu0
        %3000 = vmatprep.subr.bf16.mxu0 0
        %3001 = vmatpush1.bf16.msra.mxu0 %v2438
        %3002 = vmatprep.subr.bf16.mxu0 0
        %3003 = vmatpush1.bf16.msra.mxu0 %v2439
        %3004 = vmatprep.subr.bf16.mxu0 0
        %3005 = vmatpush1.bf16.msra.mxu0 %v2440
        %3006 = vmatprep.subr.bf16.mxu0 0
        %3007 = vmatpush1.bf16.msra.mxu0 %v2441
        %3008 = vmatprep.subr.bf16.mxu0 0
        %3009 = vmatpush1.bf16.msra.mxu0 %v2442
        %3010 = vmatprep.subr.bf16.mxu0 0
        %3011 = vmatpush1.bf16.msra.mxu0 %v2443
        %3012 = vmatprep.subr.bf16.mxu0 0
        %3013 = vmatpush1.bf16.msra.mxu0 %v2444
        %3014 = vmatprep.subr.bf16.mxu0 0
        %3015 = vmatpush1.bf16.msra.mxu0 %v2445
        %3016 = vmatprep.subr.bf16.mxu0 0
        %3017 = vmatpush1.bf16.msra.mxu0 %v2446
        %3018 = vmatprep.subr.bf16.mxu0 0
        %3019 = vmatpush1.bf16.msra.mxu0 %v2447
        %3020 = vmatprep.subr.bf16.mxu0 0
        %3021 = vmatpush1.bf16.msra.mxu0 %v2448
        %3022 = vmatprep.subr.bf16.mxu0 0
        %3023 = vmatpush1.bf16.msra.mxu0 %v2449
        %3024 = vmatprep.subr.bf16.mxu0 0
        %3025 = vmatpush1.bf16.msra.mxu0 %v2450
        %3026 = vmatprep.subr.bf16.mxu0 0
        %3027 = vmatpush1.bf16.msra.mxu0 %v2451
        %3028 = vmatprep.subr.bf16.mxu0 0
        %3029 = vmatpush1.bf16.msra.mxu0 %v2452
        %3030 = vmatprep.subr.bf16.mxu0 0
        %3031 = vmatpush1.bf16.msra.mxu0 %v2453
        %3032 = vmatprep.mubr.bf16.mxu0 %v1896
        %3033 = vmatmul.mubr.bf16.gmra.mrb[0].mxu0 %v1823
        %v3034 = vpop.f32.mrb[0].mxu0
        %v3035 = vadd.f32 %v2810, %v3034
        %v3036 = vpop.f32.mrb[0].mxu0
        %v3037 = vpop.f32.mrb[0].mxu0
        %v3038 = vadd.f32 %v2813, %v3037
        %v3039 = vpop.f32.mrb[0].mxu0
        %3040 = vmatprep.mubr.bf16.mxu0 %v1898
        %3041 = vmatmul.mubr.bf16.gmra.mrb[0].mxu0 %v1825
        %v3042 = vpop.f32.mrb[0].mxu0
        %v3043 = vadd.f32 %v2818, %v3042
        %v3044 = vpop.f32.mrb[0].mxu0
        %v3045 = vpop.f32.mrb[0].mxu0
        %v3046 = vadd.f32 %v2821, %v3045
        %v3047 = vpop.f32.mrb[0].mxu0
        %3048 = vmatprep.mubr.bf16.mxu0 %v1900
        %3049 = vmatmul.mubr.bf16.gmra.mrb[0].mxu0 %v1827
        %v3050 = vpop.f32.mrb[0].mxu0
        %v3051 = vadd.f32 %v2826, %v3050
        %v3052 = vpop.f32.mrb[0].mxu0
        %v3053 = vpop.f32.mrb[0].mxu0
        %v3054 = vadd.f32 %v2829, %v3053
        %v3055 = vpop.f32.mrb[0].mxu0
        %3056 = vmatprep.mubr.bf16.mxu0 %v1902
        %3057 = vmatmul.mubr.bf16.gmra.mrb[0].mxu0 %v1829
        %v3058 = vpop.f32.mrb[0].mxu0
        %v3059 = vadd.f32 %v2834, %v3058
        %v3060 = vpop.f32.mrb[0].mxu0
        %v3061 = vpop.f32.mrb[0].mxu0
        %v3062 = vadd.f32 %v2837, %v3061
        %v3063 = vpop.f32.mrb[0].mxu0
        %3064 = vmatprep.mubr.bf16.mxu0 %v1904
        %3065 = vmatmul.mubr.bf16.gmra.mrb[0].mxu0 %v1831
        %v3066 = vpop.f32.mrb[0].mxu0
        %v3067 = vadd.f32 %v2842, %v3066
        %v3068 = vpop.f32.mrb[0].mxu0
        %v3069 = vpop.f32.mrb[0].mxu0
        %v3070 = vadd.f32 %v2845, %v3069
        %v3071 = vpop.f32.mrb[0].mxu0
        %3072 = vmatprep.mubr.bf16.mxu0 %v1906
        %3073 = vmatmul.mubr.bf16.gmra.mrb[0].mxu0 %v1833
        %v3074 = vpop.f32.mrb[0].mxu0
        %v3075 = vadd.f32 %v2850, %v3074
        %v3076 = vpop.f32.mrb[0].mxu0
        %v3077 = vpop.f32.mrb[0].mxu0
        %v3078 = vadd.f32 %v2853, %v3077
        %v3079 = vpop.f32.mrb[0].mxu0
        %3080 = vmatprep.mubr.bf16.mxu0 %v1908
        %3081 = vmatmul.mubr.bf16.gmra.mrb[0].mxu0 %v1835
        %v3082 = vpop.f32.mrb[0].mxu0
        %v3083 = vadd.f32 %v2858, %v3082
        %v3084 = vpop.f32.mrb[0].mxu0
        %v3085 = vpop.f32.mrb[0].mxu0
        %v3086 = vadd.f32 %v2861, %v3085
        %v3087 = vpop.f32.mrb[0].mxu0
        %3088 = vmatprep.mubr.bf16.mxu0 %v1910
        %3089 = vmatmul.mubr.bf16.gmra.mrb[0].mxu0 %v1837
        %v3090 = vpop.f32.mrb[0].mxu0
        %v3091 = vadd.f32 %v2866, %v3090
        %v3092 = vpop.f32.mrb[0].mxu0
        %v3093 = vpop.f32.mrb[0].mxu0
        %v3094 = vadd.f32 %v2869, %v3093
        %v3095 = vpop.f32.mrb[0].mxu0
        %3096 = vmatprep.mubr.bf16.mxu0 %v1912
        %3097 = vmatmul.mubr.bf16.gmra.mrb[0].mxu0 %v1839
        %v3098 = vpop.f32.mrb[0].mxu0
        %v3099 = vadd.f32 %v2874, %v3098
        %v3100 = vpop.f32.mrb[0].mxu0
        %v3101 = vpop.f32.mrb[0].mxu0
        %v3102 = vadd.f32 %v2877, %v3101
        %v3103 = vpop.f32.mrb[0].mxu0
        %3104 = vmatprep.mubr.bf16.mxu0 %v1914
        %3105 = vmatmul.mubr.bf16.gmra.mrb[0].mxu0 %v1841
        %v3106 = vpop.f32.mrb[0].mxu0
        %v3107 = vadd.f32 %v2882, %v3106
        %v3108 = vpop.f32.mrb[0].mxu0
        %v3109 = vpop.f32.mrb[0].mxu0
        %v3110 = vadd.f32 %v2885, %v3109
        %v3111 = vpop.f32.mrb[0].mxu0
        %3112 = vmatprep.mubr.bf16.mxu0 %v1916
        %3113 = vmatmul.mubr.bf16.gmra.mrb[0].mxu0 %v1843
        %v3114 = vpop.f32.mrb[0].mxu0
        %v3115 = vadd.f32 %v2890, %v3114
        %v3116 = vpop.f32.mrb[0].mxu0
        %v3117 = vpop.f32.mrb[0].mxu0
        %v3118 = vadd.f32 %v2893, %v3117
        %v3119 = vpop.f32.mrb[0].mxu0
        %3120 = vmatprep.mubr.bf16.mxu0 %v1918
        %3121 = vmatmul.mubr.bf16.gmra.mrb[0].mxu0 %v1845
        %v3122 = vpop.f32.mrb[0].mxu0
        %v3123 = vadd.f32 %v2898, %v3122
        %v3124 = vpop.f32.mrb[0].mxu0
        %v3125 = vpop.f32.mrb[0].mxu0
        %v3126 = vadd.f32 %v2901, %v3125
        %v3127 = vpop.f32.mrb[0].mxu0
        %3128 = vmatprep.mubr.bf16.mxu0 %v1920
        %3129 = vmatmul.mubr.bf16.gmra.mrb[0].mxu0 %v1847
        %v3130 = vpop.f32.mrb[0].mxu0
        %v3131 = vadd.f32 %v2906, %v3130
        %v3132 = vpop.f32.mrb[0].mxu0
        %v3133 = vpop.f32.mrb[0].mxu0
        %v3134 = vadd.f32 %v2909, %v3133
        %v3135 = vpop.f32.mrb[0].mxu0
        %3136 = vmatprep.mubr.bf16.mxu0 %v1922
        %3137 = vmatmul.mubr.bf16.gmra.mrb[0].mxu0 %v1849
        %v3138 = vpop.f32.mrb[0].mxu0
        %v3139 = vadd.f32 %v2914, %v3138
        %v3140 = vpop.f32.mrb[0].mxu0
        %v3141 = vpop.f32.mrb[0].mxu0
        %v3142 = vadd.f32 %v2917, %v3141
        %v3143 = vpop.f32.mrb[0].mxu0
        %3144 = vmatprep.mubr.bf16.mxu0 %v1924
        %3145 = vmatmul.mubr.bf16.gmra.mrb[0].mxu0 %v1851
        %v3146 = vpop.f32.mrb[0].mxu0
        %v3147 = vadd.f32 %v2922, %v3146
        %v3148 = vpop.f32.mrb[0].mxu0
        %v3149 = vpop.f32.mrb[0].mxu0
        %v3150 = vadd.f32 %v2925, %v3149
        %v3151 = vpop.f32.mrb[0].mxu0
        %3152 = vmatprep.mubr.bf16.mxu0 %v1926
        %3153 = vmatmul.mubr.bf16.gmra.mrb[0].mxu0 %v1853
        %v3154 = vpop.f32.mrb[0].mxu0
        %v3155 = vadd.f32 %v2930, %v3154
        %v3156 = vpop.f32.mrb[0].mxu0
        %v3157 = vpop.f32.mrb[0].mxu0
        %v3158 = vadd.f32 %v2933, %v3157
        %v3159 = vpop.f32.mrb[0].mxu0
        %3160 = vmatprep.mubr.bf16.mxu0 %v1928
        %3161 = vmatmul.mubr.bf16.gmra.mrb[0].mxu0 %v1855
        %v3162 = vpop.f32.mrb[0].mxu0
        %v3163 = vadd.f32 %v2938, %v3162
        %v3164 = vpop.f32.mrb[0].mxu0
        %v3165 = vpop.f32.mrb[0].mxu0
        %v3166 = vadd.f32 %v2941, %v3165
        %v3167 = vpop.f32.mrb[0].mxu0
        %3168 = vmatprep.mubr.bf16.mxu0 %v1930
        %3169 = vmatmul.mubr.bf16.gmra.mrb[0].mxu0 %v1857
        %v3170 = vpop.f32.mrb[0].mxu0
        %v3171 = vadd.f32 %v2946, %v3170
        %v3172 = vpop.f32.mrb[0].mxu0
        %v3173 = vpop.f32.mrb[0].mxu0
        %v3174 = vadd.f32 %v2949, %v3173
        %v3175 = vpop.f32.mrb[0].mxu0
        %3176 = vmatprep.mubr.bf16.mxu0 %v1932
        %3177 = vmatmul.mubr.bf16.gmra.mrb[0].mxu0 %v1859
        %v3178 = vpop.f32.mrb[0].mxu0
        %v3179 = vadd.f32 %v2954, %v3178
        %v3180 = vpop.f32.mrb[0].mxu0
        %v3181 = vpop.f32.mrb[0].mxu0
        %v3182 = vadd.f32 %v2957, %v3181
        %v3183 = vpop.f32.mrb[0].mxu0
        %3184 = vmatprep.mubr.bf16.mxu0 %v1934
        %3185 = vmatmul.mubr.bf16.gmra.mrb[0].mxu0 %v1861
        %v3186 = vpop.f32.mrb[0].mxu0
        %v3187 = vadd.f32 %v2962, %v3186
        %v3188 = vpop.f32.mrb[0].mxu0
        %v3189 = vpop.f32.mrb[0].mxu0
        %v3190 = vadd.f32 %v2965, %v3189
        %v3191 = vpop.f32.mrb[0].mxu0
        %3192 = vmatprep.mubr.bf16.mxu0 %v1936
        %3193 = vmatmul.mubr.bf16.gmra.mrb[0].mxu0 %v1863
        %v3194 = vpop.f32.mrb[0].mxu0
        %v3195 = vadd.f32 %v2970, %v3194
        %v3196 = vpop.f32.mrb[0].mxu0
        %v3197 = vpop.f32.mrb[0].mxu0
        %v3198 = vadd.f32 %v2973, %v3197
        %v3199 = vpop.f32.mrb[0].mxu0
        %3200 = vmatprep.mubr.bf16.mxu0 %v1938
        %3201 = vmatmul.mubr.bf16.gmra.mrb[0].mxu0 %v1865
        %v3202 = vpop.f32.mrb[0].mxu0
        %v3203 = vadd.f32 %v2978, %v3202
        %v3204 = vpop.f32.mrb[0].mxu0
        %v3205 = vpop.f32.mrb[0].mxu0
        %v3206 = vadd.f32 %v2981, %v3205
        %v3207 = vpop.f32.mrb[0].mxu0
        %3208 = vmatprep.mubr.bf16.mxu0 %v1940
        %3209 = vmatmul.mubr.bf16.gmra.mrb[0].mxu0 %v1867
        %v3210 = vpop.f32.mrb[0].mxu0
        %v3211 = vadd.f32 %v2986, %v3210
        %v3212 = vpop.f32.mrb[0].mxu0
        %v3213 = vpop.f32.mrb[0].mxu0
        %v3214 = vadd.f32 %v2989, %v3213
        %v3215 = vpop.f32.mrb[0].mxu0
        %3216 = vmatprep.mubr.bf16.mxu0 %v1942
        %3217 = vmatmul.mubr.bf16.gmra.mrb[0].mxu0 %v1869
        %v3218 = vpop.f32.mrb[0].mxu0
        %v3219 = vadd.f32 %v2994, %v3218
        %v3220 = vpop.f32.mrb[0].mxu0
        %v3221 = vpop.f32.mrb[0].mxu0
        %v3222 = vadd.f32 %v2997, %v3221
        %v3223 = vpop.f32.mrb[0].mxu0
        %3224 = vdwg.mxu0
        %3225 = vmatprep.subr.bf16.mxu0 0
        %3226 = vmatpush1.bf16.msra.mxu0 %v2454
        %3227 = vmatprep.subr.bf16.mxu0 0
        %3228 = vmatpush1.bf16.msra.mxu0 %v2455
        %3229 = vmatprep.subr.bf16.mxu0 0
        %3230 = vmatpush1.bf16.msra.mxu0 %v2456
        %3231 = vmatprep.subr.bf16.mxu0 0
        %3232 = vmatpush1.bf16.msra.mxu0 %v2457
        %3233 = vmatprep.subr.bf16.mxu0 0
        %3234 = vmatpush1.bf16.msra.mxu0 %v2458
        %3235 = vmatprep.subr.bf16.mxu0 0
        %3236 = vmatpush1.bf16.msra.mxu0 %v2459
        %3237 = vmatprep.subr.bf16.mxu0 0
        %3238 = vmatpush1.bf16.msra.mxu0 %v2460
        %3239 = vmatprep.subr.bf16.mxu0 0
        %3240 = vmatpush1.bf16.msra.mxu0 %v2461
        %3241 = vmatprep.subr.bf16.mxu0 0
        %3242 = vmatpush1.bf16.msra.mxu0 %v2462
        %3243 = vmatprep.subr.bf16.mxu0 0
        %3244 = vmatpush1.bf16.msra.mxu0 %v2463
        %3245 = vmatprep.subr.bf16.mxu0 0
        %3246 = vmatpush1.bf16.msra.mxu0 %v2464
        %3247 = vmatprep.subr.bf16.mxu0 0
        %3248 = vmatpush1.bf16.msra.mxu0 %v2465
        %3249 = vmatprep.subr.bf16.mxu0 0
        %3250 = vmatpush1.bf16.msra.mxu0 %v2466
        %3251 = vmatprep.subr.bf16.mxu0 0
        %3252 = vmatpush1.bf16.msra.mxu0 %v2467
        %3253 = vmatprep.subr.bf16.mxu0 0
        %3254 = vmatpush1.bf16.msra.mxu0 %v2468
        %3255 = vmatprep.subr.bf16.mxu0 0
        %3256 = vmatpush1.bf16.msra.mxu0 %v2469
        %3257 = vmatprep.mubr.bf16.mxu0 %v1341
        %3258 = vmatmul.mubr.bf16.gmra.mrb[0].mxu0 %v1396
        %v3259 = vpop.f32.mrb[0].mxu0
        %v3260 = vadd.f32 %v3035, %v3259
        %v3261 = vpop.f32.mrb[0].mxu0
        %v3262 = vpop.f32.mrb[0].mxu0
        %v3263 = vadd.f32 %v3038, %v3262
        %v3264 = vpop.f32.mrb[0].mxu0
        %3265 = vmatprep.mubr.bf16.mxu0 %v1342
        %3266 = vmatmul.mubr.bf16.gmra.mrb[0].mxu0 %v1404
        %v3267 = vpop.f32.mrb[0].mxu0
        %v3268 = vadd.f32 %v3043, %v3267
        %v3269 = vpop.f32.mrb[0].mxu0
        %v3270 = vpop.f32.mrb[0].mxu0
        %v3271 = vadd.f32 %v3046, %v3270
        %v3272 = vpop.f32.mrb[0].mxu0
        %3273 = vmatprep.mubr.bf16.mxu0 %v1343
        %3274 = vmatmul.mubr.bf16.gmra.mrb[0].mxu0 %v1412
        %v3275 = vpop.f32.mrb[0].mxu0
        %v3276 = vadd.f32 %v3051, %v3275
        %v3277 = vpop.f32.mrb[0].mxu0
        %v3278 = vpop.f32.mrb[0].mxu0
        %v3279 = vadd.f32 %v3054, %v3278
        %v3280 = vpop.f32.mrb[0].mxu0
        %3281 = vmatprep.mubr.bf16.mxu0 %v1344
        %3282 = vmatmul.mubr.bf16.gmra.mrb[0].mxu0 %v1420
        %v3283 = vpop.f32.mrb[0].mxu0
        %v3284 = vadd.f32 %v3059, %v3283
        %v3285 = vpop.f32.mrb[0].mxu0
        %v3286 = vpop.f32.mrb[0].mxu0
        %v3287 = vadd.f32 %v3062, %v3286
        %v3288 = vpop.f32.mrb[0].mxu0
        %3289 = vmatprep.mubr.bf16.mxu0 %v1345
        %3290 = vmatmul.mubr.bf16.gmra.mrb[0].mxu0 %v1428
        %v3291 = vpop.f32.mrb[0].mxu0
        %v3292 = vadd.f32 %v3067, %v3291
        %v3293 = vpop.f32.mrb[0].mxu0
        %v3294 = vpop.f32.mrb[0].mxu0
        %v3295 = vadd.f32 %v3070, %v3294
        %v3296 = vpop.f32.mrb[0].mxu0
        %3297 = vmatprep.mubr.bf16.mxu0 %v1346
        %3298 = vmatmul.mubr.bf16.gmra.mrb[0].mxu0 %v1436
        %v3299 = vpop.f32.mrb[0].mxu0
        %v3300 = vadd.f32 %v3075, %v3299
        %v3301 = vpop.f32.mrb[0].mxu0
        %v3302 = vpop.f32.mrb[0].mxu0
        %v3303 = vadd.f32 %v3078, %v3302
        %v3304 = vpop.f32.mrb[0].mxu0
        %3305 = vmatprep.mubr.bf16.mxu0 %v1347
        %3306 = vmatmul.mubr.bf16.gmra.mrb[0].mxu0 %v1444
        %v3307 = vpop.f32.mrb[0].mxu0
        %v3308 = vadd.f32 %v3083, %v3307
        %v3309 = vpop.f32.mrb[0].mxu0
        %v3310 = vpop.f32.mrb[0].mxu0
        %v3311 = vadd.f32 %v3086, %v3310
        %v3312 = vpop.f32.mrb[0].mxu0
        %3313 = vmatprep.mubr.bf16.mxu0 %v1348
        %3314 = vmatmul.mubr.bf16.gmra.mrb[0].mxu0 %v1452
        %v3315 = vpop.f32.mrb[0].mxu0
        %v3316 = vadd.f32 %v3091, %v3315
        %v3317 = vpop.f32.mrb[0].mxu0
        %v3318 = vpop.f32.mrb[0].mxu0
        %v3319 = vadd.f32 %v3094, %v3318
        %v3320 = vpop.f32.mrb[0].mxu0
        %3321 = vmatprep.mubr.bf16.mxu0 %v1349
        %3322 = vmatmul.mubr.bf16.gmra.mrb[0].mxu0 %v1460
        %v3323 = vpop.f32.mrb[0].mxu0
        %v3324 = vadd.f32 %v3099, %v3323
        %v3325 = vpop.f32.mrb[0].mxu0
        %v3326 = vpop.f32.mrb[0].mxu0
        %v3327 = vadd.f32 %v3102, %v3326
        %v3328 = vpop.f32.mrb[0].mxu0
        %3329 = vmatprep.mubr.bf16.mxu0 %v1350
        %3330 = vmatmul.mubr.bf16.gmra.mrb[0].mxu0 %v1468
        %v3331 = vpop.f32.mrb[0].mxu0
        %v3332 = vadd.f32 %v3107, %v3331
        %v3333 = vpop.f32.mrb[0].mxu0
        %v3334 = vpop.f32.mrb[0].mxu0
        %v3335 = vadd.f32 %v3110, %v3334
        %v3336 = vpop.f32.mrb[0].mxu0
        %3337 = vmatprep.mubr.bf16.mxu0 %v1351
        %3338 = vmatmul.mubr.bf16.gmra.mrb[0].mxu0 %v1476
        %v3339 = vpop.f32.mrb[0].mxu0
        %v3340 = vadd.f32 %v3115, %v3339
        %v3341 = vpop.f32.mrb[0].mxu0
        %v3342 = vpop.f32.mrb[0].mxu0
        %v3343 = vadd.f32 %v3118, %v3342
        %v3344 = vpop.f32.mrb[0].mxu0
        %3345 = vmatprep.mubr.bf16.mxu0 %v1352
        %3346 = vmatmul.mubr.bf16.gmra.mrb[0].mxu0 %v1484
        %v3347 = vpop.f32.mrb[0].mxu0
        %v3348 = vadd.f32 %v3123, %v3347
        %v3349 = vpop.f32.mrb[0].mxu0
        %v3350 = vpop.f32.mrb[0].mxu0
        %v3351 = vadd.f32 %v3126, %v3350
        %v3352 = vpop.f32.mrb[0].mxu0
        %3353 = vmatprep.mubr.bf16.mxu0 %v1353
        %3354 = vmatmul.mubr.bf16.gmra.mrb[0].mxu0 %v1492
        %v3355 = vpop.f32.mrb[0].mxu0
        %v3356 = vadd.f32 %v3131, %v3355
        %v3357 = vpop.f32.mrb[0].mxu0
        %v3358 = vpop.f32.mrb[0].mxu0
        %v3359 = vadd.f32 %v3134, %v3358
        %v3360 = vpop.f32.mrb[0].mxu0
        %3361 = vmatprep.mubr.bf16.mxu0 %v1354
        %3362 = vmatmul.mubr.bf16.gmra.mrb[0].mxu0 %v1500
        %v3363 = vpop.f32.mrb[0].mxu0
        %v3364 = vadd.f32 %v3139, %v3363
        %v3365 = vpop.f32.mrb[0].mxu0
        %v3366 = vpop.f32.mrb[0].mxu0
        %v3367 = vadd.f32 %v3142, %v3366
        %v3368 = vpop.f32.mrb[0].mxu0
        %3369 = vmatprep.mubr.bf16.mxu0 %v1355
        %3370 = vmatmul.mubr.bf16.gmra.mrb[0].mxu0 %v1508
        %v3371 = vpop.f32.mrb[0].mxu0
        %v3372 = vadd.f32 %v3147, %v3371
        %v3373 = vpop.f32.mrb[0].mxu0
        %v3374 = vpop.f32.mrb[0].mxu0
        %v3375 = vadd.f32 %v3150, %v3374
        %v3376 = vpop.f32.mrb[0].mxu0
        %3377 = vmatprep.mubr.bf16.mxu0 %v1356
        %3378 = vmatmul.mubr.bf16.gmra.mrb[0].mxu0 %v1516
        %v3379 = vpop.f32.mrb[0].mxu0
        %v3380 = vadd.f32 %v3155, %v3379
        %v3381 = vpop.f32.mrb[0].mxu0
        %v3382 = vpop.f32.mrb[0].mxu0
        %v3383 = vadd.f32 %v3158, %v3382
        %v3384 = vpop.f32.mrb[0].mxu0
        %3385 = vmatprep.mubr.bf16.mxu0 %v1357
        %3386 = vmatmul.mubr.bf16.gmra.mrb[0].mxu0 %v1524
        %v3387 = vpop.f32.mrb[0].mxu0
        %v3388 = vadd.f32 %v3163, %v3387
        %v3389 = vpop.f32.mrb[0].mxu0
        %v3390 = vpop.f32.mrb[0].mxu0
        %v3391 = vadd.f32 %v3166, %v3390
        %v3392 = vpop.f32.mrb[0].mxu0
        %3393 = vmatprep.mubr.bf16.mxu0 %v1358
        %3394 = vmatmul.mubr.bf16.gmra.mrb[0].mxu0 %v1532
        %v3395 = vpop.f32.mrb[0].mxu0
        %v3396 = vadd.f32 %v3171, %v3395
        %v3397 = vpop.f32.mrb[0].mxu0
        %v3398 = vpop.f32.mrb[0].mxu0
        %v3399 = vadd.f32 %v3174, %v3398
        %v3400 = vpop.f32.mrb[0].mxu0
        %3401 = vmatprep.mubr.bf16.mxu0 %v1359
        %3402 = vmatmul.mubr.bf16.gmra.mrb[0].mxu0 %v1540
        %v3403 = vpop.f32.mrb[0].mxu0
        %v3404 = vadd.f32 %v3179, %v3403
        %v3405 = vpop.f32.mrb[0].mxu0
        %v3406 = vpop.f32.mrb[0].mxu0
        %v3407 = vadd.f32 %v3182, %v3406
        %v3408 = vpop.f32.mrb[0].mxu0
        %3409 = vmatprep.mubr.bf16.mxu0 %v1360
        %3410 = vmatmul.mubr.bf16.gmra.mrb[0].mxu0 %v1548
        %v3411 = vpop.f32.mrb[0].mxu0
        %v3412 = vadd.f32 %v3187, %v3411
        %v3413 = vpop.f32.mrb[0].mxu0
        %v3414 = vpop.f32.mrb[0].mxu0
        %v3415 = vadd.f32 %v3190, %v3414
        %v3416 = vpop.f32.mrb[0].mxu0
        %3417 = vmatprep.mubr.bf16.mxu0 %v1361
        %3418 = vmatmul.mubr.bf16.gmra.mrb[0].mxu0 %v1556
        %v3419 = vpop.f32.mrb[0].mxu0
        %v3420 = vadd.f32 %v3195, %v3419
        %v3421 = vpop.f32.mrb[0].mxu0
        %v3422 = vpop.f32.mrb[0].mxu0
        %v3423 = vadd.f32 %v3198, %v3422
        %v3424 = vpop.f32.mrb[0].mxu0
        %3425 = vmatprep.mubr.bf16.mxu0 %v1362
        %3426 = vmatmul.mubr.bf16.gmra.mrb[0].mxu0 %v1564
        %v3427 = vpop.f32.mrb[0].mxu0
        %v3428 = vadd.f32 %v3203, %v3427
        %v3429 = vpop.f32.mrb[0].mxu0
        %v3430 = vpop.f32.mrb[0].mxu0
        %v3431 = vadd.f32 %v3206, %v3430
        %v3432 = vpop.f32.mrb[0].mxu0
        %3433 = vmatprep.mubr.bf16.mxu0 %v1363
        %3434 = vmatmul.mubr.bf16.gmra.mrb[0].mxu0 %v1572
        %v3435 = vpop.f32.mrb[0].mxu0
        %v3436 = vadd.f32 %v3211, %v3435
        %v3437 = vpop.f32.mrb[0].mxu0
        %v3438 = vpop.f32.mrb[0].mxu0
        %v3439 = vadd.f32 %v3214, %v3438
        %v3440 = vpop.f32.mrb[0].mxu0
        %3441 = vmatprep.mubr.bf16.mxu0 %v1364
        %3442 = vmatmul.mubr.bf16.gmra.mrb[0].mxu0 %v1580
        %v3443 = vpop.f32.mrb[0].mxu0
        %v3444 = vadd.f32 %v3219, %v3443
        %v3445 = vpop.f32.mrb[0].mxu0
        %v3446 = vpop.f32.mrb[0].mxu0
        %v3447 = vadd.f32 %v3222, %v3446
        %v3448 = vpop.f32.mrb[0].mxu0
        %3449 = vdwg.mxu0
        %3450 = vmatprep.subr.bf16.mxu0 0
        %3451 = vmatpush1.bf16.msra.mxu0 %v2470
        %3452 = vmatprep.subr.bf16.mxu0 0
        %3453 = vmatpush1.bf16.msra.mxu0 %v2471
        %3454 = vmatprep.subr.bf16.mxu0 0
        %3455 = vmatpush1.bf16.msra.mxu0 %v2472
        %3456 = vmatprep.subr.bf16.mxu0 0
        %3457 = vmatpush1.bf16.msra.mxu0 %v2473
        %3458 = vmatprep.subr.bf16.mxu0 0
        %3459 = vmatpush1.bf16.msra.mxu0 %v2474
        %3460 = vmatprep.subr.bf16.mxu0 0
        %3461 = vmatpush1.bf16.msra.mxu0 %v2475
        %3462 = vmatprep.subr.bf16.mxu0 0
        %3463 = vmatpush1.bf16.msra.mxu0 %v2476
        %3464 = vmatprep.subr.bf16.mxu0 0
        %3465 = vmatpush1.bf16.msra.mxu0 %v2477
        %3466 = vmatprep.subr.bf16.mxu0 0
        %3467 = vmatpush1.bf16.msra.mxu0 0
        %3468 = vmatprep.subr.bf16.mxu0 0
        %3469 = vmatpush1.bf16.msra.mxu0 0
        %3470 = vmatprep.subr.bf16.mxu0 0
        %3471 = vmatpush1.bf16.msra.mxu0 0
        %3472 = vmatprep.subr.bf16.mxu0 0
        %3473 = vmatpush1.bf16.msra.mxu0 0
        %3474 = vmatprep.subr.bf16.mxu0 0
        %3475 = vmatpush1.bf16.msra.mxu0 0
        %3476 = vmatprep.subr.bf16.mxu0 0
        %3477 = vmatpush1.bf16.msra.mxu0 0
        %3478 = vmatprep.subr.bf16.mxu0 0
        %3479 = vmatpush1.bf16.msra.mxu0 0
        %3480 = vmatprep.subr.bf16.mxu0 0
        %3481 = vmatpush1.bf16.msra.mxu0 0
        %3482 = vmatprep.mubr.bf16.mxu0 0
        %3483 = vmatmul.mubr.bf16.gmra.mrb[0].mxu0 %v1624
        %v3484 = vpop.f32.mrb[0].mxu0
        %v3485 = vadd.f32 %v3260, %v3484
        %v3486 = vpop.f32.mrb[0].mxu0
        %v3487 = vpop.f32.mrb[0].mxu0
        %v3488 = vadd.f32 %v3263, %v3487
        %v3489 = vpop.f32.mrb[0].mxu0
        %3490 = vmatprep.mubr.bf16.mxu0 0
        %3491 = vmatmul.mubr.bf16.gmra.mrb[0].mxu0 %v1627
        %v3492 = vpop.f32.mrb[0].mxu0
        %v3493 = vadd.f32 %v3268, %v3492
        %v3494 = vpop.f32.mrb[0].mxu0
        %v3495 = vpop.f32.mrb[0].mxu0
        %v3496 = vadd.f32 %v3271, %v3495
        %v3497 = vpop.f32.mrb[0].mxu0
        %3498 = vmatprep.mubr.bf16.mxu0 0
        %3499 = vmatmul.mubr.bf16.gmra.mrb[0].mxu0 %v1630
        %v3500 = vpop.f32.mrb[0].mxu0
        %v3501 = vadd.f32 %v3276, %v3500
        %v3502 = vpop.f32.mrb[0].mxu0
        %v3503 = vpop.f32.mrb[0].mxu0
        %v3504 = vadd.f32 %v3279, %v3503
        %v3505 = vpop.f32.mrb[0].mxu0
        %3506 = vmatprep.mubr.bf16.mxu0 0
        %3507 = vmatmul.mubr.bf16.gmra.mrb[0].mxu0 %v1633
        %v3508 = vpop.f32.mrb[0].mxu0
        %v3509 = vadd.f32 %v3284, %v3508
        %v3510 = vpop.f32.mrb[0].mxu0
        %v3511 = vpop.f32.mrb[0].mxu0
        %v3512 = vadd.f32 %v3287, %v3511
        %v3513 = vpop.f32.mrb[0].mxu0
        %3514 = vmatprep.mubr.bf16.mxu0 0
        %3515 = vmatmul.mubr.bf16.gmra.mrb[0].mxu0 %v1636
        %v3516 = vpop.f32.mrb[0].mxu0
        %v3517 = vadd.f32 %v3292, %v3516
        %v3518 = vpop.f32.mrb[0].mxu0
        %v3519 = vpop.f32.mrb[0].mxu0
        %v3520 = vadd.f32 %v3295, %v3519
        %v3521 = vpop.f32.mrb[0].mxu0
        %3522 = vmatprep.mubr.bf16.mxu0 0
        %3523 = vmatmul.mubr.bf16.gmra.mrb[0].mxu0 %v1639
        %v3524 = vpop.f32.mrb[0].mxu0
        %v3525 = vadd.f32 %v3300, %v3524
        %v3526 = vpop.f32.mrb[0].mxu0
        %v3527 = vpop.f32.mrb[0].mxu0
        %v3528 = vadd.f32 %v3303, %v3527
        %v3529 = vpop.f32.mrb[0].mxu0
        %3530 = vmatprep.mubr.bf16.mxu0 0
        %3531 = vmatmul.mubr.bf16.gmra.mrb[0].mxu0 %v1642
        %v3532 = vpop.f32.mrb[0].mxu0
        %v3533 = vadd.f32 %v3308, %v3532
        %v3534 = vpop.f32.mrb[0].mxu0
        %v3535 = vpop.f32.mrb[0].mxu0
        %v3536 = vadd.f32 %v3311, %v3535
        %v3537 = vpop.f32.mrb[0].mxu0
        %3538 = vmatprep.mubr.bf16.mxu0 0
        %3539 = vmatmul.mubr.bf16.gmra.mrb[0].mxu0 %v1645
        %v3540 = vpop.f32.mrb[0].mxu0
        %v3541 = vadd.f32 %v3316, %v3540
        %v3542 = vpop.f32.mrb[0].mxu0
        %v3543 = vpop.f32.mrb[0].mxu0
        %v3544 = vadd.f32 %v3319, %v3543
        %v3545 = vpop.f32.mrb[0].mxu0
        %3546 = vmatprep.mubr.bf16.mxu0 0
        %3547 = vmatmul.mubr.bf16.gmra.mrb[0].mxu0 %v1648
        %v3548 = vpop.f32.mrb[0].mxu0
        %v3549 = vadd.f32 %v3324, %v3548
        %v3550 = vpop.f32.mrb[0].mxu0
        %v3551 = vpop.f32.mrb[0].mxu0
        %v3552 = vadd.f32 %v3327, %v3551
        %v3553 = vpop.f32.mrb[0].mxu0
        %3554 = vmatprep.mubr.bf16.mxu0 0
        %3555 = vmatmul.mubr.bf16.gmra.mrb[0].mxu0 %v1651
        %v3556 = vpop.f32.mrb[0].mxu0
        %v3557 = vadd.f32 %v3332, %v3556
        %v3558 = vpop.f32.mrb[0].mxu0
        %v3559 = vpop.f32.mrb[0].mxu0
        %v3560 = vadd.f32 %v3335, %v3559
        %v3561 = vpop.f32.mrb[0].mxu0
        %3562 = vmatprep.mubr.bf16.mxu0 0
        %3563 = vmatmul.mubr.bf16.gmra.mrb[0].mxu0 %v1654
        %v3564 = vpop.f32.mrb[0].mxu0
        %v3565 = vadd.f32 %v3340, %v3564
        %v3566 = vpop.f32.mrb[0].mxu0
        %v3567 = vpop.f32.mrb[0].mxu0
        %v3568 = vadd.f32 %v3343, %v3567
        %v3569 = vpop.f32.mrb[0].mxu0
        %3570 = vmatprep.mubr.bf16.mxu0 0
        %3571 = vmatmul.mubr.bf16.gmra.mrb[0].mxu0 %v1657
        %v3572 = vpop.f32.mrb[0].mxu0
        %v3573 = vadd.f32 %v3348, %v3572
        %v3574 = vpop.f32.mrb[0].mxu0
        %v3575 = vpop.f32.mrb[0].mxu0
        %v3576 = vadd.f32 %v3351, %v3575
        %v3577 = vpop.f32.mrb[0].mxu0
        %3578 = vmatprep.mubr.bf16.mxu0 0
        %3579 = vmatmul.mubr.bf16.gmra.mrb[0].mxu0 %v1660
        %v3580 = vpop.f32.mrb[0].mxu0
        %v3581 = vadd.f32 %v3356, %v3580
        %v3582 = vpop.f32.mrb[0].mxu0
        %v3583 = vpop.f32.mrb[0].mxu0
        %v3584 = vadd.f32 %v3359, %v3583
        %v3585 = vpop.f32.mrb[0].mxu0
        %3586 = vmatprep.mubr.bf16.mxu0 0
        %3587 = vmatmul.mubr.bf16.gmra.mrb[0].mxu0 %v1663
        %v3588 = vpop.f32.mrb[0].mxu0
        %v3589 = vadd.f32 %v3364, %v3588
        %v3590 = vpop.f32.mrb[0].mxu0
        %v3591 = vpop.f32.mrb[0].mxu0
        %v3592 = vadd.f32 %v3367, %v3591
        %v3593 = vpop.f32.mrb[0].mxu0
        %3594 = vmatprep.mubr.bf16.mxu0 0
        %3595 = vmatmul.mubr.bf16.gmra.mrb[0].mxu0 %v1666
        %v3596 = vpop.f32.mrb[0].mxu0
        %v3597 = vadd.f32 %v3372, %v3596
        %v3598 = vpop.f32.mrb[0].mxu0
        %v3599 = vpop.f32.mrb[0].mxu0
        %v3600 = vadd.f32 %v3375, %v3599
        %v3601 = vpop.f32.mrb[0].mxu0
        %3602 = vmatprep.mubr.bf16.mxu0 0
        %3603 = vmatmul.mubr.bf16.gmra.mrb[0].mxu0 %v1669
        %v3604 = vpop.f32.mrb[0].mxu0
        %v3605 = vadd.f32 %v3380, %v3604
        %v3606 = vpop.f32.mrb[0].mxu0
        %v3607 = vpop.f32.mrb[0].mxu0
        %v3608 = vadd.f32 %v3383, %v3607
        %v3609 = vpop.f32.mrb[0].mxu0
        %3610 = vmatprep.mubr.bf16.mxu0 0
        %3611 = vmatmul.mubr.bf16.gmra.mrb[0].mxu0 %v1672
        %v3612 = vpop.f32.mrb[0].mxu0
        %v3613 = vadd.f32 %v3388, %v3612
        %v3614 = vpop.f32.mrb[0].mxu0
        %v3615 = vpop.f32.mrb[0].mxu0
        %v3616 = vadd.f32 %v3391, %v3615
        %v3617 = vpop.f32.mrb[0].mxu0
        %3618 = vmatprep.mubr.bf16.mxu0 0
        %3619 = vmatmul.mubr.bf16.gmra.mrb[0].mxu0 %v1675
        %v3620 = vpop.f32.mrb[0].mxu0
        %v3621 = vadd.f32 %v3396, %v3620
        %v3622 = vpop.f32.mrb[0].mxu0
        %v3623 = vpop.f32.mrb[0].mxu0
        %v3624 = vadd.f32 %v3399, %v3623
        %v3625 = vpop.f32.mrb[0].mxu0
        %3626 = vmatprep.mubr.bf16.mxu0 0
        %3627 = vmatmul.mubr.bf16.gmra.mrb[0].mxu0 %v1678
        %v3628 = vpop.f32.mrb[0].mxu0
        %v3629 = vadd.f32 %v3404, %v3628
        %v3630 = vpop.f32.mrb[0].mxu0
        %v3631 = vpop.f32.mrb[0].mxu0
        %v3632 = vadd.f32 %v3407, %v3631
        %v3633 = vpop.f32.mrb[0].mxu0
        %3634 = vmatprep.mubr.bf16.mxu0 0
        %3635 = vmatmul.mubr.bf16.gmra.mrb[0].mxu0 %v1681
        %v3636 = vpop.f32.mrb[0].mxu0
        %v3637 = vadd.f32 %v3412, %v3636
        %v3638 = vpop.f32.mrb[0].mxu0
        %v3639 = vpop.f32.mrb[0].mxu0
        %v3640 = vadd.f32 %v3415, %v3639
        %v3641 = vpop.f32.mrb[0].mxu0
        %3642 = vmatprep.mubr.bf16.mxu0 0
        %3643 = vmatmul.mubr.bf16.gmra.mrb[0].mxu0 %v1684
        %v3644 = vpop.f32.mrb[0].mxu0
        %v3645 = vadd.f32 %v3420, %v3644
        %v3646 = vpop.f32.mrb[0].mxu0
        %v3647 = vpop.f32.mrb[0].mxu0
        %v3648 = vadd.f32 %v3423, %v3647
        %v3649 = vpop.f32.mrb[0].mxu0
        %3650 = vmatprep.mubr.bf16.mxu0 0
        %3651 = vmatmul.mubr.bf16.gmra.mrb[0].mxu0 %v1687
        %v3652 = vpop.f32.mrb[0].mxu0
        %v3653 = vadd.f32 %v3428, %v3652
        %v3654 = vpop.f32.mrb[0].mxu0
        %v3655 = vpop.f32.mrb[0].mxu0
        %v3656 = vadd.f32 %v3431, %v3655
        %v3657 = vpop.f32.mrb[0].mxu0
        %3658 = vmatprep.mubr.bf16.mxu0 0
        %3659 = vmatmul.mubr.bf16.gmra.mrb[0].mxu0 %v1690
        %v3660 = vpop.f32.mrb[0].mxu0
        %v3661 = vadd.f32 %v3436, %v3660
        %v3662 = vpop.f32.mrb[0].mxu0
        %v3663 = vpop.f32.mrb[0].mxu0
        %v3664 = vadd.f32 %v3439, %v3663
        %v3665 = vpop.f32.mrb[0].mxu0
        %3666 = vmatprep.mubr.bf16.mxu0 0
        %3667 = vmatmul.mubr.bf16.gmra.mrb[0].mxu0 %v1721
        %v3668 = vpop.f32.mrb[0].mxu0
        %v3669 = vadd.f32 %v3444, %v3668
        %v3670 = vpop.f32.mrb[0].mxu0
        %v3671 = vpop.f32.mrb[0].mxu0
        %v3672 = vadd.f32 %v3447, %v3671
        %v3673 = vpop.f32.mrb[0].mxu0
        %3674 = vdwg.mxu0
        %v3675 = vmax.f32 %v3485, 0.0
        %v3676 = vmax.f32 %v3488, 0.0
        %v3677 = vmax.f32 %v3493, 0.0
        %v3678 = vmax.f32 %v3496, 0.0
        %v3679 = vmax.f32 %v3501, 0.0
        %v3680 = vmax.f32 %v3504, 0.0
        %v3681 = vmax.f32 %v3509, 0.0
        %v3682 = vmax.f32 %v3512, 0.0
        %v3683 = vmax.f32 %v3517, 0.0
        %v3684 = vmax.f32 %v3520, 0.0
        %v3685 = vmax.f32 %v3525, 0.0
        %v3686 = vmax.f32 %v3528, 0.0
        %v3687 = vmax.f32 %v3533, 0.0
        %v3688 = vmax.f32 %v3536, 0.0
        %v3689 = vmax.f32 %v3541, 0.0
        %v3690 = vmax.f32 %v3544, 0.0
        %v3691 = vmax.f32 %v3549, 0.0
        %v3692 = vmax.f32 %v3552, 0.0
        %v3693 = vmax.f32 %v3557, 0.0
        %v3694 = vmax.f32 %v3560, 0.0
        %v3695 = vmax.f32 %v3565, 0.0
        %v3696 = vmax.f32 %v3568, 0.0
        %v3697 = vmax.f32 %v3573, 0.0
        %v3698 = vmax.f32 %v3576, 0.0
        %v3699 = vmax.f32 %v3581, 0.0
        %v3700 = vmax.f32 %v3584, 0.0
        %v3701 = vmax.f32 %v3589, 0.0
        %v3702 = vmax.f32 %v3592, 0.0
        %v3703 = vmax.f32 %v3597, 0.0
        %v3704 = vmax.f32 %v3600, 0.0
        %v3705 = vmax.f32 %v3605, 0.0
        %v3706 = vmax.f32 %v3608, 0.0
        %v3707 = vmax.f32 %v3613, 0.0
        %v3708 = vmax.f32 %v3616, 0.0
        %v3709 = vmax.f32 %v3621, 0.0
        %v3710 = vmax.f32 %v3624, 0.0
        %v3711 = vmax.f32 %v3629, 0.0
        %v3712 = vmax.f32 %v3632, 0.0
        %v3713 = vmax.f32 %v3637, 0.0
        %v3714 = vmax.f32 %v3640, 0.0
        %v3715 = vmax.f32 %v3645, 0.0
        %v3716 = vmax.f32 %v3648, 0.0
        %v3717 = vmax.f32 %v3653, 0.0
        %v3718 = vmax.f32 %v3656, 0.0
        %v3719 = vmax.f32 %v3661, 0.0
        %v3720 = vmax.f32 %v3664, 0.0
        %v3721 = vmax.f32 %v3669, 0.0
        %v3722 = vmax.f32 %v3672, 0.0
        %v3723 = vpack.c.bf16 %v3676, %v3675
        %v3724 = vpack.c.bf16 %v3678, %v3677
        %v3725 = vpack.c.bf16 %v3680, %v3679
        %v3726 = vpack.c.bf16 %v3682, %v3681
        %v3727 = vpack.c.bf16 %v3684, %v3683
        %v3728 = vpack.c.bf16 %v3686, %v3685
        %v3729 = vpack.c.bf16 %v3688, %v3687
        %v3730 = vpack.c.bf16 %v3690, %v3689
        %v3731 = vpack.c.bf16 %v3692, %v3691
        %v3732 = vpack.c.bf16 %v3694, %v3693
        %v3733 = vpack.c.bf16 %v3696, %v3695
        %v3734 = vpack.c.bf16 %v3698, %v3697
        %v3735 = vpack.c.bf16 %v3700, %v3699
        %v3736 = vpack.c.bf16 %v3702, %v3701
        %v3737 = vpack.c.bf16 %v3704, %v3703
        %v3738 = vpack.c.bf16 %v3706, %v3705
        %v3739 = vpack.c.bf16 %v3708, %v3707
        %v3740 = vpack.c.bf16 %v3710, %v3709
        %v3741 = vpack.c.bf16 %v3712, %v3711
        %v3742 = vpack.c.bf16 %v3714, %v3713
        %v3743 = vpack.c.bf16 %v3716, %v3715
        %v3744 = vpack.c.bf16 %v3718, %v3717
        %v3745 = vpack.c.bf16 %v3720, %v3719
        %v3746 = vpack.c.bf16 %v3722, %v3721
        %v3747 = vld [vmem:[#allocation7] sm:$0xf]
        %v3748 = vld [vmem:[#allocation7 + $0x4] sm:$0xf]
        %v3749 = vld [vmem:[#allocation7 + $0x8] sm:$0xf]
        %v3750 = vld [vmem:[#allocation7 + $0xc] sm:$0xf]
        %v3751 = vld [vmem:[#allocation7 + $0x10] sm:$0xf]
        %v3752 = vld [vmem:[#allocation7 + $0x14] sm:$0xf]
        %v3753 = vld [vmem:[#allocation7 + $0x18] sm:$0xf]
        %v3754 = vld [vmem:[#allocation7 + $0x1c] sm:$0xf]
        %v3755 = vld [vmem:[#allocation7 + $0x20] sm:$0xf]
        %v3756 = vld [vmem:[#allocation7 + $0x24] sm:$0xf]
        %v3757 = vld [vmem:[#allocation7 + $0x28] sm:$0xf]
        %v3758 = vld [vmem:[#allocation7 + $0x2c] sm:$0xf]
        %v3759 = vld [vmem:[#allocation7 + $0x30] sm:$0xf]
        %v3760 = vld [vmem:[#allocation7 + $0x34] sm:$0xf]
        %v3761 = vld [vmem:[#allocation7 + $0x38] sm:$0xf]
        %v3762 = vld [vmem:[#allocation7 + $0x3c] sm:$0xf]
        %v3763 = vunpack.c.l.bf16 %v372
        %v3764 = vunpack.c.l.bf16 %v373
        %v3765 = vunpack.c.l.bf16 %v374
        %v3766 = vunpack.c.l.bf16 %v375
        %v3767 = vunpack.c.l.bf16 %v376
        %v3768 = vunpack.c.l.bf16 %v377
        %v3769 = vunpack.c.l.bf16 %v378
        %v3770 = vunpack.c.l.bf16 %v379
        %v3771 = vunpack.c.l.bf16 %v380
        %v3772 = vunpack.c.l.bf16 %v381
        %v3773 = vunpack.c.l.bf16 %v382
        %v3774 = vunpack.c.l.bf16 %v383
        %v3775 = vunpack.c.l.bf16 %v384
        %v3776 = vunpack.c.l.bf16 %v385
        %v3777 = vunpack.c.l.bf16 %v386
        %v3778 = vunpack.c.l.bf16 %v387
        %v3779 = vunpack.c.l.bf16 %v388
        %v3780 = vunpack.c.l.bf16 %v389
        %v3781 = vunpack.c.l.bf16 %v390
        %v3782 = vunpack.c.l.bf16 %v391
        %v3783 = vunpack.c.l.bf16 %v392
        %v3784 = vunpack.c.l.bf16 %v393
        %v3785 = vunpack.c.l.bf16 %v394
        %v3786 = vunpack.c.l.bf16 %v395
        %v3787 = vunpack.c.l.bf16 %v396
        %v3788 = vunpack.c.l.bf16 %v397
        %v3789 = vunpack.c.l.bf16 %v398
        %v3790 = vunpack.c.l.bf16 %v399
        %v3791 = vunpack.c.l.bf16 %v400
        %v3792 = vunpack.c.l.bf16 %v401
        %v3793 = vunpack.c.l.bf16 %v402
        %v3794 = vunpack.c.l.bf16 %v403
        %v3795 = vunpack.c.l.bf16 %v404
        %v3796 = vunpack.c.l.bf16 %v405
        %v3797 = vunpack.c.l.bf16 %v406
        %v3798 = vunpack.c.l.bf16 %v407
        %v3799 = vunpack.c.l.bf16 %v408
        %v3800 = vunpack.c.l.bf16 %v409
        %v3801 = vunpack.c.l.bf16 %v410
        %v3802 = vunpack.c.l.bf16 %v411
        %v3803 = vunpack.c.l.bf16 %v412
        %v3804 = vunpack.c.l.bf16 %v413
        %v3805 = vunpack.c.l.bf16 %v414
        %v3806 = vunpack.c.l.bf16 %v415
        %v3807 = vunpack.c.l.bf16 %v416
        %v3808 = vunpack.c.l.bf16 %v417
        %v3809 = vunpack.c.l.bf16 %v418
        %v3810 = vunpack.c.l.bf16 %v419
        %v3811 = vld [vmem:[%s7] sm:$0x1]
        %v3813 = vlaneseq
        %v3814 = vshrl.u32 %v3813, 7
        %v3815 = vsub.s32 0, %v3814
        %v3816 = vrot.slane %v3811, %v3815
        %v3834 = vunpack.c.l.b16 %v3747
        %v3835 = vunpack.c.l.b16 %v3748
        %v3836 = vunpack.c.l.b16 %v3749
        %v3837 = vunpack.c.l.b16 %v3750
        %v3838 = vunpack.c.l.b16 %v3751
        %v3839 = vunpack.c.l.b16 %v3752
        %v3840 = vunpack.c.l.b16 %v3753
        %v3841 = vunpack.c.l.b16 %v3754
        %v3842 = vunpack.c.l.b16 %v3755
        %v3843 = vunpack.c.l.b16 %v3756
        %v3844 = vunpack.c.l.b16 %v3757
        %v3845 = vunpack.c.l.b16 %v3758
        %v3846 = vunpack.c.l.b16 %v3759
        %v3847 = vunpack.c.l.b16 %v3760
        %v3848 = vunpack.c.l.b16 %v3761
        %v3849 = vunpack.c.l.b16 %v3762
        %v3850 = vpack.c.b16 %v3835, %v3834
        %v3851 = vpack.c.b16 %v3837, %v3836
        %v3852 = vpack.c.b16 %v3839, %v3838
        %v3853 = vpack.c.b16 %v3841, %v3840
        %v3854 = vpack.c.b16 %v3843, %v3842
        %v3855 = vpack.c.b16 %v3845, %v3844
        %v3856 = vpack.c.b16 %v3847, %v3846
        %v3857 = vpack.c.b16 %v3849, %v3848
        %3866 = vmatprep.subr.bf16.mxu0 0
        %3867 = vmatpush1.bf16.msra.mxu0 %v3850
        %3868 = vmatprep.subr.bf16.mxu0 0
        %3869 = vmatpush1.bf16.msra.mxu0 %v3851
        %3870 = vmatprep.subr.bf16.mxu0 0
        %3871 = vmatpush1.bf16.msra.mxu0 %v3852
        %3872 = vmatprep.subr.bf16.mxu0 0
        %3873 = vmatpush1.bf16.msra.mxu0 %v3853
        %3874 = vmatprep.subr.bf16.mxu0 0
        %3875 = vmatpush1.bf16.msra.mxu0 %v3854
        %3876 = vmatprep.subr.bf16.mxu0 0
        %3877 = vmatpush1.bf16.msra.mxu0 %v3855
        %3878 = vmatprep.subr.bf16.mxu0 0
        %3879 = vmatpush1.bf16.msra.mxu0 %v3856
        %3880 = vmatprep.subr.bf16.mxu0 0
        %3881 = vmatpush1.bf16.msra.mxu0 %v3857
        %3882 = vmatprep.subr.bf16.mxu0 0
        %3883 = vmatpush1.bf16.msra.mxu0 0
        %3884 = vmatprep.subr.bf16.mxu0 0
        %3885 = vmatpush1.bf16.msra.mxu0 0
        %3886 = vmatprep.subr.bf16.mxu0 0
        %3887 = vmatpush1.bf16.msra.mxu0 0
        %3888 = vmatprep.subr.bf16.mxu0 0
        %3889 = vmatpush1.bf16.msra.mxu0 0
        %3890 = vmatprep.subr.bf16.mxu0 0
        %3891 = vmatpush1.bf16.msra.mxu0 0
        %3892 = vmatprep.subr.bf16.mxu0 0
        %3893 = vmatpush1.bf16.msra.mxu0 0
        %3894 = vmatprep.subr.bf16.mxu0 0
        %3895 = vmatpush1.bf16.msra.mxu0 0
        %3896 = vmatprep.subr.bf16.mxu0 0
        %3897 = vmatpush1.bf16.msra.mxu0 0
        %3898 = vmatprep.mubr.bf16.mxu0 0
        %3899 = vmatmul.mubr.bf16.gmra.mrb[0].mxu0 %v3723
        %v3900 = vpop.f32.mrb[0].mxu0
        %v3901 = vadd.f32 %v3816, %v3900
        %v3902 = vpop.f32.mrb[0].mxu0
        %v3903 = vpop.f32.mrb[0].mxu0
        %v3904 = vadd.f32 %v3816, %v3903
        %v3905 = vpop.f32.mrb[0].mxu0
        %3906 = vmatprep.mubr.bf16.mxu0 0
        %3907 = vmatmul.mubr.bf16.gmra.mrb[0].mxu0 %v3724
        %v3908 = vpop.f32.mrb[0].mxu0
        %v3909 = vadd.f32 %v3816, %v3908
        %v3910 = vpop.f32.mrb[0].mxu0
        %v3911 = vpop.f32.mrb[0].mxu0
        %v3912 = vadd.f32 %v3816, %v3911
        %v3913 = vpop.f32.mrb[0].mxu0
        %3914 = vmatprep.mubr.bf16.mxu0 0
        %3915 = vmatmul.mubr.bf16.gmra.mrb[0].mxu0 %v3725
        %v3916 = vpop.f32.mrb[0].mxu0
        %v3917 = vadd.f32 %v3816, %v3916
        %v3918 = vpop.f32.mrb[0].mxu0
        %v3919 = vpop.f32.mrb[0].mxu0
        %v3920 = vadd.f32 %v3816, %v3919
        %v3921 = vpop.f32.mrb[0].mxu0
        %3922 = vmatprep.mubr.bf16.mxu0 0
        %3923 = vmatmul.mubr.bf16.gmra.mrb[0].mxu0 %v3726
        %v3924 = vpop.f32.mrb[0].mxu0
        %v3925 = vadd.f32 %v3816, %v3924
        %v3926 = vpop.f32.mrb[0].mxu0
        %v3927 = vpop.f32.mrb[0].mxu0
        %v3928 = vadd.f32 %v3816, %v3927
        %v3929 = vpop.f32.mrb[0].mxu0
        %3930 = vmatprep.mubr.bf16.mxu0 0
        %3931 = vmatmul.mubr.bf16.gmra.mrb[0].mxu0 %v3727
        %v3932 = vpop.f32.mrb[0].mxu0
        %v3933 = vadd.f32 %v3816, %v3932
        %v3934 = vpop.f32.mrb[0].mxu0
        %v3935 = vpop.f32.mrb[0].mxu0
        %v3936 = vadd.f32 %v3816, %v3935
        %v3937 = vpop.f32.mrb[0].mxu0
        %3938 = vmatprep.mubr.bf16.mxu0 0
        %3939 = vmatmul.mubr.bf16.gmra.mrb[0].mxu0 %v3728
        %v3940 = vpop.f32.mrb[0].mxu0
        %v3941 = vadd.f32 %v3816, %v3940
        %v3942 = vpop.f32.mrb[0].mxu0
        %v3943 = vpop.f32.mrb[0].mxu0
        %v3944 = vadd.f32 %v3816, %v3943
        %v3945 = vpop.f32.mrb[0].mxu0
        %3946 = vmatprep.mubr.bf16.mxu0 0
        %3947 = vmatmul.mubr.bf16.gmra.mrb[0].mxu0 %v3729
        %v3948 = vpop.f32.mrb[0].mxu0
        %v3949 = vadd.f32 %v3816, %v3948
        %v3950 = vpop.f32.mrb[0].mxu0
        %v3951 = vpop.f32.mrb[0].mxu0
        %v3952 = vadd.f32 %v3816, %v3951
        %v3953 = vpop.f32.mrb[0].mxu0
        %3954 = vmatprep.mubr.bf16.mxu0 0
        %3955 = vmatmul.mubr.bf16.gmra.mrb[0].mxu0 %v3730
        %v3956 = vpop.f32.mrb[0].mxu0
        %v3957 = vadd.f32 %v3816, %v3956
        %v3958 = vpop.f32.mrb[0].mxu0
        %v3959 = vpop.f32.mrb[0].mxu0
        %v3960 = vadd.f32 %v3816, %v3959
        %v3961 = vpop.f32.mrb[0].mxu0
        %3962 = vmatprep.mubr.bf16.mxu0 0
        %3963 = vmatmul.mubr.bf16.gmra.mrb[0].mxu0 %v3731
        %v3964 = vpop.f32.mrb[0].mxu0
        %v3965 = vadd.f32 %v3816, %v3964
        %v3966 = vpop.f32.mrb[0].mxu0
        %v3967 = vpop.f32.mrb[0].mxu0
        %v3968 = vadd.f32 %v3816, %v3967
        %v3969 = vpop.f32.mrb[0].mxu0
        %3970 = vmatprep.mubr.bf16.mxu0 0
        %3971 = vmatmul.mubr.bf16.gmra.mrb[0].mxu0 %v3732
        %v3972 = vpop.f32.mrb[0].mxu0
        %v3973 = vadd.f32 %v3816, %v3972
        %v3974 = vpop.f32.mrb[0].mxu0
        %v3975 = vpop.f32.mrb[0].mxu0
        %v3976 = vadd.f32 %v3816, %v3975
        %v3977 = vpop.f32.mrb[0].mxu0
        %3978 = vmatprep.mubr.bf16.mxu0 0
        %3979 = vmatmul.mubr.bf16.gmra.mrb[0].mxu0 %v3733
        %v3980 = vpop.f32.mrb[0].mxu0
        %v3981 = vadd.f32 %v3816, %v3980
        %v3982 = vpop.f32.mrb[0].mxu0
        %v3983 = vpop.f32.mrb[0].mxu0
        %v3984 = vadd.f32 %v3816, %v3983
        %v3985 = vpop.f32.mrb[0].mxu0
        %3986 = vmatprep.mubr.bf16.mxu0 0
        %3987 = vmatmul.mubr.bf16.gmra.mrb[0].mxu0 %v3734
        %v3988 = vpop.f32.mrb[0].mxu0
        %v3989 = vadd.f32 %v3816, %v3988
        %v3990 = vpop.f32.mrb[0].mxu0
        %v3991 = vpop.f32.mrb[0].mxu0
        %v3992 = vadd.f32 %v3816, %v3991
        %v3993 = vpop.f32.mrb[0].mxu0
        %3994 = vmatprep.mubr.bf16.mxu0 0
        %3995 = vmatmul.mubr.bf16.gmra.mrb[0].mxu0 %v3735
        %v3996 = vpop.f32.mrb[0].mxu0
        %v3997 = vadd.f32 %v3816, %v3996
        %v3998 = vpop.f32.mrb[0].mxu0
        %v3999 = vpop.f32.mrb[0].mxu0
        %v4000 = vadd.f32 %v3816, %v3999
        %v4001 = vpop.f32.mrb[0].mxu0
        %4002 = vmatprep.mubr.bf16.mxu0 0
        %4003 = vmatmul.mubr.bf16.gmra.mrb[0].mxu0 %v3736
        %v4004 = vpop.f32.mrb[0].mxu0
        %v4005 = vadd.f32 %v3816, %v4004
        %v4006 = vpop.f32.mrb[0].mxu0
        %v4007 = vpop.f32.mrb[0].mxu0
        %v4008 = vadd.f32 %v3816, %v4007
        %v4009 = vpop.f32.mrb[0].mxu0
        %4010 = vmatprep.mubr.bf16.mxu0 0
        %4011 = vmatmul.mubr.bf16.gmra.mrb[0].mxu0 %v3737
        %v4012 = vpop.f32.mrb[0].mxu0
        %v4013 = vadd.f32 %v3816, %v4012
        %v4014 = vpop.f32.mrb[0].mxu0
        %v4015 = vpop.f32.mrb[0].mxu0
        %v4016 = vadd.f32 %v3816, %v4015
        %v4017 = vpop.f32.mrb[0].mxu0
        %4018 = vmatprep.mubr.bf16.mxu0 0
        %4019 = vmatmul.mubr.bf16.gmra.mrb[0].mxu0 %v3738
        %v4020 = vpop.f32.mrb[0].mxu0
        %v4021 = vadd.f32 %v3816, %v4020
        %v4022 = vpop.f32.mrb[0].mxu0
        %v4023 = vpop.f32.mrb[0].mxu0
        %v4024 = vadd.f32 %v3816, %v4023
        %v4025 = vpop.f32.mrb[0].mxu0
        %4026 = vmatprep.mubr.bf16.mxu0 0
        %4027 = vmatmul.mubr.bf16.gmra.mrb[0].mxu0 %v3739
        %v4028 = vpop.f32.mrb[0].mxu0
        %v4029 = vadd.f32 %v3816, %v4028
        %v4030 = vpop.f32.mrb[0].mxu0
        %v4031 = vpop.f32.mrb[0].mxu0
        %v4032 = vadd.f32 %v3816, %v4031
        %v4033 = vpop.f32.mrb[0].mxu0
        %4034 = vmatprep.mubr.bf16.mxu0 0
        %4035 = vmatmul.mubr.bf16.gmra.mrb[0].mxu0 %v3740
        %v4036 = vpop.f32.mrb[0].mxu0
        %v4037 = vadd.f32 %v3816, %v4036
        %v4038 = vpop.f32.mrb[0].mxu0
        %v4039 = vpop.f32.mrb[0].mxu0
        %v4040 = vadd.f32 %v3816, %v4039
        %v4041 = vpop.f32.mrb[0].mxu0
        %4042 = vmatprep.mubr.bf16.mxu0 0
        %4043 = vmatmul.mubr.bf16.gmra.mrb[0].mxu0 %v3741
        %v4044 = vpop.f32.mrb[0].mxu0
        %v4045 = vadd.f32 %v3816, %v4044
        %v4046 = vpop.f32.mrb[0].mxu0
        %v4047 = vpop.f32.mrb[0].mxu0
        %v4048 = vadd.f32 %v3816, %v4047
        %v4049 = vpop.f32.mrb[0].mxu0
        %4050 = vmatprep.mubr.bf16.mxu0 0
        %4051 = vmatmul.mubr.bf16.gmra.mrb[0].mxu0 %v3742
        %v4052 = vpop.f32.mrb[0].mxu0
        %v4053 = vadd.f32 %v3816, %v4052
        %v4054 = vpop.f32.mrb[0].mxu0
        %v4055 = vpop.f32.mrb[0].mxu0
        %v4056 = vadd.f32 %v3816, %v4055
        %v4057 = vpop.f32.mrb[0].mxu0
        %4058 = vmatprep.mubr.bf16.mxu0 0
        %4059 = vmatmul.mubr.bf16.gmra.mrb[0].mxu0 %v3743
        %v4060 = vpop.f32.mrb[0].mxu0
        %v4061 = vadd.f32 %v3816, %v4060
        %v4062 = vpop.f32.mrb[0].mxu0
        %v4063 = vpop.f32.mrb[0].mxu0
        %v4064 = vadd.f32 %v3816, %v4063
        %v4065 = vpop.f32.mrb[0].mxu0
        %4066 = vmatprep.mubr.bf16.mxu0 0
        %4067 = vmatmul.mubr.bf16.gmra.mrb[0].mxu0 %v3744
        %v4068 = vpop.f32.mrb[0].mxu0
        %v4069 = vadd.f32 %v3816, %v4068
        %v4070 = vpop.f32.mrb[0].mxu0
        %v4071 = vpop.f32.mrb[0].mxu0
        %v4072 = vadd.f32 %v3816, %v4071
        %v4073 = vpop.f32.mrb[0].mxu0
        %4074 = vmatprep.mubr.bf16.mxu0 0
        %4075 = vmatmul.mubr.bf16.gmra.mrb[0].mxu0 %v3745
        %v4076 = vpop.f32.mrb[0].mxu0
        %v4077 = vadd.f32 %v3816, %v4076
        %v4078 = vpop.f32.mrb[0].mxu0
        %v4079 = vpop.f32.mrb[0].mxu0
        %v4080 = vadd.f32 %v3816, %v4079
        %v4081 = vpop.f32.mrb[0].mxu0
        %4082 = vmatprep.mubr.bf16.mxu0 0
        %4083 = vmatmul.mubr.bf16.gmra.mrb[0].mxu0 %v3746
        %v4084 = vpop.f32.mrb[0].mxu0
        %v4085 = vadd.f32 %v3816, %v4084
        %v4086 = vpop.f32.mrb[0].mxu0
        %v4087 = vpop.f32.mrb[0].mxu0
        %v4088 = vadd.f32 %v3816, %v4087
        %v4089 = vpop.f32.mrb[0].mxu0
        %4090 = vdwg.mxu0
        %v4091 = vadd.f32 %v3901, %v3763
        %v4092 = vadd.f32 %v3904, %v3764
        %v4093 = vadd.f32 %v3909, %v3765
        %v4094 = vadd.f32 %v3912, %v3766
        %v4095 = vadd.f32 %v3917, %v3767
        %v4096 = vadd.f32 %v3920, %v3768
        %v4097 = vadd.f32 %v3925, %v3769
        %v4098 = vadd.f32 %v3928, %v3770
        %v4099 = vadd.f32 %v3933, %v3771
        %v4100 = vadd.f32 %v3936, %v3772
        %v4101 = vadd.f32 %v3941, %v3773
        %v4102 = vadd.f32 %v3944, %v3774
        %v4103 = vadd.f32 %v3949, %v3775
        %v4104 = vadd.f32 %v3952, %v3776
        %v4105 = vadd.f32 %v3957, %v3777
        %v4106 = vadd.f32 %v3960, %v3778
        %v4107 = vadd.f32 %v3965, %v3779
        %v4108 = vadd.f32 %v3968, %v3780
        %v4109 = vadd.f32 %v3973, %v3781
        %v4110 = vadd.f32 %v3976, %v3782
        %v4111 = vadd.f32 %v3981, %v3783
        %v4112 = vadd.f32 %v3984, %v3784
        %v4113 = vadd.f32 %v3989, %v3785
        %v4114 = vadd.f32 %v3992, %v3786
        %v4115 = vadd.f32 %v3997, %v3787
        %v4116 = vadd.f32 %v4000, %v3788
        %v4117 = vadd.f32 %v4005, %v3789
        %v4118 = vadd.f32 %v4008, %v3790
        %v4119 = vadd.f32 %v4013, %v3791
        %v4120 = vadd.f32 %v4016, %v3792
        %v4121 = vadd.f32 %v4021, %v3793
        %v4122 = vadd.f32 %v4024, %v3794
        %v4123 = vadd.f32 %v4029, %v3795
        %v4124 = vadd.f32 %v4032, %v3796
        %v4125 = vadd.f32 %v4037, %v3797
        %v4126 = vadd.f32 %v4040, %v3798
        %v4127 = vadd.f32 %v4045, %v3799
        %v4128 = vadd.f32 %v4048, %v3800
        %v4129 = vadd.f32 %v4053, %v3801
        %v4130 = vadd.f32 %v4056, %v3802
        %v4131 = vadd.f32 %v4061, %v3803
        %v4132 = vadd.f32 %v4064, %v3804
        %v4133 = vadd.f32 %v4069, %v3805
        %v4134 = vadd.f32 %v4072, %v3806
        %v4135 = vadd.f32 %v4077, %v3807
        %v4136 = vadd.f32 %v4080, %v3808
        %v4137 = vadd.f32 %v4085, %v3809
        %v4138 = vadd.f32 %v4088, %v3810
        %v4139 = vmax.f32 %v4091, 0.0
        %v4140 = vmax.f32 %v4092, 0.0
        %v4141 = vmax.f32 %v4093, 0.0
        %v4142 = vmax.f32 %v4094, 0.0
        %v4143 = vmax.f32 %v4095, 0.0
        %v4144 = vmax.f32 %v4096, 0.0
        %v4145 = vmax.f32 %v4097, 0.0
        %v4146 = vmax.f32 %v4098, 0.0
        %v4147 = vmax.f32 %v4099, 0.0
        %v4148 = vmax.f32 %v4100, 0.0
        %v4149 = vmax.f32 %v4101, 0.0
        %v4150 = vmax.f32 %v4102, 0.0
        %v4151 = vmax.f32 %v4103, 0.0
        %v4152 = vmax.f32 %v4104, 0.0
        %v4153 = vmax.f32 %v4105, 0.0
        %v4154 = vmax.f32 %v4106, 0.0
        %v4155 = vmax.f32 %v4107, 0.0
        %v4156 = vmax.f32 %v4108, 0.0
        %v4157 = vmax.f32 %v4109, 0.0
        %v4158 = vmax.f32 %v4110, 0.0
        %v4159 = vmax.f32 %v4111, 0.0
        %v4160 = vmax.f32 %v4112, 0.0
        %v4161 = vmax.f32 %v4113, 0.0
        %v4162 = vmax.f32 %v4114, 0.0
        %v4163 = vmax.f32 %v4115, 0.0
        %v4164 = vmax.f32 %v4116, 0.0
        %v4165 = vmax.f32 %v4117, 0.0
        %v4166 = vmax.f32 %v4118, 0.0
        %v4167 = vmax.f32 %v4119, 0.0
        %v4168 = vmax.f32 %v4120, 0.0
        %v4169 = vmax.f32 %v4121, 0.0
        %v4170 = vmax.f32 %v4122, 0.0
        %v4171 = vmax.f32 %v4123, 0.0
        %v4172 = vmax.f32 %v4124, 0.0
        %v4173 = vmax.f32 %v4125, 0.0
        %v4174 = vmax.f32 %v4126, 0.0
        %v4175 = vmax.f32 %v4127, 0.0
        %v4176 = vmax.f32 %v4128, 0.0
        %v4177 = vmax.f32 %v4129, 0.0
        %v4178 = vmax.f32 %v4130, 0.0
        %v4179 = vmax.f32 %v4131, 0.0
        %v4180 = vmax.f32 %v4132, 0.0
        %v4181 = vmax.f32 %v4133, 0.0
        %v4182 = vmax.f32 %v4134, 0.0
        %v4183 = vmax.f32 %v4135, 0.0
        %v4184 = vmax.f32 %v4136, 0.0
        %v4185 = vmax.f32 %v4137, 0.0
        %v4186 = vmax.f32 %v4138, 0.0
        %4187 = vst [vmem:[%s356] sm:$0xff] %v4139
        %4188 = vst [vmem:[%s356 + $0x8] sm:$0xff] %v4140
        %4189 = vst [vmem:[%s356 + $0x10] sm:$0xff] %v4141
        %4190 = vst [vmem:[%s356 + $0x18] sm:$0xff] %v4142
        %4191 = vst [vmem:[%s356 + $0x20] sm:$0xff] %v4143
        %4192 = vst [vmem:[%s356 + $0x28] sm:$0xff] %v4144
        %4193 = vst [vmem:[%s356 + $0x30] sm:$0xff] %v4145
        %4194 = vst [vmem:[%s356 + $0x38] sm:$0xff] %v4146
        %4195 = vst [vmem:[%s356 + $0x40] sm:$0xff] %v4147
        %4196 = vst [vmem:[%s356 + $0x48] sm:$0xff] %v4148
        %4197 = vst [vmem:[%s356 + $0x50] sm:$0xff] %v4149
        %4198 = vst [vmem:[%s356 + $0x58] sm:$0xff] %v4150
        %4199 = vst [vmem:[%s356 + $0x60] sm:$0xff] %v4151
        %4200 = vst [vmem:[%s356 + $0x68] sm:$0xff] %v4152
        %4201 = vst [vmem:[%s356 + $0x70] sm:$0xff] %v4153
        %4202 = vst [vmem:[%s356 + $0x78] sm:$0xff] %v4154
        %4203 = vst [vmem:[%s356 + $0x80] sm:$0xff] %v4155
        %4204 = vst [vmem:[%s356 + $0x88] sm:$0xff] %v4156
        %4205 = vst [vmem:[%s356 + $0x90] sm:$0xff] %v4157
        %4206 = vst [vmem:[%s356 + $0x98] sm:$0xff] %v4158
        %4207 = vst [vmem:[%s356 + $0xa0] sm:$0xff] %v4159
        %4208 = vst [vmem:[%s356 + $0xa8] sm:$0xff] %v4160
        %4209 = vst [vmem:[%s356 + $0xb0] sm:$0xff] %v4161
        %4210 = vst [vmem:[%s356 + $0xb8] sm:$0xff] %v4162
        %4211 = vst [vmem:[%s356 + $0xc0] sm:$0xff] %v4163
        %4212 = vst [vmem:[%s356 + $0xc8] sm:$0xff] %v4164
        %4213 = vst [vmem:[%s356 + $0xd0] sm:$0xff] %v4165
        %4214 = vst [vmem:[%s356 + $0xd8] sm:$0xff] %v4166
        %4215 = vst [vmem:[%s356 + $0xe0] sm:$0xff] %v4167
        %4216 = vst [vmem:[%s356 + $0xe8] sm:$0xff] %v4168
        %4217 = vst [vmem:[%s356 + $0xf0] sm:$0xff] %v4169
        %4218 = vst [vmem:[%s356 + $0xf8] sm:$0xff] %v4170
        %4219 = vst [vmem:[%s356 + $0x100] sm:$0xff] %v4171
        %4220 = vst [vmem:[%s356 + $0x108] sm:$0xff] %v4172
        %4221 = vst [vmem:[%s356 + $0x110] sm:$0xff] %v4173
        %4222 = vst [vmem:[%s356 + $0x118] sm:$0xff] %v4174
        %4223 = vst [vmem:[%s356 + $0x120] sm:$0xff] %v4175
        %4224 = vst [vmem:[%s356 + $0x128] sm:$0xff] %v4176
        %4225 = vst [vmem:[%s356 + $0x130] sm:$0xff] %v4177
        %4226 = vst [vmem:[%s356 + $0x138] sm:$0xff] %v4178
        %4227 = vst [vmem:[%s356 + $0x140] sm:$0xff] %v4179
        %4228 = vst [vmem:[%s356 + $0x148] sm:$0xff] %v4180
        %4229 = vst [vmem:[%s356 + $0x150] sm:$0xff] %v4181
        %4230 = vst [vmem:[%s356 + $0x158] sm:$0xff] %v4182
        %4231 = vst [vmem:[%s356 + $0x160] sm:$0xff] %v4183
        %4232 = vst [vmem:[%s356 + $0x168] sm:$0xff] %v4184
        %4233 = vst [vmem:[%s356 + $0x170] sm:$0xff] %v4185
        %4234 = vst [vmem:[%s356 + $0x178] sm:$0xff] %v4186
        %s4235 = sand.u32 %s219, 1
        %s4236 = scalar_lea.sflag [#allocation4], %s4235
        %s4237 = sand.u32 %s219, 1
        %s4238 = smul.addr %s4237, 384
        %s4239 = scalar_lea.vmem [#allocation8], %s4238
        // Predicated region
        $region65: #{tpu_custom_call.1} parent=51 // pred_check
          %p4240 = pneg %p229
        $region66: #{tpu_custom_call.1} parent=51 // pred_check_branch
          %4242 = sbr.rel (%p4240) target = $region68
        $region67: #{tpu_custom_call.1} parent=51 // pred_region
          %s4243 = smul.u32 48, %s29
          %s4245 = ssub.s32 6144, 6144
          %4246 = vsyncadd %s4236, %s4245
          %s4247 = smul.addr %s28, 48
          %s4248 = sadd.s32 %s4243, %s4247
          %s4249 = smul.addr %s4248, 128
          %s4250 = scalar_lea.hbm %s8, %s4249
          %s4251 = sshll.u32 %s4239, 4
          %s4252 = int_to_ptr.vmem [resolvable:$true] %s4251
          %4257 = dma.vmem_to_hbm [thread:$0]  %s4252, 6144, %s4250, %s4236, 128, 128, 8
        $region68: #{tpu_custom_call.1} parent=51 // pred_fallthru
          _
      $region52: #{tpu_custom_call.1} parent=5 // pred_fallthru
        _
      %p4258 = scmp.le.s32.totalorder 2, %s19
      // Predicated region
      $region69: #{tpu_custom_call.1} parent=5 // pred_check
        %p4259 = pneg %p4258
      $region70: #{tpu_custom_call.1} parent=5 // pred_check_branch
        %4261 = sbr.rel (%p4259) target = $region72
      $region71: #{tpu_custom_call.1} parent=5 // pred_region
        %s4262 = ssub.s32 %s19, 2
        // Predicated region
        $region73: #{tpu_custom_call.1} parent=71 // pred_check
          %p4263 = pneg %p235
        $region74: #{tpu_custom_call.1} parent=71 // pred_check_branch
          %4265 = sbr.rel (%p4263) target = $region76
        $region75: #{tpu_custom_call.1} parent=71 // pred_region
          %s4266 = sand.u32 %s220, 1
          %s4267 = scalar_lea.sflag [#allocation4], %s4266
          %s4268 = sand.u32 %s220, 1
          %s4269 = smul.addr %s4268, 384
          %s4270 = scalar_lea.vmem [#allocation8], %s4269
          %4271 = dma.done %s4267, 6144
        $region76: #{tpu_custom_call.1} parent=71 // pred_fallthru
          _
      $region72: #{tpu_custom_call.1} parent=5 // pred_fallthru
        _
    $region6: #{tpu_custom_call.1} parent=1 // loop_footer
      %s23 = sadd.s32 1, %s19
    $region7: #{tpu_custom_call.1} parent=1 // loop_footer_branch
      %18 = sbr.rel target = $region3
    $region8: #{tpu_custom_call.1} parent=1 // loop_exit
      _
    %4272 = vsyncpa [#allocation3], 1
    %s4273 = scalar_lea.sflag [#allocation3], 1
    %4274 = vsyncpa %s4273, 1
    %4275 = vsyncpa [#allocation6], 1
    %4276 = vsyncpa [#allocation4], 1
    %s4277 = scalar_lea.sflag [#allocation4], 1
    %4278 = vsyncpa %s4277, 1

// kernel: tpu_custom_call.1
$region0: #{tpu_custom_call.1}
  #allocation0 [shape = 'u32[]', space=smem, size = 0x4, offset = 0x4, fixed_abs, tag = 'smem constant byte address 0x4 - core index']
  #allocation1 [shape = 'u32[144,128]{1,0:T(1,128)}', space=vmem, size = 0x12000, scoped, tag = 'internal scratch']
  %s0 = inlined_call_operand.vmem [shape: bf16[2,432,128], index: 0, kind: input, shape index: {}]
  %s1 = inlined_call_operand.vmem [shape: f32[432,1], index: 1, kind: input, shape index: {}]
  %s2 = inlined_call_operand.hbm [shape: bf16[128,128], index: 2, kind: input, shape index: {}]
  %s3 = inlined_call_operand.vmem [shape: f32[1,128], index: 3, kind: input, shape index: {}]
  %s4 = inlined_call_operand.hbm [shape: bf16[1152,128], index: 4, kind: input, shape index: {}]
  %s5 = inlined_call_operand.vmem [shape: f32[1,128], index: 5, kind: input, shape index: {}]
  %s6 = inlined_call_operand.hbm [shape: bf16[128,128], index: 6, kind: input, shape index: {}]
  %s7 = inlined_call_operand.vmem [shape: f32[1,128], index: 7, kind: input, shape index: {}]
  %s8 = inlined_call_operand.hbm [shape: f32[2,384,128], index: 8, kind: output, shape index: {}]
  %s9 = sld [smem:[#allocation0]]
  $region77: #{tpu_custom_call.1} parent=0
    _
  %s11 = ssub.s32 1, %s9
  %s12 = scalar_select 0, %s11, %s9
  $region1: #{tpu_custom_call.1} parent=0
    #allocation2 [shape = 'u8[32768]{0}', space=vmem, size = 0x8000, scoped, tag = 'input window, operand 2, single buffered']
    #allocation3 [shape = 's32[2]{0}', space=sflag, size = 0x8, scoped, tag = 'scoped memory for tpu_custom_call.1']
    #allocation4 [shape = 's32[2]{0}', space=sflag, size = 0x8, scoped, tag = 'scoped memory for tpu_custom_call.1']
    #allocation5 [shape = 'u8[294912]{0}', space=vmem, size = 0x48000, scoped, tag = 'input window, operand 4, single buffered']
    #allocation6 [shape = 's32[1]{0}', space=sflag, size = 0x4, scoped, tag = 'scoped memory for tpu_custom_call.1']
    #allocation7 [shape = 'u8[32768]{0}', space=vmem, size = 0x8000, scoped, tag = 'input window, operand 6, single buffered']
    #allocation8 [shape = 'u8[393216]{0}', space=vmem, size = 0x60000, scoped, tag = 'output window, operand 0']
    %13 = vsyncpa [#allocation3], 0
    %14 = vsyncpa [#allocation6], 0
    %15 = vsyncpa [#allocation4], 0
    %s16 = scalar_lea.sflag [#allocation4], 1
    %17 = vsyncpa %s16, 0
    loop: start=0, step=1, limit=4
    $region2: #{tpu_custom_call.1} parent=1 // loop_pre_header
      _
    $region3: #{tpu_custom_call.1} parent=1 // loop_header
      %s19 = sphi 0, %s23
      %p20 = scmp.ge.s32.totalorder %s19, 4
      %s26 = sphi 0, %s38
      %s27 = sphi 0, %s34
      %s28 = sphi 0, %s26
      %s29 = sphi 0, %s27
      %s30 = sphi 0, %s28
      %s31 = sphi 0, %s29
      %s41 = sphi 0, %s43
      %s44 = sphi 0, %s41
      %s45 = sphi 0, %s44
      %s61 = sphi 0, %s45
      %s65 = sphi 0, %s65
      %s67 = sphi 0, %s65
      %s68 = sphi 0, %s67
      %s82 = sphi 0, %s68
      %s86 = sphi 0, %s86
      %s88 = sphi 0, %s86
      %s89 = sphi 0, %s88
      %s103 = sphi 0, %s89
      %s107 = sphi 0, %s107
      %s109 = sphi 0, %s107
      %s110 = sphi 0, %s109
      %s124 = sphi 0, %s110
      %s128 = sphi 0, %s128
      %s130 = sphi 0, %s128
      %s131 = sphi 0, %s130
      %s145 = sphi 0, %s131
      %s149 = sphi 0, %s149
      %s151 = sphi 0, %s149
      %s152 = sphi 0, %s151
      %s166 = sphi 0, %s152
      %s170 = sphi 0, %s170
      %s172 = sphi 0, %s170
      %s173 = sphi 0, %s172
      %s187 = sphi 0, %s173
      %s191 = sphi 0, %s191
      %s193 = sphi 0, %s191
      %s194 = sphi 0, %s193
      %s208 = sphi 0, %s194
      %s216 = sphi 0, %s218
      %s219 = sphi 0, %s216
      %s220 = sphi 0, %s219
      %s236 = sphi 0, %s220
    $region4: #{tpu_custom_call.1} parent=1 // loop_header_branch
      %22 = sbr.rel (%p20) target = $region8
    $region5: #{tpu_custom_call.1} parent=1 // loop_body
      %s24 = ssub.s32 %s19, 1
      %s25 = ssub.s32 %s19, 2
      %s32 = sadd.s32 1, %s27
      %p33 = scmp.ge.s32.totalorder %s32, 1
      %s34 = scalar_select %p33, 0, %s32
      %s35 = sadd.s32 1, %s26
      %s36 = scalar_select %p33, %s35, %s26
      %p37 = scmp.ge.s32.totalorder %s36, 2
      %s38 = scalar_select %p37, 0, %s36
      %s39 = ssub.s32 %s26, %s38
      %p40 = scmp.eq.s32.totalorder %s39, 0
      %s42 = sadd.s32 %s41, 1
      %s43 = scalar_select %p40, %s41, %s42
      %p46 = pneg %p40
      %p47 = scmp.eq.s32.totalorder %s19, 1
      %p48 = por %p46, %p47
      %p49 = scmp.ne.s32.totalorder %s41, %s44
      %p50 = scmp.eq.s32.totalorder %s19, 0
      %p51 = por %p49, %p50
      %p52 = scmp.ne.s32.totalorder %s41, %s44
      %p53 = scmp.eq.s32.totalorder %s24, 1
      %p54 = por %p52, %p53
      %p55 = scmp.ne.s32.totalorder %s44, %s45
      %p56 = scmp.eq.s32.totalorder %s24, 0
      %p57 = por %p55, %p56
      %p58 = scmp.ne.s32.totalorder %s44, %s45
      %p59 = scmp.eq.s32.totalorder %s25, 1
      %p60 = por %p58, %p59
      %p62 = scmp.ne.s32.totalorder %s45, %s61
      %p63 = scmp.eq.s32.totalorder %s25, 0
      %p64 = por %p62, %p63
      %s66 = sadd.s32 %s65, 1
      %p69 = scmp.eq.s32.totalorder %s19, 1
      %p70 = scmp.ne.s32.totalorder %s65, %s67
      %p71 = scmp.eq.s32.totalorder %s19, 0
      %p72 = por %p70, %p71
      %p73 = scmp.ne.s32.totalorder %s65, %s67
      %p74 = scmp.eq.s32.totalorder %s24, 1
      %p75 = por %p73, %p74
      %p76 = scmp.ne.s32.totalorder %s67, %s68
      %p77 = scmp.eq.s32.totalorder %s24, 0
      %p78 = por %p76, %p77
      %p79 = scmp.ne.s32.totalorder %s67, %s68
      %p80 = scmp.eq.s32.totalorder %s25, 1
      %p81 = por %p79, %p80
      %p83 = scmp.ne.s32.totalorder %s68, %s82
      %p84 = scmp.eq.s32.totalorder %s25, 0
      %p85 = por %p83, %p84
      %s87 = sadd.s32 %s86, 1
      %p90 = scmp.eq.s32.totalorder %s19, 1
      %p91 = scmp.ne.s32.totalorder %s86, %s88
      %p92 = scmp.eq.s32.totalorder %s19, 0
      %p93 = por %p91, %p92
      %p94 = scmp.ne.s32.totalorder %s86, %s88
      %p95 = scmp.eq.s32.totalorder %s24, 1
      %p96 = por %p94, %p95
      %p97 = scmp.ne.s32.totalorder %s88, %s89
      %p98 = scmp.eq.s32.totalorder %s24, 0
      %p99 = por %p97, %p98
      %p100 = scmp.ne.s32.totalorder %s88, %s89
      %p101 = scmp.eq.s32.totalorder %s25, 1
      %p102 = por %p100, %p101
      %p104 = scmp.ne.s32.totalorder %s89, %s103
      %p105 = scmp.eq.s32.totalorder %s25, 0
      %p106 = por %p104, %p105
      %s108 = sadd.s32 %s107, 1
      %p111 = scmp.eq.s32.totalorder %s19, 1
      %p112 = scmp.ne.s32.totalorder %s107, %s109
      %p113 = scmp.eq.s32.totalorder %s19, 0
      %p114 = por %p112, %p113
      %p115 = scmp.ne.s32.totalorder %s107, %s109
      %p116 = scmp.eq.s32.totalorder %s24, 1
      %p117 = por %p115, %p116
      %p118 = scmp.ne.s32.totalorder %s109, %s110
      %p119 = scmp.eq.s32.totalorder %s24, 0
      %p120 = por %p118, %p119
      %p121 = scmp.ne.s32.totalorder %s109, %s110
      %p122 = scmp.eq.s32.totalorder %s25, 1
      %p123 = por %p121, %p122
      %p125 = scmp.ne.s32.totalorder %s110, %s124
      %p126 = scmp.eq.s32.totalorder %s25, 0
      %p127 = por %p125, %p126
      %s129 = sadd.s32 %s128, 1
      %p132 = scmp.eq.s32.totalorder %s19, 1
      %p133 = scmp.ne.s32.totalorder %s128, %s130
      %p134 = scmp.eq.s32.totalorder %s19, 0
      %p135 = por %p133, %p134
      %p136 = scmp.ne.s32.totalorder %s128, %s130
      %p137 = scmp.eq.s32.totalorder %s24, 1
      %p138 = por %p136, %p137
      %p139 = scmp.ne.s32.totalorder %s130, %s131
      %p140 = scmp.eq.s32.totalorder %s24, 0
      %p141 = por %p139, %p140
      %p142 = scmp.ne.s32.totalorder %s130, %s131
      %p143 = scmp.eq.s32.totalorder %s25, 1
      %p144 = por %p142, %p143
      %p146 = scmp.ne.s32.totalorder %s131, %s145
      %p147 = scmp.eq.s32.totalorder %s25, 0
      %p148 = por %p146, %p147
      %s150 = sadd.s32 %s149, 1
      %p153 = scmp.eq.s32.totalorder %s19, 1
      %p154 = scmp.ne.s32.totalorder %s149, %s151
      %p155 = scmp.eq.s32.totalorder %s19, 0
      %p156 = por %p154, %p155
      %p157 = scmp.ne.s32.totalorder %s149, %s151
      %p158 = scmp.eq.s32.totalorder %s24, 1
      %p159 = por %p157, %p158
      %p160 = scmp.ne.s32.totalorder %s151, %s152
      %p161 = scmp.eq.s32.totalorder %s24, 0
      %p162 = por %p160, %p161
      %p163 = scmp.ne.s32.totalorder %s151, %s152
      %p164 = scmp.eq.s32.totalorder %s25, 1
      %p165 = por %p163, %p164
      %p167 = scmp.ne.s32.totalorder %s152, %s166
      %p168 = scmp.eq.s32.totalorder %s25, 0
      %p169 = por %p167, %p168
      %s171 = sadd.s32 %s170, 1
      %p174 = scmp.eq.s32.totalorder %s19, 1
      %p175 = scmp.ne.s32.totalorder %s170, %s172
      %p176 = scmp.eq.s32.totalorder %s19, 0
      %p177 = por %p175, %p176
      %p178 = scmp.ne.s32.totalorder %s170, %s172
      %p179 = scmp.eq.s32.totalorder %s24, 1
      %p180 = por %p178, %p179
      %p181 = scmp.ne.s32.totalorder %s172, %s173
      %p182 = scmp.eq.s32.totalorder %s24, 0
      %p183 = por %p181, %p182
      %p184 = scmp.ne.s32.totalorder %s172, %s173
      %p185 = scmp.eq.s32.totalorder %s25, 1
      %p186 = por %p184, %p185
      %p188 = scmp.ne.s32.totalorder %s173, %s187
      %p189 = scmp.eq.s32.totalorder %s25, 0
      %p190 = por %p188, %p189
      %s192 = sadd.s32 %s191, 1
      %p195 = scmp.eq.s32.totalorder %s19, 1
      %p196 = scmp.ne.s32.totalorder %s191, %s193
      %p197 = scmp.eq.s32.totalorder %s19, 0
      %p198 = por %p196, %p197
      %p199 = scmp.ne.s32.totalorder %s191, %s193
      %p200 = scmp.eq.s32.totalorder %s24, 1
      %p201 = por %p199, %p200
      %p202 = scmp.ne.s32.totalorder %s193, %s194
      %p203 = scmp.eq.s32.totalorder %s24, 0
      %p204 = por %p202, %p203
      %p205 = scmp.ne.s32.totalorder %s193, %s194
      %p206 = scmp.eq.s32.totalorder %s25, 1
      %p207 = por %p205, %p206
      %p209 = scmp.ne.s32.totalorder %s194, %s208
      %p210 = scmp.eq.s32.totalorder %s25, 0
      %p211 = por %p209, %p210
      %s212 = ssub.s32 %s26, %s38
      %s213 = ssub.s32 %s27, %s34
      %s214 = sor.u32 %s212, %s213
      %p215 = scmp.eq.s32.totalorder %s214, 0
      %s217 = sadd.s32 %s216, 1
      %s218 = scalar_select %p215, %s216, %s217
      %p221 = pneg %p215
      %p222 = scmp.eq.s32.totalorder %s19, 1
      %p223 = por %p221, %p222
      %p224 = scmp.ne.s32.totalorder %s216, %s219
      %p225 = scmp.eq.s32.totalorder %s19, 0
      %p226 = por %p224, %p225
      %p227 = scmp.ne.s32.totalorder %s216, %s219
      %p228 = scmp.eq.s32.totalorder %s24, 1
      %p229 = por %p227, %p228
      %p230 = scmp.ne.s32.totalorder %s219, %s220
      %p231 = scmp.eq.s32.totalorder %s24, 0
      %p232 = por %p230, %p231
      %p233 = scmp.ne.s32.totalorder %s219, %s220
      %p234 = scmp.eq.s32.totalorder %s25, 1
      %p235 = por %p233, %p234
      %p237 = scmp.ne.s32.totalorder %s220, %s236
      %p238 = scmp.eq.s32.totalorder %s25, 0
      %p239 = por %p237, %p238
      %p240 = scmp.le.s32.totalorder 1, %s19
      %p241 = scmp.lt.s32.totalorder %s19, 3
      %p242 = pnand %p240, %p241
      %p243 = pneg %p242
      // Predicated region
      $region9: #{tpu_custom_call.1} parent=5 // pred_check
        _
      $region10: #{tpu_custom_call.1} parent=5 // pred_check_branch
        %245 = sbr.rel (%p242) target = $region12
      $region11: #{tpu_custom_call.1} parent=5 // pred_region
        %s246 = ssub.s32 %s19, 1
        // Predicated region
        $region13: #{tpu_custom_call.1} parent=11 // pred_check
          %p247 = pneg %p78
        $region14: #{tpu_custom_call.1} parent=11 // pred_check_branch
          %249 = sbr.rel (%p247) target = $region16
        $region15: #{tpu_custom_call.1} parent=11 // pred_region
          _
        $region16: #{tpu_custom_call.1} parent=11 // pred_fallthru
          _
        // Predicated region
        $region17: #{tpu_custom_call.1} parent=11 // pred_check
          %p250 = pneg %p99
        $region18: #{tpu_custom_call.1} parent=11 // pred_check_branch
          %252 = sbr.rel (%p250) target = $region20
        $region19: #{tpu_custom_call.1} parent=11 // pred_region
          %s254 = ssub.s32 1024, 1024
          %255 = vsyncadd [#allocation3], %s254
          %s256 = sshll.u32 [#allocation2], 4
          %s257 = int_to_ptr.vmem [resolvable:$true] %s256
          %262 = dma.hbm_to_vmem [thread:$0]  %s2, 1024, %s257, [#allocation3], 64, 64, 4
        $region20: #{tpu_custom_call.1} parent=11 // pred_fallthru
          _
        // Predicated region
        $region21: #{tpu_custom_call.1} parent=11 // pred_check
          %p263 = pneg %p120
        $region22: #{tpu_custom_call.1} parent=11 // pred_check_branch
          %265 = sbr.rel (%p263) target = $region24
        $region23: #{tpu_custom_call.1} parent=11 // pred_region
          _
        $region24: #{tpu_custom_call.1} parent=11 // pred_fallthru
          _
        // Predicated region
        $region25: #{tpu_custom_call.1} parent=11 // pred_check
          %p266 = pneg %p141
        $region26: #{tpu_custom_call.1} parent=11 // pred_check_branch
          %268 = sbr.rel (%p266) target = $region28
        $region27: #{tpu_custom_call.1} parent=11 // pred_region
          %s270 = ssub.s32 9216, 9216
          %271 = vsyncadd [#allocation6], %s270
          %s272 = sshll.u32 [#allocation5], 4
          %s273 = int_to_ptr.vmem [resolvable:$true] %s272
          %278 = dma.hbm_to_vmem [thread:$0]  %s4, 9216, %s273, [#allocation6], 64, 64, 4
        $region28: #{tpu_custom_call.1} parent=11 // pred_fallthru
          _
        // Predicated region
        $region29: #{tpu_custom_call.1} parent=11 // pred_check
          %p279 = pneg %p162
        $region30: #{tpu_custom_call.1} parent=11 // pred_check_branch
          %281 = sbr.rel (%p279) target = $region32
        $region31: #{tpu_custom_call.1} parent=11 // pred_region
          _
        $region32: #{tpu_custom_call.1} parent=11 // pred_fallthru
          _
        // Predicated region
        $region33: #{tpu_custom_call.1} parent=11 // pred_check
          %p282 = pneg %p183
        $region34: #{tpu_custom_call.1} parent=11 // pred_check_branch
          %284 = sbr.rel (%p282) target = $region36
        $region35: #{tpu_custom_call.1} parent=11 // pred_region
          %s286 = ssub.s32 1024, 1024
          %287 = vsyncadd [#allocation6], %s286
          %s288 = sshll.u32 [#allocation7], 4
          %s289 = int_to_ptr.vmem [resolvable:$true] %s288
          %294 = dma.hbm_to_vmem [thread:$0]  %s6, 1024, %s289, [#allocation6], 64, 64, 4
        $region36: #{tpu_custom_call.1} parent=11 // pred_fallthru
          _
        // Predicated region
        $region37: #{tpu_custom_call.1} parent=11 // pred_check
          %p295 = pneg %p204
        $region38: #{tpu_custom_call.1} parent=11 // pred_check_branch
          %297 = sbr.rel (%p295) target = $region40
        $region39: #{tpu_custom_call.1} parent=11 // pred_region
          _
        $region40: #{tpu_custom_call.1} parent=11 // pred_fallthru
          _
      $region12: #{tpu_custom_call.1} parent=5 // pred_fallthru
        _
      %p298 = scmp.lt.s32.totalorder %s19, 2
      // Predicated region
      $region41: #{tpu_custom_call.1} parent=5 // pred_check
        %p299 = pneg %p298
      $region42: #{tpu_custom_call.1} parent=5 // pred_check_branch
        %301 = sbr.rel (%p299) target = $region44
      $region43: #{tpu_custom_call.1} parent=5 // pred_region
        // Predicated region
        $region45: #{tpu_custom_call.1} parent=43 // pred_check
          %p302 = pneg %p51
        $region46: #{tpu_custom_call.1} parent=43 // pred_check_branch
          %304 = sbr.rel (%p302) target = $region48
        $region47: #{tpu_custom_call.1} parent=43 // pred_region
          %p305 = scmp.lt.s32.totalorder %s26, 1
          %s306 = scalar_select %p305, %s26, 1
          %s307 = smul.addr %s306, 54
          %s308 = smul.addr %s307, 4
          %s309 = scalar_lea.vmem %s0, %s308
        $region48: #{tpu_custom_call.1} parent=43 // pred_fallthru
          _
      $region44: #{tpu_custom_call.1} parent=5 // pred_fallthru
        _
      %p310 = scmp.le.s32.totalorder 1, %s19
      %p311 = scmp.lt.s32.totalorder %s19, 3
      %p312 = pnand %p310, %p311
      %p313 = pneg %p312
      // Predicated region
      $region49: #{tpu_custom_call.1} parent=5 // pred_check
        _
      $region50: #{tpu_custom_call.1} parent=5 // pred_check_branch
        %315 = sbr.rel (%p312) target = $region52
      $region51: #{tpu_custom_call.1} parent=5 // pred_region
        %s316 = ssub.s32 %s19, 1
        // Predicated region
        $region53: #{tpu_custom_call.1} parent=51 // pred_check
          %p317 = pneg %p99
        $region54: #{tpu_custom_call.1} parent=51 // pred_check_branch
          %319 = sbr.rel (%p317) target = $region56
        $region55: #{tpu_custom_call.1} parent=51 // pred_region
          %320 = dma.done [#allocation3], 1024
        $region56: #{tpu_custom_call.1} parent=51 // pred_fallthru
          _
        // Predicated region
        $region57: #{tpu_custom_call.1} parent=51 // pred_check
          %p321 = pneg %p141
        $region58: #{tpu_custom_call.1} parent=51 // pred_check_branch
          %323 = sbr.rel (%p321) target = $region60
        $region59: #{tpu_custom_call.1} parent=51 // pred_region
          %324 = dma.done [#allocation6], 9216
        $region60: #{tpu_custom_call.1} parent=51 // pred_fallthru
          _
        // Predicated region
        $region61: #{tpu_custom_call.1} parent=51 // pred_check
          %p325 = pneg %p183
        $region62: #{tpu_custom_call.1} parent=51 // pred_check_branch
          %327 = sbr.rel (%p325) target = $region64
        $region63: #{tpu_custom_call.1} parent=51 // pred_region
          %328 = dma.done [#allocation6], 1024
        $region64: #{tpu_custom_call.1} parent=51 // pred_fallthru
          _
        %p329 = scmp.lt.s32.totalorder %s28, 1
        %s330 = scalar_select %p329, %s28, 1
        %s331 = smul.addr %s330, 54
        %s332 = smul.addr %s331, 4
        %s333 = scalar_lea.vmem %s0, %s332
        %p334 = pneg %p57
        %p335 = pneg %p54
        %p336 = pneg %p78
        %p337 = pneg %p75
        %p338 = pneg %p99
        %p339 = pneg %p96
        %p340 = pneg %p120
        %p341 = pneg %p117
        %p342 = pneg %p141
        %p343 = pneg %p138
        %p344 = pneg %p162
        %p345 = pneg %p159
        %p346 = pneg %p183
        %p347 = pneg %p180
        %p348 = pneg %p204
        %p349 = pneg %p201
        %p350 = pneg %p232
        %p351 = pneg %p229
        %s352 = sand.u32 %s219, 1
        %s353 = scalar_lea.sflag [#allocation4], %s352
        %s354 = sand.u32 %s219, 1
        %s355 = smul.addr %s354, 384
        %s356 = scalar_lea.vmem [#allocation8], %s355
        %p357 = scmp.lt.s32.totalorder %s28, 1
        %s358 = scalar_select %p357, %s28, 1
        %s359 = smul.addr %s358, 54
        %s360 = smul.addr %s359, 4
        %s361 = scalar_lea.vmem %s0, %s360
        %s362 = smul.u32 48, %s29
        %s364 = smul.u32 %s29, 384
        %s365 = sshra.s32 %s364, 3
        %s366 = sand.u32 %s364, 7
        %s367 = smul.addr %s365, 4
        %s368 = scalar_lea.vmem %s361, %s367
        %v369 = vld [vmem:[%s368] sm:$0xf]
        %v370 = vld [vmem:[%s368 + $0x4] sm:$0xf]
        %v371 = vld [vmem:[%s368 + $0x8] sm:$0xf]
        %v372 = vld [vmem:[%s368 + $0xc] sm:$0xf]
        %v373 = vld [vmem:[%s368 + $0x10] sm:$0xf]
        %v374 = vld [vmem:[%s368 + $0x14] sm:$0xf]
        %v375 = vld [vmem:[%s368 + $0x18] sm:$0xf]
        %v376 = vld [vmem:[%s368 + $0x1c] sm:$0xf]
        %v377 = vld [vmem:[%s368 + $0x20] sm:$0xf]
        %v378 = vld [vmem:[%s368 + $0x24] sm:$0xf]
        %v379 = vld [vmem:[%s368 + $0x28] sm:$0xf]
        %v380 = vld [vmem:[%s368 + $0x2c] sm:$0xf]
        %v381 = vld [vmem:[%s368 + $0x30] sm:$0xf]
        %v382 = vld [vmem:[%s368 + $0x34] sm:$0xf]
        %v383 = vld [vmem:[%s368 + $0x38] sm:$0xf]
        %v384 = vld [vmem:[%s368 + $0x3c] sm:$0xf]
        %v385 = vld [vmem:[%s368 + $0x40] sm:$0xf]
        %v386 = vld [vmem:[%s368 + $0x44] sm:$0xf]
        %v387 = vld [vmem:[%s368 + $0x48] sm:$0xf]
        %v388 = vld [vmem:[%s368 + $0x4c] sm:$0xf]
        %v389 = vld [vmem:[%s368 + $0x50] sm:$0xf]
        %v390 = vld [vmem:[%s368 + $0x54] sm:$0xf]
        %v391 = vld [vmem:[%s368 + $0x58] sm:$0xf]
        %v392 = vld [vmem:[%s368 + $0x5c] sm:$0xf]
        %v393 = vld [vmem:[%s368 + $0x60] sm:$0xf]
        %v394 = vld [vmem:[%s368 + $0x64] sm:$0xf]
        %v395 = vld [vmem:[%s368 + $0x68] sm:$0xf]
        %v396 = vld [vmem:[%s368 + $0x6c] sm:$0xf]
        %v397 = vld [vmem:[%s368 + $0x70] sm:$0xf]
        %v398 = vld [vmem:[%s368 + $0x74] sm:$0xf]
        %v399 = vld [vmem:[%s368 + $0x78] sm:$0xf]
        %v400 = vld [vmem:[%s368 + $0x7c] sm:$0xf]
        %v401 = vld [vmem:[%s368 + $0x80] sm:$0xf]
        %v402 = vld [vmem:[%s368 + $0x84] sm:$0xf]
        %v403 = vld [vmem:[%s368 + $0x88] sm:$0xf]
        %v404 = vld [vmem:[%s368 + $0x8c] sm:$0xf]
        %v405 = vld [vmem:[%s368 + $0x90] sm:$0xf]
        %v406 = vld [vmem:[%s368 + $0x94] sm:$0xf]
        %v407 = vld [vmem:[%s368 + $0x98] sm:$0xf]
        %v408 = vld [vmem:[%s368 + $0x9c] sm:$0xf]
        %v409 = vld [vmem:[%s368 + $0xa0] sm:$0xf]
        %v410 = vld [vmem:[%s368 + $0xa4] sm:$0xf]
        %v411 = vld [vmem:[%s368 + $0xa8] sm:$0xf]
        %v412 = vld [vmem:[%s368 + $0xac] sm:$0xf]
        %v413 = vld [vmem:[%s368 + $0xb0] sm:$0xf]
        %v414 = vld [vmem:[%s368 + $0xb4] sm:$0xf]
        %v415 = vld [vmem:[%s368 + $0xb8] sm:$0xf]
        %v416 = vld [vmem:[%s368 + $0xbc] sm:$0xf]
        %v417 = vld [vmem:[%s368 + $0xc0] sm:$0xf]
        %v418 = vld [vmem:[%s368 + $0xc4] sm:$0xf]
        %v419 = vld [vmem:[%s368 + $0xc8] sm:$0xf]
        %v420 = vld [vmem:[%s368 + $0xcc] sm:$0xf]
        %v421 = vld [vmem:[%s368 + $0xd0] sm:$0xf]
        %v422 = vld [vmem:[%s368 + $0xd4] sm:$0xf]
        %s423 = scalar_lea.vmem %s1, %s364
        %v424 = vld [vmem:[%s423] sm:$0xff]
        %v425 = vld [vmem:[%s423 + $0x8] sm:$0xff]
        %v426 = vld [vmem:[%s423 + $0x10] sm:$0xff]
        %v427 = vld [vmem:[%s423 + $0x18] sm:$0xff]
        %v428 = vld [vmem:[%s423 + $0x20] sm:$0xff]
        %v429 = vld [vmem:[%s423 + $0x28] sm:$0xff]
        %v430 = vld [vmem:[%s423 + $0x30] sm:$0xff]
        %v431 = vld [vmem:[%s423 + $0x38] sm:$0xff]
        %v432 = vld [vmem:[%s423 + $0x40] sm:$0xff]
        %v433 = vld [vmem:[%s423 + $0x48] sm:$0xff]
        %v434 = vld [vmem:[%s423 + $0x50] sm:$0xff]
        %v435 = vld [vmem:[%s423 + $0x58] sm:$0xff]
        %v436 = vld [vmem:[%s423 + $0x60] sm:$0xff]
        %v437 = vld [vmem:[%s423 + $0x68] sm:$0xff]
        %v438 = vld [vmem:[%s423 + $0x70] sm:$0xff]
        %v439 = vld [vmem:[%s423 + $0x78] sm:$0xff]
        %v440 = vld [vmem:[%s423 + $0x80] sm:$0xff]
        %v441 = vld [vmem:[%s423 + $0x88] sm:$0xff]
        %v442 = vld [vmem:[%s423 + $0x90] sm:$0xff]
        %v443 = vld [vmem:[%s423 + $0x98] sm:$0xff]
        %v444 = vld [vmem:[%s423 + $0xa0] sm:$0xff]
        %v445 = vld [vmem:[%s423 + $0xa8] sm:$0xff]
        %v446 = vld [vmem:[%s423 + $0xb0] sm:$0xff]
        %v447 = vld [vmem:[%s423 + $0xb8] sm:$0xff]
        %v448 = vld [vmem:[%s423 + $0xc0] sm:$0xff]
        %v449 = vld [vmem:[%s423 + $0xc8] sm:$0xff]
        %v450 = vld [vmem:[%s423 + $0xd0] sm:$0xff]
        %v451 = vld [vmem:[%s423 + $0xd8] sm:$0xff]
        %v452 = vld [vmem:[%s423 + $0xe0] sm:$0xff]
        %v453 = vld [vmem:[%s423 + $0xe8] sm:$0xff]
        %v454 = vld [vmem:[%s423 + $0xf0] sm:$0xff]
        %v455 = vld [vmem:[%s423 + $0xf8] sm:$0xff]
        %v456 = vld [vmem:[%s423 + $0x100] sm:$0xff]
        %v457 = vld [vmem:[%s423 + $0x108] sm:$0xff]
        %v458 = vld [vmem:[%s423 + $0x110] sm:$0xff]
        %v459 = vld [vmem:[%s423 + $0x118] sm:$0xff]
        %v460 = vld [vmem:[%s423 + $0x120] sm:$0xff]
        %v461 = vld [vmem:[%s423 + $0x128] sm:$0xff]
        %v462 = vld [vmem:[%s423 + $0x130] sm:$0xff]
        %v463 = vld [vmem:[%s423 + $0x138] sm:$0xff]
        %v464 = vld [vmem:[%s423 + $0x140] sm:$0xff]
        %v465 = vld [vmem:[%s423 + $0x148] sm:$0xff]
        %v466 = vld [vmem:[%s423 + $0x150] sm:$0xff]
        %v467 = vld [vmem:[%s423 + $0x158] sm:$0xff]
        %v468 = vld [vmem:[%s423 + $0x160] sm:$0xff]
        %v469 = vld [vmem:[%s423 + $0x168] sm:$0xff]
        %v470 = vld [vmem:[%s423 + $0x170] sm:$0xff]
        %v471 = vld [vmem:[%s423 + $0x178] sm:$0xff]
        %v472 = vld [vmem:[%s423 + $0x180] sm:$0xff]
        %v473 = vld [vmem:[%s423 + $0x188] sm:$0xff]
        %v474 = vld [vmem:[%s423 + $0x190] sm:$0xff]
        %v475 = vld [vmem:[%s423 + $0x198] sm:$0xff]
        %v476 = vld [vmem:[%s423 + $0x1a0] sm:$0xff]
        %v477 = vld [vmem:[%s423 + $0x1a8] sm:$0xff]
        %v478 = vld [vmem:[#allocation2] sm:$0xf]
        %v479 = vld [vmem:[#allocation2 + $0x4] sm:$0xf]
        %v480 = vld [vmem:[#allocation2 + $0x8] sm:$0xf]
        %v481 = vld [vmem:[#allocation2 + $0xc] sm:$0xf]
        %v482 = vld [vmem:[#allocation2 + $0x10] sm:$0xf]
        %v483 = vld [vmem:[#allocation2 + $0x14] sm:$0xf]
        %v484 = vld [vmem:[#allocation2 + $0x18] sm:$0xf]
        %v485 = vld [vmem:[#allocation2 + $0x1c] sm:$0xf]
        %v486 = vld [vmem:[#allocation2 + $0x20] sm:$0xf]
        %v487 = vld [vmem:[#allocation2 + $0x24] sm:$0xf]
        %v488 = vld [vmem:[#allocation2 + $0x28] sm:$0xf]
        %v489 = vld [vmem:[#allocation2 + $0x2c] sm:$0xf]
        %v490 = vld [vmem:[#allocation2 + $0x30] sm:$0xf]
        %v491 = vld [vmem:[#allocation2 + $0x34] sm:$0xf]
        %v492 = vld [vmem:[#allocation2 + $0x38] sm:$0xf]
        %v493 = vld [vmem:[#allocation2 + $0x3c] sm:$0xf]
        %v494 = vld [vmem:[%s3] sm:$0x1]
        %v496 = vlaneseq
        %v497 = vshrl.u32 %v496, 7
        %v498 = vsub.s32 0, %v497
        %v499 = vrot.slane %v494, %v498
        %v555 = vunpack.c.l.b16 %v369
        %v556 = vunpack.c.l.b16 %v370
        %v557 = vunpack.c.l.b16 %v371
        %v558 = vunpack.c.l.b16 %v372
        %v559 = vunpack.c.l.b16 %v373
        %v560 = vunpack.c.l.b16 %v374
        %v561 = vunpack.c.l.b16 %v375
        %v562 = vunpack.c.l.b16 %v376
        %v563 = vunpack.c.l.b16 %v377
        %v564 = vunpack.c.l.b16 %v378
        %v565 = vunpack.c.l.b16 %v379
        %v566 = vunpack.c.l.b16 %v380
        %v567 = vunpack.c.l.b16 %v381
        %v568 = vunpack.c.l.b16 %v382
        %v569 = vunpack.c.l.b16 %v383
        %v570 = vunpack.c.l.b16 %v384
        %v571 = vunpack.c.l.b16 %v385
        %v572 = vunpack.c.l.b16 %v386
        %v573 = vunpack.c.l.b16 %v387
        %v574 = vunpack.c.l.b16 %v388
        %v575 = vunpack.c.l.b16 %v389
        %v576 = vunpack.c.l.b16 %v390
        %v577 = vunpack.c.l.b16 %v391
        %v578 = vunpack.c.l.b16 %v392
        %v579 = vunpack.c.l.b16 %v393
        %v580 = vunpack.c.l.b16 %v394
        %v581 = vunpack.c.l.b16 %v395
        %v582 = vunpack.c.l.b16 %v396
        %v583 = vunpack.c.l.b16 %v397
        %v584 = vunpack.c.l.b16 %v398
        %v585 = vunpack.c.l.b16 %v399
        %v586 = vunpack.c.l.b16 %v400
        %v587 = vunpack.c.l.b16 %v401
        %v588 = vunpack.c.l.b16 %v402
        %v589 = vunpack.c.l.b16 %v403
        %v590 = vunpack.c.l.b16 %v404
        %v591 = vunpack.c.l.b16 %v405
        %v592 = vunpack.c.l.b16 %v406
        %v593 = vunpack.c.l.b16 %v407
        %v594 = vunpack.c.l.b16 %v408
        %v595 = vunpack.c.l.b16 %v409
        %v596 = vunpack.c.l.b16 %v410
        %v597 = vunpack.c.l.b16 %v411
        %v598 = vunpack.c.l.b16 %v412
        %v599 = vunpack.c.l.b16 %v413
        %v600 = vunpack.c.l.b16 %v414
        %v601 = vunpack.c.l.b16 %v415
        %v602 = vunpack.c.l.b16 %v416
        %v603 = vunpack.c.l.b16 %v417
        %v604 = vunpack.c.l.b16 %v418
        %v605 = vunpack.c.l.b16 %v419
        %v606 = vunpack.c.l.b16 %v420
        %v607 = vunpack.c.l.b16 %v421
        %v608 = vunpack.c.l.b16 %v422
        %v609 = vpack.c.b16 %v556, %v555
        %v610 = vpack.c.b16 %v558, %v557
        %v611 = vpack.c.b16 %v560, %v559
        %v612 = vpack.c.b16 %v562, %v561
        %v613 = vpack.c.b16 %v564, %v563
        %v614 = vpack.c.b16 %v566, %v565
        %v615 = vpack.c.b16 %v568, %v567
        %v616 = vpack.c.b16 %v570, %v569
        %v617 = vpack.c.b16 %v572, %v571
        %v618 = vpack.c.b16 %v574, %v573
        %v619 = vpack.c.b16 %v576, %v575
        %v620 = vpack.c.b16 %v578, %v577
        %v621 = vpack.c.b16 %v580, %v579
        %v622 = vpack.c.b16 %v582, %v581
        %v623 = vpack.c.b16 %v584, %v583
        %v624 = vpack.c.b16 %v586, %v585
        %v625 = vpack.c.b16 %v588, %v587
        %v626 = vpack.c.b16 %v590, %v589
        %v627 = vpack.c.b16 %v592, %v591
        %v628 = vpack.c.b16 %v594, %v593
        %v629 = vpack.c.b16 %v596, %v595
        %v630 = vpack.c.b16 %v598, %v597
        %v631 = vpack.c.b16 %v600, %v599
        %v632 = vpack.c.b16 %v602, %v601
        %v633 = vpack.c.b16 %v604, %v603
        %v634 = vpack.c.b16 %v606, %v605
        %v635 = vpack.c.b16 %v608, %v607
        %v679 = vunpack.c.l.b16 %v478
        %v680 = vunpack.c.l.b16 %v479
        %v681 = vunpack.c.l.b16 %v480
        %v682 = vunpack.c.l.b16 %v481
        %v683 = vunpack.c.l.b16 %v482
        %v684 = vunpack.c.l.b16 %v483
        %v685 = vunpack.c.l.b16 %v484
        %v686 = vunpack.c.l.b16 %v485
        %v687 = vunpack.c.l.b16 %v486
        %v688 = vunpack.c.l.b16 %v487
        %v689 = vunpack.c.l.b16 %v488
        %v690 = vunpack.c.l.b16 %v489
        %v691 = vunpack.c.l.b16 %v490
        %v692 = vunpack.c.l.b16 %v491
        %v693 = vunpack.c.l.b16 %v492
        %v694 = vunpack.c.l.b16 %v493
        %v695 = vpack.c.b16 %v680, %v679
        %v696 = vpack.c.b16 %v682, %v681
        %v697 = vpack.c.b16 %v684, %v683
        %v698 = vpack.c.b16 %v686, %v685
        %v699 = vpack.c.b16 %v688, %v687
        %v700 = vpack.c.b16 %v690, %v689
        %v701 = vpack.c.b16 %v692, %v691
        %v702 = vpack.c.b16 %v694, %v693
        %711 = vmatprep.subr.bf16.mxu0 0
        %712 = vmatpush1.bf16.msra.mxu0 %v695
        %713 = vmatprep.subr.bf16.mxu0 0
        %714 = vmatpush1.bf16.msra.mxu0 %v696
        %715 = vmatprep.subr.bf16.mxu0 0
        %716 = vmatpush1.bf16.msra.mxu0 %v697
        %717 = vmatprep.subr.bf16.mxu0 0
        %718 = vmatpush1.bf16.msra.mxu0 %v698
        %719 = vmatprep.subr.bf16.mxu0 0
        %720 = vmatpush1.bf16.msra.mxu0 %v699
        %721 = vmatprep.subr.bf16.mxu0 0
        %722 = vmatpush1.bf16.msra.mxu0 %v700
        %723 = vmatprep.subr.bf16.mxu0 0
        %724 = vmatpush1.bf16.msra.mxu0 %v701
        %725 = vmatprep.subr.bf16.mxu0 0
        %726 = vmatpush1.bf16.msra.mxu0 %v702
        %727 = vmatprep.subr.bf16.mxu0 0
        %728 = vmatpush1.bf16.msra.mxu0 0
        %729 = vmatprep.subr.bf16.mxu0 0
        %730 = vmatpush1.bf16.msra.mxu0 0
        %731 = vmatprep.subr.bf16.mxu0 0
        %732 = vmatpush1.bf16.msra.mxu0 0
        %733 = vmatprep.subr.bf16.mxu0 0
        %734 = vmatpush1.bf16.msra.mxu0 0
        %735 = vmatprep.subr.bf16.mxu0 0
        %736 = vmatpush1.bf16.msra.mxu0 0
        %737 = vmatprep.subr.bf16.mxu0 0
        %738 = vmatpush1.bf16.msra.mxu0 0
        %739 = vmatprep.subr.bf16.mxu0 0
        %740 = vmatpush1.bf16.msra.mxu0 0
        %741 = vmatprep.subr.bf16.mxu0 0
        %742 = vmatpush1.bf16.msra.mxu0 0
        %743 = vmatprep.mubr.bf16.mxu0 0
        %744 = vmatmul.mubr.bf16.gmra.mrb[0].mxu0 %v609
        %v745 = vpop.f32.mrb[0].mxu0
        %v746 = vadd.f32 %v499, %v745
        %v747 = vpop.f32.mrb[0].mxu0
        %v748 = vpop.f32.mrb[0].mxu0
        %v749 = vadd.f32 %v499, %v748
        %v750 = vpop.f32.mrb[0].mxu0
        %751 = vmatprep.mubr.bf16.mxu0 0
        %752 = vmatmul.mubr.bf16.gmra.mrb[0].mxu0 %v610
        %v753 = vpop.f32.mrb[0].mxu0
        %v754 = vadd.f32 %v499, %v753
        %v755 = vpop.f32.mrb[0].mxu0
        %v756 = vpop.f32.mrb[0].mxu0
        %v757 = vadd.f32 %v499, %v756
        %v758 = vpop.f32.mrb[0].mxu0
        %759 = vmatprep.mubr.bf16.mxu0 0
        %760 = vmatmul.mubr.bf16.gmra.mrb[0].mxu0 %v611
        %v761 = vpop.f32.mrb[0].mxu0
        %v762 = vadd.f32 %v499, %v761
        %v763 = vpop.f32.mrb[0].mxu0
        %v764 = vpop.f32.mrb[0].mxu0
        %v765 = vadd.f32 %v499, %v764
        %v766 = vpop.f32.mrb[0].mxu0
        %767 = vmatprep.mubr.bf16.mxu0 0
        %768 = vmatmul.mubr.bf16.gmra.mrb[0].mxu0 %v612
        %v769 = vpop.f32.mrb[0].mxu0
        %v770 = vadd.f32 %v499, %v769
        %v771 = vpop.f32.mrb[0].mxu0
        %v772 = vpop.f32.mrb[0].mxu0
        %v773 = vadd.f32 %v499, %v772
        %v774 = vpop.f32.mrb[0].mxu0
        %775 = vmatprep.mubr.bf16.mxu0 0
        %776 = vmatmul.mubr.bf16.gmra.mrb[0].mxu0 %v613
        %v777 = vpop.f32.mrb[0].mxu0
        %v778 = vadd.f32 %v499, %v777
        %v779 = vpop.f32.mrb[0].mxu0
        %v780 = vpop.f32.mrb[0].mxu0
        %v781 = vadd.f32 %v499, %v780
        %v782 = vpop.f32.mrb[0].mxu0
        %783 = vmatprep.mubr.bf16.mxu0 0
        %784 = vmatmul.mubr.bf16.gmra.mrb[0].mxu0 %v614
        %v785 = vpop.f32.mrb[0].mxu0
        %v786 = vadd.f32 %v499, %v785
        %v787 = vpop.f32.mrb[0].mxu0
        %v788 = vpop.f32.mrb[0].mxu0
        %v789 = vadd.f32 %v499, %v788
        %v790 = vpop.f32.mrb[0].mxu0
        %791 = vmatprep.mubr.bf16.mxu0 0
        %792 = vmatmul.mubr.bf16.gmra.mrb[0].mxu0 %v615
        %v793 = vpop.f32.mrb[0].mxu0
        %v794 = vadd.f32 %v499, %v793
        %v795 = vpop.f32.mrb[0].mxu0
        %v796 = vpop.f32.mrb[0].mxu0
        %v797 = vadd.f32 %v499, %v796
        %v798 = vpop.f32.mrb[0].mxu0
        %799 = vmatprep.mubr.bf16.mxu0 0
        %800 = vmatmul.mubr.bf16.gmra.mrb[0].mxu0 %v616
        %v801 = vpop.f32.mrb[0].mxu0
        %v802 = vadd.f32 %v499, %v801
        %v803 = vpop.f32.mrb[0].mxu0
        %v804 = vpop.f32.mrb[0].mxu0
        %v805 = vadd.f32 %v499, %v804
        %v806 = vpop.f32.mrb[0].mxu0
        %807 = vmatprep.mubr.bf16.mxu0 0
        %808 = vmatmul.mubr.bf16.gmra.mrb[0].mxu0 %v617
        %v809 = vpop.f32.mrb[0].mxu0
        %v810 = vadd.f32 %v499, %v809
        %v811 = vpop.f32.mrb[0].mxu0
        %v812 = vpop.f32.mrb[0].mxu0
        %v813 = vadd.f32 %v499, %v812
        %v814 = vpop.f32.mrb[0].mxu0
        %815 = vmatprep.mubr.bf16.mxu0 0
        %816 = vmatmul.mubr.bf16.gmra.mrb[0].mxu0 %v618
        %v817 = vpop.f32.mrb[0].mxu0
        %v818 = vadd.f32 %v499, %v817
        %v819 = vpop.f32.mrb[0].mxu0
        %v820 = vpop.f32.mrb[0].mxu0
        %v821 = vadd.f32 %v499, %v820
        %v822 = vpop.f32.mrb[0].mxu0
        %823 = vmatprep.mubr.bf16.mxu0 0
        %824 = vmatmul.mubr.bf16.gmra.mrb[0].mxu0 %v619
        %v825 = vpop.f32.mrb[0].mxu0
        %v826 = vadd.f32 %v499, %v825
        %v827 = vpop.f32.mrb[0].mxu0
        %v828 = vpop.f32.mrb[0].mxu0
        %v829 = vadd.f32 %v499, %v828
        %v830 = vpop.f32.mrb[0].mxu0
        %831 = vmatprep.mubr.bf16.mxu0 0
        %832 = vmatmul.mubr.bf16.gmra.mrb[0].mxu0 %v620
        %v833 = vpop.f32.mrb[0].mxu0
        %v834 = vadd.f32 %v499, %v833
        %v835 = vpop.f32.mrb[0].mxu0
        %v836 = vpop.f32.mrb[0].mxu0
        %v837 = vadd.f32 %v499, %v836
        %v838 = vpop.f32.mrb[0].mxu0
        %839 = vmatprep.mubr.bf16.mxu0 0
        %840 = vmatmul.mubr.bf16.gmra.mrb[0].mxu0 %v621
        %v841 = vpop.f32.mrb[0].mxu0
        %v842 = vadd.f32 %v499, %v841
        %v843 = vpop.f32.mrb[0].mxu0
        %v844 = vpop.f32.mrb[0].mxu0
        %v845 = vadd.f32 %v499, %v844
        %v846 = vpop.f32.mrb[0].mxu0
        %847 = vmatprep.mubr.bf16.mxu0 0
        %848 = vmatmul.mubr.bf16.gmra.mrb[0].mxu0 %v622
        %v849 = vpop.f32.mrb[0].mxu0
        %v850 = vadd.f32 %v499, %v849
        %v851 = vpop.f32.mrb[0].mxu0
        %v852 = vpop.f32.mrb[0].mxu0
        %v853 = vadd.f32 %v499, %v852
        %v854 = vpop.f32.mrb[0].mxu0
        %855 = vmatprep.mubr.bf16.mxu0 0
        %856 = vmatmul.mubr.bf16.gmra.mrb[0].mxu0 %v623
        %v857 = vpop.f32.mrb[0].mxu0
        %v858 = vadd.f32 %v499, %v857
        %v859 = vpop.f32.mrb[0].mxu0
        %v860 = vpop.f32.mrb[0].mxu0
        %v861 = vadd.f32 %v499, %v860
        %v862 = vpop.f32.mrb[0].mxu0
        %863 = vmatprep.mubr.bf16.mxu0 0
        %864 = vmatmul.mubr.bf16.gmra.mrb[0].mxu0 %v624
        %v865 = vpop.f32.mrb[0].mxu0
        %v866 = vadd.f32 %v499, %v865
        %v867 = vpop.f32.mrb[0].mxu0
        %v868 = vpop.f32.mrb[0].mxu0
        %v869 = vadd.f32 %v499, %v868
        %v870 = vpop.f32.mrb[0].mxu0
        %871 = vmatprep.mubr.bf16.mxu0 0
        %872 = vmatmul.mubr.bf16.gmra.mrb[0].mxu0 %v625
        %v873 = vpop.f32.mrb[0].mxu0
        %v874 = vadd.f32 %v499, %v873
        %v875 = vpop.f32.mrb[0].mxu0
        %v876 = vpop.f32.mrb[0].mxu0
        %v877 = vadd.f32 %v499, %v876
        %v878 = vpop.f32.mrb[0].mxu0
        %879 = vmatprep.mubr.bf16.mxu0 0
        %880 = vmatmul.mubr.bf16.gmra.mrb[0].mxu0 %v626
        %v881 = vpop.f32.mrb[0].mxu0
        %v882 = vadd.f32 %v499, %v881
        %v883 = vpop.f32.mrb[0].mxu0
        %v884 = vpop.f32.mrb[0].mxu0
        %v885 = vadd.f32 %v499, %v884
        %v886 = vpop.f32.mrb[0].mxu0
        %887 = vmatprep.mubr.bf16.mxu0 0
        %888 = vmatmul.mubr.bf16.gmra.mrb[0].mxu0 %v627
        %v889 = vpop.f32.mrb[0].mxu0
        %v890 = vadd.f32 %v499, %v889
        %v891 = vpop.f32.mrb[0].mxu0
        %v892 = vpop.f32.mrb[0].mxu0
        %v893 = vadd.f32 %v499, %v892
        %v894 = vpop.f32.mrb[0].mxu0
        %895 = vmatprep.mubr.bf16.mxu0 0
        %896 = vmatmul.mubr.bf16.gmra.mrb[0].mxu0 %v628
        %v897 = vpop.f32.mrb[0].mxu0
        %v898 = vadd.f32 %v499, %v897
        %v899 = vpop.f32.mrb[0].mxu0
        %v900 = vpop.f32.mrb[0].mxu0
        %v901 = vadd.f32 %v499, %v900
        %v902 = vpop.f32.mrb[0].mxu0
        %903 = vmatprep.mubr.bf16.mxu0 0
        %904 = vmatmul.mubr.bf16.gmra.mrb[0].mxu0 %v629
        %v905 = vpop.f32.mrb[0].mxu0
        %v906 = vadd.f32 %v499, %v905
        %v907 = vpop.f32.mrb[0].mxu0
        %v908 = vpop.f32.mrb[0].mxu0
        %v909 = vadd.f32 %v499, %v908
        %v910 = vpop.f32.mrb[0].mxu0
        %911 = vmatprep.mubr.bf16.mxu0 0
        %912 = vmatmul.mubr.bf16.gmra.mrb[0].mxu0 %v630
        %v913 = vpop.f32.mrb[0].mxu0
        %v914 = vadd.f32 %v499, %v913
        %v915 = vpop.f32.mrb[0].mxu0
        %v916 = vpop.f32.mrb[0].mxu0
        %v917 = vadd.f32 %v499, %v916
        %v918 = vpop.f32.mrb[0].mxu0
        %919 = vmatprep.mubr.bf16.mxu0 0
        %920 = vmatmul.mubr.bf16.gmra.mrb[0].mxu0 %v631
        %v921 = vpop.f32.mrb[0].mxu0
        %v922 = vadd.f32 %v499, %v921
        %v923 = vpop.f32.mrb[0].mxu0
        %v924 = vpop.f32.mrb[0].mxu0
        %v925 = vadd.f32 %v499, %v924
        %v926 = vpop.f32.mrb[0].mxu0
        %927 = vmatprep.mubr.bf16.mxu0 0
        %928 = vmatmul.mubr.bf16.gmra.mrb[0].mxu0 %v632
        %v929 = vpop.f32.mrb[0].mxu0
        %v930 = vadd.f32 %v499, %v929
        %v931 = vpop.f32.mrb[0].mxu0
        %v932 = vpop.f32.mrb[0].mxu0
        %v933 = vadd.f32 %v499, %v932
        %v934 = vpop.f32.mrb[0].mxu0
        %935 = vmatprep.mubr.bf16.mxu0 0
        %936 = vmatmul.mubr.bf16.gmra.mrb[0].mxu0 %v633
        %v937 = vpop.f32.mrb[0].mxu0
        %v938 = vadd.f32 %v499, %v937
        %v939 = vpop.f32.mrb[0].mxu0
        %v940 = vpop.f32.mrb[0].mxu0
        %v941 = vadd.f32 %v499, %v940
        %v942 = vpop.f32.mrb[0].mxu0
        %943 = vmatprep.mubr.bf16.mxu0 0
        %944 = vmatmul.mubr.bf16.gmra.mrb[0].mxu0 %v634
        %v945 = vpop.f32.mrb[0].mxu0
        %v946 = vadd.f32 %v499, %v945
        %v947 = vpop.f32.mrb[0].mxu0
        %v948 = vpop.f32.mrb[0].mxu0
        %v949 = vadd.f32 %v499, %v948
        %v950 = vpop.f32.mrb[0].mxu0
        %951 = vmatprep.mubr.bf16.mxu0 0
        %952 = vmatmul.mubr.bf16.gmra.mrb[0].mxu0 %v635
        %v953 = vpop.f32.mrb[0].mxu0
        %v954 = vadd.f32 %v499, %v953
        %v955 = vpop.f32.mrb[0].mxu0
        %v956 = vpop.f32.mrb[0].mxu0
        %v957 = vadd.f32 %v499, %v956
        %v958 = vpop.f32.mrb[0].mxu0
        %959 = vdwg.mxu0
        %v960 = vmax.f32 %v746, 0.0
        %v961 = vmax.f32 %v749, 0.0
        %v962 = vmax.f32 %v754, 0.0
        %v963 = vmax.f32 %v757, 0.0
        %v964 = vmax.f32 %v762, 0.0
        %v965 = vmax.f32 %v765, 0.0
        %v966 = vmax.f32 %v770, 0.0
        %v967 = vmax.f32 %v773, 0.0
        %v968 = vmax.f32 %v778, 0.0
        %v969 = vmax.f32 %v781, 0.0
        %v970 = vmax.f32 %v786, 0.0
        %v971 = vmax.f32 %v789, 0.0
        %v972 = vmax.f32 %v794, 0.0
        %v973 = vmax.f32 %v797, 0.0
        %v974 = vmax.f32 %v802, 0.0
        %v975 = vmax.f32 %v805, 0.0
        %v976 = vmax.f32 %v810, 0.0
        %v977 = vmax.f32 %v813, 0.0
        %v978 = vmax.f32 %v818, 0.0
        %v979 = vmax.f32 %v821, 0.0
        %v980 = vmax.f32 %v826, 0.0
        %v981 = vmax.f32 %v829, 0.0
        %v982 = vmax.f32 %v834, 0.0
        %v983 = vmax.f32 %v837, 0.0
        %v984 = vmax.f32 %v842, 0.0
        %v985 = vmax.f32 %v845, 0.0
        %v986 = vmax.f32 %v850, 0.0
        %v987 = vmax.f32 %v853, 0.0
        %v988 = vmax.f32 %v858, 0.0
        %v989 = vmax.f32 %v861, 0.0
        %v990 = vmax.f32 %v866, 0.0
        %v991 = vmax.f32 %v869, 0.0
        %v992 = vmax.f32 %v874, 0.0
        %v993 = vmax.f32 %v877, 0.0
        %v994 = vmax.f32 %v882, 0.0
        %v995 = vmax.f32 %v885, 0.0
        %v996 = vmax.f32 %v890, 0.0
        %v997 = vmax.f32 %v893, 0.0
        %v998 = vmax.f32 %v898, 0.0
        %v999 = vmax.f32 %v901, 0.0
        %v1000 = vmax.f32 %v906, 0.0
        %v1001 = vmax.f32 %v909, 0.0
        %v1002 = vmax.f32 %v914, 0.0
        %v1003 = vmax.f32 %v917, 0.0
        %v1004 = vmax.f32 %v922, 0.0
        %v1005 = vmax.f32 %v925, 0.0
        %v1006 = vmax.f32 %v930, 0.0
        %v1007 = vmax.f32 %v933, 0.0
        %v1008 = vmax.f32 %v938, 0.0
        %v1009 = vmax.f32 %v941, 0.0
        %v1010 = vmax.f32 %v946, 0.0
        %v1011 = vmax.f32 %v949, 0.0
        %v1012 = vmax.f32 %v954, 0.0
        %v1013 = vmax.f32 %v957, 0.0
        %1015 = vset.pattern.permute.xlu0 0
        %1016 = vperm.xlu0 %1015, %v424
        %v1017 = vpop.permute.xlu0 %1016
        %1020 = vset.pattern.permute.xlu0 0
        %1021 = vperm.xlu0 %1020, %v425
        %v1022 = vpop.permute.xlu0 %1021
        %1025 = vset.pattern.permute.xlu0 0
        %1026 = vperm.xlu0 %1025, %v426
        %v1027 = vpop.permute.xlu0 %1026
        %1030 = vset.pattern.permute.xlu0 0
        %1031 = vperm.xlu0 %1030, %v427
        %v1032 = vpop.permute.xlu0 %1031
        %1035 = vset.pattern.permute.xlu0 0
        %1036 = vperm.xlu0 %1035, %v428
        %v1037 = vpop.permute.xlu0 %1036
        %1040 = vset.pattern.permute.xlu0 0
        %1041 = vperm.xlu0 %1040, %v429
        %v1042 = vpop.permute.xlu0 %1041
        %1045 = vset.pattern.permute.xlu0 0
        %1046 = vperm.xlu0 %1045, %v430
        %v1047 = vpop.permute.xlu0 %1046
        %1050 = vset.pattern.permute.xlu0 0
        %1051 = vperm.xlu0 %1050, %v431
        %v1052 = vpop.permute.xlu0 %1051
        %1055 = vset.pattern.permute.xlu0 0
        %1056 = vperm.xlu0 %1055, %v432
        %v1057 = vpop.permute.xlu0 %1056
        %1060 = vset.pattern.permute.xlu0 0
        %1061 = vperm.xlu0 %1060, %v433
        %v1062 = vpop.permute.xlu0 %1061
        %1065 = vset.pattern.permute.xlu0 0
        %1066 = vperm.xlu0 %1065, %v434
        %v1067 = vpop.permute.xlu0 %1066
        %1070 = vset.pattern.permute.xlu0 0
        %1071 = vperm.xlu0 %1070, %v435
        %v1072 = vpop.permute.xlu0 %1071
        %1075 = vset.pattern.permute.xlu0 0
        %1076 = vperm.xlu0 %1075, %v436
        %v1077 = vpop.permute.xlu0 %1076
        %1080 = vset.pattern.permute.xlu0 0
        %1081 = vperm.xlu0 %1080, %v437
        %v1082 = vpop.permute.xlu0 %1081
        %1085 = vset.pattern.permute.xlu0 0
        %1086 = vperm.xlu0 %1085, %v438
        %v1087 = vpop.permute.xlu0 %1086
        %1090 = vset.pattern.permute.xlu0 0
        %1091 = vperm.xlu0 %1090, %v439
        %v1092 = vpop.permute.xlu0 %1091
        %1095 = vset.pattern.permute.xlu0 0
        %1096 = vperm.xlu0 %1095, %v440
        %v1097 = vpop.permute.xlu0 %1096
        %1100 = vset.pattern.permute.xlu0 0
        %1101 = vperm.xlu0 %1100, %v441
        %v1102 = vpop.permute.xlu0 %1101
        %1105 = vset.pattern.permute.xlu0 0
        %1106 = vperm.xlu0 %1105, %v442
        %v1107 = vpop.permute.xlu0 %1106
        %1110 = vset.pattern.permute.xlu0 0
        %1111 = vperm.xlu0 %1110, %v443
        %v1112 = vpop.permute.xlu0 %1111
        %1115 = vset.pattern.permute.xlu0 0
        %1116 = vperm.xlu0 %1115, %v444
        %v1117 = vpop.permute.xlu0 %1116
        %1120 = vset.pattern.permute.xlu0 0
        %1121 = vperm.xlu0 %1120, %v445
        %v1122 = vpop.permute.xlu0 %1121
        %1125 = vset.pattern.permute.xlu0 0
        %1126 = vperm.xlu0 %1125, %v446
        %v1127 = vpop.permute.xlu0 %1126
        %1130 = vset.pattern.permute.xlu0 0
        %1131 = vperm.xlu0 %1130, %v447
        %v1132 = vpop.permute.xlu0 %1131
        %1135 = vset.pattern.permute.xlu0 0
        %1136 = vperm.xlu0 %1135, %v448
        %v1137 = vpop.permute.xlu0 %1136
        %1140 = vset.pattern.permute.xlu0 0
        %1141 = vperm.xlu0 %1140, %v449
        %v1142 = vpop.permute.xlu0 %1141
        %1145 = vset.pattern.permute.xlu0 0
        %1146 = vperm.xlu0 %1145, %v450
        %v1147 = vpop.permute.xlu0 %1146
        %1150 = vset.pattern.permute.xlu0 0
        %1151 = vperm.xlu0 %1150, %v451
        %v1152 = vpop.permute.xlu0 %1151
        %1155 = vset.pattern.permute.xlu0 0
        %1156 = vperm.xlu0 %1155, %v452
        %v1157 = vpop.permute.xlu0 %1156
        %1160 = vset.pattern.permute.xlu0 0
        %1161 = vperm.xlu0 %1160, %v453
        %v1162 = vpop.permute.xlu0 %1161
        %1165 = vset.pattern.permute.xlu0 0
        %1166 = vperm.xlu0 %1165, %v454
        %v1167 = vpop.permute.xlu0 %1166
        %1170 = vset.pattern.permute.xlu0 0
        %1171 = vperm.xlu0 %1170, %v455
        %v1172 = vpop.permute.xlu0 %1171
        %1175 = vset.pattern.permute.xlu0 0
        %1176 = vperm.xlu0 %1175, %v456
        %v1177 = vpop.permute.xlu0 %1176
        %1180 = vset.pattern.permute.xlu0 0
        %1181 = vperm.xlu0 %1180, %v457
        %v1182 = vpop.permute.xlu0 %1181
        %1185 = vset.pattern.permute.xlu0 0
        %1186 = vperm.xlu0 %1185, %v458
        %v1187 = vpop.permute.xlu0 %1186
        %1190 = vset.pattern.permute.xlu0 0
        %1191 = vperm.xlu0 %1190, %v459
        %v1192 = vpop.permute.xlu0 %1191
        %1195 = vset.pattern.permute.xlu0 0
        %1196 = vperm.xlu0 %1195, %v460
        %v1197 = vpop.permute.xlu0 %1196
        %1200 = vset.pattern.permute.xlu0 0
        %1201 = vperm.xlu0 %1200, %v461
        %v1202 = vpop.permute.xlu0 %1201
        %1205 = vset.pattern.permute.xlu0 0
        %1206 = vperm.xlu0 %1205, %v462
        %v1207 = vpop.permute.xlu0 %1206
        %1210 = vset.pattern.permute.xlu0 0
        %1211 = vperm.xlu0 %1210, %v463
        %v1212 = vpop.permute.xlu0 %1211
        %1215 = vset.pattern.permute.xlu0 0
        %1216 = vperm.xlu0 %1215, %v464
        %v1217 = vpop.permute.xlu0 %1216
        %1220 = vset.pattern.permute.xlu0 0
        %1221 = vperm.xlu0 %1220, %v465
        %v1222 = vpop.permute.xlu0 %1221
        %1225 = vset.pattern.permute.xlu0 0
        %1226 = vperm.xlu0 %1225, %v466
        %v1227 = vpop.permute.xlu0 %1226
        %1230 = vset.pattern.permute.xlu0 0
        %1231 = vperm.xlu0 %1230, %v467
        %v1232 = vpop.permute.xlu0 %1231
        %1235 = vset.pattern.permute.xlu0 0
        %1236 = vperm.xlu0 %1235, %v468
        %v1237 = vpop.permute.xlu0 %1236
        %1240 = vset.pattern.permute.xlu0 0
        %1241 = vperm.xlu0 %1240, %v469
        %v1242 = vpop.permute.xlu0 %1241
        %1245 = vset.pattern.permute.xlu0 0
        %1246 = vperm.xlu0 %1245, %v470
        %v1247 = vpop.permute.xlu0 %1246
        %1250 = vset.pattern.permute.xlu0 0
        %1251 = vperm.xlu0 %1250, %v471
        %v1252 = vpop.permute.xlu0 %1251
        %1255 = vset.pattern.permute.xlu0 0
        %1256 = vperm.xlu0 %1255, %v472
        %v1257 = vpop.permute.xlu0 %1256
        %1260 = vset.pattern.permute.xlu0 0
        %1261 = vperm.xlu0 %1260, %v473
        %v1262 = vpop.permute.xlu0 %1261
        %1265 = vset.pattern.permute.xlu0 0
        %1266 = vperm.xlu0 %1265, %v474
        %v1267 = vpop.permute.xlu0 %1266
        %1270 = vset.pattern.permute.xlu0 0
        %1271 = vperm.xlu0 %1270, %v475
        %v1272 = vpop.permute.xlu0 %1271
        %1275 = vset.pattern.permute.xlu0 0
        %1276 = vperm.xlu0 %1275, %v476
        %v1277 = vpop.permute.xlu0 %1276
        %1280 = vset.pattern.permute.xlu0 0
        %1281 = vperm.xlu0 %1280, %v477
        %v1282 = vpop.permute.xlu0 %1281
        %v1284 = vmul.f32 %v960, %v1017
        %v1285 = vmul.f32 %v961, %v1022
        %v1286 = vmul.f32 %v962, %v1027
        %v1287 = vmul.f32 %v963, %v1032
        %v1288 = vmul.f32 %v964, %v1037
        %v1289 = vmul.f32 %v965, %v1042
        %v1290 = vmul.f32 %v966, %v1047
        %v1291 = vmul.f32 %v967, %v1052
        %v1292 = vmul.f32 %v968, %v1057
        %v1293 = vmul.f32 %v969, %v1062
        %v1294 = vmul.f32 %v970, %v1067
        %v1295 = vmul.f32 %v971, %v1072
        %v1296 = vmul.f32 %v972, %v1077
        %v1297 = vmul.f32 %v973, %v1082
        %v1298 = vmul.f32 %v974, %v1087
        %v1299 = vmul.f32 %v975, %v1092
        %v1300 = vmul.f32 %v976, %v1097
        %v1301 = vmul.f32 %v977, %v1102
        %v1302 = vmul.f32 %v978, %v1107
        %v1303 = vmul.f32 %v979, %v1112
        %v1304 = vmul.f32 %v980, %v1117
        %v1305 = vmul.f32 %v981, %v1122
        %v1306 = vmul.f32 %v982, %v1127
        %v1307 = vmul.f32 %v983, %v1132
        %v1308 = vmul.f32 %v984, %v1137
        %v1309 = vmul.f32 %v985, %v1142
        %v1310 = vmul.f32 %v986, %v1147
        %v1311 = vmul.f32 %v987, %v1152
        %v1312 = vmul.f32 %v988, %v1157
        %v1313 = vmul.f32 %v989, %v1162
        %v1314 = vmul.f32 %v990, %v1167
        %v1315 = vmul.f32 %v991, %v1172
        %v1316 = vmul.f32 %v992, %v1177
        %v1317 = vmul.f32 %v993, %v1182
        %v1318 = vmul.f32 %v994, %v1187
        %v1319 = vmul.f32 %v995, %v1192
        %v1320 = vmul.f32 %v996, %v1197
        %v1321 = vmul.f32 %v997, %v1202
        %v1322 = vmul.f32 %v998, %v1207
        %v1323 = vmul.f32 %v999, %v1212
        %v1324 = vmul.f32 %v1000, %v1217
        %v1325 = vmul.f32 %v1001, %v1222
        %v1326 = vmul.f32 %v1002, %v1227
        %v1327 = vmul.f32 %v1003, %v1232
        %v1328 = vmul.f32 %v1004, %v1237
        %v1329 = vmul.f32 %v1005, %v1242
        %v1330 = vmul.f32 %v1006, %v1247
        %v1331 = vmul.f32 %v1007, %v1252
        %v1332 = vmul.f32 %v1008, %v1257
        %v1333 = vmul.f32 %v1009, %v1262
        %v1334 = vmul.f32 %v1010, %v1267
        %v1335 = vmul.f32 %v1011, %v1272
        %v1336 = vmul.f32 %v1012, %v1277
        %v1337 = vmul.f32 %v1013, %v1282
        %v1338 = vpack.c.bf16 %v1285, %v1284
        %v1339 = vpack.c.bf16 %v1287, %v1286
        %v1340 = vpack.c.bf16 %v1289, %v1288
        %v1341 = vpack.c.bf16 %v1291, %v1290
        %v1342 = vpack.c.bf16 %v1293, %v1292
        %v1343 = vpack.c.bf16 %v1295, %v1294
        %v1344 = vpack.c.bf16 %v1297, %v1296
        %v1345 = vpack.c.bf16 %v1299, %v1298
        %v1346 = vpack.c.bf16 %v1301, %v1300
        %v1347 = vpack.c.bf16 %v1303, %v1302
        %v1348 = vpack.c.bf16 %v1305, %v1304
        %v1349 = vpack.c.bf16 %v1307, %v1306
        %v1350 = vpack.c.bf16 %v1309, %v1308
        %v1351 = vpack.c.bf16 %v1311, %v1310
        %v1352 = vpack.c.bf16 %v1313, %v1312
        %v1353 = vpack.c.bf16 %v1315, %v1314
        %v1354 = vpack.c.bf16 %v1317, %v1316
        %v1355 = vpack.c.bf16 %v1319, %v1318
        %v1356 = vpack.c.bf16 %v1321, %v1320
        %v1357 = vpack.c.bf16 %v1323, %v1322
        %v1358 = vpack.c.bf16 %v1325, %v1324
        %v1359 = vpack.c.bf16 %v1327, %v1326
        %v1360 = vpack.c.bf16 %v1329, %v1328
        %v1361 = vpack.c.bf16 %v1331, %v1330
        %v1362 = vpack.c.bf16 %v1333, %v1332
        %v1363 = vpack.c.bf16 %v1335, %v1334
        %v1364 = vpack.c.bf16 %v1337, %v1336
        %vm1365 = vsmask.f32 256
        %v1367 = vshrl.u32 %v1338, 16
        %v1369 = vrot.slane %v1367, 7
        %v1370 = vshll.u32 %v1338, 16
        %v1372 = vor.u32 %v1369, %v1370
        %v1374 = vshrl.u32 %v1339, 16
        %v1376 = vrot.slane %v1374, 7
        %v1377 = vshll.u32 %v1339, 16
        %v1379 = vor.u32 %v1376, %v1377
        %v1380 = vsel %vm1365, %v1369, %v1379
        %v1382 = vshrl.u32 %v1340, 16
        %v1384 = vrot.slane %v1382, 7
        %v1385 = vshll.u32 %v1340, 16
        %v1387 = vor.u32 %v1384, %v1385
        %v1388 = vsel %vm1365, %v1376, %v1387
        %v1390 = vshrl.u32 %v1341, 16
        %v1392 = vrot.slane %v1390, 7
        %v1393 = vshll.u32 %v1341, 16
        %v1395 = vor.u32 %v1392, %v1393
        %v1396 = vsel %vm1365, %v1384, %v1395
        %v1398 = vshrl.u32 %v1342, 16
        %v1400 = vrot.slane %v1398, 7
        %v1401 = vshll.u32 %v1342, 16
        %v1403 = vor.u32 %v1400, %v1401
        %v1404 = vsel %vm1365, %v1392, %v1403
        %v1406 = vshrl.u32 %v1343, 16
        %v1408 = vrot.slane %v1406, 7
        %v1409 = vshll.u32 %v1343, 16
        %v1411 = vor.u32 %v1408, %v1409
        %v1412 = vsel %vm1365, %v1400, %v1411
        %v1414 = vshrl.u32 %v1344, 16
        %v1416 = vrot.slane %v1414, 7
        %v1417 = vshll.u32 %v1344, 16
        %v1419 = vor.u32 %v1416, %v1417
        %v1420 = vsel %vm1365, %v1408, %v1419
        %v1422 = vshrl.u32 %v1345, 16
        %v1424 = vrot.slane %v1422, 7
        %v1425 = vshll.u32 %v1345, 16
        %v1427 = vor.u32 %v1424, %v1425
        %v1428 = vsel %vm1365, %v1416, %v1427
        %v1430 = vshrl.u32 %v1346, 16
        %v1432 = vrot.slane %v1430, 7
        %v1433 = vshll.u32 %v1346, 16
        %v1435 = vor.u32 %v1432, %v1433
        %v1436 = vsel %vm1365, %v1424, %v1435
        %v1438 = vshrl.u32 %v1347, 16
        %v1440 = vrot.slane %v1438, 7
        %v1441 = vshll.u32 %v1347, 16
        %v1443 = vor.u32 %v1440, %v1441
        %v1444 = vsel %vm1365, %v1432, %v1443
        %v1446 = vshrl.u32 %v1348, 16
        %v1448 = vrot.slane %v1446, 7
        %v1449 = vshll.u32 %v1348, 16
        %v1451 = vor.u32 %v1448, %v1449
        %v1452 = vsel %vm1365, %v1440, %v1451
        %v1454 = vshrl.u32 %v1349, 16
        %v1456 = vrot.slane %v1454, 7
        %v1457 = vshll.u32 %v1349, 16
        %v1459 = vor.u32 %v1456, %v1457
        %v1460 = vsel %vm1365, %v1448, %v1459
        %v1462 = vshrl.u32 %v1350, 16
        %v1464 = vrot.slane %v1462, 7
        %v1465 = vshll.u32 %v1350, 16
        %v1467 = vor.u32 %v1464, %v1465
        %v1468 = vsel %vm1365, %v1456, %v1467
        %v1470 = vshrl.u32 %v1351, 16
        %v1472 = vrot.slane %v1470, 7
        %v1473 = vshll.u32 %v1351, 16
        %v1475 = vor.u32 %v1472, %v1473
        %v1476 = vsel %vm1365, %v1464, %v1475
        %v1478 = vshrl.u32 %v1352, 16
        %v1480 = vrot.slane %v1478, 7
        %v1481 = vshll.u32 %v1352, 16
        %v1483 = vor.u32 %v1480, %v1481
        %v1484 = vsel %vm1365, %v1472, %v1483
        %v1486 = vshrl.u32 %v1353, 16
        %v1488 = vrot.slane %v1486, 7
        %v1489 = vshll.u32 %v1353, 16
        %v1491 = vor.u32 %v1488, %v1489
        %v1492 = vsel %vm1365, %v1480, %v1491
        %v1494 = vshrl.u32 %v1354, 16
        %v1496 = vrot.slane %v1494, 7
        %v1497 = vshll.u32 %v1354, 16
        %v1499 = vor.u32 %v1496, %v1497
        %v1500 = vsel %vm1365, %v1488, %v1499
        %v1502 = vshrl.u32 %v1355, 16
        %v1504 = vrot.slane %v1502, 7
        %v1505 = vshll.u32 %v1355, 16
        %v1507 = vor.u32 %v1504, %v1505
        %v1508 = vsel %vm1365, %v1496, %v1507
        %v1510 = vshrl.u32 %v1356, 16
        %v1512 = vrot.slane %v1510, 7
        %v1513 = vshll.u32 %v1356, 16
        %v1515 = vor.u32 %v1512, %v1513
        %v1516 = vsel %vm1365, %v1504, %v1515
        %v1518 = vshrl.u32 %v1357, 16
        %v1520 = vrot.slane %v1518, 7
        %v1521 = vshll.u32 %v1357, 16
        %v1523 = vor.u32 %v1520, %v1521
        %v1524 = vsel %vm1365, %v1512, %v1523
        %v1526 = vshrl.u32 %v1358, 16
        %v1528 = vrot.slane %v1526, 7
        %v1529 = vshll.u32 %v1358, 16
        %v1531 = vor.u32 %v1528, %v1529
        %v1532 = vsel %vm1365, %v1520, %v1531
        %v1534 = vshrl.u32 %v1359, 16
        %v1536 = vrot.slane %v1534, 7
        %v1537 = vshll.u32 %v1359, 16
        %v1539 = vor.u32 %v1536, %v1537
        %v1540 = vsel %vm1365, %v1528, %v1539
        %v1542 = vshrl.u32 %v1360, 16
        %v1544 = vrot.slane %v1542, 7
        %v1545 = vshll.u32 %v1360, 16
        %v1547 = vor.u32 %v1544, %v1545
        %v1548 = vsel %vm1365, %v1536, %v1547
        %v1550 = vshrl.u32 %v1361, 16
        %v1552 = vrot.slane %v1550, 7
        %v1553 = vshll.u32 %v1361, 16
        %v1555 = vor.u32 %v1552, %v1553
        %v1556 = vsel %vm1365, %v1544, %v1555
        %v1558 = vshrl.u32 %v1362, 16
        %v1560 = vrot.slane %v1558, 7
        %v1561 = vshll.u32 %v1362, 16
        %v1563 = vor.u32 %v1560, %v1561
        %v1564 = vsel %vm1365, %v1552, %v1563
        %v1566 = vshrl.u32 %v1363, 16
        %v1568 = vrot.slane %v1566, 7
        %v1569 = vshll.u32 %v1363, 16
        %v1571 = vor.u32 %v1568, %v1569
        %v1572 = vsel %vm1365, %v1560, %v1571
        %v1574 = vshrl.u32 %v1364, 16
        %v1576 = vrot.slane %v1574, 7
        %v1577 = vshll.u32 %v1364, 16
        %v1579 = vor.u32 %v1576, %v1577
        %v1580 = vsel %vm1365, %v1568, %v1579
        %vm1608 = vcmask 1040384
        %vm1609 = vmand %vm1608, %vm1365
        %v1610 = vsel %vm1609, 0, %v1372
        %vm1611 = vsmask.f32 7424
        %v1612 = vrot.slane %v1370, 1
        %v1613 = vor.u32 %v1367, %v1612
        %v1614 = vrot.slane %v1377, 1
        %v1615 = vsel %vm1611, %v1613, %v1614
        %v1616 = vor.u32 %v1374, %v1614
        %v1617 = vrot.slane %v1385, 1
        %v1618 = vsel %vm1611, %v1616, %v1617
        %v1619 = vor.u32 %v1382, %v1617
        %v1620 = vrot.slane %v1393, 1
        %v1621 = vsel %vm1611, %v1619, %v1620
        %v1622 = vor.u32 %v1390, %v1620
        %v1623 = vrot.slane %v1401, 1
        %v1624 = vsel %vm1611, %v1622, %v1623
        %v1625 = vor.u32 %v1398, %v1623
        %v1626 = vrot.slane %v1409, 1
        %v1627 = vsel %vm1611, %v1625, %v1626
        %v1628 = vor.u32 %v1406, %v1626
        %v1629 = vrot.slane %v1417, 1
        %v1630 = vsel %vm1611, %v1628, %v1629
        %v1631 = vor.u32 %v1414, %v1629
        %v1632 = vrot.slane %v1425, 1
        %v1633 = vsel %vm1611, %v1631, %v1632
        %v1634 = vor.u32 %v1422, %v1632
        %v1635 = vrot.slane %v1433, 1
        %v1636 = vsel %vm1611, %v1634, %v1635
        %v1637 = vor.u32 %v1430, %v1635
        %v1638 = vrot.slane %v1441, 1
        %v1639 = vsel %vm1611, %v1637, %v1638
        %v1640 = vor.u32 %v1438, %v1638
        %v1641 = vrot.slane %v1449, 1
        %v1642 = vsel %vm1611, %v1640, %v1641
        %v1643 = vor.u32 %v1446, %v1641
        %v1644 = vrot.slane %v1457, 1
        %v1645 = vsel %vm1611, %v1643, %v1644
        %v1646 = vor.u32 %v1454, %v1644
        %v1647 = vrot.slane %v1465, 1
        %v1648 = vsel %vm1611, %v1646, %v1647
        %v1649 = vor.u32 %v1462, %v1647
        %v1650 = vrot.slane %v1473, 1
        %v1651 = vsel %vm1611, %v1649, %v1650
        %v1652 = vor.u32 %v1470, %v1650
        %v1653 = vrot.slane %v1481, 1
        %v1654 = vsel %vm1611, %v1652, %v1653
        %v1655 = vor.u32 %v1478, %v1653
        %v1656 = vrot.slane %v1489, 1
        %v1657 = vsel %vm1611, %v1655, %v1656
        %v1658 = vor.u32 %v1486, %v1656
        %v1659 = vrot.slane %v1497, 1
        %v1660 = vsel %vm1611, %v1658, %v1659
        %v1661 = vor.u32 %v1494, %v1659
        %v1662 = vrot.slane %v1505, 1
        %v1663 = vsel %vm1611, %v1661, %v1662
        %v1664 = vor.u32 %v1502, %v1662
        %v1665 = vrot.slane %v1513, 1
        %v1666 = vsel %vm1611, %v1664, %v1665
        %v1667 = vor.u32 %v1510, %v1665
        %v1668 = vrot.slane %v1521, 1
        %v1669 = vsel %vm1611, %v1667, %v1668
        %v1670 = vor.u32 %v1518, %v1668
        %v1671 = vrot.slane %v1529, 1
        %v1672 = vsel %vm1611, %v1670, %v1671
        %v1673 = vor.u32 %v1526, %v1671
        %v1674 = vrot.slane %v1537, 1
        %v1675 = vsel %vm1611, %v1673, %v1674
        %v1676 = vor.u32 %v1534, %v1674
        %v1677 = vrot.slane %v1545, 1
        %v1678 = vsel %vm1611, %v1676, %v1677
        %v1679 = vor.u32 %v1542, %v1677
        %v1680 = vrot.slane %v1553, 1
        %v1681 = vsel %vm1611, %v1679, %v1680
        %v1682 = vor.u32 %v1550, %v1680
        %v1683 = vrot.slane %v1561, 1
        %v1684 = vsel %vm1611, %v1682, %v1683
        %v1685 = vor.u32 %v1558, %v1683
        %v1686 = vrot.slane %v1569, 1
        %v1687 = vsel %vm1611, %v1685, %v1686
        %v1688 = vor.u32 %v1566, %v1686
        %v1689 = vrot.slane %v1577, 1
        %v1690 = vsel %vm1611, %v1688, %v1689
        %v1691 = vor.u32 %v1574, %v1689
        %vm1719 = vcmask 1047552
        %vm1720 = vmand %vm1719, %vm1611
        %v1721 = vsel %vm1720, %v1691, 0
        %vm1722 = vcmask 1043456
        %v1723 = vrot.slane %v1380, 4
        %v1724 = vrot.slane %v1388, 4
        %v1725 = vsel %vm1722, %v1723, %v1724
        %v1726 = vrot.slane %v1396, 4
        %v1727 = vsel %vm1722, %v1724, %v1726
        %v1728 = vrot.slane %v1404, 4
        %v1729 = vsel %vm1722, %v1726, %v1728
        %v1730 = vrot.slane %v1412, 4
        %v1731 = vsel %vm1722, %v1728, %v1730
        %v1732 = vrot.slane %v1420, 4
        %v1733 = vsel %vm1722, %v1730, %v1732
        %v1734 = vrot.slane %v1428, 4
        %v1735 = vsel %vm1722, %v1732, %v1734
        %v1736 = vrot.slane %v1436, 4
        %v1737 = vsel %vm1722, %v1734, %v1736
        %v1738 = vrot.slane %v1444, 4
        %v1739 = vsel %vm1722, %v1736, %v1738
        %v1740 = vrot.slane %v1452, 4
        %v1741 = vsel %vm1722, %v1738, %v1740
        %v1742 = vrot.slane %v1460, 4
        %v1743 = vsel %vm1722, %v1740, %v1742
        %v1744 = vrot.slane %v1468, 4
        %v1745 = vsel %vm1722, %v1742, %v1744
        %v1746 = vrot.slane %v1476, 4
        %v1747 = vsel %vm1722, %v1744, %v1746
        %v1748 = vrot.slane %v1484, 4
        %v1749 = vsel %vm1722, %v1746, %v1748
        %v1750 = vrot.slane %v1492, 4
        %v1751 = vsel %vm1722, %v1748, %v1750
        %v1752 = vrot.slane %v1500, 4
        %v1753 = vsel %vm1722, %v1750, %v1752
        %v1754 = vrot.slane %v1508, 4
        %v1755 = vsel %vm1722, %v1752, %v1754
        %v1756 = vrot.slane %v1516, 4
        %v1757 = vsel %vm1722, %v1754, %v1756
        %v1758 = vrot.slane %v1524, 4
        %v1759 = vsel %vm1722, %v1756, %v1758
        %v1760 = vrot.slane %v1532, 4
        %v1761 = vsel %vm1722, %v1758, %v1760
        %v1762 = vrot.slane %v1540, 4
        %v1763 = vsel %vm1722, %v1760, %v1762
        %v1764 = vrot.slane %v1548, 4
        %v1765 = vsel %vm1722, %v1762, %v1764
        %v1766 = vrot.slane %v1556, 4
        %v1767 = vsel %vm1722, %v1764, %v1766
        %v1768 = vrot.slane %v1564, 4
        %v1769 = vsel %vm1722, %v1766, %v1768
        %v1770 = vrot.slane %v1572, 4
        %v1771 = vsel %vm1722, %v1768, %v1770
        %v1821 = vrot.slane %v1339, 4
        %v1822 = vrot.slane %v1340, 4
        %v1823 = vsel %vm1722, %v1821, %v1822
        %v1824 = vrot.slane %v1341, 4
        %v1825 = vsel %vm1722, %v1822, %v1824
        %v1826 = vrot.slane %v1342, 4
        %v1827 = vsel %vm1722, %v1824, %v1826
        %v1828 = vrot.slane %v1343, 4
        %v1829 = vsel %vm1722, %v1826, %v1828
        %v1830 = vrot.slane %v1344, 4
        %v1831 = vsel %vm1722, %v1828, %v1830
        %v1832 = vrot.slane %v1345, 4
        %v1833 = vsel %vm1722, %v1830, %v1832
        %v1834 = vrot.slane %v1346, 4
        %v1835 = vsel %vm1722, %v1832, %v1834
        %v1836 = vrot.slane %v1347, 4
        %v1837 = vsel %vm1722, %v1834, %v1836
        %v1838 = vrot.slane %v1348, 4
        %v1839 = vsel %vm1722, %v1836, %v1838
        %v1840 = vrot.slane %v1349, 4
        %v1841 = vsel %vm1722, %v1838, %v1840
        %v1842 = vrot.slane %v1350, 4
        %v1843 = vsel %vm1722, %v1840, %v1842
        %v1844 = vrot.slane %v1351, 4
        %v1845 = vsel %vm1722, %v1842, %v1844
        %v1846 = vrot.slane %v1352, 4
        %v1847 = vsel %vm1722, %v1844, %v1846
        %v1848 = vrot.slane %v1353, 4
        %v1849 = vsel %vm1722, %v1846, %v1848
        %v1850 = vrot.slane %v1354, 4
        %v1851 = vsel %vm1722, %v1848, %v1850
        %v1852 = vrot.slane %v1355, 4
        %v1853 = vsel %vm1722, %v1850, %v1852
        %v1854 = vrot.slane %v1356, 4
        %v1855 = vsel %vm1722, %v1852, %v1854
        %v1856 = vrot.slane %v1357, 4
        %v1857 = vsel %vm1722, %v1854, %v1856
        %v1858 = vrot.slane %v1358, 4
        %v1859 = vsel %vm1722, %v1856, %v1858
        %v1860 = vrot.slane %v1359, 4
        %v1861 = vsel %vm1722, %v1858, %v1860
        %v1862 = vrot.slane %v1360, 4
        %v1863 = vsel %vm1722, %v1860, %v1862
        %v1864 = vrot.slane %v1361, 4
        %v1865 = vsel %vm1722, %v1862, %v1864
        %v1866 = vrot.slane %v1362, 4
        %v1867 = vsel %vm1722, %v1864, %v1866
        %v1868 = vrot.slane %v1363, 4
        %v1869 = vsel %vm1722, %v1866, %v1868
        %v1894 = vrot.slane %v1618, 4
        %v1895 = vrot.slane %v1621, 4
        %v1896 = vsel %vm1722, %v1894, %v1895
        %v1897 = vrot.slane %v1624, 4
        %v1898 = vsel %vm1722, %v1895, %v1897
        %v1899 = vrot.slane %v1627, 4
        %v1900 = vsel %vm1722, %v1897, %v1899
        %v1901 = vrot.slane %v1630, 4
        %v1902 = vsel %vm1722, %v1899, %v1901
        %v1903 = vrot.slane %v1633, 4
        %v1904 = vsel %vm1722, %v1901, %v1903
        %v1905 = vrot.slane %v1636, 4
        %v1906 = vsel %vm1722, %v1903, %v1905
        %v1907 = vrot.slane %v1639, 4
        %v1908 = vsel %vm1722, %v1905, %v1907
        %v1909 = vrot.slane %v1642, 4
        %v1910 = vsel %vm1722, %v1907, %v1909
        %v1911 = vrot.slane %v1645, 4
        %v1912 = vsel %vm1722, %v1909, %v1911
        %v1913 = vrot.slane %v1648, 4
        %v1914 = vsel %vm1722, %v1911, %v1913
        %v1915 = vrot.slane %v1651, 4
        %v1916 = vsel %vm1722, %v1913, %v1915
        %v1917 = vrot.slane %v1654, 4
        %v1918 = vsel %vm1722, %v1915, %v1917
        %v1919 = vrot.slane %v1657, 4
        %v1920 = vsel %vm1722, %v1917, %v1919
        %v1921 = vrot.slane %v1660, 4
        %v1922 = vsel %vm1722, %v1919, %v1921
        %v1923 = vrot.slane %v1663, 4
        %v1924 = vsel %vm1722, %v1921, %v1923
        %v1925 = vrot.slane %v1666, 4
        %v1926 = vsel %vm1722, %v1923, %v1925
        %v1927 = vrot.slane %v1669, 4
        %v1928 = vsel %vm1722, %v1925, %v1927
        %v1929 = vrot.slane %v1672, 4
        %v1930 = vsel %vm1722, %v1927, %v1929
        %v1931 = vrot.slane %v1675, 4
        %v1932 = vsel %vm1722, %v1929, %v1931
        %v1933 = vrot.slane %v1678, 4
        %v1934 = vsel %vm1722, %v1931, %v1933
        %v1935 = vrot.slane %v1681, 4
        %v1936 = vsel %vm1722, %v1933, %v1935
        %v1937 = vrot.slane %v1684, 4
        %v1938 = vsel %vm1722, %v1935, %v1937
        %v1939 = vrot.slane %v1687, 4
        %v1940 = vsel %vm1722, %v1937, %v1939
        %v1941 = vrot.slane %v1690, 4
        %v1942 = vsel %vm1722, %v1939, %v1941
        %v1967 = vld [vmem:[#allocation5] sm:$0xf]
        %v1968 = vld [vmem:[#allocation5 + $0x4] sm:$0xf]
        %v1969 = vld [vmem:[#allocation5 + $0x8] sm:$0xf]
        %v1970 = vld [vmem:[#allocation5 + $0xc] sm:$0xf]
        %v1971 = vld [vmem:[#allocation5 + $0x10] sm:$0xf]
        %v1972 = vld [vmem:[#allocation5 + $0x14] sm:$0xf]
        %v1973 = vld [vmem:[#allocation5 + $0x18] sm:$0xf]
        %v1974 = vld [vmem:[#allocation5 + $0x1c] sm:$0xf]
        %v1975 = vld [vmem:[#allocation5 + $0x20] sm:$0xf]
        %v1976 = vld [vmem:[#allocation5 + $0x24] sm:$0xf]
        %v1977 = vld [vmem:[#allocation5 + $0x28] sm:$0xf]
        %v1978 = vld [vmem:[#allocation5 + $0x2c] sm:$0xf]
        %v1979 = vld [vmem:[#allocation5 + $0x30] sm:$0xf]
        %v1980 = vld [vmem:[#allocation5 + $0x34] sm:$0xf]
        %v1981 = vld [vmem:[#allocation5 + $0x38] sm:$0xf]
        %v1982 = vld [vmem:[#allocation5 + $0x3c] sm:$0xf]
        %v1983 = vld [vmem:[#allocation5 + $0x40] sm:$0xf]
        %v1984 = vld [vmem:[#allocation5 + $0x44] sm:$0xf]
        %v1985 = vld [vmem:[#allocation5 + $0x48] sm:$0xf]
        %v1986 = vld [vmem:[#allocation5 + $0x4c] sm:$0xf]
        %v1987 = vld [vmem:[#allocation5 + $0x50] sm:$0xf]
        %v1988 = vld [vmem:[#allocation5 + $0x54] sm:$0xf]
        %v1989 = vld [vmem:[#allocation5 + $0x58] sm:$0xf]
        %v1990 = vld [vmem:[#allocation5 + $0x5c] sm:$0xf]
        %v1991 = vld [vmem:[#allocation5 + $0x60] sm:$0xf]
        %v1992 = vld [vmem:[#allocation5 + $0x64] sm:$0xf]
        %v1993 = vld [vmem:[#allocation5 + $0x68] sm:$0xf]
        %v1994 = vld [vmem:[#allocation5 + $0x6c] sm:$0xf]
        %v1995 = vld [vmem:[#allocation5 + $0x70] sm:$0xf]
        %v1996 = vld [vmem:[#allocation5 + $0x74] sm:$0xf]
        %v1997 = vld [vmem:[#allocation5 + $0x78] sm:$0xf]
        %v1998 = vld [vmem:[#allocation5 + $0x7c] sm:$0xf]
        %v1999 = vld [vmem:[#allocation5 + $0x80] sm:$0xf]
        %v2000 = vld [vmem:[#allocation5 + $0x84] sm:$0xf]
        %v2001 = vld [vmem:[#allocation5 + $0x88] sm:$0xf]
        %v2002 = vld [vmem:[#allocation5 + $0x8c] sm:$0xf]
        %v2003 = vld [vmem:[#allocation5 + $0x90] sm:$0xf]
        %v2004 = vld [vmem:[#allocation5 + $0x94] sm:$0xf]
        %v2005 = vld [vmem:[#allocation5 + $0x98] sm:$0xf]
        %v2006 = vld [vmem:[#allocation5 + $0x9c] sm:$0xf]
        %v2007 = vld [vmem:[#allocation5 + $0xa0] sm:$0xf]
        %v2008 = vld [vmem:[#allocation5 + $0xa4] sm:$0xf]
        %v2009 = vld [vmem:[#allocation5 + $0xa8] sm:$0xf]
        %v2010 = vld [vmem:[#allocation5 + $0xac] sm:$0xf]
        %v2011 = vld [vmem:[#allocation5 + $0xb0] sm:$0xf]
        %v2012 = vld [vmem:[#allocation5 + $0xb4] sm:$0xf]
        %v2013 = vld [vmem:[#allocation5 + $0xb8] sm:$0xf]
        %v2014 = vld [vmem:[#allocation5 + $0xbc] sm:$0xf]
        %v2015 = vld [vmem:[#allocation5 + $0xc0] sm:$0xf]
        %v2016 = vld [vmem:[#allocation5 + $0xc4] sm:$0xf]
        %v2017 = vld [vmem:[#allocation5 + $0xc8] sm:$0xf]
        %v2018 = vld [vmem:[#allocation5 + $0xcc] sm:$0xf]
        %v2019 = vld [vmem:[#allocation5 + $0xd0] sm:$0xf]
        %v2020 = vld [vmem:[#allocation5 + $0xd4] sm:$0xf]
        %v2021 = vld [vmem:[#allocation5 + $0xd8] sm:$0xf]
        %v2022 = vld [vmem:[#allocation5 + $0xdc] sm:$0xf]
        %v2023 = vld [vmem:[#allocation5 + $0xe0] sm:$0xf]
        %v2024 = vld [vmem:[#allocation5 + $0xe4] sm:$0xf]
        %v2025 = vld [vmem:[#allocation5 + $0xe8] sm:$0xf]
        %v2026 = vld [vmem:[#allocation5 + $0xec] sm:$0xf]
        %v2027 = vld [vmem:[#allocation5 + $0xf0] sm:$0xf]
        %v2028 = vld [vmem:[#allocation5 + $0xf4] sm:$0xf]
        %v2029 = vld [vmem:[#allocation5 + $0xf8] sm:$0xf]
        %v2030 = vld [vmem:[#allocation5 + $0xfc] sm:$0xf]
        %v2031 = vld [vmem:[#allocation5 + $0x100] sm:$0xf]
        %v2032 = vld [vmem:[#allocation5 + $0x104] sm:$0xf]
        %v2033 = vld [vmem:[#allocation5 + $0x108] sm:$0xf]
        %v2034 = vld [vmem:[#allocation5 + $0x10c] sm:$0xf]
        %v2035 = vld [vmem:[#allocation5 + $0x110] sm:$0xf]
        %v2036 = vld [vmem:[#allocation5 + $0x114] sm:$0xf]
        %v2037 = vld [vmem:[#allocation5 + $0x118] sm:$0xf]
        %v2038 = vld [vmem:[#allocation5 + $0x11c] sm:$0xf]
        %v2039 = vld [vmem:[#allocation5 + $0x120] sm:$0xf]
        %v2040 = vld [vmem:[#allocation5 + $0x124] sm:$0xf]
        %v2041 = vld [vmem:[#allocation5 + $0x128] sm:$0xf]
        %v2042 = vld [vmem:[#allocation5 + $0x12c] sm:$0xf]
        %v2043 = vld [vmem:[#allocation5 + $0x130] sm:$0xf]
        %v2044 = vld [vmem:[#allocation5 + $0x134] sm:$0xf]
        %v2045 = vld [vmem:[#allocation5 + $0x138] sm:$0xf]
        %v2046 = vld [vmem:[#allocation5 + $0x13c] sm:$0xf]
        %v2047 = vld [vmem:[#allocation5 + $0x140] sm:$0xf]
        %v2048 = vld [vmem:[#allocation5 + $0x144] sm:$0xf]
        %v2049 = vld [vmem:[#allocation5 + $0x148] sm:$0xf]
        %v2050 = vld [vmem:[#allocation5 + $0x14c] sm:$0xf]
        %v2051 = vld [vmem:[#allocation5 + $0x150] sm:$0xf]
        %v2052 = vld [vmem:[#allocation5 + $0x154] sm:$0xf]
        %v2053 = vld [vmem:[#allocation5 + $0x158] sm:$0xf]
        %v2054 = vld [vmem:[#allocation5 + $0x15c] sm:$0xf]
        %v2055 = vld [vmem:[#allocation5 + $0x160] sm:$0xf]
        %v2056 = vld [vmem:[#allocation5 + $0x164] sm:$0xf]
        %v2057 = vld [vmem:[#allocation5 + $0x168] sm:$0xf]
        %v2058 = vld [vmem:[#allocation5 + $0x16c] sm:$0xf]
        %v2059 = vld [vmem:[#allocation5 + $0x170] sm:$0xf]
        %v2060 = vld [vmem:[#allocation5 + $0x174] sm:$0xf]
        %v2061 = vld [vmem:[#allocation5 + $0x178] sm:$0xf]
        %v2062 = vld [vmem:[#allocation5 + $0x17c] sm:$0xf]
        %v2063 = vld [vmem:[#allocation5 + $0x180] sm:$0xf]
        %v2064 = vld [vmem:[#allocation5 + $0x184] sm:$0xf]
        %v2065 = vld [vmem:[#allocation5 + $0x188] sm:$0xf]
        %v2066 = vld [vmem:[#allocation5 + $0x18c] sm:$0xf]
        %v2067 = vld [vmem:[#allocation5 + $0x190] sm:$0xf]
        %v2068 = vld [vmem:[#allocation5 + $0x194] sm:$0xf]
        %v2069 = vld [vmem:[#allocation5 + $0x198] sm:$0xf]
        %v2070 = vld [vmem:[#allocation5 + $0x19c] sm:$0xf]
        %v2071 = vld [vmem:[#allocation5 + $0x1a0] sm:$0xf]
        %v2072 = vld [vmem:[#allocation5 + $0x1a4] sm:$0xf]
        %v2073 = vld [vmem:[#allocation5 + $0x1a8] sm:$0xf]
        %v2074 = vld [vmem:[#allocation5 + $0x1ac] sm:$0xf]
        %v2075 = vld [vmem:[#allocation5 + $0x1b0] sm:$0xf]
        %v2076 = vld [vmem:[#allocation5 + $0x1b4] sm:$0xf]
        %v2077 = vld [vmem:[#allocation5 + $0x1b8] sm:$0xf]
        %v2078 = vld [vmem:[#allocation5 + $0x1bc] sm:$0xf]
        %v2079 = vld [vmem:[#allocation5 + $0x1c0] sm:$0xf]
        %v2080 = vld [vmem:[#allocation5 + $0x1c4] sm:$0xf]
        %v2081 = vld [vmem:[#allocation5 + $0x1c8] sm:$0xf]
        %v2082 = vld [vmem:[#allocation5 + $0x1cc] sm:$0xf]
        %v2083 = vld [vmem:[#allocation5 + $0x1d0] sm:$0xf]
        %v2084 = vld [vmem:[#allocation5 + $0x1d4] sm:$0xf]
        %v2085 = vld [vmem:[#allocation5 + $0x1d8] sm:$0xf]
        %v2086 = vld [vmem:[#allocation5 + $0x1dc] sm:$0xf]
        %v2087 = vld [vmem:[#allocation5 + $0x1e0] sm:$0xf]
        %v2088 = vld [vmem:[#allocation5 + $0x1e4] sm:$0xf]
        %v2089 = vld [vmem:[#allocation5 + $0x1e8] sm:$0xf]
        %v2090 = vld [vmem:[#allocation5 + $0x1ec] sm:$0xf]
        %v2091 = vld [vmem:[#allocation5 + $0x1f0] sm:$0xf]
        %v2092 = vld [vmem:[#allocation5 + $0x1f4] sm:$0xf]
        %v2093 = vld [vmem:[#allocation5 + $0x1f8] sm:$0xf]
        %v2094 = vld [vmem:[#allocation5 + $0x1fc] sm:$0xf]
        %v2095 = vld [vmem:[#allocation5 + $0x200] sm:$0xf]
        %v2096 = vld [vmem:[#allocation5 + $0x204] sm:$0xf]
        %v2097 = vld [vmem:[#allocation5 + $0x208] sm:$0xf]
        %v2098 = vld [vmem:[#allocation5 + $0x20c] sm:$0xf]
        %v2099 = vld [vmem:[#allocation5 + $0x210] sm:$0xf]
        %v2100 = vld [vmem:[#allocation5 + $0x214] sm:$0xf]
        %v2101 = vld [vmem:[#allocation5 + $0x218] sm:$0xf]
        %v2102 = vld [vmem:[#allocation5 + $0x21c] sm:$0xf]
        %v2103 = vld [vmem:[#allocation5 + $0x220] sm:$0xf]
        %v2104 = vld [vmem:[#allocation5 + $0x224] sm:$0xf]
        %v2105 = vld [vmem:[#allocation5 + $0x228] sm:$0xf]
        %v2106 = vld [vmem:[#allocation5 + $0x22c] sm:$0xf]
        %v2107 = vld [vmem:[#allocation5 + $0x230] sm:$0xf]
        %v2108 = vld [vmem:[#allocation5 + $0x234] sm:$0xf]
        %v2109 = vld [vmem:[#allocation5 + $0x238] sm:$0xf]
        %v2110 = vld [vmem:[#allocation5 + $0x23c] sm:$0xf]
        %v2111 = vld [vmem:[%s5] sm:$0x1]
        %v2113 = vlaneseq
        %v2114 = vshrl.u32 %v2113, 7
        %v2115 = vsub.s32 0, %v2114
        %v2116 = vrot.slane %v2111, %v2115
        %v2262 = vunpack.c.l.b16 %v1967
        %v2263 = vunpack.c.l.b16 %v1968
        %v2264 = vunpack.c.l.b16 %v1969
        %v2265 = vunpack.c.l.b16 %v1970
        %v2266 = vunpack.c.l.b16 %v1971
        %v2267 = vunpack.c.l.b16 %v1972
        %v2268 = vunpack.c.l.b16 %v1973
        %v2269 = vunpack.c.l.b16 %v1974
        %v2270 = vunpack.c.l.b16 %v1975
        %v2271 = vunpack.c.l.b16 %v1976
        %v2272 = vunpack.c.l.b16 %v1977
        %v2273 = vunpack.c.l.b16 %v1978
        %v2274 = vunpack.c.l.b16 %v1979
        %v2275 = vunpack.c.l.b16 %v1980
        %v2276 = vunpack.c.l.b16 %v1981
        %v2277 = vunpack.c.l.b16 %v1982
        %v2278 = vunpack.c.l.b16 %v1983
        %v2279 = vunpack.c.l.b16 %v1984
        %v2280 = vunpack.c.l.b16 %v1985
        %v2281 = vunpack.c.l.b16 %v1986
        %v2282 = vunpack.c.l.b16 %v1987
        %v2283 = vunpack.c.l.b16 %v1988
        %v2284 = vunpack.c.l.b16 %v1989
        %v2285 = vunpack.c.l.b16 %v1990
        %v2286 = vunpack.c.l.b16 %v1991
        %v2287 = vunpack.c.l.b16 %v1992
        %v2288 = vunpack.c.l.b16 %v1993
        %v2289 = vunpack.c.l.b16 %v1994
        %v2290 = vunpack.c.l.b16 %v1995
        %v2291 = vunpack.c.l.b16 %v1996
        %v2292 = vunpack.c.l.b16 %v1997
        %v2293 = vunpack.c.l.b16 %v1998
        %v2294 = vunpack.c.l.b16 %v1999
        %v2295 = vunpack.c.l.b16 %v2000
        %v2296 = vunpack.c.l.b16 %v2001
        %v2297 = vunpack.c.l.b16 %v2002
        %v2298 = vunpack.c.l.b16 %v2003
        %v2299 = vunpack.c.l.b16 %v2004
        %v2300 = vunpack.c.l.b16 %v2005
        %v2301 = vunpack.c.l.b16 %v2006
        %v2302 = vunpack.c.l.b16 %v2007
        %v2303 = vunpack.c.l.b16 %v2008
        %v2304 = vunpack.c.l.b16 %v2009
        %v2305 = vunpack.c.l.b16 %v2010
        %v2306 = vunpack.c.l.b16 %v2011
        %v2307 = vunpack.c.l.b16 %v2012
        %v2308 = vunpack.c.l.b16 %v2013
        %v2309 = vunpack.c.l.b16 %v2014
        %v2310 = vunpack.c.l.b16 %v2015
        %v2311 = vunpack.c.l.b16 %v2016
        %v2312 = vunpack.c.l.b16 %v2017
        %v2313 = vunpack.c.l.b16 %v2018
        %v2314 = vunpack.c.l.b16 %v2019
        %v2315 = vunpack.c.l.b16 %v2020
        %v2316 = vunpack.c.l.b16 %v2021
        %v2317 = vunpack.c.l.b16 %v2022
        %v2318 = vunpack.c.l.b16 %v2023
        %v2319 = vunpack.c.l.b16 %v2024
        %v2320 = vunpack.c.l.b16 %v2025
        %v2321 = vunpack.c.l.b16 %v2026
        %v2322 = vunpack.c.l.b16 %v2027
        %v2323 = vunpack.c.l.b16 %v2028
        %v2324 = vunpack.c.l.b16 %v2029
        %v2325 = vunpack.c.l.b16 %v2030
        %v2326 = vunpack.c.l.b16 %v2031
        %v2327 = vunpack.c.l.b16 %v2032
        %v2328 = vunpack.c.l.b16 %v2033
        %v2329 = vunpack.c.l.b16 %v2034
        %v2330 = vunpack.c.l.b16 %v2035
        %v2331 = vunpack.c.l.b16 %v2036
        %v2332 = vunpack.c.l.b16 %v2037
        %v2333 = vunpack.c.l.b16 %v2038
        %v2334 = vunpack.c.l.b16 %v2039
        %v2335 = vunpack.c.l.b16 %v2040
        %v2336 = vunpack.c.l.b16 %v2041
        %v2337 = vunpack.c.l.b16 %v2042
        %v2338 = vunpack.c.l.b16 %v2043
        %v2339 = vunpack.c.l.b16 %v2044
        %v2340 = vunpack.c.l.b16 %v2045
        %v2341 = vunpack.c.l.b16 %v2046
        %v2342 = vunpack.c.l.b16 %v2047
        %v2343 = vunpack.c.l.b16 %v2048
        %v2344 = vunpack.c.l.b16 %v2049
        %v2345 = vunpack.c.l.b16 %v2050
        %v2346 = vunpack.c.l.b16 %v2051
        %v2347 = vunpack.c.l.b16 %v2052
        %v2348 = vunpack.c.l.b16 %v2053
        %v2349 = vunpack.c.l.b16 %v2054
        %v2350 = vunpack.c.l.b16 %v2055
        %v2351 = vunpack.c.l.b16 %v2056
        %v2352 = vunpack.c.l.b16 %v2057
        %v2353 = vunpack.c.l.b16 %v2058
        %v2354 = vunpack.c.l.b16 %v2059
        %v2355 = vunpack.c.l.b16 %v2060
        %v2356 = vunpack.c.l.b16 %v2061
        %v2357 = vunpack.c.l.b16 %v2062
        %v2358 = vunpack.c.l.b16 %v2063
        %v2359 = vunpack.c.l.b16 %v2064
        %v2360 = vunpack.c.l.b16 %v2065
        %v2361 = vunpack.c.l.b16 %v2066
        %v2362 = vunpack.c.l.b16 %v2067
        %v2363 = vunpack.c.l.b16 %v2068
        %v2364 = vunpack.c.l.b16 %v2069
        %v2365 = vunpack.c.l.b16 %v2070
        %v2366 = vunpack.c.l.b16 %v2071
        %v2367 = vunpack.c.l.b16 %v2072
        %v2368 = vunpack.c.l.b16 %v2073
        %v2369 = vunpack.c.l.b16 %v2074
        %v2370 = vunpack.c.l.b16 %v2075
        %v2371 = vunpack.c.l.b16 %v2076
        %v2372 = vunpack.c.l.b16 %v2077
        %v2373 = vunpack.c.l.b16 %v2078
        %v2374 = vunpack.c.l.b16 %v2079
        %v2375 = vunpack.c.l.b16 %v2080
        %v2376 = vunpack.c.l.b16 %v2081
        %v2377 = vunpack.c.l.b16 %v2082
        %v2378 = vunpack.c.l.b16 %v2083
        %v2379 = vunpack.c.l.b16 %v2084
        %v2380 = vunpack.c.l.b16 %v2085
        %v2381 = vunpack.c.l.b16 %v2086
        %v2382 = vunpack.c.l.b16 %v2087
        %v2383 = vunpack.c.l.b16 %v2088
        %v2384 = vunpack.c.l.b16 %v2089
        %v2385 = vunpack.c.l.b16 %v2090
        %v2386 = vunpack.c.l.b16 %v2091
        %v2387 = vunpack.c.l.b16 %v2092
        %v2388 = vunpack.c.l.b16 %v2093
        %v2389 = vunpack.c.l.b16 %v2094
        %v2390 = vunpack.c.l.b16 %v2095
        %v2391 = vunpack.c.l.b16 %v2096
        %v2392 = vunpack.c.l.b16 %v2097
        %v2393 = vunpack.c.l.b16 %v2098
        %v2394 = vunpack.c.l.b16 %v2099
        %v2395 = vunpack.c.l.b16 %v2100
        %v2396 = vunpack.c.l.b16 %v2101
        %v2397 = vunpack.c.l.b16 %v2102
        %v2398 = vunpack.c.l.b16 %v2103
        %v2399 = vunpack.c.l.b16 %v2104
        %v2400 = vunpack.c.l.b16 %v2105
        %v2401 = vunpack.c.l.b16 %v2106
        %v2402 = vunpack.c.l.b16 %v2107
        %v2403 = vunpack.c.l.b16 %v2108
        %v2404 = vunpack.c.l.b16 %v2109
        %v2405 = vunpack.c.l.b16 %v2110
        %v2406 = vpack.c.b16 %v2263, %v2262
        %v2407 = vpack.c.b16 %v2265, %v2264
        %v2408 = vpack.c.b16 %v2267, %v2266
        %v2409 = vpack.c.b16 %v2269, %v2268
        %v2410 = vpack.c.b16 %v2271, %v2270
        %v2411 = vpack.c.b16 %v2273, %v2272
        %v2412 = vpack.c.b16 %v2275, %v2274
        %v2413 = vpack.c.b16 %v2277, %v2276
        %v2414 = vpack.c.b16 %v2279, %v2278
        %v2415 = vpack.c.b16 %v2281, %v2280
        %v2416 = vpack.c.b16 %v2283, %v2282
        %v2417 = vpack.c.b16 %v2285, %v2284
        %v2418 = vpack.c.b16 %v2287, %v2286
        %v2419 = vpack.c.b16 %v2289, %v2288
        %v2420 = vpack.c.b16 %v2291, %v2290
        %v2421 = vpack.c.b16 %v2293, %v2292
        %v2422 = vpack.c.b16 %v2295, %v2294
        %v2423 = vpack.c.b16 %v2297, %v2296
        %v2424 = vpack.c.b16 %v2299, %v2298
        %v2425 = vpack.c.b16 %v2301, %v2300
        %v2426 = vpack.c.b16 %v2303, %v2302
        %v2427 = vpack.c.b16 %v2305, %v2304
        %v2428 = vpack.c.b16 %v2307, %v2306
        %v2429 = vpack.c.b16 %v2309, %v2308
        %v2430 = vpack.c.b16 %v2311, %v2310
        %v2431 = vpack.c.b16 %v2313, %v2312
        %v2432 = vpack.c.b16 %v2315, %v2314
        %v2433 = vpack.c.b16 %v2317, %v2316
        %v2434 = vpack.c.b16 %v2319, %v2318
        %v2435 = vpack.c.b16 %v2321, %v2320
        %v2436 = vpack.c.b16 %v2323, %v2322
        %v2437 = vpack.c.b16 %v2325, %v2324
        %v2438 = vpack.c.b16 %v2327, %v2326
        %v2439 = vpack.c.b16 %v2329, %v2328
        %v2440 = vpack.c.b16 %v2331, %v2330
        %v2441 = vpack.c.b16 %v2333, %v2332
        %v2442 = vpack.c.b16 %v2335, %v2334
        %v2443 = vpack.c.b16 %v2337, %v2336
        %v2444 = vpack.c.b16 %v2339, %v2338
        %v2445 = vpack.c.b16 %v2341, %v2340
        %v2446 = vpack.c.b16 %v2343, %v2342
        %v2447 = vpack.c.b16 %v2345, %v2344
        %v2448 = vpack.c.b16 %v2347, %v2346
        %v2449 = vpack.c.b16 %v2349, %v2348
        %v2450 = vpack.c.b16 %v2351, %v2350
        %v2451 = vpack.c.b16 %v2353, %v2352
        %v2452 = vpack.c.b16 %v2355, %v2354
        %v2453 = vpack.c.b16 %v2357, %v2356
        %v2454 = vpack.c.b16 %v2359, %v2358
        %v2455 = vpack.c.b16 %v2361, %v2360
        %v2456 = vpack.c.b16 %v2363, %v2362
        %v2457 = vpack.c.b16 %v2365, %v2364
        %v2458 = vpack.c.b16 %v2367, %v2366
        %v2459 = vpack.c.b16 %v2369, %v2368
        %v2460 = vpack.c.b16 %v2371, %v2370
        %v2461 = vpack.c.b16 %v2373, %v2372
        %v2462 = vpack.c.b16 %v2375, %v2374
        %v2463 = vpack.c.b16 %v2377, %v2376
        %v2464 = vpack.c.b16 %v2379, %v2378
        %v2465 = vpack.c.b16 %v2381, %v2380
        %v2466 = vpack.c.b16 %v2383, %v2382
        %v2467 = vpack.c.b16 %v2385, %v2384
        %v2468 = vpack.c.b16 %v2387, %v2386
        %v2469 = vpack.c.b16 %v2389, %v2388
        %v2470 = vpack.c.b16 %v2391, %v2390
        %v2471 = vpack.c.b16 %v2393, %v2392
        %v2472 = vpack.c.b16 %v2395, %v2394
        %v2473 = vpack.c.b16 %v2397, %v2396
        %v2474 = vpack.c.b16 %v2399, %v2398
        %v2475 = vpack.c.b16 %v2401, %v2400
        %v2476 = vpack.c.b16 %v2403, %v2402
        %v2477 = vpack.c.b16 %v2405, %v2404
        %2550 = vmatprep.subr.bf16.mxu0 0
        %2551 = vmatpush1.bf16.msra.mxu0 %v2406
        %2552 = vmatprep.subr.bf16.mxu0 0
        %2553 = vmatpush1.bf16.msra.mxu0 %v2407
        %2554 = vmatprep.subr.bf16.mxu0 0
        %2555 = vmatpush1.bf16.msra.mxu0 %v2408
        %2556 = vmatprep.subr.bf16.mxu0 0
        %2557 = vmatpush1.bf16.msra.mxu0 %v2409
        %2558 = vmatprep.subr.bf16.mxu0 0
        %2559 = vmatpush1.bf16.msra.mxu0 %v2410
        %2560 = vmatprep.subr.bf16.mxu0 0
        %2561 = vmatpush1.bf16.msra.mxu0 %v2411
        %2562 = vmatprep.subr.bf16.mxu0 0
        %2563 = vmatpush1.bf16.msra.mxu0 %v2412
        %2564 = vmatprep.subr.bf16.mxu0 0
        %2565 = vmatpush1.bf16.msra.mxu0 %v2413
        %2566 = vmatprep.subr.bf16.mxu0 0
        %2567 = vmatpush1.bf16.msra.mxu0 %v2414
        %2568 = vmatprep.subr.bf16.mxu0 0
        %2569 = vmatpush1.bf16.msra.mxu0 %v2415
        %2570 = vmatprep.subr.bf16.mxu0 0
        %2571 = vmatpush1.bf16.msra.mxu0 %v2416
        %2572 = vmatprep.subr.bf16.mxu0 0
        %2573 = vmatpush1.bf16.msra.mxu0 %v2417
        %2574 = vmatprep.subr.bf16.mxu0 0
        %2575 = vmatpush1.bf16.msra.mxu0 %v2418
        %2576 = vmatprep.subr.bf16.mxu0 0
        %2577 = vmatpush1.bf16.msra.mxu0 %v2419
        %2578 = vmatprep.subr.bf16.mxu0 0
        %2579 = vmatpush1.bf16.msra.mxu0 %v2420
        %2580 = vmatprep.subr.bf16.mxu0 0
        %2581 = vmatpush1.bf16.msra.mxu0 %v2421
        %2582 = vmatprep.mubr.bf16.mxu0 %v1338
        %2583 = vmatmul.mubr.bf16.gmra.mrb[0].mxu0 %v1610
        %v2584 = vpop.f32.mrb[0].mxu0
        %v2585 = vadd.f32 %v2116, %v2584
        %v2586 = vpop.f32.mrb[0].mxu0
        %v2587 = vpop.f32.mrb[0].mxu0
        %v2588 = vadd.f32 %v2116, %v2587
        %v2589 = vpop.f32.mrb[0].mxu0
        %2590 = vmatprep.mubr.bf16.mxu0 %v1339
        %2591 = vmatmul.mubr.bf16.gmra.mrb[0].mxu0 %v1380
        %v2592 = vpop.f32.mrb[0].mxu0
        %v2593 = vadd.f32 %v2116, %v2592
        %v2594 = vpop.f32.mrb[0].mxu0
        %v2595 = vpop.f32.mrb[0].mxu0
        %v2596 = vadd.f32 %v2116, %v2595
        %v2597 = vpop.f32.mrb[0].mxu0
        %2598 = vmatprep.mubr.bf16.mxu0 %v1340
        %2599 = vmatmul.mubr.bf16.gmra.mrb[0].mxu0 %v1388
        %v2600 = vpop.f32.mrb[0].mxu0
        %v2601 = vadd.f32 %v2116, %v2600
        %v2602 = vpop.f32.mrb[0].mxu0
        %v2603 = vpop.f32.mrb[0].mxu0
        %v2604 = vadd.f32 %v2116, %v2603
        %v2605 = vpop.f32.mrb[0].mxu0
        %2606 = vmatprep.mubr.bf16.mxu0 %v1341
        %2607 = vmatmul.mubr.bf16.gmra.mrb[0].mxu0 %v1396
        %v2608 = vpop.f32.mrb[0].mxu0
        %v2609 = vadd.f32 %v2116, %v2608
        %v2610 = vpop.f32.mrb[0].mxu0
        %v2611 = vpop.f32.mrb[0].mxu0
        %v2612 = vadd.f32 %v2116, %v2611
        %v2613 = vpop.f32.mrb[0].mxu0
        %2614 = vmatprep.mubr.bf16.mxu0 %v1342
        %2615 = vmatmul.mubr.bf16.gmra.mrb[0].mxu0 %v1404
        %v2616 = vpop.f32.mrb[0].mxu0
        %v2617 = vadd.f32 %v2116, %v2616
        %v2618 = vpop.f32.mrb[0].mxu0
        %v2619 = vpop.f32.mrb[0].mxu0
        %v2620 = vadd.f32 %v2116, %v2619
        %v2621 = vpop.f32.mrb[0].mxu0
        %2622 = vmatprep.mubr.bf16.mxu0 %v1343
        %2623 = vmatmul.mubr.bf16.gmra.mrb[0].mxu0 %v1412
        %v2624 = vpop.f32.mrb[0].mxu0
        %v2625 = vadd.f32 %v2116, %v2624
        %v2626 = vpop.f32.mrb[0].mxu0
        %v2627 = vpop.f32.mrb[0].mxu0
        %v2628 = vadd.f32 %v2116, %v2627
        %v2629 = vpop.f32.mrb[0].mxu0
        %2630 = vmatprep.mubr.bf16.mxu0 %v1344
        %2631 = vmatmul.mubr.bf16.gmra.mrb[0].mxu0 %v1420
        %v2632 = vpop.f32.mrb[0].mxu0
        %v2633 = vadd.f32 %v2116, %v2632
        %v2634 = vpop.f32.mrb[0].mxu0
        %v2635 = vpop.f32.mrb[0].mxu0
        %v2636 = vadd.f32 %v2116, %v2635
        %v2637 = vpop.f32.mrb[0].mxu0
        %2638 = vmatprep.mubr.bf16.mxu0 %v1345
        %2639 = vmatmul.mubr.bf16.gmra.mrb[0].mxu0 %v1428
        %v2640 = vpop.f32.mrb[0].mxu0
        %v2641 = vadd.f32 %v2116, %v2640
        %v2642 = vpop.f32.mrb[0].mxu0
        %v2643 = vpop.f32.mrb[0].mxu0
        %v2644 = vadd.f32 %v2116, %v2643
        %v2645 = vpop.f32.mrb[0].mxu0
        %2646 = vmatprep.mubr.bf16.mxu0 %v1346
        %2647 = vmatmul.mubr.bf16.gmra.mrb[0].mxu0 %v1436
        %v2648 = vpop.f32.mrb[0].mxu0
        %v2649 = vadd.f32 %v2116, %v2648
        %v2650 = vpop.f32.mrb[0].mxu0
        %v2651 = vpop.f32.mrb[0].mxu0
        %v2652 = vadd.f32 %v2116, %v2651
        %v2653 = vpop.f32.mrb[0].mxu0
        %2654 = vmatprep.mubr.bf16.mxu0 %v1347
        %2655 = vmatmul.mubr.bf16.gmra.mrb[0].mxu0 %v1444
        %v2656 = vpop.f32.mrb[0].mxu0
        %v2657 = vadd.f32 %v2116, %v2656
        %v2658 = vpop.f32.mrb[0].mxu0
        %v2659 = vpop.f32.mrb[0].mxu0
        %v2660 = vadd.f32 %v2116, %v2659
        %v2661 = vpop.f32.mrb[0].mxu0
        %2662 = vmatprep.mubr.bf16.mxu0 %v1348
        %2663 = vmatmul.mubr.bf16.gmra.mrb[0].mxu0 %v1452
        %v2664 = vpop.f32.mrb[0].mxu0
        %v2665 = vadd.f32 %v2116, %v2664
        %v2666 = vpop.f32.mrb[0].mxu0
        %v2667 = vpop.f32.mrb[0].mxu0
        %v2668 = vadd.f32 %v2116, %v2667
        %v2669 = vpop.f32.mrb[0].mxu0
        %2670 = vmatprep.mubr.bf16.mxu0 %v1349
        %2671 = vmatmul.mubr.bf16.gmra.mrb[0].mxu0 %v1460
        %v2672 = vpop.f32.mrb[0].mxu0
        %v2673 = vadd.f32 %v2116, %v2672
        %v2674 = vpop.f32.mrb[0].mxu0
        %v2675 = vpop.f32.mrb[0].mxu0
        %v2676 = vadd.f32 %v2116, %v2675
        %v2677 = vpop.f32.mrb[0].mxu0
        %2678 = vmatprep.mubr.bf16.mxu0 %v1350
        %2679 = vmatmul.mubr.bf16.gmra.mrb[0].mxu0 %v1468
        %v2680 = vpop.f32.mrb[0].mxu0
        %v2681 = vadd.f32 %v2116, %v2680
        %v2682 = vpop.f32.mrb[0].mxu0
        %v2683 = vpop.f32.mrb[0].mxu0
        %v2684 = vadd.f32 %v2116, %v2683
        %v2685 = vpop.f32.mrb[0].mxu0
        %2686 = vmatprep.mubr.bf16.mxu0 %v1351
        %2687 = vmatmul.mubr.bf16.gmra.mrb[0].mxu0 %v1476
        %v2688 = vpop.f32.mrb[0].mxu0
        %v2689 = vadd.f32 %v2116, %v2688
        %v2690 = vpop.f32.mrb[0].mxu0
        %v2691 = vpop.f32.mrb[0].mxu0
        %v2692 = vadd.f32 %v2116, %v2691
        %v2693 = vpop.f32.mrb[0].mxu0
        %2694 = vmatprep.mubr.bf16.mxu0 %v1352
        %2695 = vmatmul.mubr.bf16.gmra.mrb[0].mxu0 %v1484
        %v2696 = vpop.f32.mrb[0].mxu0
        %v2697 = vadd.f32 %v2116, %v2696
        %v2698 = vpop.f32.mrb[0].mxu0
        %v2699 = vpop.f32.mrb[0].mxu0
        %v2700 = vadd.f32 %v2116, %v2699
        %v2701 = vpop.f32.mrb[0].mxu0
        %2702 = vmatprep.mubr.bf16.mxu0 %v1353
        %2703 = vmatmul.mubr.bf16.gmra.mrb[0].mxu0 %v1492
        %v2704 = vpop.f32.mrb[0].mxu0
        %v2705 = vadd.f32 %v2116, %v2704
        %v2706 = vpop.f32.mrb[0].mxu0
        %v2707 = vpop.f32.mrb[0].mxu0
        %v2708 = vadd.f32 %v2116, %v2707
        %v2709 = vpop.f32.mrb[0].mxu0
        %2710 = vmatprep.mubr.bf16.mxu0 %v1354
        %2711 = vmatmul.mubr.bf16.gmra.mrb[0].mxu0 %v1500
        %v2712 = vpop.f32.mrb[0].mxu0
        %v2713 = vadd.f32 %v2116, %v2712
        %v2714 = vpop.f32.mrb[0].mxu0
        %v2715 = vpop.f32.mrb[0].mxu0
        %v2716 = vadd.f32 %v2116, %v2715
        %v2717 = vpop.f32.mrb[0].mxu0
        %2718 = vmatprep.mubr.bf16.mxu0 %v1355
        %2719 = vmatmul.mubr.bf16.gmra.mrb[0].mxu0 %v1508
        %v2720 = vpop.f32.mrb[0].mxu0
        %v2721 = vadd.f32 %v2116, %v2720
        %v2722 = vpop.f32.mrb[0].mxu0
        %v2723 = vpop.f32.mrb[0].mxu0
        %v2724 = vadd.f32 %v2116, %v2723
        %v2725 = vpop.f32.mrb[0].mxu0
        %2726 = vmatprep.mubr.bf16.mxu0 %v1356
        %2727 = vmatmul.mubr.bf16.gmra.mrb[0].mxu0 %v1516
        %v2728 = vpop.f32.mrb[0].mxu0
        %v2729 = vadd.f32 %v2116, %v2728
        %v2730 = vpop.f32.mrb[0].mxu0
        %v2731 = vpop.f32.mrb[0].mxu0
        %v2732 = vadd.f32 %v2116, %v2731
        %v2733 = vpop.f32.mrb[0].mxu0
        %2734 = vmatprep.mubr.bf16.mxu0 %v1357
        %2735 = vmatmul.mubr.bf16.gmra.mrb[0].mxu0 %v1524
        %v2736 = vpop.f32.mrb[0].mxu0
        %v2737 = vadd.f32 %v2116, %v2736
        %v2738 = vpop.f32.mrb[0].mxu0
        %v2739 = vpop.f32.mrb[0].mxu0
        %v2740 = vadd.f32 %v2116, %v2739
        %v2741 = vpop.f32.mrb[0].mxu0
        %2742 = vmatprep.mubr.bf16.mxu0 %v1358
        %2743 = vmatmul.mubr.bf16.gmra.mrb[0].mxu0 %v1532
        %v2744 = vpop.f32.mrb[0].mxu0
        %v2745 = vadd.f32 %v2116, %v2744
        %v2746 = vpop.f32.mrb[0].mxu0
        %v2747 = vpop.f32.mrb[0].mxu0
        %v2748 = vadd.f32 %v2116, %v2747
        %v2749 = vpop.f32.mrb[0].mxu0
        %2750 = vmatprep.mubr.bf16.mxu0 %v1359
        %2751 = vmatmul.mubr.bf16.gmra.mrb[0].mxu0 %v1540
        %v2752 = vpop.f32.mrb[0].mxu0
        %v2753 = vadd.f32 %v2116, %v2752
        %v2754 = vpop.f32.mrb[0].mxu0
        %v2755 = vpop.f32.mrb[0].mxu0
        %v2756 = vadd.f32 %v2116, %v2755
        %v2757 = vpop.f32.mrb[0].mxu0
        %2758 = vmatprep.mubr.bf16.mxu0 %v1360
        %2759 = vmatmul.mubr.bf16.gmra.mrb[0].mxu0 %v1548
        %v2760 = vpop.f32.mrb[0].mxu0
        %v2761 = vadd.f32 %v2116, %v2760
        %v2762 = vpop.f32.mrb[0].mxu0
        %v2763 = vpop.f32.mrb[0].mxu0
        %v2764 = vadd.f32 %v2116, %v2763
        %v2765 = vpop.f32.mrb[0].mxu0
        %2766 = vmatprep.mubr.bf16.mxu0 %v1361
        %2767 = vmatmul.mubr.bf16.gmra.mrb[0].mxu0 %v1556
        %v2768 = vpop.f32.mrb[0].mxu0
        %v2769 = vadd.f32 %v2116, %v2768
        %v2770 = vpop.f32.mrb[0].mxu0
        %v2771 = vpop.f32.mrb[0].mxu0
        %v2772 = vadd.f32 %v2116, %v2771
        %v2773 = vpop.f32.mrb[0].mxu0
        %2774 = vdwg.mxu0
        %2775 = vmatprep.subr.bf16.mxu0 0
        %2776 = vmatpush1.bf16.msra.mxu0 %v2422
        %2777 = vmatprep.subr.bf16.mxu0 0
        %2778 = vmatpush1.bf16.msra.mxu0 %v2423
        %2779 = vmatprep.subr.bf16.mxu0 0
        %2780 = vmatpush1.bf16.msra.mxu0 %v2424
        %2781 = vmatprep.subr.bf16.mxu0 0
        %2782 = vmatpush1.bf16.msra.mxu0 %v2425
        %2783 = vmatprep.subr.bf16.mxu0 0
        %2784 = vmatpush1.bf16.msra.mxu0 %v2426
        %2785 = vmatprep.subr.bf16.mxu0 0
        %2786 = vmatpush1.bf16.msra.mxu0 %v2427
        %2787 = vmatprep.subr.bf16.mxu0 0
        %2788 = vmatpush1.bf16.msra.mxu0 %v2428
        %2789 = vmatprep.subr.bf16.mxu0 0
        %2790 = vmatpush1.bf16.msra.mxu0 %v2429
        %2791 = vmatprep.subr.bf16.mxu0 0
        %2792 = vmatpush1.bf16.msra.mxu0 %v2430
        %2793 = vmatprep.subr.bf16.mxu0 0
        %2794 = vmatpush1.bf16.msra.mxu0 %v2431
        %2795 = vmatprep.subr.bf16.mxu0 0
        %2796 = vmatpush1.bf16.msra.mxu0 %v2432
        %2797 = vmatprep.subr.bf16.mxu0 0
        %2798 = vmatpush1.bf16.msra.mxu0 %v2433
        %2799 = vmatprep.subr.bf16.mxu0 0
        %2800 = vmatpush1.bf16.msra.mxu0 %v2434
        %2801 = vmatprep.subr.bf16.mxu0 0
        %2802 = vmatpush1.bf16.msra.mxu0 %v2435
        %2803 = vmatprep.subr.bf16.mxu0 0
        %2804 = vmatpush1.bf16.msra.mxu0 %v2436
        %2805 = vmatprep.subr.bf16.mxu0 0
        %2806 = vmatpush1.bf16.msra.mxu0 %v2437
        %2807 = vmatprep.mubr.bf16.mxu0 %v1725
        %2808 = vmatmul.mubr.bf16.gmra.mrb[0].mxu0 %v1615
        %v2809 = vpop.f32.mrb[0].mxu0
        %v2810 = vadd.f32 %v2585, %v2809
        %v2811 = vpop.f32.mrb[0].mxu0
        %v2812 = vpop.f32.mrb[0].mxu0
        %v2813 = vadd.f32 %v2588, %v2812
        %v2814 = vpop.f32.mrb[0].mxu0
        %2815 = vmatprep.mubr.bf16.mxu0 %v1727
        %2816 = vmatmul.mubr.bf16.gmra.mrb[0].mxu0 %v1618
        %v2817 = vpop.f32.mrb[0].mxu0
        %v2818 = vadd.f32 %v2593, %v2817
        %v2819 = vpop.f32.mrb[0].mxu0
        %v2820 = vpop.f32.mrb[0].mxu0
        %v2821 = vadd.f32 %v2596, %v2820
        %v2822 = vpop.f32.mrb[0].mxu0
        %2823 = vmatprep.mubr.bf16.mxu0 %v1729
        %2824 = vmatmul.mubr.bf16.gmra.mrb[0].mxu0 %v1621
        %v2825 = vpop.f32.mrb[0].mxu0
        %v2826 = vadd.f32 %v2601, %v2825
        %v2827 = vpop.f32.mrb[0].mxu0
        %v2828 = vpop.f32.mrb[0].mxu0
        %v2829 = vadd.f32 %v2604, %v2828
        %v2830 = vpop.f32.mrb[0].mxu0
        %2831 = vmatprep.mubr.bf16.mxu0 %v1731
        %2832 = vmatmul.mubr.bf16.gmra.mrb[0].mxu0 %v1624
        %v2833 = vpop.f32.mrb[0].mxu0
        %v2834 = vadd.f32 %v2609, %v2833
        %v2835 = vpop.f32.mrb[0].mxu0
        %v2836 = vpop.f32.mrb[0].mxu0
        %v2837 = vadd.f32 %v2612, %v2836
        %v2838 = vpop.f32.mrb[0].mxu0
        %2839 = vmatprep.mubr.bf16.mxu0 %v1733
        %2840 = vmatmul.mubr.bf16.gmra.mrb[0].mxu0 %v1627
        %v2841 = vpop.f32.mrb[0].mxu0
        %v2842 = vadd.f32 %v2617, %v2841
        %v2843 = vpop.f32.mrb[0].mxu0
        %v2844 = vpop.f32.mrb[0].mxu0
        %v2845 = vadd.f32 %v2620, %v2844
        %v2846 = vpop.f32.mrb[0].mxu0
        %2847 = vmatprep.mubr.bf16.mxu0 %v1735
        %2848 = vmatmul.mubr.bf16.gmra.mrb[0].mxu0 %v1630
        %v2849 = vpop.f32.mrb[0].mxu0
        %v2850 = vadd.f32 %v2625, %v2849
        %v2851 = vpop.f32.mrb[0].mxu0
        %v2852 = vpop.f32.mrb[0].mxu0
        %v2853 = vadd.f32 %v2628, %v2852
        %v2854 = vpop.f32.mrb[0].mxu0
        %2855 = vmatprep.mubr.bf16.mxu0 %v1737
        %2856 = vmatmul.mubr.bf16.gmra.mrb[0].mxu0 %v1633
        %v2857 = vpop.f32.mrb[0].mxu0
        %v2858 = vadd.f32 %v2633, %v2857
        %v2859 = vpop.f32.mrb[0].mxu0
        %v2860 = vpop.f32.mrb[0].mxu0
        %v2861 = vadd.f32 %v2636, %v2860
        %v2862 = vpop.f32.mrb[0].mxu0
        %2863 = vmatprep.mubr.bf16.mxu0 %v1739
        %2864 = vmatmul.mubr.bf16.gmra.mrb[0].mxu0 %v1636
        %v2865 = vpop.f32.mrb[0].mxu0
        %v2866 = vadd.f32 %v2641, %v2865
        %v2867 = vpop.f32.mrb[0].mxu0
        %v2868 = vpop.f32.mrb[0].mxu0
        %v2869 = vadd.f32 %v2644, %v2868
        %v2870 = vpop.f32.mrb[0].mxu0
        %2871 = vmatprep.mubr.bf16.mxu0 %v1741
        %2872 = vmatmul.mubr.bf16.gmra.mrb[0].mxu0 %v1639
        %v2873 = vpop.f32.mrb[0].mxu0
        %v2874 = vadd.f32 %v2649, %v2873
        %v2875 = vpop.f32.mrb[0].mxu0
        %v2876 = vpop.f32.mrb[0].mxu0
        %v2877 = vadd.f32 %v2652, %v2876
        %v2878 = vpop.f32.mrb[0].mxu0
        %2879 = vmatprep.mubr.bf16.mxu0 %v1743
        %2880 = vmatmul.mubr.bf16.gmra.mrb[0].mxu0 %v1642
        %v2881 = vpop.f32.mrb[0].mxu0
        %v2882 = vadd.f32 %v2657, %v2881
        %v2883 = vpop.f32.mrb[0].mxu0
        %v2884 = vpop.f32.mrb[0].mxu0
        %v2885 = vadd.f32 %v2660, %v2884
        %v2886 = vpop.f32.mrb[0].mxu0
        %2887 = vmatprep.mubr.bf16.mxu0 %v1745
        %2888 = vmatmul.mubr.bf16.gmra.mrb[0].mxu0 %v1645
        %v2889 = vpop.f32.mrb[0].mxu0
        %v2890 = vadd.f32 %v2665, %v2889
        %v2891 = vpop.f32.mrb[0].mxu0
        %v2892 = vpop.f32.mrb[0].mxu0
        %v2893 = vadd.f32 %v2668, %v2892
        %v2894 = vpop.f32.mrb[0].mxu0
        %2895 = vmatprep.mubr.bf16.mxu0 %v1747
        %2896 = vmatmul.mubr.bf16.gmra.mrb[0].mxu0 %v1648
        %v2897 = vpop.f32.mrb[0].mxu0
        %v2898 = vadd.f32 %v2673, %v2897
        %v2899 = vpop.f32.mrb[0].mxu0
        %v2900 = vpop.f32.mrb[0].mxu0
        %v2901 = vadd.f32 %v2676, %v2900
        %v2902 = vpop.f32.mrb[0].mxu0
        %2903 = vmatprep.mubr.bf16.mxu0 %v1749
        %2904 = vmatmul.mubr.bf16.gmra.mrb[0].mxu0 %v1651
        %v2905 = vpop.f32.mrb[0].mxu0
        %v2906 = vadd.f32 %v2681, %v2905
        %v2907 = vpop.f32.mrb[0].mxu0
        %v2908 = vpop.f32.mrb[0].mxu0
        %v2909 = vadd.f32 %v2684, %v2908
        %v2910 = vpop.f32.mrb[0].mxu0
        %2911 = vmatprep.mubr.bf16.mxu0 %v1751
        %2912 = vmatmul.mubr.bf16.gmra.mrb[0].mxu0 %v1654
        %v2913 = vpop.f32.mrb[0].mxu0
        %v2914 = vadd.f32 %v2689, %v2913
        %v2915 = vpop.f32.mrb[0].mxu0
        %v2916 = vpop.f32.mrb[0].mxu0
        %v2917 = vadd.f32 %v2692, %v2916
        %v2918 = vpop.f32.mrb[0].mxu0
        %2919 = vmatprep.mubr.bf16.mxu0 %v1753
        %2920 = vmatmul.mubr.bf16.gmra.mrb[0].mxu0 %v1657
        %v2921 = vpop.f32.mrb[0].mxu0
        %v2922 = vadd.f32 %v2697, %v2921
        %v2923 = vpop.f32.mrb[0].mxu0
        %v2924 = vpop.f32.mrb[0].mxu0
        %v2925 = vadd.f32 %v2700, %v2924
        %v2926 = vpop.f32.mrb[0].mxu0
        %2927 = vmatprep.mubr.bf16.mxu0 %v1755
        %2928 = vmatmul.mubr.bf16.gmra.mrb[0].mxu0 %v1660
        %v2929 = vpop.f32.mrb[0].mxu0
        %v2930 = vadd.f32 %v2705, %v2929
        %v2931 = vpop.f32.mrb[0].mxu0
        %v2932 = vpop.f32.mrb[0].mxu0
        %v2933 = vadd.f32 %v2708, %v2932
        %v2934 = vpop.f32.mrb[0].mxu0
        %2935 = vmatprep.mubr.bf16.mxu0 %v1757
        %2936 = vmatmul.mubr.bf16.gmra.mrb[0].mxu0 %v1663
        %v2937 = vpop.f32.mrb[0].mxu0
        %v2938 = vadd.f32 %v2713, %v2937
        %v2939 = vpop.f32.mrb[0].mxu0
        %v2940 = vpop.f32.mrb[0].mxu0
        %v2941 = vadd.f32 %v2716, %v2940
        %v2942 = vpop.f32.mrb[0].mxu0
        %2943 = vmatprep.mubr.bf16.mxu0 %v1759
        %2944 = vmatmul.mubr.bf16.gmra.mrb[0].mxu0 %v1666
        %v2945 = vpop.f32.mrb[0].mxu0
        %v2946 = vadd.f32 %v2721, %v2945
        %v2947 = vpop.f32.mrb[0].mxu0
        %v2948 = vpop.f32.mrb[0].mxu0
        %v2949 = vadd.f32 %v2724, %v2948
        %v2950 = vpop.f32.mrb[0].mxu0
        %2951 = vmatprep.mubr.bf16.mxu0 %v1761
        %2952 = vmatmul.mubr.bf16.gmra.mrb[0].mxu0 %v1669
        %v2953 = vpop.f32.mrb[0].mxu0
        %v2954 = vadd.f32 %v2729, %v2953
        %v2955 = vpop.f32.mrb[0].mxu0
        %v2956 = vpop.f32.mrb[0].mxu0
        %v2957 = vadd.f32 %v2732, %v2956
        %v2958 = vpop.f32.mrb[0].mxu0
        %2959 = vmatprep.mubr.bf16.mxu0 %v1763
        %2960 = vmatmul.mubr.bf16.gmra.mrb[0].mxu0 %v1672
        %v2961 = vpop.f32.mrb[0].mxu0
        %v2962 = vadd.f32 %v2737, %v2961
        %v2963 = vpop.f32.mrb[0].mxu0
        %v2964 = vpop.f32.mrb[0].mxu0
        %v2965 = vadd.f32 %v2740, %v2964
        %v2966 = vpop.f32.mrb[0].mxu0
        %2967 = vmatprep.mubr.bf16.mxu0 %v1765
        %2968 = vmatmul.mubr.bf16.gmra.mrb[0].mxu0 %v1675
        %v2969 = vpop.f32.mrb[0].mxu0
        %v2970 = vadd.f32 %v2745, %v2969
        %v2971 = vpop.f32.mrb[0].mxu0
        %v2972 = vpop.f32.mrb[0].mxu0
        %v2973 = vadd.f32 %v2748, %v2972
        %v2974 = vpop.f32.mrb[0].mxu0
        %2975 = vmatprep.mubr.bf16.mxu0 %v1767
        %2976 = vmatmul.mubr.bf16.gmra.mrb[0].mxu0 %v1678
        %v2977 = vpop.f32.mrb[0].mxu0
        %v2978 = vadd.f32 %v2753, %v2977
        %v2979 = vpop.f32.mrb[0].mxu0
        %v2980 = vpop.f32.mrb[0].mxu0
        %v2981 = vadd.f32 %v2756, %v2980
        %v2982 = vpop.f32.mrb[0].mxu0
        %2983 = vmatprep.mubr.bf16.mxu0 %v1769
        %2984 = vmatmul.mubr.bf16.gmra.mrb[0].mxu0 %v1681
        %v2985 = vpop.f32.mrb[0].mxu0
        %v2986 = vadd.f32 %v2761, %v2985
        %v2987 = vpop.f32.mrb[0].mxu0
        %v2988 = vpop.f32.mrb[0].mxu0
        %v2989 = vadd.f32 %v2764, %v2988
        %v2990 = vpop.f32.mrb[0].mxu0
        %2991 = vmatprep.mubr.bf16.mxu0 %v1771
        %2992 = vmatmul.mubr.bf16.gmra.mrb[0].mxu0 %v1684
        %v2993 = vpop.f32.mrb[0].mxu0
        %v2994 = vadd.f32 %v2769, %v2993
        %v2995 = vpop.f32.mrb[0].mxu0
        %v2996 = vpop.f32.mrb[0].mxu0
        %v2997 = vadd.f32 %v2772, %v2996
        %v2998 = vpop.f32.mrb[0].mxu0
        %2999 = vdwg.mxu0
        %3000 = vmatprep.subr.bf16.mxu0 0
        %3001 = vmatpush1.bf16.msra.mxu0 %v2438
        %3002 = vmatprep.subr.bf16.mxu0 0
        %3003 = vmatpush1.bf16.msra.mxu0 %v2439
        %3004 = vmatprep.subr.bf16.mxu0 0
        %3005 = vmatpush1.bf16.msra.mxu0 %v2440
        %3006 = vmatprep.subr.bf16.mxu0 0
        %3007 = vmatpush1.bf16.msra.mxu0 %v2441
        %3008 = vmatprep.subr.bf16.mxu0 0
        %3009 = vmatpush1.bf16.msra.mxu0 %v2442
        %3010 = vmatprep.subr.bf16.mxu0 0
        %3011 = vmatpush1.bf16.msra.mxu0 %v2443
        %3012 = vmatprep.subr.bf16.mxu0 0
        %3013 = vmatpush1.bf16.msra.mxu0 %v2444
        %3014 = vmatprep.subr.bf16.mxu0 0
        %3015 = vmatpush1.bf16.msra.mxu0 %v2445
        %3016 = vmatprep.subr.bf16.mxu0 0
        %3017 = vmatpush1.bf16.msra.mxu0 %v2446
        %3018 = vmatprep.subr.bf16.mxu0 0
        %3019 = vmatpush1.bf16.msra.mxu0 %v2447
        %3020 = vmatprep.subr.bf16.mxu0 0
        %3021 = vmatpush1.bf16.msra.mxu0 %v2448
        %3022 = vmatprep.subr.bf16.mxu0 0
        %3023 = vmatpush1.bf16.msra.mxu0 %v2449
        %3024 = vmatprep.subr.bf16.mxu0 0
        %3025 = vmatpush1.bf16.msra.mxu0 %v2450
        %3026 = vmatprep.subr.bf16.mxu0 0
        %3027 = vmatpush1.bf16.msra.mxu0 %v2451
        %3028 = vmatprep.subr.bf16.mxu0 0
        %3029 = vmatpush1.bf16.msra.mxu0 %v2452
        %3030 = vmatprep.subr.bf16.mxu0 0
        %3031 = vmatpush1.bf16.msra.mxu0 %v2453
        %3032 = vmatprep.mubr.bf16.mxu0 %v1896
        %3033 = vmatmul.mubr.bf16.gmra.mrb[0].mxu0 %v1823
        %v3034 = vpop.f32.mrb[0].mxu0
        %v3035 = vadd.f32 %v2810, %v3034
        %v3036 = vpop.f32.mrb[0].mxu0
        %v3037 = vpop.f32.mrb[0].mxu0
        %v3038 = vadd.f32 %v2813, %v3037
        %v3039 = vpop.f32.mrb[0].mxu0
        %3040 = vmatprep.mubr.bf16.mxu0 %v1898
        %3041 = vmatmul.mubr.bf16.gmra.mrb[0].mxu0 %v1825
        %v3042 = vpop.f32.mrb[0].mxu0
        %v3043 = vadd.f32 %v2818, %v3042
        %v3044 = vpop.f32.mrb[0].mxu0
        %v3045 = vpop.f32.mrb[0].mxu0
        %v3046 = vadd.f32 %v2821, %v3045
        %v3047 = vpop.f32.mrb[0].mxu0
        %3048 = vmatprep.mubr.bf16.mxu0 %v1900
        %3049 = vmatmul.mubr.bf16.gmra.mrb[0].mxu0 %v1827
        %v3050 = vpop.f32.mrb[0].mxu0
        %v3051 = vadd.f32 %v2826, %v3050
        %v3052 = vpop.f32.mrb[0].mxu0
        %v3053 = vpop.f32.mrb[0].mxu0
        %v3054 = vadd.f32 %v2829, %v3053
        %v3055 = vpop.f32.mrb[0].mxu0
        %3056 = vmatprep.mubr.bf16.mxu0 %v1902
        %3057 = vmatmul.mubr.bf16.gmra.mrb[0].mxu0 %v1829
        %v3058 = vpop.f32.mrb[0].mxu0
        %v3059 = vadd.f32 %v2834, %v3058
        %v3060 = vpop.f32.mrb[0].mxu0
        %v3061 = vpop.f32.mrb[0].mxu0
        %v3062 = vadd.f32 %v2837, %v3061
        %v3063 = vpop.f32.mrb[0].mxu0
        %3064 = vmatprep.mubr.bf16.mxu0 %v1904
        %3065 = vmatmul.mubr.bf16.gmra.mrb[0].mxu0 %v1831
        %v3066 = vpop.f32.mrb[0].mxu0
        %v3067 = vadd.f32 %v2842, %v3066
        %v3068 = vpop.f32.mrb[0].mxu0
        %v3069 = vpop.f32.mrb[0].mxu0
        %v3070 = vadd.f32 %v2845, %v3069
        %v3071 = vpop.f32.mrb[0].mxu0
        %3072 = vmatprep.mubr.bf16.mxu0 %v1906
        %3073 = vmatmul.mubr.bf16.gmra.mrb[0].mxu0 %v1833
        %v3074 = vpop.f32.mrb[0].mxu0
        %v3075 = vadd.f32 %v2850, %v3074
        %v3076 = vpop.f32.mrb[0].mxu0
        %v3077 = vpop.f32.mrb[0].mxu0
        %v3078 = vadd.f32 %v2853, %v3077
        %v3079 = vpop.f32.mrb[0].mxu0
        %3080 = vmatprep.mubr.bf16.mxu0 %v1908
        %3081 = vmatmul.mubr.bf16.gmra.mrb[0].mxu0 %v1835
        %v3082 = vpop.f32.mrb[0].mxu0
        %v3083 = vadd.f32 %v2858, %v3082
        %v3084 = vpop.f32.mrb[0].mxu0
        %v3085 = vpop.f32.mrb[0].mxu0
        %v3086 = vadd.f32 %v2861, %v3085
        %v3087 = vpop.f32.mrb[0].mxu0
        %3088 = vmatprep.mubr.bf16.mxu0 %v1910
        %3089 = vmatmul.mubr.bf16.gmra.mrb[0].mxu0 %v1837
        %v3090 = vpop.f32.mrb[0].mxu0
        %v3091 = vadd.f32 %v2866, %v3090
        %v3092 = vpop.f32.mrb[0].mxu0
        %v3093 = vpop.f32.mrb[0].mxu0
        %v3094 = vadd.f32 %v2869, %v3093
        %v3095 = vpop.f32.mrb[0].mxu0
        %3096 = vmatprep.mubr.bf16.mxu0 %v1912
        %3097 = vmatmul.mubr.bf16.gmra.mrb[0].mxu0 %v1839
        %v3098 = vpop.f32.mrb[0].mxu0
        %v3099 = vadd.f32 %v2874, %v3098
        %v3100 = vpop.f32.mrb[0].mxu0
        %v3101 = vpop.f32.mrb[0].mxu0
        %v3102 = vadd.f32 %v2877, %v3101
        %v3103 = vpop.f32.mrb[0].mxu0
        %3104 = vmatprep.mubr.bf16.mxu0 %v1914
        %3105 = vmatmul.mubr.bf16.gmra.mrb[0].mxu0 %v1841
        %v3106 = vpop.f32.mrb[0].mxu0
        %v3107 = vadd.f32 %v2882, %v3106
        %v3108 = vpop.f32.mrb[0].mxu0
        %v3109 = vpop.f32.mrb[0].mxu0
        %v3110 = vadd.f32 %v2885, %v3109
        %v3111 = vpop.f32.mrb[0].mxu0
        %3112 = vmatprep.mubr.bf16.mxu0 %v1916
        %3113 = vmatmul.mubr.bf16.gmra.mrb[0].mxu0 %v1843
        %v3114 = vpop.f32.mrb[0].mxu0
        %v3115 = vadd.f32 %v2890, %v3114
        %v3116 = vpop.f32.mrb[0].mxu0
        %v3117 = vpop.f32.mrb[0].mxu0
        %v3118 = vadd.f32 %v2893, %v3117
        %v3119 = vpop.f32.mrb[0].mxu0
        %3120 = vmatprep.mubr.bf16.mxu0 %v1918
        %3121 = vmatmul.mubr.bf16.gmra.mrb[0].mxu0 %v1845
        %v3122 = vpop.f32.mrb[0].mxu0
        %v3123 = vadd.f32 %v2898, %v3122
        %v3124 = vpop.f32.mrb[0].mxu0
        %v3125 = vpop.f32.mrb[0].mxu0
        %v3126 = vadd.f32 %v2901, %v3125
        %v3127 = vpop.f32.mrb[0].mxu0
        %3128 = vmatprep.mubr.bf16.mxu0 %v1920
        %3129 = vmatmul.mubr.bf16.gmra.mrb[0].mxu0 %v1847
        %v3130 = vpop.f32.mrb[0].mxu0
        %v3131 = vadd.f32 %v2906, %v3130
        %v3132 = vpop.f32.mrb[0].mxu0
        %v3133 = vpop.f32.mrb[0].mxu0
        %v3134 = vadd.f32 %v2909, %v3133
        %v3135 = vpop.f32.mrb[0].mxu0
        %3136 = vmatprep.mubr.bf16.mxu0 %v1922
        %3137 = vmatmul.mubr.bf16.gmra.mrb[0].mxu0 %v1849
        %v3138 = vpop.f32.mrb[0].mxu0
        %v3139 = vadd.f32 %v2914, %v3138
        %v3140 = vpop.f32.mrb[0].mxu0
        %v3141 = vpop.f32.mrb[0].mxu0
        %v3142 = vadd.f32 %v2917, %v3141
        %v3143 = vpop.f32.mrb[0].mxu0
        %3144 = vmatprep.mubr.bf16.mxu0 %v1924
        %3145 = vmatmul.mubr.bf16.gmra.mrb[0].mxu0 %v1851
        %v3146 = vpop.f32.mrb[0].mxu0
        %v3147 = vadd.f32 %v2922, %v3146
        %v3148 = vpop.f32.mrb[0].mxu0
        %v3149 = vpop.f32.mrb[0].mxu0
        %v3150 = vadd.f32 %v2925, %v3149
        %v3151 = vpop.f32.mrb[0].mxu0
        %3152 = vmatprep.mubr.bf16.mxu0 %v1926
        %3153 = vmatmul.mubr.bf16.gmra.mrb[0].mxu0 %v1853
        %v3154 = vpop.f32.mrb[0].mxu0
        %v3155 = vadd.f32 %v2930, %v3154
        %v3156 = vpop.f32.mrb[0].mxu0
        %v3157 = vpop.f32.mrb[0].mxu0
        %v3158 = vadd.f32 %v2933, %v3157
        %v3159 = vpop.f32.mrb[0].mxu0
        %3160 = vmatprep.mubr.bf16.mxu0 %v1928
        %3161 = vmatmul.mubr.bf16.gmra.mrb[0].mxu0 %v1855
        %v3162 = vpop.f32.mrb[0].mxu0
        %v3163 = vadd.f32 %v2938, %v3162
        %v3164 = vpop.f32.mrb[0].mxu0
        %v3165 = vpop.f32.mrb[0].mxu0
        %v3166 = vadd.f32 %v2941, %v3165
        %v3167 = vpop.f32.mrb[0].mxu0
        %3168 = vmatprep.mubr.bf16.mxu0 %v1930
        %3169 = vmatmul.mubr.bf16.gmra.mrb[0].mxu0 %v1857
        %v3170 = vpop.f32.mrb[0].mxu0
        %v3171 = vadd.f32 %v2946, %v3170
        %v3172 = vpop.f32.mrb[0].mxu0
        %v3173 = vpop.f32.mrb[0].mxu0
        %v3174 = vadd.f32 %v2949, %v3173
        %v3175 = vpop.f32.mrb[0].mxu0
        %3176 = vmatprep.mubr.bf16.mxu0 %v1932
        %3177 = vmatmul.mubr.bf16.gmra.mrb[0].mxu0 %v1859
        %v3178 = vpop.f32.mrb[0].mxu0
        %v3179 = vadd.f32 %v2954, %v3178
        %v3180 = vpop.f32.mrb[0].mxu0
        %v3181 = vpop.f32.mrb[0].mxu0
        %v3182 = vadd.f32 %v2957, %v3181
        %v3183 = vpop.f32.mrb[0].mxu0
        %3184 = vmatprep.mubr.bf16.mxu0 %v1934
        %3185 = vmatmul.mubr.bf16.gmra.mrb[0].mxu0 %v1861
        %v3186 = vpop.f32.mrb[0].mxu0
        %v3187 = vadd.f32 %v2962, %v3186
        %v3188 = vpop.f32.mrb[0].mxu0
        %v3189 = vpop.f32.mrb[0].mxu0
        %v3190 = vadd.f32 %v2965, %v3189
        %v3191 = vpop.f32.mrb[0].mxu0
        %3192 = vmatprep.mubr.bf16.mxu0 %v1936
        %3193 = vmatmul.mubr.bf16.gmra.mrb[0].mxu0 %v1863
        %v3194 = vpop.f32.mrb[0].mxu0
        %v3195 = vadd.f32 %v2970, %v3194
        %v3196 = vpop.f32.mrb[0].mxu0
        %v3197 = vpop.f32.mrb[0].mxu0
        %v3198 = vadd.f32 %v2973, %v3197
        %v3199 = vpop.f32.mrb[0].mxu0
        %3200 = vmatprep.mubr.bf16.mxu0 %v1938
        %3201 = vmatmul.mubr.bf16.gmra.mrb[0].mxu0 %v1865
        %v3202 = vpop.f32.mrb[0].mxu0
        %v3203 = vadd.f32 %v2978, %v3202
        %v3204 = vpop.f32.mrb[0].mxu0
        %v3205 = vpop.f32.mrb[0].mxu0
        %v3206 = vadd.f32 %v2981, %v3205
        %v3207 = vpop.f32.mrb[0].mxu0
        %3208 = vmatprep.mubr.bf16.mxu0 %v1940
        %3209 = vmatmul.mubr.bf16.gmra.mrb[0].mxu0 %v1867
        %v3210 = vpop.f32.mrb[0].mxu0
        %v3211 = vadd.f32 %v2986, %v3210
        %v3212 = vpop.f32.mrb[0].mxu0
        %v3213 = vpop.f32.mrb[0].mxu0
        %v3214 = vadd.f32 %v2989, %v3213
        %v3215 = vpop.f32.mrb[0].mxu0
        %3216 = vmatprep.mubr.bf16.mxu0 %v1942
        %3217 = vmatmul.mubr.bf16.gmra.mrb[0].mxu0 %v1869
        %v3218 = vpop.f32.mrb[0].mxu0
        %v3219 = vadd.f32 %v2994, %v3218
        %v3220 = vpop.f32.mrb[0].mxu0
        %v3221 = vpop.f32.mrb[0].mxu0
        %v3222 = vadd.f32 %v2997, %v3221
        %v3223 = vpop.f32.mrb[0].mxu0
        %3224 = vdwg.mxu0
        %3225 = vmatprep.subr.bf16.mxu0 0
        %3226 = vmatpush1.bf16.msra.mxu0 %v2454
        %3227 = vmatprep.subr.bf16.mxu0 0
        %3228 = vmatpush1.bf16.msra.mxu0 %v2455
        %3229 = vmatprep.subr.bf16.mxu0 0
        %3230 = vmatpush1.bf16.msra.mxu0 %v2456
        %3231 = vmatprep.subr.bf16.mxu0 0
        %3232 = vmatpush1.bf16.msra.mxu0 %v2457
        %3233 = vmatprep.subr.bf16.mxu0 0
        %3234 = vmatpush1.bf16.msra.mxu0 %v2458
        %3235 = vmatprep.subr.bf16.mxu0 0
        %3236 = vmatpush1.bf16.msra.mxu0 %v2459
        %3237 = vmatprep.subr.bf16.mxu0 0
        %3238 = vmatpush1.bf16.msra.mxu0 %v2460
        %3239 = vmatprep.subr.bf16.mxu0 0
        %3240 = vmatpush1.bf16.msra.mxu0 %v2461
        %3241 = vmatprep.subr.bf16.mxu0 0
        %3242 = vmatpush1.bf16.msra.mxu0 %v2462
        %3243 = vmatprep.subr.bf16.mxu0 0
        %3244 = vmatpush1.bf16.msra.mxu0 %v2463
        %3245 = vmatprep.subr.bf16.mxu0 0
        %3246 = vmatpush1.bf16.msra.mxu0 %v2464
        %3247 = vmatprep.subr.bf16.mxu0 0
        %3248 = vmatpush1.bf16.msra.mxu0 %v2465
        %3249 = vmatprep.subr.bf16.mxu0 0
        %3250 = vmatpush1.bf16.msra.mxu0 %v2466
        %3251 = vmatprep.subr.bf16.mxu0 0
        %3252 = vmatpush1.bf16.msra.mxu0 %v2467
        %3253 = vmatprep.subr.bf16.mxu0 0
        %3254 = vmatpush1.bf16.msra.mxu0 %v2468
        %3255 = vmatprep.subr.bf16.mxu0 0
        %3256 = vmatpush1.bf16.msra.mxu0 %v2469
        %3257 = vmatprep.mubr.bf16.mxu0 %v1341
        %3258 = vmatmul.mubr.bf16.gmra.mrb[0].mxu0 %v1396
        %v3259 = vpop.f32.mrb[0].mxu0
        %v3260 = vadd.f32 %v3035, %v3259
        %v3261 = vpop.f32.mrb[0].mxu0
        %v3262 = vpop.f32.mrb[0].mxu0
        %v3263 = vadd.f32 %v3038, %v3262
        %v3264 = vpop.f32.mrb[0].mxu0
        %3265 = vmatprep.mubr.bf16.mxu0 %v1342
        %3266 = vmatmul.mubr.bf16.gmra.mrb[0].mxu0 %v1404
        %v3267 = vpop.f32.mrb[0].mxu0
        %v3268 = vadd.f32 %v3043, %v3267
        %v3269 = vpop.f32.mrb[0].mxu0
        %v3270 = vpop.f32.mrb[0].mxu0
        %v3271 = vadd.f32 %v3046, %v3270
        %v3272 = vpop.f32.mrb[0].mxu0
        %3273 = vmatprep.mubr.bf16.mxu0 %v1343
        %3274 = vmatmul.mubr.bf16.gmra.mrb[0].mxu0 %v1412
        %v3275 = vpop.f32.mrb[0].mxu0
        %v3276 = vadd.f32 %v3051, %v3275
        %v3277 = vpop.f32.mrb[0].mxu0
        %v3278 = vpop.f32.mrb[0].mxu0
        %v3279 = vadd.f32 %v3054, %v3278
        %v3280 = vpop.f32.mrb[0].mxu0
        %3281 = vmatprep.mubr.bf16.mxu0 %v1344
        %3282 = vmatmul.mubr.bf16.gmra.mrb[0].mxu0 %v1420
        %v3283 = vpop.f32.mrb[0].mxu0
        %v3284 = vadd.f32 %v3059, %v3283
        %v3285 = vpop.f32.mrb[0].mxu0
        %v3286 = vpop.f32.mrb[0].mxu0
        %v3287 = vadd.f32 %v3062, %v3286
        %v3288 = vpop.f32.mrb[0].mxu0
        %3289 = vmatprep.mubr.bf16.mxu0 %v1345
        %3290 = vmatmul.mubr.bf16.gmra.mrb[0].mxu0 %v1428
        %v3291 = vpop.f32.mrb[0].mxu0
        %v3292 = vadd.f32 %v3067, %v3291
        %v3293 = vpop.f32.mrb[0].mxu0
        %v3294 = vpop.f32.mrb[0].mxu0
        %v3295 = vadd.f32 %v3070, %v3294
        %v3296 = vpop.f32.mrb[0].mxu0
        %3297 = vmatprep.mubr.bf16.mxu0 %v1346
        %3298 = vmatmul.mubr.bf16.gmra.mrb[0].mxu0 %v1436
        %v3299 = vpop.f32.mrb[0].mxu0
        %v3300 = vadd.f32 %v3075, %v3299
        %v3301 = vpop.f32.mrb[0].mxu0
        %v3302 = vpop.f32.mrb[0].mxu0
        %v3303 = vadd.f32 %v3078, %v3302
        %v3304 = vpop.f32.mrb[0].mxu0
        %3305 = vmatprep.mubr.bf16.mxu0 %v1347
        %3306 = vmatmul.mubr.bf16.gmra.mrb[0].mxu0 %v1444
        %v3307 = vpop.f32.mrb[0].mxu0
        %v3308 = vadd.f32 %v3083, %v3307
        %v3309 = vpop.f32.mrb[0].mxu0
        %v3310 = vpop.f32.mrb[0].mxu0
        %v3311 = vadd.f32 %v3086, %v3310
        %v3312 = vpop.f32.mrb[0].mxu0
        %3313 = vmatprep.mubr.bf16.mxu0 %v1348
        %3314 = vmatmul.mubr.bf16.gmra.mrb[0].mxu0 %v1452
        %v3315 = vpop.f32.mrb[0].mxu0
        %v3316 = vadd.f32 %v3091, %v3315
        %v3317 = vpop.f32.mrb[0].mxu0
        %v3318 = vpop.f32.mrb[0].mxu0
        %v3319 = vadd.f32 %v3094, %v3318
        %v3320 = vpop.f32.mrb[0].mxu0
        %3321 = vmatprep.mubr.bf16.mxu0 %v1349
        %3322 = vmatmul.mubr.bf16.gmra.mrb[0].mxu0 %v1460
        %v3323 = vpop.f32.mrb[0].mxu0
        %v3324 = vadd.f32 %v3099, %v3323
        %v3325 = vpop.f32.mrb[0].mxu0
        %v3326 = vpop.f32.mrb[0].mxu0
        %v3327 = vadd.f32 %v3102, %v3326
        %v3328 = vpop.f32.mrb[0].mxu0
        %3329 = vmatprep.mubr.bf16.mxu0 %v1350
        %3330 = vmatmul.mubr.bf16.gmra.mrb[0].mxu0 %v1468
        %v3331 = vpop.f32.mrb[0].mxu0
        %v3332 = vadd.f32 %v3107, %v3331
        %v3333 = vpop.f32.mrb[0].mxu0
        %v3334 = vpop.f32.mrb[0].mxu0
        %v3335 = vadd.f32 %v3110, %v3334
        %v3336 = vpop.f32.mrb[0].mxu0
        %3337 = vmatprep.mubr.bf16.mxu0 %v1351
        %3338 = vmatmul.mubr.bf16.gmra.mrb[0].mxu0 %v1476
        %v3339 = vpop.f32.mrb[0].mxu0
        %v3340 = vadd.f32 %v3115, %v3339
        %v3341 = vpop.f32.mrb[0].mxu0
        %v3342 = vpop.f32.mrb[0].mxu0
        %v3343 = vadd.f32 %v3118, %v3342
        %v3344 = vpop.f32.mrb[0].mxu0
        %3345 = vmatprep.mubr.bf16.mxu0 %v1352
        %3346 = vmatmul.mubr.bf16.gmra.mrb[0].mxu0 %v1484
        %v3347 = vpop.f32.mrb[0].mxu0
        %v3348 = vadd.f32 %v3123, %v3347
        %v3349 = vpop.f32.mrb[0].mxu0
        %v3350 = vpop.f32.mrb[0].mxu0
        %v3351 = vadd.f32 %v3126, %v3350
        %v3352 = vpop.f32.mrb[0].mxu0
        %3353 = vmatprep.mubr.bf16.mxu0 %v1353
        %3354 = vmatmul.mubr.bf16.gmra.mrb[0].mxu0 %v1492
        %v3355 = vpop.f32.mrb[0].mxu0
        %v3356 = vadd.f32 %v3131, %v3355
        %v3357 = vpop.f32.mrb[0].mxu0
        %v3358 = vpop.f32.mrb[0].mxu0
        %v3359 = vadd.f32 %v3134, %v3358
        %v3360 = vpop.f32.mrb[0].mxu0
        %3361 = vmatprep.mubr.bf16.mxu0 %v1354
        %3362 = vmatmul.mubr.bf16.gmra.mrb[0].mxu0 %v1500
        %v3363 = vpop.f32.mrb[0].mxu0
        %v3364 = vadd.f32 %v3139, %v3363
        %v3365 = vpop.f32.mrb[0].mxu0
        %v3366 = vpop.f32.mrb[0].mxu0
        %v3367 = vadd.f32 %v3142, %v3366
        %v3368 = vpop.f32.mrb[0].mxu0
        %3369 = vmatprep.mubr.bf16.mxu0 %v1355
        %3370 = vmatmul.mubr.bf16.gmra.mrb[0].mxu0 %v1508
        %v3371 = vpop.f32.mrb[0].mxu0
        %v3372 = vadd.f32 %v3147, %v3371
        %v3373 = vpop.f32.mrb[0].mxu0
        %v3374 = vpop.f32.mrb[0].mxu0
        %v3375 = vadd.f32 %v3150, %v3374
        %v3376 = vpop.f32.mrb[0].mxu0
        %3377 = vmatprep.mubr.bf16.mxu0 %v1356
        %3378 = vmatmul.mubr.bf16.gmra.mrb[0].mxu0 %v1516
        %v3379 = vpop.f32.mrb[0].mxu0
        %v3380 = vadd.f32 %v3155, %v3379
        %v3381 = vpop.f32.mrb[0].mxu0
        %v3382 = vpop.f32.mrb[0].mxu0
        %v3383 = vadd.f32 %v3158, %v3382
        %v3384 = vpop.f32.mrb[0].mxu0
        %3385 = vmatprep.mubr.bf16.mxu0 %v1357
        %3386 = vmatmul.mubr.bf16.gmra.mrb[0].mxu0 %v1524
        %v3387 = vpop.f32.mrb[0].mxu0
        %v3388 = vadd.f32 %v3163, %v3387
        %v3389 = vpop.f32.mrb[0].mxu0
        %v3390 = vpop.f32.mrb[0].mxu0
        %v3391 = vadd.f32 %v3166, %v3390
        %v3392 = vpop.f32.mrb[0].mxu0
        %3393 = vmatprep.mubr.bf16.mxu0 %v1358
        %3394 = vmatmul.mubr.bf16.gmra.mrb[0].mxu0 %v1532
        %v3395 = vpop.f32.mrb[0].mxu0
        %v3396 = vadd.f32 %v3171, %v3395
        %v3397 = vpop.f32.mrb[0].mxu0
        %v3398 = vpop.f32.mrb[0].mxu0
        %v3399 = vadd.f32 %v3174, %v3398
        %v3400 = vpop.f32.mrb[0].mxu0
        %3401 = vmatprep.mubr.bf16.mxu0 %v1359
        %3402 = vmatmul.mubr.bf16.gmra.mrb[0].mxu0 %v1540
        %v3403 = vpop.f32.mrb[0].mxu0
        %v3404 = vadd.f32 %v3179, %v3403
        %v3405 = vpop.f32.mrb[0].mxu0
        %v3406 = vpop.f32.mrb[0].mxu0
        %v3407 = vadd.f32 %v3182, %v3406
        %v3408 = vpop.f32.mrb[0].mxu0
        %3409 = vmatprep.mubr.bf16.mxu0 %v1360
        %3410 = vmatmul.mubr.bf16.gmra.mrb[0].mxu0 %v1548
        %v3411 = vpop.f32.mrb[0].mxu0
        %v3412 = vadd.f32 %v3187, %v3411
        %v3413 = vpop.f32.mrb[0].mxu0
        %v3414 = vpop.f32.mrb[0].mxu0
        %v3415 = vadd.f32 %v3190, %v3414
        %v3416 = vpop.f32.mrb[0].mxu0
        %3417 = vmatprep.mubr.bf16.mxu0 %v1361
        %3418 = vmatmul.mubr.bf16.gmra.mrb[0].mxu0 %v1556
        %v3419 = vpop.f32.mrb[0].mxu0
        %v3420 = vadd.f32 %v3195, %v3419
        %v3421 = vpop.f32.mrb[0].mxu0
        %v3422 = vpop.f32.mrb[0].mxu0
        %v3423 = vadd.f32 %v3198, %v3422
        %v3424 = vpop.f32.mrb[0].mxu0
        %3425 = vmatprep.mubr.bf16.mxu0 %v1362
        %3426 = vmatmul.mubr.bf16.gmra.mrb[0].mxu0 %v1564
        %v3427 = vpop.f32.mrb[0].mxu0
        %v3428 = vadd.f32 %v3203, %v3427
        %v3429 = vpop.f32.mrb[0].mxu0
        %v3430 = vpop.f32.mrb[0].mxu0
        %v3431 = vadd.f32 %v3206, %v3430
        %v3432 = vpop.f32.mrb[0].mxu0
        %3433 = vmatprep.mubr.bf16.mxu0 %v1363
        %3434 = vmatmul.mubr.bf16.gmra.mrb[0].mxu0 %v1572
        %v3435 = vpop.f32.mrb[0].mxu0
        %v3436 = vadd.f32 %v3211, %v3435
        %v3437 = vpop.f32.mrb[0].mxu0
        %v3438 = vpop.f32.mrb[0].mxu0
        %v3439 = vadd.f32 %v3214, %v3438
        %v3440 = vpop.f32.mrb[0].mxu0
        %3441 = vmatprep.mubr.bf16.mxu0 %v1364
        %3442 = vmatmul.mubr.bf16.gmra.mrb[0].mxu0 %v1580
        %v3443 = vpop.f32.mrb[0].mxu0
        %v3444 = vadd.f32 %v3219, %v3443
        %v3445 = vpop.f32.mrb[0].mxu0
        %v3446 = vpop.f32.mrb[0].mxu0
        %v3447 = vadd.f32 %v3222, %v3446
        %v3448 = vpop.f32.mrb[0].mxu0
        %3449 = vdwg.mxu0
        %3450 = vmatprep.subr.bf16.mxu0 0
        %3451 = vmatpush1.bf16.msra.mxu0 %v2470
        %3452 = vmatprep.subr.bf16.mxu0 0
        %3453 = vmatpush1.bf16.msra.mxu0 %v2471
        %3454 = vmatprep.subr.bf16.mxu0 0
        %3455 = vmatpush1.bf16.msra.mxu0 %v2472
        %3456 = vmatprep.subr.bf16.mxu0 0
        %3457 = vmatpush1.bf16.msra.mxu0 %v2473
        %3458 = vmatprep.subr.bf16.mxu0 0
        %3459 = vmatpush1.bf16.msra.mxu0 %v2474
        %3460 = vmatprep.subr.bf16.mxu0 0
        %3461 = vmatpush1.bf16.msra.mxu0 %v2475
        %3462 = vmatprep.subr.bf16.mxu0 0
        %3463 = vmatpush1.bf16.msra.mxu0 %v2476
        %3464 = vmatprep.subr.bf16.mxu0 0
        %3465 = vmatpush1.bf16.msra.mxu0 %v2477
        %3466 = vmatprep.subr.bf16.mxu0 0
        %3467 = vmatpush1.bf16.msra.mxu0 0
        %3468 = vmatprep.subr.bf16.mxu0 0
        %3469 = vmatpush1.bf16.msra.mxu0 0
        %3470 = vmatprep.subr.bf16.mxu0 0
        %3471 = vmatpush1.bf16.msra.mxu0 0
        %3472 = vmatprep.subr.bf16.mxu0 0
        %3473 = vmatpush1.bf16.msra.mxu0 0
        %3474 = vmatprep.subr.bf16.mxu0 0
        %3475 = vmatpush1.bf16.msra.mxu0 0
        %3476 = vmatprep.subr.bf16.mxu0 0
        %3477 = vmatpush1.bf16.msra.mxu0 0
        %3478 = vmatprep.subr.bf16.mxu0 0
        %3479 = vmatpush1.bf16.msra.mxu0 0
        %3480 = vmatprep.subr.bf16.mxu0 0
        %3481 = vmatpush1.bf16.msra.mxu0 0
        %3482 = vmatprep.mubr.bf16.mxu0 0
        %3483 = vmatmul.mubr.bf16.gmra.mrb[0].mxu0 %v1624
        %v3484 = vpop.f32.mrb[0].mxu0
        %v3485 = vadd.f32 %v3260, %v3484
        %v3486 = vpop.f32.mrb[0].mxu0
        %v3487 = vpop.f32.mrb[0].mxu0
        %v3488 = vadd.f32 %v3263, %v3487
        %v3489 = vpop.f32.mrb[0].mxu0
        %3490 = vmatprep.mubr.bf16.mxu0 0
        %3491 = vmatmul.mubr.bf16.gmra.mrb[0].mxu0 %v1627
        %v3492 = vpop.f32.mrb[0].mxu0
        %v3493 = vadd.f32 %v3268, %v3492
        %v3494 = vpop.f32.mrb[0].mxu0
        %v3495 = vpop.f32.mrb[0].mxu0
        %v3496 = vadd.f32 %v3271, %v3495
        %v3497 = vpop.f32.mrb[0].mxu0
        %3498 = vmatprep.mubr.bf16.mxu0 0
        %3499 = vmatmul.mubr.bf16.gmra.mrb[0].mxu0 %v1630
        %v3500 = vpop.f32.mrb[0].mxu0
        %v3501 = vadd.f32 %v3276, %v3500
        %v3502 = vpop.f32.mrb[0].mxu0
        %v3503 = vpop.f32.mrb[0].mxu0
        %v3504 = vadd.f32 %v3279, %v3503
        %v3505 = vpop.f32.mrb[0].mxu0
        %3506 = vmatprep.mubr.bf16.mxu0 0
        %3507 = vmatmul.mubr.bf16.gmra.mrb[0].mxu0 %v1633
        %v3508 = vpop.f32.mrb[0].mxu0
        %v3509 = vadd.f32 %v3284, %v3508
        %v3510 = vpop.f32.mrb[0].mxu0
        %v3511 = vpop.f32.mrb[0].mxu0
        %v3512 = vadd.f32 %v3287, %v3511
        %v3513 = vpop.f32.mrb[0].mxu0
        %3514 = vmatprep.mubr.bf16.mxu0 0
        %3515 = vmatmul.mubr.bf16.gmra.mrb[0].mxu0 %v1636
        %v3516 = vpop.f32.mrb[0].mxu0
        %v3517 = vadd.f32 %v3292, %v3516
        %v3518 = vpop.f32.mrb[0].mxu0
        %v3519 = vpop.f32.mrb[0].mxu0
        %v3520 = vadd.f32 %v3295, %v3519
        %v3521 = vpop.f32.mrb[0].mxu0
        %3522 = vmatprep.mubr.bf16.mxu0 0
        %3523 = vmatmul.mubr.bf16.gmra.mrb[0].mxu0 %v1639
        %v3524 = vpop.f32.mrb[0].mxu0
        %v3525 = vadd.f32 %v3300, %v3524
        %v3526 = vpop.f32.mrb[0].mxu0
        %v3527 = vpop.f32.mrb[0].mxu0
        %v3528 = vadd.f32 %v3303, %v3527
        %v3529 = vpop.f32.mrb[0].mxu0
        %3530 = vmatprep.mubr.bf16.mxu0 0
        %3531 = vmatmul.mubr.bf16.gmra.mrb[0].mxu0 %v1642
        %v3532 = vpop.f32.mrb[0].mxu0
        %v3533 = vadd.f32 %v3308, %v3532
        %v3534 = vpop.f32.mrb[0].mxu0
        %v3535 = vpop.f32.mrb[0].mxu0
        %v3536 = vadd.f32 %v3311, %v3535
        %v3537 = vpop.f32.mrb[0].mxu0
        %3538 = vmatprep.mubr.bf16.mxu0 0
        %3539 = vmatmul.mubr.bf16.gmra.mrb[0].mxu0 %v1645
        %v3540 = vpop.f32.mrb[0].mxu0
        %v3541 = vadd.f32 %v3316, %v3540
        %v3542 = vpop.f32.mrb[0].mxu0
        %v3543 = vpop.f32.mrb[0].mxu0
        %v3544 = vadd.f32 %v3319, %v3543
        %v3545 = vpop.f32.mrb[0].mxu0
        %3546 = vmatprep.mubr.bf16.mxu0 0
        %3547 = vmatmul.mubr.bf16.gmra.mrb[0].mxu0 %v1648
        %v3548 = vpop.f32.mrb[0].mxu0
        %v3549 = vadd.f32 %v3324, %v3548
        %v3550 = vpop.f32.mrb[0].mxu0
        %v3551 = vpop.f32.mrb[0].mxu0
        %v3552 = vadd.f32 %v3327, %v3551
        %v3553 = vpop.f32.mrb[0].mxu0
        %3554 = vmatprep.mubr.bf16.mxu0 0
        %3555 = vmatmul.mubr.bf16.gmra.mrb[0].mxu0 %v1651
        %v3556 = vpop.f32.mrb[0].mxu0
        %v3557 = vadd.f32 %v3332, %v3556
        %v3558 = vpop.f32.mrb[0].mxu0
        %v3559 = vpop.f32.mrb[0].mxu0
        %v3560 = vadd.f32 %v3335, %v3559
        %v3561 = vpop.f32.mrb[0].mxu0
        %3562 = vmatprep.mubr.bf16.mxu0 0
        %3563 = vmatmul.mubr.bf16.gmra.mrb[0].mxu0 %v1654
        %v3564 = vpop.f32.mrb[0].mxu0
        %v3565 = vadd.f32 %v3340, %v3564
        %v3566 = vpop.f32.mrb[0].mxu0
        %v3567 = vpop.f32.mrb[0].mxu0
        %v3568 = vadd.f32 %v3343, %v3567
        %v3569 = vpop.f32.mrb[0].mxu0
        %3570 = vmatprep.mubr.bf16.mxu0 0
        %3571 = vmatmul.mubr.bf16.gmra.mrb[0].mxu0 %v1657
        %v3572 = vpop.f32.mrb[0].mxu0
        %v3573 = vadd.f32 %v3348, %v3572
        %v3574 = vpop.f32.mrb[0].mxu0
        %v3575 = vpop.f32.mrb[0].mxu0
        %v3576 = vadd.f32 %v3351, %v3575
        %v3577 = vpop.f32.mrb[0].mxu0
        %3578 = vmatprep.mubr.bf16.mxu0 0
        %3579 = vmatmul.mubr.bf16.gmra.mrb[0].mxu0 %v1660
        %v3580 = vpop.f32.mrb[0].mxu0
        %v3581 = vadd.f32 %v3356, %v3580
        %v3582 = vpop.f32.mrb[0].mxu0
        %v3583 = vpop.f32.mrb[0].mxu0
        %v3584 = vadd.f32 %v3359, %v3583
        %v3585 = vpop.f32.mrb[0].mxu0
        %3586 = vmatprep.mubr.bf16.mxu0 0
        %3587 = vmatmul.mubr.bf16.gmra.mrb[0].mxu0 %v1663
        %v3588 = vpop.f32.mrb[0].mxu0
        %v3589 = vadd.f32 %v3364, %v3588
        %v3590 = vpop.f32.mrb[0].mxu0
        %v3591 = vpop.f32.mrb[0].mxu0
        %v3592 = vadd.f32 %v3367, %v3591
        %v3593 = vpop.f32.mrb[0].mxu0
        %3594 = vmatprep.mubr.bf16.mxu0 0
        %3595 = vmatmul.mubr.bf16.gmra.mrb[0].mxu0 %v1666
        %v3596 = vpop.f32.mrb[0].mxu0
        %v3597 = vadd.f32 %v3372, %v3596
        %v3598 = vpop.f32.mrb[0].mxu0
        %v3599 = vpop.f32.mrb[0].mxu0
        %v3600 = vadd.f32 %v3375, %v3599
        %v3601 = vpop.f32.mrb[0].mxu0
        %3602 = vmatprep.mubr.bf16.mxu0 0
        %3603 = vmatmul.mubr.bf16.gmra.mrb[0].mxu0 %v1669
        %v3604 = vpop.f32.mrb[0].mxu0
        %v3605 = vadd.f32 %v3380, %v3604
        %v3606 = vpop.f32.mrb[0].mxu0
        %v3607 = vpop.f32.mrb[0].mxu0
        %v3608 = vadd.f32 %v3383, %v3607
        %v3609 = vpop.f32.mrb[0].mxu0
        %3610 = vmatprep.mubr.bf16.mxu0 0
        %3611 = vmatmul.mubr.bf16.gmra.mrb[0].mxu0 %v1672
        %v3612 = vpop.f32.mrb[0].mxu0
        %v3613 = vadd.f32 %v3388, %v3612
        %v3614 = vpop.f32.mrb[0].mxu0
        %v3615 = vpop.f32.mrb[0].mxu0
        %v3616 = vadd.f32 %v3391, %v3615
        %v3617 = vpop.f32.mrb[0].mxu0
        %3618 = vmatprep.mubr.bf16.mxu0 0
        %3619 = vmatmul.mubr.bf16.gmra.mrb[0].mxu0 %v1675
        %v3620 = vpop.f32.mrb[0].mxu0
        %v3621 = vadd.f32 %v3396, %v3620
        %v3622 = vpop.f32.mrb[0].mxu0
        %v3623 = vpop.f32.mrb[0].mxu0
        %v3624 = vadd.f32 %v3399, %v3623
        %v3625 = vpop.f32.mrb[0].mxu0
        %3626 = vmatprep.mubr.bf16.mxu0 0
        %3627 = vmatmul.mubr.bf16.gmra.mrb[0].mxu0 %v1678
        %v3628 = vpop.f32.mrb[0].mxu0
        %v3629 = vadd.f32 %v3404, %v3628
        %v3630 = vpop.f32.mrb[0].mxu0
        %v3631 = vpop.f32.mrb[0].mxu0
        %v3632 = vadd.f32 %v3407, %v3631
        %v3633 = vpop.f32.mrb[0].mxu0
        %3634 = vmatprep.mubr.bf16.mxu0 0
        %3635 = vmatmul.mubr.bf16.gmra.mrb[0].mxu0 %v1681
        %v3636 = vpop.f32.mrb[0].mxu0
        %v3637 = vadd.f32 %v3412, %v3636
        %v3638 = vpop.f32.mrb[0].mxu0
        %v3639 = vpop.f32.mrb[0].mxu0
        %v3640 = vadd.f32 %v3415, %v3639
        %v3641 = vpop.f32.mrb[0].mxu0
        %3642 = vmatprep.mubr.bf16.mxu0 0
        %3643 = vmatmul.mubr.bf16.gmra.mrb[0].mxu0 %v1684
        %v3644 = vpop.f32.mrb[0].mxu0
        %v3645 = vadd.f32 %v3420, %v3644
        %v3646 = vpop.f32.mrb[0].mxu0
        %v3647 = vpop.f32.mrb[0].mxu0
        %v3648 = vadd.f32 %v3423, %v3647
        %v3649 = vpop.f32.mrb[0].mxu0
        %3650 = vmatprep.mubr.bf16.mxu0 0
        %3651 = vmatmul.mubr.bf16.gmra.mrb[0].mxu0 %v1687
        %v3652 = vpop.f32.mrb[0].mxu0
        %v3653 = vadd.f32 %v3428, %v3652
        %v3654 = vpop.f32.mrb[0].mxu0
        %v3655 = vpop.f32.mrb[0].mxu0
        %v3656 = vadd.f32 %v3431, %v3655
        %v3657 = vpop.f32.mrb[0].mxu0
        %3658 = vmatprep.mubr.bf16.mxu0 0
        %3659 = vmatmul.mubr.bf16.gmra.mrb[0].mxu0 %v1690
        %v3660 = vpop.f32.mrb[0].mxu0
        %v3661 = vadd.f32 %v3436, %v3660
        %v3662 = vpop.f32.mrb[0].mxu0
        %v3663 = vpop.f32.mrb[0].mxu0
        %v3664 = vadd.f32 %v3439, %v3663
        %v3665 = vpop.f32.mrb[0].mxu0
        %3666 = vmatprep.mubr.bf16.mxu0 0
        %3667 = vmatmul.mubr.bf16.gmra.mrb[0].mxu0 %v1721
        %v3668 = vpop.f32.mrb[0].mxu0
        %v3669 = vadd.f32 %v3444, %v3668
        %v3670 = vpop.f32.mrb[0].mxu0
        %v3671 = vpop.f32.mrb[0].mxu0
        %v3672 = vadd.f32 %v3447, %v3671
        %v3673 = vpop.f32.mrb[0].mxu0
        %3674 = vdwg.mxu0
        %v3675 = vmax.f32 %v3485, 0.0
        %v3676 = vmax.f32 %v3488, 0.0
        %v3677 = vmax.f32 %v3493, 0.0
        %v3678 = vmax.f32 %v3496, 0.0
        %v3679 = vmax.f32 %v3501, 0.0
        %v3680 = vmax.f32 %v3504, 0.0
        %v3681 = vmax.f32 %v3509, 0.0
        %v3682 = vmax.f32 %v3512, 0.0
        %v3683 = vmax.f32 %v3517, 0.0
        %v3684 = vmax.f32 %v3520, 0.0
        %v3685 = vmax.f32 %v3525, 0.0
        %v3686 = vmax.f32 %v3528, 0.0
        %v3687 = vmax.f32 %v3533, 0.0
        %v3688 = vmax.f32 %v3536, 0.0
        %v3689 = vmax.f32 %v3541, 0.0
        %v3690 = vmax.f32 %v3544, 0.0
        %v3691 = vmax.f32 %v3549, 0.0
        %v3692 = vmax.f32 %v3552, 0.0
        %v3693 = vmax.f32 %v3557, 0.0
        %v3694 = vmax.f32 %v3560, 0.0
        %v3695 = vmax.f32 %v3565, 0.0
        %v3696 = vmax.f32 %v3568, 0.0
        %v3697 = vmax.f32 %v3573, 0.0
        %v3698 = vmax.f32 %v3576, 0.0
        %v3699 = vmax.f32 %v3581, 0.0
        %v3700 = vmax.f32 %v3584, 0.0
        %v3701 = vmax.f32 %v3589, 0.0
        %v3702 = vmax.f32 %v3592, 0.0
        %v3703 = vmax.f32 %v3597, 0.0
        %v3704 = vmax.f32 %v3600, 0.0
        %v3705 = vmax.f32 %v3605, 0.0
        %v3706 = vmax.f32 %v3608, 0.0
        %v3707 = vmax.f32 %v3613, 0.0
        %v3708 = vmax.f32 %v3616, 0.0
        %v3709 = vmax.f32 %v3621, 0.0
        %v3710 = vmax.f32 %v3624, 0.0
        %v3711 = vmax.f32 %v3629, 0.0
        %v3712 = vmax.f32 %v3632, 0.0
        %v3713 = vmax.f32 %v3637, 0.0
        %v3714 = vmax.f32 %v3640, 0.0
        %v3715 = vmax.f32 %v3645, 0.0
        %v3716 = vmax.f32 %v3648, 0.0
        %v3717 = vmax.f32 %v3653, 0.0
        %v3718 = vmax.f32 %v3656, 0.0
        %v3719 = vmax.f32 %v3661, 0.0
        %v3720 = vmax.f32 %v3664, 0.0
        %v3721 = vmax.f32 %v3669, 0.0
        %v3722 = vmax.f32 %v3672, 0.0
        %v3723 = vpack.c.bf16 %v3676, %v3675
        %v3724 = vpack.c.bf16 %v3678, %v3677
        %v3725 = vpack.c.bf16 %v3680, %v3679
        %v3726 = vpack.c.bf16 %v3682, %v3681
        %v3727 = vpack.c.bf16 %v3684, %v3683
        %v3728 = vpack.c.bf16 %v3686, %v3685
        %v3729 = vpack.c.bf16 %v3688, %v3687
        %v3730 = vpack.c.bf16 %v3690, %v3689
        %v3731 = vpack.c.bf16 %v3692, %v3691
        %v3732 = vpack.c.bf16 %v3694, %v3693
        %v3733 = vpack.c.bf16 %v3696, %v3695
        %v3734 = vpack.c.bf16 %v3698, %v3697
        %v3735 = vpack.c.bf16 %v3700, %v3699
        %v3736 = vpack.c.bf16 %v3702, %v3701
        %v3737 = vpack.c.bf16 %v3704, %v3703
        %v3738 = vpack.c.bf16 %v3706, %v3705
        %v3739 = vpack.c.bf16 %v3708, %v3707
        %v3740 = vpack.c.bf16 %v3710, %v3709
        %v3741 = vpack.c.bf16 %v3712, %v3711
        %v3742 = vpack.c.bf16 %v3714, %v3713
        %v3743 = vpack.c.bf16 %v3716, %v3715
        %v3744 = vpack.c.bf16 %v3718, %v3717
        %v3745 = vpack.c.bf16 %v3720, %v3719
        %v3746 = vpack.c.bf16 %v3722, %v3721
        %v3747 = vld [vmem:[#allocation7] sm:$0xf]
        %v3748 = vld [vmem:[#allocation7 + $0x4] sm:$0xf]
        %v3749 = vld [vmem:[#allocation7 + $0x8] sm:$0xf]
        %v3750 = vld [vmem:[#allocation7 + $0xc] sm:$0xf]
        %v3751 = vld [vmem:[#allocation7 + $0x10] sm:$0xf]
        %v3752 = vld [vmem:[#allocation7 + $0x14] sm:$0xf]
        %v3753 = vld [vmem:[#allocation7 + $0x18] sm:$0xf]
        %v3754 = vld [vmem:[#allocation7 + $0x1c] sm:$0xf]
        %v3755 = vld [vmem:[#allocation7 + $0x20] sm:$0xf]
        %v3756 = vld [vmem:[#allocation7 + $0x24] sm:$0xf]
        %v3757 = vld [vmem:[#allocation7 + $0x28] sm:$0xf]
        %v3758 = vld [vmem:[#allocation7 + $0x2c] sm:$0xf]
        %v3759 = vld [vmem:[#allocation7 + $0x30] sm:$0xf]
        %v3760 = vld [vmem:[#allocation7 + $0x34] sm:$0xf]
        %v3761 = vld [vmem:[#allocation7 + $0x38] sm:$0xf]
        %v3762 = vld [vmem:[#allocation7 + $0x3c] sm:$0xf]
        %v3763 = vunpack.c.l.bf16 %v372
        %v3764 = vunpack.c.l.bf16 %v373
        %v3765 = vunpack.c.l.bf16 %v374
        %v3766 = vunpack.c.l.bf16 %v375
        %v3767 = vunpack.c.l.bf16 %v376
        %v3768 = vunpack.c.l.bf16 %v377
        %v3769 = vunpack.c.l.bf16 %v378
        %v3770 = vunpack.c.l.bf16 %v379
        %v3771 = vunpack.c.l.bf16 %v380
        %v3772 = vunpack.c.l.bf16 %v381
        %v3773 = vunpack.c.l.bf16 %v382
        %v3774 = vunpack.c.l.bf16 %v383
        %v3775 = vunpack.c.l.bf16 %v384
        %v3776 = vunpack.c.l.bf16 %v385
        %v3777 = vunpack.c.l.bf16 %v386
        %v3778 = vunpack.c.l.bf16 %v387
        %v3779 = vunpack.c.l.bf16 %v388
        %v3780 = vunpack.c.l.bf16 %v389
        %v3781 = vunpack.c.l.bf16 %v390
        %v3782 = vunpack.c.l.bf16 %v391
        %v3783 = vunpack.c.l.bf16 %v392
        %v3784 = vunpack.c.l.bf16 %v393
        %v3785 = vunpack.c.l.bf16 %v394
        %v3786 = vunpack.c.l.bf16 %v395
        %v3787 = vunpack.c.l.bf16 %v396
        %v3788 = vunpack.c.l.bf16 %v397
        %v3789 = vunpack.c.l.bf16 %v398
        %v3790 = vunpack.c.l.bf16 %v399
        %v3791 = vunpack.c.l.bf16 %v400
        %v3792 = vunpack.c.l.bf16 %v401
        %v3793 = vunpack.c.l.bf16 %v402
        %v3794 = vunpack.c.l.bf16 %v403
        %v3795 = vunpack.c.l.bf16 %v404
        %v3796 = vunpack.c.l.bf16 %v405
        %v3797 = vunpack.c.l.bf16 %v406
        %v3798 = vunpack.c.l.bf16 %v407
        %v3799 = vunpack.c.l.bf16 %v408
        %v3800 = vunpack.c.l.bf16 %v409
        %v3801 = vunpack.c.l.bf16 %v410
        %v3802 = vunpack.c.l.bf16 %v411
        %v3803 = vunpack.c.l.bf16 %v412
        %v3804 = vunpack.c.l.bf16 %v413
        %v3805 = vunpack.c.l.bf16 %v414
        %v3806 = vunpack.c.l.bf16 %v415
        %v3807 = vunpack.c.l.bf16 %v416
        %v3808 = vunpack.c.l.bf16 %v417
        %v3809 = vunpack.c.l.bf16 %v418
        %v3810 = vunpack.c.l.bf16 %v419
        %v3811 = vld [vmem:[%s7] sm:$0x1]
        %v3813 = vlaneseq
        %v3814 = vshrl.u32 %v3813, 7
        %v3815 = vsub.s32 0, %v3814
        %v3816 = vrot.slane %v3811, %v3815
        %v3834 = vunpack.c.l.b16 %v3747
        %v3835 = vunpack.c.l.b16 %v3748
        %v3836 = vunpack.c.l.b16 %v3749
        %v3837 = vunpack.c.l.b16 %v3750
        %v3838 = vunpack.c.l.b16 %v3751
        %v3839 = vunpack.c.l.b16 %v3752
        %v3840 = vunpack.c.l.b16 %v3753
        %v3841 = vunpack.c.l.b16 %v3754
        %v3842 = vunpack.c.l.b16 %v3755
        %v3843 = vunpack.c.l.b16 %v3756
        %v3844 = vunpack.c.l.b16 %v3757
        %v3845 = vunpack.c.l.b16 %v3758
        %v3846 = vunpack.c.l.b16 %v3759
        %v3847 = vunpack.c.l.b16 %v3760
        %v3848 = vunpack.c.l.b16 %v3761
        %v3849 = vunpack.c.l.b16 %v3762
        %v3850 = vpack.c.b16 %v3835, %v3834
        %v3851 = vpack.c.b16 %v3837, %v3836
        %v3852 = vpack.c.b16 %v3839, %v3838
        %v3853 = vpack.c.b16 %v3841, %v3840
        %v3854 = vpack.c.b16 %v3843, %v3842
        %v3855 = vpack.c.b16 %v3845, %v3844
        %v3856 = vpack.c.b16 %v3847, %v3846
        %v3857 = vpack.c.b16 %v3849, %v3848
        %3866 = vmatprep.subr.bf16.mxu0 0
        %3867 = vmatpush1.bf16.msra.mxu0 %v3850
        %3868 = vmatprep.subr.bf16.mxu0 0
        %3869 = vmatpush1.bf16.msra.mxu0 %v3851
        %3870 = vmatprep.subr.bf16.mxu0 0
        %3871 = vmatpush1.bf16.msra.mxu0 %v3852
        %3872 = vmatprep.subr.bf16.mxu0 0
        %3873 = vmatpush1.bf16.msra.mxu0 %v3853
        %3874 = vmatprep.subr.bf16.mxu0 0
        %3875 = vmatpush1.bf16.msra.mxu0 %v3854
        %3876 = vmatprep.subr.bf16.mxu0 0
        %3877 = vmatpush1.bf16.msra.mxu0 %v3855
        %3878 = vmatprep.subr.bf16.mxu0 0
        %3879 = vmatpush1.bf16.msra.mxu0 %v3856
        %3880 = vmatprep.subr.bf16.mxu0 0
        %3881 = vmatpush1.bf16.msra.mxu0 %v3857
        %3882 = vmatprep.subr.bf16.mxu0 0
        %3883 = vmatpush1.bf16.msra.mxu0 0
        %3884 = vmatprep.subr.bf16.mxu0 0
        %3885 = vmatpush1.bf16.msra.mxu0 0
        %3886 = vmatprep.subr.bf16.mxu0 0
        %3887 = vmatpush1.bf16.msra.mxu0 0
        %3888 = vmatprep.subr.bf16.mxu0 0
        %3889 = vmatpush1.bf16.msra.mxu0 0
        %3890 = vmatprep.subr.bf16.mxu0 0
        %3891 = vmatpush1.bf16.msra.mxu0 0
        %3892 = vmatprep.subr.bf16.mxu0 0
        %3893 = vmatpush1.bf16.msra.mxu0 0
        %3894 = vmatprep.subr.bf16.mxu0 0
        %3895 = vmatpush1.bf16.msra.mxu0 0
        %3896 = vmatprep.subr.bf16.mxu0 0
        %3897 = vmatpush1.bf16.msra.mxu0 0
        %3898 = vmatprep.mubr.bf16.mxu0 0
        %3899 = vmatmul.mubr.bf16.gmra.mrb[0].mxu0 %v3723
        %v3900 = vpop.f32.mrb[0].mxu0
        %v3901 = vadd.f32 %v3816, %v3900
        %v3902 = vpop.f32.mrb[0].mxu0
        %v3903 = vpop.f32.mrb[0].mxu0
        %v3904 = vadd.f32 %v3816, %v3903
        %v3905 = vpop.f32.mrb[0].mxu0
        %3906 = vmatprep.mubr.bf16.mxu0 0
        %3907 = vmatmul.mubr.bf16.gmra.mrb[0].mxu0 %v3724
        %v3908 = vpop.f32.mrb[0].mxu0
        %v3909 = vadd.f32 %v3816, %v3908
        %v3910 = vpop.f32.mrb[0].mxu0
        %v3911 = vpop.f32.mrb[0].mxu0
        %v3912 = vadd.f32 %v3816, %v3911
        %v3913 = vpop.f32.mrb[0].mxu0
        %3914 = vmatprep.mubr.bf16.mxu0 0
        %3915 = vmatmul.mubr.bf16.gmra.mrb[0].mxu0 %v3725
        %v3916 = vpop.f32.mrb[0].mxu0
        %v3917 = vadd.f32 %v3816, %v3916
        %v3918 = vpop.f32.mrb[0].mxu0
        %v3919 = vpop.f32.mrb[0].mxu0
        %v3920 = vadd.f32 %v3816, %v3919
        %v3921 = vpop.f32.mrb[0].mxu0
        %3922 = vmatprep.mubr.bf16.mxu0 0
        %3923 = vmatmul.mubr.bf16.gmra.mrb[0].mxu0 %v3726
        %v3924 = vpop.f32.mrb[0].mxu0
        %v3925 = vadd.f32 %v3816, %v3924
        %v3926 = vpop.f32.mrb[0].mxu0
        %v3927 = vpop.f32.mrb[0].mxu0
        %v3928 = vadd.f32 %v3816, %v3927
        %v3929 = vpop.f32.mrb[0].mxu0
        %3930 = vmatprep.mubr.bf16.mxu0 0
        %3931 = vmatmul.mubr.bf16.gmra.mrb[0].mxu0 %v3727
        %v3932 = vpop.f32.mrb[0].mxu0
        %v3933 = vadd.f32 %v3816, %v3932
        %v3934 = vpop.f32.mrb[0].mxu0
        %v3935 = vpop.f32.mrb[0].mxu0
        %v3936 = vadd.f32 %v3816, %v3935
        %v3937 = vpop.f32.mrb[0].mxu0
        %3938 = vmatprep.mubr.bf16.mxu0 0
        %3939 = vmatmul.mubr.bf16.gmra.mrb[0].mxu0 %v3728
        %v3940 = vpop.f32.mrb[0].mxu0
        %v3941 = vadd.f32 %v3816, %v3940
        %v3942 = vpop.f32.mrb[0].mxu0
        %v3943 = vpop.f32.mrb[0].mxu0
        %v3944 = vadd.f32 %v3816, %v3943
        %v3945 = vpop.f32.mrb[0].mxu0
        %3946 = vmatprep.mubr.bf16.mxu0 0
        %3947 = vmatmul.mubr.bf16.gmra.mrb[0].mxu0 %v3729
        %v3948 = vpop.f32.mrb[0].mxu0
        %v3949 = vadd.f32 %v3816, %v3948
        %v3950 = vpop.f32.mrb[0].mxu0
        %v3951 = vpop.f32.mrb[0].mxu0
        %v3952 = vadd.f32 %v3816, %v3951
        %v3953 = vpop.f32.mrb[0].mxu0
        %3954 = vmatprep.mubr.bf16.mxu0 0
        %3955 = vmatmul.mubr.bf16.gmra.mrb[0].mxu0 %v3730
        %v3956 = vpop.f32.mrb[0].mxu0
        %v3957 = vadd.f32 %v3816, %v3956
        %v3958 = vpop.f32.mrb[0].mxu0
        %v3959 = vpop.f32.mrb[0].mxu0
        %v3960 = vadd.f32 %v3816, %v3959
        %v3961 = vpop.f32.mrb[0].mxu0
        %3962 = vmatprep.mubr.bf16.mxu0 0
        %3963 = vmatmul.mubr.bf16.gmra.mrb[0].mxu0 %v3731
        %v3964 = vpop.f32.mrb[0].mxu0
        %v3965 = vadd.f32 %v3816, %v3964
        %v3966 = vpop.f32.mrb[0].mxu0
        %v3967 = vpop.f32.mrb[0].mxu0
        %v3968 = vadd.f32 %v3816, %v3967
        %v3969 = vpop.f32.mrb[0].mxu0
        %3970 = vmatprep.mubr.bf16.mxu0 0
        %3971 = vmatmul.mubr.bf16.gmra.mrb[0].mxu0 %v3732
        %v3972 = vpop.f32.mrb[0].mxu0
        %v3973 = vadd.f32 %v3816, %v3972
        %v3974 = vpop.f32.mrb[0].mxu0
        %v3975 = vpop.f32.mrb[0].mxu0
        %v3976 = vadd.f32 %v3816, %v3975
        %v3977 = vpop.f32.mrb[0].mxu0
        %3978 = vmatprep.mubr.bf16.mxu0 0
        %3979 = vmatmul.mubr.bf16.gmra.mrb[0].mxu0 %v3733
        %v3980 = vpop.f32.mrb[0].mxu0
        %v3981 = vadd.f32 %v3816, %v3980
        %v3982 = vpop.f32.mrb[0].mxu0
        %v3983 = vpop.f32.mrb[0].mxu0
        %v3984 = vadd.f32 %v3816, %v3983
        %v3985 = vpop.f32.mrb[0].mxu0
        %3986 = vmatprep.mubr.bf16.mxu0 0
        %3987 = vmatmul.mubr.bf16.gmra.mrb[0].mxu0 %v3734
        %v3988 = vpop.f32.mrb[0].mxu0
        %v3989 = vadd.f32 %v3816, %v3988
        %v3990 = vpop.f32.mrb[0].mxu0
        %v3991 = vpop.f32.mrb[0].mxu0
        %v3992 = vadd.f32 %v3816, %v3991
        %v3993 = vpop.f32.mrb[0].mxu0
        %3994 = vmatprep.mubr.bf16.mxu0 0
        %3995 = vmatmul.mubr.bf16.gmra.mrb[0].mxu0 %v3735
        %v3996 = vpop.f32.mrb[0].mxu0
        %v3997 = vadd.f32 %v3816, %v3996
        %v3998 = vpop.f32.mrb[0].mxu0
        %v3999 = vpop.f32.mrb[0].mxu0
        %v4000 = vadd.f32 %v3816, %v3999
        %v4001 = vpop.f32.mrb[0].mxu0
        %4002 = vmatprep.mubr.bf16.mxu0 0
        %4003 = vmatmul.mubr.bf16.gmra.mrb[0].mxu0 %v3736
        %v4004 = vpop.f32.mrb[0].mxu0
        %v4005 = vadd.f32 %v3816, %v4004
        %v4006 = vpop.f32.mrb[0].mxu0
        %v4007 = vpop.f32.mrb[0].mxu0
        %v4008 = vadd.f32 %v3816, %v4007
        %v4009 = vpop.f32.mrb[0].mxu0
        %4010 = vmatprep.mubr.bf16.mxu0 0
        %4011 = vmatmul.mubr.bf16.gmra.mrb[0].mxu0 %v3737
        %v4012 = vpop.f32.mrb[0].mxu0
        %v4013 = vadd.f32 %v3816, %v4012
        %v4014 = vpop.f32.mrb[0].mxu0
        %v4015 = vpop.f32.mrb[0].mxu0
        %v4016 = vadd.f32 %v3816, %v4015
        %v4017 = vpop.f32.mrb[0].mxu0
        %4018 = vmatprep.mubr.bf16.mxu0 0
        %4019 = vmatmul.mubr.bf16.gmra.mrb[0].mxu0 %v3738
        %v4020 = vpop.f32.mrb[0].mxu0
        %v4021 = vadd.f32 %v3816, %v4020
        %v4022 = vpop.f32.mrb[0].mxu0
        %v4023 = vpop.f32.mrb[0].mxu0
        %v4024 = vadd.f32 %v3816, %v4023
        %v4025 = vpop.f32.mrb[0].mxu0
        %4026 = vmatprep.mubr.bf16.mxu0 0
        %4027 = vmatmul.mubr.bf16.gmra.mrb[0].mxu0 %v3739
        %v4028 = vpop.f32.mrb[0].mxu0
        %v4029 = vadd.f32 %v3816, %v4028
        %v4030 = vpop.f32.mrb[0].mxu0
        %v4031 = vpop.f32.mrb[0].mxu0
        %v4032 = vadd.f32 %v3816, %v4031
        %v4033 = vpop.f32.mrb[0].mxu0
        %4034 = vmatprep.mubr.bf16.mxu0 0
        %4035 = vmatmul.mubr.bf16.gmra.mrb[0].mxu0 %v3740
        %v4036 = vpop.f32.mrb[0].mxu0
        %v4037 = vadd.f32 %v3816, %v4036
        %v4038 = vpop.f32.mrb[0].mxu0
        %v4039 = vpop.f32.mrb[0].mxu0
        %v4040 = vadd.f32 %v3816, %v4039
        %v4041 = vpop.f32.mrb[0].mxu0
        %4042 = vmatprep.mubr.bf16.mxu0 0
        %4043 = vmatmul.mubr.bf16.gmra.mrb[0].mxu0 %v3741
        %v4044 = vpop.f32.mrb[0].mxu0
        %v4045 = vadd.f32 %v3816, %v4044
        %v4046 = vpop.f32.mrb[0].mxu0
        %v4047 = vpop.f32.mrb[0].mxu0
        %v4048 = vadd.f32 %v3816, %v4047
        %v4049 = vpop.f32.mrb[0].mxu0
        %4050 = vmatprep.mubr.bf16.mxu0 0
        %4051 = vmatmul.mubr.bf16.gmra.mrb[0].mxu0 %v3742
        %v4052 = vpop.f32.mrb[0].mxu0
        %v4053 = vadd.f32 %v3816, %v4052
        %v4054 = vpop.f32.mrb[0].mxu0
        %v4055 = vpop.f32.mrb[0].mxu0
        %v4056 = vadd.f32 %v3816, %v4055
        %v4057 = vpop.f32.mrb[0].mxu0
        %4058 = vmatprep.mubr.bf16.mxu0 0
        %4059 = vmatmul.mubr.bf16.gmra.mrb[0].mxu0 %v3743
        %v4060 = vpop.f32.mrb[0].mxu0
        %v4061 = vadd.f32 %v3816, %v4060
        %v4062 = vpop.f32.mrb[0].mxu0
        %v4063 = vpop.f32.mrb[0].mxu0
        %v4064 = vadd.f32 %v3816, %v4063
        %v4065 = vpop.f32.mrb[0].mxu0
        %4066 = vmatprep.mubr.bf16.mxu0 0
        %4067 = vmatmul.mubr.bf16.gmra.mrb[0].mxu0 %v3744
        %v4068 = vpop.f32.mrb[0].mxu0
        %v4069 = vadd.f32 %v3816, %v4068
        %v4070 = vpop.f32.mrb[0].mxu0
        %v4071 = vpop.f32.mrb[0].mxu0
        %v4072 = vadd.f32 %v3816, %v4071
        %v4073 = vpop.f32.mrb[0].mxu0
        %4074 = vmatprep.mubr.bf16.mxu0 0
        %4075 = vmatmul.mubr.bf16.gmra.mrb[0].mxu0 %v3745
        %v4076 = vpop.f32.mrb[0].mxu0
        %v4077 = vadd.f32 %v3816, %v4076
        %v4078 = vpop.f32.mrb[0].mxu0
        %v4079 = vpop.f32.mrb[0].mxu0
        %v4080 = vadd.f32 %v3816, %v4079
        %v4081 = vpop.f32.mrb[0].mxu0
        %4082 = vmatprep.mubr.bf16.mxu0 0
        %4083 = vmatmul.mubr.bf16.gmra.mrb[0].mxu0 %v3746
        %v4084 = vpop.f32.mrb[0].mxu0
        %v4085 = vadd.f32 %v3816, %v4084
        %v4086 = vpop.f32.mrb[0].mxu0
        %v4087 = vpop.f32.mrb[0].mxu0
        %v4088 = vadd.f32 %v3816, %v4087
        %v4089 = vpop.f32.mrb[0].mxu0
        %4090 = vdwg.mxu0
        %v4091 = vadd.f32 %v3901, %v3763
        %v4092 = vadd.f32 %v3904, %v3764
        %v4093 = vadd.f32 %v3909, %v3765
        %v4094 = vadd.f32 %v3912, %v3766
        %v4095 = vadd.f32 %v3917, %v3767
        %v4096 = vadd.f32 %v3920, %v3768
        %v4097 = vadd.f32 %v3925, %v3769
        %v4098 = vadd.f32 %v3928, %v3770
        %v4099 = vadd.f32 %v3933, %v3771
        %v4100 = vadd.f32 %v3936, %v3772
        %v4101 = vadd.f32 %v3941, %v3773
        %v4102 = vadd.f32 %v3944, %v3774
        %v4103 = vadd.f32 %v3949, %v3775
        %v4104 = vadd.f32 %v3952, %v3776
        %v4105 = vadd.f32 %v3957, %v3777
        %v4106 = vadd.f32 %v3960, %v3778
        %v4107 = vadd.f32 %v3965, %v3779
        %v4108 = vadd.f32 %v3968, %v3780
        %v4109 = vadd.f32 %v3973, %v3781
        %v4110 = vadd.f32 %v3976, %v3782
        %v4111 = vadd.f32 %v3981, %v3783
        %v4112 = vadd.f32 %v3984, %v3784
        %v4113 = vadd.f32 %v3989, %v3785
        %v4114 = vadd.f32 %v3992, %v3786
        %v4115 = vadd.f32 %v3997, %v3787
        %v4116 = vadd.f32 %v4000, %v3788
        %v4117 = vadd.f32 %v4005, %v3789
        %v4118 = vadd.f32 %v4008, %v3790
        %v4119 = vadd.f32 %v4013, %v3791
        %v4120 = vadd.f32 %v4016, %v3792
        %v4121 = vadd.f32 %v4021, %v3793
        %v4122 = vadd.f32 %v4024, %v3794
        %v4123 = vadd.f32 %v4029, %v3795
        %v4124 = vadd.f32 %v4032, %v3796
        %v4125 = vadd.f32 %v4037, %v3797
        %v4126 = vadd.f32 %v4040, %v3798
        %v4127 = vadd.f32 %v4045, %v3799
        %v4128 = vadd.f32 %v4048, %v3800
        %v4129 = vadd.f32 %v4053, %v3801
        %v4130 = vadd.f32 %v4056, %v3802
        %v4131 = vadd.f32 %v4061, %v3803
        %v4132 = vadd.f32 %v4064, %v3804
        %v4133 = vadd.f32 %v4069, %v3805
        %v4134 = vadd.f32 %v4072, %v3806
        %v4135 = vadd.f32 %v4077, %v3807
        %v4136 = vadd.f32 %v4080, %v3808
        %v4137 = vadd.f32 %v4085, %v3809
        %v4138 = vadd.f32 %v4088, %v3810
        %v4139 = vmax.f32 %v4091, 0.0
        %v4140 = vmax.f32 %v4092, 0.0
        %v4141 = vmax.f32 %v4093, 0.0
        %v4142 = vmax.f32 %v4094, 0.0
        %v4143 = vmax.f32 %v4095, 0.0
        %v4144 = vmax.f32 %v4096, 0.0
        %v4145 = vmax.f32 %v4097, 0.0
        %v4146 = vmax.f32 %v4098, 0.0
        %v4147 = vmax.f32 %v4099, 0.0
        %v4148 = vmax.f32 %v4100, 0.0
        %v4149 = vmax.f32 %v4101, 0.0
        %v4150 = vmax.f32 %v4102, 0.0
        %v4151 = vmax.f32 %v4103, 0.0
        %v4152 = vmax.f32 %v4104, 0.0
        %v4153 = vmax.f32 %v4105, 0.0
        %v4154 = vmax.f32 %v4106, 0.0
        %v4155 = vmax.f32 %v4107, 0.0
        %v4156 = vmax.f32 %v4108, 0.0
        %v4157 = vmax.f32 %v4109, 0.0
        %v4158 = vmax.f32 %v4110, 0.0
        %v4159 = vmax.f32 %v4111, 0.0
        %v4160 = vmax.f32 %v4112, 0.0
        %v4161 = vmax.f32 %v4113, 0.0
        %v4162 = vmax.f32 %v4114, 0.0
        %v4163 = vmax.f32 %v4115, 0.0
        %v4164 = vmax.f32 %v4116, 0.0
        %v4165 = vmax.f32 %v4117, 0.0
        %v4166 = vmax.f32 %v4118, 0.0
        %v4167 = vmax.f32 %v4119, 0.0
        %v4168 = vmax.f32 %v4120, 0.0
        %v4169 = vmax.f32 %v4121, 0.0
        %v4170 = vmax.f32 %v4122, 0.0
        %v4171 = vmax.f32 %v4123, 0.0
        %v4172 = vmax.f32 %v4124, 0.0
        %v4173 = vmax.f32 %v4125, 0.0
        %v4174 = vmax.f32 %v4126, 0.0
        %v4175 = vmax.f32 %v4127, 0.0
        %v4176 = vmax.f32 %v4128, 0.0
        %v4177 = vmax.f32 %v4129, 0.0
        %v4178 = vmax.f32 %v4130, 0.0
        %v4179 = vmax.f32 %v4131, 0.0
        %v4180 = vmax.f32 %v4132, 0.0
        %v4181 = vmax.f32 %v4133, 0.0
        %v4182 = vmax.f32 %v4134, 0.0
        %v4183 = vmax.f32 %v4135, 0.0
        %v4184 = vmax.f32 %v4136, 0.0
        %v4185 = vmax.f32 %v4137, 0.0
        %v4186 = vmax.f32 %v4138, 0.0
        %4187 = vst [vmem:[%s356] sm:$0xff] %v4139
        %4188 = vst [vmem:[%s356 + $0x8] sm:$0xff] %v4140
        %4189 = vst [vmem:[%s356 + $0x10] sm:$0xff] %v4141
        %4190 = vst [vmem:[%s356 + $0x18] sm:$0xff] %v4142
        %4191 = vst [vmem:[%s356 + $0x20] sm:$0xff] %v4143
        %4192 = vst [vmem:[%s356 + $0x28] sm:$0xff] %v4144
        %4193 = vst [vmem:[%s356 + $0x30] sm:$0xff] %v4145
        %4194 = vst [vmem:[%s356 + $0x38] sm:$0xff] %v4146
        %4195 = vst [vmem:[%s356 + $0x40] sm:$0xff] %v4147
        %4196 = vst [vmem:[%s356 + $0x48] sm:$0xff] %v4148
        %4197 = vst [vmem:[%s356 + $0x50] sm:$0xff] %v4149
        %4198 = vst [vmem:[%s356 + $0x58] sm:$0xff] %v4150
        %4199 = vst [vmem:[%s356 + $0x60] sm:$0xff] %v4151
        %4200 = vst [vmem:[%s356 + $0x68] sm:$0xff] %v4152
        %4201 = vst [vmem:[%s356 + $0x70] sm:$0xff] %v4153
        %4202 = vst [vmem:[%s356 + $0x78] sm:$0xff] %v4154
        %4203 = vst [vmem:[%s356 + $0x80] sm:$0xff] %v4155
        %4204 = vst [vmem:[%s356 + $0x88] sm:$0xff] %v4156
        %4205 = vst [vmem:[%s356 + $0x90] sm:$0xff] %v4157
        %4206 = vst [vmem:[%s356 + $0x98] sm:$0xff] %v4158
        %4207 = vst [vmem:[%s356 + $0xa0] sm:$0xff] %v4159
        %4208 = vst [vmem:[%s356 + $0xa8] sm:$0xff] %v4160
        %4209 = vst [vmem:[%s356 + $0xb0] sm:$0xff] %v4161
        %4210 = vst [vmem:[%s356 + $0xb8] sm:$0xff] %v4162
        %4211 = vst [vmem:[%s356 + $0xc0] sm:$0xff] %v4163
        %4212 = vst [vmem:[%s356 + $0xc8] sm:$0xff] %v4164
        %4213 = vst [vmem:[%s356 + $0xd0] sm:$0xff] %v4165
        %4214 = vst [vmem:[%s356 + $0xd8] sm:$0xff] %v4166
        %4215 = vst [vmem:[%s356 + $0xe0] sm:$0xff] %v4167
        %4216 = vst [vmem:[%s356 + $0xe8] sm:$0xff] %v4168
        %4217 = vst [vmem:[%s356 + $0xf0] sm:$0xff] %v4169
        %4218 = vst [vmem:[%s356 + $0xf8] sm:$0xff] %v4170
        %4219 = vst [vmem:[%s356 + $0x100] sm:$0xff] %v4171
        %4220 = vst [vmem:[%s356 + $0x108] sm:$0xff] %v4172
        %4221 = vst [vmem:[%s356 + $0x110] sm:$0xff] %v4173
        %4222 = vst [vmem:[%s356 + $0x118] sm:$0xff] %v4174
        %4223 = vst [vmem:[%s356 + $0x120] sm:$0xff] %v4175
        %4224 = vst [vmem:[%s356 + $0x128] sm:$0xff] %v4176
        %4225 = vst [vmem:[%s356 + $0x130] sm:$0xff] %v4177
        %4226 = vst [vmem:[%s356 + $0x138] sm:$0xff] %v4178
        %4227 = vst [vmem:[%s356 + $0x140] sm:$0xff] %v4179
        %4228 = vst [vmem:[%s356 + $0x148] sm:$0xff] %v4180
        %4229 = vst [vmem:[%s356 + $0x150] sm:$0xff] %v4181
        %4230 = vst [vmem:[%s356 + $0x158] sm:$0xff] %v4182
        %4231 = vst [vmem:[%s356 + $0x160] sm:$0xff] %v4183
        %4232 = vst [vmem:[%s356 + $0x168] sm:$0xff] %v4184
        %4233 = vst [vmem:[%s356 + $0x170] sm:$0xff] %v4185
        %4234 = vst [vmem:[%s356 + $0x178] sm:$0xff] %v4186
        %s4235 = sand.u32 %s219, 1
        %s4236 = scalar_lea.sflag [#allocation4], %s4235
        %s4237 = sand.u32 %s219, 1
        %s4238 = smul.addr %s4237, 384
        %s4239 = scalar_lea.vmem [#allocation8], %s4238
        // Predicated region
        $region65: #{tpu_custom_call.1} parent=51 // pred_check
          %p4240 = pneg %p229
        $region66: #{tpu_custom_call.1} parent=51 // pred_check_branch
          %4242 = sbr.rel (%p4240) target = $region68
        $region67: #{tpu_custom_call.1} parent=51 // pred_region
          %s4243 = smul.u32 48, %s29
          %s4245 = ssub.s32 6144, 6144
          %4246 = vsyncadd %s4236, %s4245
          %s4247 = smul.addr %s28, 48
          %s4248 = sadd.s32 %s4243, %s4247
          %s4249 = smul.addr %s4248, 128
          %s4250 = scalar_lea.hbm %s8, %s4249
          %s4251 = sshll.u32 %s4239, 4
          %s4252 = int_to_ptr.vmem [resolvable:$true] %s4251
          %4257 = dma.vmem_to_hbm [thread:$0]  %s4252, 6144, %s4250, %s4236, 128, 128, 8
        $region68: #{tpu_custom_call.1} parent=51 // pred_fallthru
          _
      $region52: #{tpu_custom_call.1} parent=5 // pred_fallthru
        _
      %p4258 = scmp.le.s32.totalorder 2, %s19
      // Predicated region
      $region69: #{tpu_custom_call.1} parent=5 // pred_check
        %p4259 = pneg %p4258
      $region70: #{tpu_custom_call.1} parent=5 // pred_check_branch
        %4261 = sbr.rel (%p4259) target = $region72
      $region71: #{tpu_custom_call.1} parent=5 // pred_region
        %s4262 = ssub.s32 %s19, 2
        // Predicated region
        $region73: #{tpu_custom_call.1} parent=71 // pred_check
          %p4263 = pneg %p235
        $region74: #{tpu_custom_call.1} parent=71 // pred_check_branch
          %4265 = sbr.rel (%p4263) target = $region76
        $region75: #{tpu_custom_call.1} parent=71 // pred_region
          %s4266 = sand.u32 %s220, 1
          %s4267 = scalar_lea.sflag [#allocation4], %s4266
          %s4268 = sand.u32 %s220, 1
          %s4269 = smul.addr %s4268, 384
          %s4270 = scalar_lea.vmem [#allocation8], %s4269
          %4271 = dma.done %s4267, 6144
        $region76: #{tpu_custom_call.1} parent=71 // pred_fallthru
          _
      $region72: #{tpu_custom_call.1} parent=5 // pred_fallthru
        _
    $region6: #{tpu_custom_call.1} parent=1 // loop_footer
      %s23 = sadd.s32 1, %s19
    $region7: #{tpu_custom_call.1} parent=1 // loop_footer_branch
      %18 = sbr.rel target = $region3
    $region8: #{tpu_custom_call.1} parent=1 // loop_exit
      _
    %4272 = vsyncpa [#allocation3], 1
    %s4273 = scalar_lea.sflag [#allocation3], 1
    %4274 = vsyncpa %s4273, 1
    %4275 = vsyncpa [#allocation6], 1
    %4276 = vsyncpa [#allocation4], 1
    %s4277 = scalar_lea.sflag [#allocation4], 1
    %4278 = vsyncpa %s4277, 1

</llo_original>
